<compile_context>
chip_gen: v6e
topology: v6e:2x2x1
jax: 0.10.0
libtpu: 0.0.40
codegen_flags: <defaults>
</compile_context>

<pallas_src>
import functools

import jax
import jax.numpy as jnp
from jax import lax
from jax.experimental import pallas as pl
from jax.experimental.pallas import tpu as pltpu


def bottleneck_kernel(x_ref, w1_ref, s1_ref, b1_ref,
                      w2_ref, s2_ref, b2_ref,
                      w3_ref, s3_ref, b3_ref,
                      o_ref, *scratch, W, R, BI, wide_k):
    """One grid step = BI images, flat (BI*H*W, C) layout, channels on lanes."""
    sbuf_ref = scratch[0]                       # (R + 2*(W+1), P) f32 staging
    tbuf_ref = scratch[1] if wide_k else None   # (R, 9P) bf16 im2col (if used)

    C = x_ref.shape[2]
    P = w1_ref.shape[1]
    pad = W + 1                                 # row halo covers |dy*W + dx|

    x = x_ref[0]                                # (M, C) f32, M = BI*R
    xb = x.astype(jnp.bfloat16)

    # ---- conv1 (1x1) + bn1 + relu : one bf16 MXU matmul over all BI images --
    h1 = jnp.dot(xb, w1_ref[...], preferred_element_type=jnp.float32)
    h1 = jnp.maximum(h1 * s1_ref[...] + b1_ref[...], 0.0)          # (M, P) f32

    # Column-boundary masks for the dx = -1 / +1 taps, generated in-kernel.
    col = jax.lax.broadcasted_iota(jnp.int32, (R, 1), 0) % W
    ml = (col != 0).astype(jnp.float32)          # 0 where out_x == 0
    mr = (col != W - 1).astype(jnp.float32)      # 0 where out_x == W-1

    zero_halo = jnp.zeros((pad, P), jnp.float32)  # hoisted out of the loops

    for b in range(BI):
        # ---- conv2 (3x3, pad=1, stride=1) via row-shifted staging buffer ----
        sbuf_ref[0:pad, :] = zero_halo                         # top halo
        sbuf_ref[pad + R:2 * pad + R, :] = zero_halo           # bottom halo
        sbuf_ref[pad:pad + R, :] = h1[b * R:(b + 1) * R, :]

        if wide_k:
            # bf16 im2col-in-K with 128-lane-aligned tap slots, one wide-K dot.
            for ky in range(3):
                for kx in range(3):
                    k = ky * 3 + kx
                    delta = (ky - 1) * W + (kx - 1)
                    v = sbuf_ref[pad + delta:pad + delta + R, :]
                    if kx == 0:
                        v = v * ml
                    elif kx == 2:
                        v = v * mr
                    tbuf_ref[:, k * P:(k + 1) * P] = v.astype(jnp.bfloat16)
            h2 = jnp.dot(tbuf_ref[...], w2_ref[...],
                         preferred_element_type=jnp.float32)
        else:
            # planes < 128: 9 accumulating short-K matmuls, no im2col buffer.
            h2 = jnp.zeros((R, P), jnp.float32)
            for ky in range(3):
                for kx in range(3):
                    k = ky * 3 + kx
                    delta = (ky - 1) * W + (kx - 1)
                    v = sbuf_ref[pad + delta:pad + delta + R, :]
                    if kx == 0:
                        v = v * ml
                    elif kx == 2:
                        v = v * mr
                    h2 = h2 + jnp.dot(v.astype(jnp.bfloat16),
                                      w2_ref[k * P:(k + 1) * P, :],
                                      preferred_element_type=jnp.float32)

        h2 = jnp.maximum(h2 * s2_ref[...] + b2_ref[...], 0.0)     # (R, P) f32

        # ---- conv3 (1x1) + bn3 + residual add + relu, lane-dense store ------
        h3 = jnp.dot(h2.astype(jnp.bfloat16), w3_ref[...],
                     preferred_element_type=jnp.float32)
        h3 = h3 * s3_ref[...] + b3_ref[...]
        o_ref[0, b * R:(b + 1) * R, :] = jnp.maximum(
            h3 + x[b * R:(b + 1) * R, :], 0.0)


def _pick_images_per_step(N, R, target_rows=1024):
    """Largest divisor of N with BI*R <= target_rows (amortize step overhead)."""
    cap = max(1, min(N, target_rows // max(R, 1)))
    for cand in range(cap, 0, -1):
        if N % cand == 0:
            return cand
    return 1


def bottleneck_pallas(x_nhwc, params):
    """x_nhwc: (N, H, W, C) float32 with C == planes*4. Returns (N, H, W, C)."""
    (w1, s1, b1, w2f, s2, b2, w3, s3, b3) = params
    N, H, W, C = x_nhwc.shape
    P = w1.shape[1]
    R = H * W
    assert w3.shape[1] == C, "identity residual requires inplanes == planes * 4"

    BI = _pick_images_per_step(N, R)
    M = BI * R
    x2 = x_nhwc.reshape(N // BI, M, C)          # free view of NHWC-contiguous x

    wide_k = (P % 128 == 0)                     # lane-aligned tap slots only

    def full(a):
        return pl.BlockSpec(a.shape, lambda n, _nd=a.ndim: (0,) * _nd)

    scratch = [pltpu.VMEM((R + 2 * (W + 1), P), jnp.float32)]   # row-padded h1
    if wide_k:
        scratch.append(pltpu.VMEM((R, 9 * P), jnp.bfloat16))    # bf16 im2col

    # --- VMEM accounting: blocks (double-buffered) + scratch + temporaries ---
    f32b, bf16b = 4, 2
    need = 2 * 2 * M * C * f32b                                  # x + out blocks
    need += 2 * ((C * P + 9 * P * P + P * C) * bf16b            # weights
                 + (4 * P + 2 * C) * f32b)                       # BN scale/bias
    need += (R + 2 * (W + 1)) * P * f32b                         # sbuf
    if wide_k:
        need += R * 9 * P * bf16b                                # tbuf
    need += M * (C * bf16b + 3 * P * f32b + 2 * C * f32b)        # rough temps
    try:
        phys = pltpu.get_tpu_info().vmem_capacity_bytes
    except Exception:                                            # pragma: no cover
        phys = 64 * 1024 * 1024                                  # safe on all gens
    vmem_limit = int(min(max(need * 3 // 2, 32 * 1024 * 1024), phys * 9 // 10))

    grid_spec = pltpu.PrefetchScalarGridSpec(
        num_scalar_prefetch=0,
        grid=(N // BI,),
        in_specs=[
            pl.BlockSpec((1, M, C), lambda n: (n, 0, 0)),        # x (flat NHWC)
            full(w1), full(s1), full(b1),                        # conv1 / bn1
            full(w2f), full(s2), full(b2),                       # conv2 / bn2
            full(w3), full(s3), full(b3),                        # conv3 / bn3
        ],
        out_specs=pl.BlockSpec((1, M, C), lambda n: (n, 0, 0)),
        scratch_shapes=scratch,
    )

    out = pl.pallas_call(
        functools.partial(bottleneck_kernel, W=W, R=R, BI=BI, wide_k=wide_k),
        out_shape=jax.ShapeDtypeStruct((N // BI, M, C), jnp.float32),
        grid_spec=grid_spec,
        compiler_params=pltpu.CompilerParams(
            dimension_semantics=("parallel",),
            vmem_limit_bytes=vmem_limit,
        ),
    )(x2, w1, s1, b1, w2f, s2, b2, w3, s3, b3)

    return out.reshape(N, H, W, C)


def make_params(key, inplanes, planes, eps=1e-5):
    """Synthetic weights. w1: (Cin,P); w2: (3,3,P,P) HWIO; w3: (P,4P).
       BN (inference mode) folded into per-channel scale/bias."""
    Cout = planes * 4
    ks = jax.random.split(key, 6)

    def bn_fold(k, c):
        kg, kb, km, kv = jax.random.split(k, 4)
        gamma = jax.random.normal(kg, (c,)) * 0.1 + 1.0
        beta = jax.random.normal(kb, (c,)) * 0.1
        mean = jax.random.normal(km, (c,)) * 0.1
        var = jnp.abs(jax.random.normal(kv, (c,))) * 0.1 + 1.0
        scale = (gamma / jnp.sqrt(var + eps)).astype(jnp.float32)
        bias = (beta - mean * scale).astype(jnp.float32)
        return scale, bias

    w1 = (jax.random.normal(ks[0], (inplanes, planes))
          * (inplanes ** -0.5)).astype(jnp.float32)
    w2 = (jax.random.normal(ks[1], (3, 3, planes, planes))
          * ((9 * planes) ** -0.5)).astype(jnp.float32)
    w3 = (jax.random.normal(ks[2], (planes, Cout))
          * (planes ** -0.5)).astype(jnp.float32)
    s1, b1 = bn_fold(ks[3], planes)
    s2, b2 = bn_fold(ks[4], planes)
    s3, b3 = bn_fold(ks[5], Cout)
    return dict(w1=w1, w2=w2, w3=w3, s1=s1, b1=b1, s2=s2, b2=b2, s3=s3, b3=b3)


def prepare_kernel_params(raw):
    """bf16 matmul weights (w2 flattened to (9P, P), tap-major along K);
       f32 (1, C)-shaped folded BN scale/bias."""
    P = raw["w1"].shape[1]
    to2d = lambda v: v.reshape(1, -1).astype(jnp.float32)
    return (raw["w1"].astype(jnp.bfloat16), to2d(raw["s1"]), to2d(raw["b1"]),
            raw["w2"].reshape(9 * P, P).astype(jnp.bfloat16),
            to2d(raw["s2"]), to2d(raw["b2"]),
            raw["w3"].astype(jnp.bfloat16), to2d(raw["s3"]), to2d(raw["b3"]))


def bottleneck_reference(x_nhwc, raw):
    """Pure-JAX f32 reference (NHWC convs) matching the PyTorch forward."""
    dn = ("NHWC", "HWIO", "NHWC")
    conv = functools.partial(lax.conv_general_dilated,
                             window_strides=(1, 1), dimension_numbers=dn)
    h = conv(x_nhwc, raw["w1"][None, None], padding="VALID")
    h = jnp.maximum(h * raw["s1"] + raw["b1"], 0.0)
    h = conv(h, raw["w2"], padding=((1, 1), (1, 1)))
    h = jnp.maximum(h * raw["s2"] + raw["b2"], 0.0)
    h = conv(h, raw["w3"][None, None], padding="VALID")
    h = h * raw["s3"] + raw["b3"]
    return jnp.maximum(h + x_nhwc, 0.0)


if __name__ == "__main__":
    key = jax.random.PRNGKey(0)

    configs = [
        # (N, inplanes, planes, H, W), inplanes == planes*4 (identity residual)
        (2, 32, 8, 16, 16),     # planes < 128  -> 9 accumulating-matmul path
        (2, 512, 128, 8, 8),    # planes % 128 == 0 -> bf16 im2col wide-K path
    ]
    for idx, (N, inplanes, planes, H, W) in enumerate(configs):
        kx, kp, key = jax.random.split(key, 3)
        x = jax.random.normal(kx, (N, H, W, inplanes), dtype=jnp.float32)  # NHWC

        raw = make_params(kp, inplanes, planes)
        kparams = prepare_kernel_params(raw)

        out = jax.block_until_ready(bottleneck_pallas(x, kparams))
        ref = jax.block_until_ready(bottleneck_reference(x, raw))

        assert out.shape == (N, H, W, inplanes)
        max_err = float(jnp.max(jnp.abs(out - ref)))
        # bf16 matmul inputs vs f32 reference -> small rounding differences only.
        assert jnp.allclose(out, ref, rtol=5e-2, atol=5e-2), (idx, max_err)

    print("KERNEL_OK")
</pallas_src>

<mosaic_0001>
module attributes {stable_mosaic.version = 11 : i64} {
  func.func @bottleneck_kernel(%arg0: i32, %arg1: memref<1x512x32xf32, #tpu.memory_space<vmem>>, %arg2: memref<32x8xbf16, #tpu.memory_space<vmem>>, %arg3: memref<1x8xf32, #tpu.memory_space<vmem>>, %arg4: memref<1x8xf32, #tpu.memory_space<vmem>>, %arg5: memref<72x8xbf16, #tpu.memory_space<vmem>>, %arg6: memref<1x8xf32, #tpu.memory_space<vmem>>, %arg7: memref<1x8xf32, #tpu.memory_space<vmem>>, %arg8: memref<8x32xbf16, #tpu.memory_space<vmem>>, %arg9: memref<1x32xf32, #tpu.memory_space<vmem>>, %arg10: memref<1x32xf32, #tpu.memory_space<vmem>>, %arg11: memref<1x512x32xf32, #tpu.memory_space<vmem>>, %arg12: memref<290x8xf32, #tpu.memory_space<vmem>>) attributes {dimension_semantics = [#tpu.dimension_semantics<parallel>], iteration_bounds = array<i64: 1>, scalar_prefetch = 0 : i64, scratch_operands = 1 : i64, tpu.core_type = #tpu.core_type<tc>, window_params = [{transform_indices = @transform_0, window_bounds = array<i64: 1, 512, 32>}, {pipeline_mode = #tpu.pipeline_mode<synchronous>, transform_indices = @transform_1, window_bounds = array<i64: 32, 8>}, {pipeline_mode = #tpu.pipeline_mode<synchronous>, transform_indices = @transform_2, window_bounds = array<i64: 1, 8>}, {pipeline_mode = #tpu.pipeline_mode<synchronous>, transform_indices = @transform_3, window_bounds = array<i64: 1, 8>}, {pipeline_mode = #tpu.pipeline_mode<synchronous>, transform_indices = @transform_4, window_bounds = array<i64: 72, 8>}, {pipeline_mode = #tpu.pipeline_mode<synchronous>, transform_indices = @transform_5, window_bounds = array<i64: 1, 8>}, {pipeline_mode = #tpu.pipeline_mode<synchronous>, transform_indices = @transform_6, window_bounds = array<i64: 1, 8>}, {pipeline_mode = #tpu.pipeline_mode<synchronous>, transform_indices = @transform_7, window_bounds = array<i64: 8, 32>}, {pipeline_mode = #tpu.pipeline_mode<synchronous>, transform_indices = @transform_8, window_bounds = array<i64: 1, 32>}, {pipeline_mode = #tpu.pipeline_mode<synchronous>, transform_indices = @transform_9, window_bounds = array<i64: 1, 32>}, {transform_indices = @transform_10, window_bounds = array<i64: 1, 512, 32>}]} {
    %c0 = arith.constant 0 : index
    %c0_0 = arith.constant 0 : index
    %c0_1 = arith.constant 0 : index
    %0 = vector.load %arg1[%c0, %c0_0, %c0_1] : memref<1x512x32xf32, #tpu.memory_space<vmem>>, vector<1x512x32xf32>
    %1 = vector.shape_cast %0 : vector<1x512x32xf32> to vector<512x32xf32>
    %2 = arith.truncf %1 : vector<512x32xf32> to vector<512x32xbf16>
    %c0_2 = arith.constant 0 : index
    %c0_3 = arith.constant 0 : index
    %3 = vector.load %arg2[%c0_2, %c0_3] : memref<32x8xbf16, #tpu.memory_space<vmem>>, vector<32x8xbf16>
    %cst = arith.constant dense<0.000000e+00> : vector<512x8xf32>
    %4 = tpu.matmul %2, %3, %cst {dimension_numbers = #tpu.dot_dimension_numbers<[1], [0], [0], [1], [0, 0, 1, 1], [], []>} : vector<512x32xbf16>, vector<32x8xbf16>, vector<512x8xf32> -> vector<512x8xf32>
    %c0_4 = arith.constant 0 : index
    %c0_5 = arith.constant 0 : index
    %5 = vector.load %arg3[%c0_4, %c0_5] : memref<1x8xf32, #tpu.memory_space<vmem>>, vector<1x8xf32>
    %6 = vector.broadcast %5 : vector<1x8xf32> to vector<512x8xf32>
    %7 = arith.mulf %4, %6 : vector<512x8xf32>
    %c0_6 = arith.constant 0 : index
    %c0_7 = arith.constant 0 : index
    %8 = vector.load %arg4[%c0_6, %c0_7] : memref<1x8xf32, #tpu.memory_space<vmem>>, vector<1x8xf32>
    %9 = vector.broadcast %8 : vector<1x8xf32> to vector<512x8xf32>
    %10 = arith.addf %7, %9 : vector<512x8xf32>
    %cst_8 = arith.constant 0.000000e+00 : f32
    %11 = vector.broadcast %cst_8 : f32 to vector<512x8xf32>
    %12 = arith.maximumf %10, %11 : vector<512x8xf32>
    %13 = tpu.iota {dimensions = array<i32: 0>} : vector<256x1xi32>
    %c16_i32 = arith.constant 16 : i32
    %c0_i32 = arith.constant 0 : i32
    %14 = arith.cmpi eq, %c16_i32, %c0_i32 : i32
    %c1_i32 = arith.constant 1 : i32
    %15 = arith.select %14, %c1_i32, %c16_i32 : i32
    %16 = vector.broadcast %15 : i32 to vector<256x1xi32>
    %17 = arith.remsi %13, %16 : vector<256x1xi32>
    %c0_i32_9 = arith.constant 0 : i32
    %18 = vector.broadcast %c0_i32_9 : i32 to vector<256x1xi32>
    %19 = arith.cmpi ne, %17, %18 : vector<256x1xi32>
    %c0_i32_10 = arith.constant 0 : i32
    %20 = vector.broadcast %c0_i32_10 : i32 to vector<256x1xi32>
    %21 = arith.cmpi slt, %17, %20 : vector<256x1xi32>
    %c0_i32_11 = arith.constant 0 : i32
    %22 = arith.cmpi slt, %15, %c0_i32_11 : i32
    %23 = vector.broadcast %22 : i1 to vector<256x1xi1>
    %24 = vector.broadcast %23 : vector<256x1xi1> to vector<256x1xi1>
    %25 = arith.xori %21, %24 : vector<256x1xi1>
    %26 = arith.andi %25, %19 : vector<256x1xi1>
    %27 = vector.broadcast %15 : i32 to vector<256x1xi32>
    %28 = arith.addi %17, %27 : vector<256x1xi32>
    %29 = arith.select %26, %28, %17 : vector<256x1xi1>, vector<256x1xi32>
    %c0_i32_12 = arith.constant 0 : i32
    %30 = vector.broadcast %c0_i32_12 : i32 to vector<256x1xi32>
    %31 = arith.cmpi ne, %29, %30 : vector<256x1xi32>
    %32 = arith.extui %31 : vector<256x1xi1> to vector<256x1xi32>
    %33 = arith.sitofp %32 : vector<256x1xi32> to vector<256x1xf32>
    %c15_i32 = arith.constant 15 : i32
    %34 = vector.broadcast %c15_i32 : i32 to vector<256x1xi32>
    %35 = arith.cmpi ne, %29, %34 : vector<256x1xi32>
    %36 = arith.extui %35 : vector<256x1xi1> to vector<256x1xi32>
    %37 = arith.sitofp %36 : vector<256x1xi32> to vector<256x1xf32>
    %cst_13 = arith.constant 0.000000e+00 : f32
    %38 = vector.broadcast %cst_13 : f32 to vector<17x8xf32>
    %c0_14 = arith.constant 0 : index
    %c0_15 = arith.constant 0 : index
    %39 = vector.load %arg12[%c0_14, %c0_15] : memref<290x8xf32, #tpu.memory_space<vmem>>, vector<17x8xf32>
    tpu.vector_store %arg12[%c0_14, %c0_15], %38 {strides = array<i32>} : memref<290x8xf32, #tpu.memory_space<vmem>>, vector<17x8xf32>,
    %c273 = arith.constant 273 : index
    %c0_16 = arith.constant 0 : index
    %40 = vector.load %arg12[%c273, %c0_16] : memref<290x8xf32, #tpu.memory_space<vmem>>, vector<17x8xf32>
    tpu.vector_store %arg12[%c273, %c0_16], %38 {strides = array<i32>} : memref<290x8xf32, #tpu.memory_space<vmem>>, vector<17x8xf32>,
    %41 = vector.extract_strided_slice %12 {offsets = [0, 0], sizes = [256, 8], strides = [1, 1]} : vector<512x8xf32> to vector<256x8xf32>
    %c17 = arith.constant 17 : index
    %c0_17 = arith.constant 0 : index
    %42 = vector.load %arg12[%c17, %c0_17] : memref<290x8xf32, #tpu.memory_space<vmem>>, vector<256x8xf32>
    tpu.vector_store %arg12[%c17, %c0_17], %41 {strides = array<i32>} : memref<290x8xf32, #tpu.memory_space<vmem>>, vector<256x8xf32>,
    %cst_18 = arith.constant 0.000000e+00 : f32
    %43 = vector.broadcast %cst_18 : f32 to vector<256x8xf32>
    %c0_19 = arith.constant 0 : index
    %c0_20 = arith.constant 0 : index
    %44 = vector.load %arg12[%c0_19, %c0_20] : memref<290x8xf32, #tpu.memory_space<vmem>>, vector<256x8xf32>
    %45 = vector.broadcast %33 : vector<256x1xf32> to vector<256x8xf32>
    %46 = arith.mulf %44, %45 : vector<256x8xf32>
    %47 = arith.truncf %46 : vector<256x8xf32> to vector<256x8xbf16>
    %c0_21 = arith.constant 0 : index
    %c0_22 = arith.constant 0 : index
    %48 = vector.load %arg5[%c0_21, %c0_22] : memref<72x8xbf16, #tpu.memory_space<vmem>>, vector<8x8xbf16>
    %cst_23 = arith.constant dense<0.000000e+00> : vector<256x8xf32>
    %49 = tpu.matmul %47, %48, %cst_23 {dimension_numbers = #tpu.dot_dimension_numbers<[1], [0], [0], [1], [0, 0, 1, 1], [], []>} : vector<256x8xbf16>, vector<8x8xbf16>, vector<256x8xf32> -> vector<256x8xf32>
    %50 = arith.addf %43, %49 : vector<256x8xf32>
    %c1 = arith.constant 1 : index
    %c0_24 = arith.constant 0 : index
    %51 = vector.load %arg12[%c1, %c0_24] : memref<290x8xf32, #tpu.memory_space<vmem>>, vector<256x8xf32>
    %52 = arith.truncf %51 : vector<256x8xf32> to vector<256x8xbf16>
    %c8 = arith.constant 8 : index
    %c0_25 = arith.constant 0 : index
    %53 = vector.load %arg5[%c8, %c0_25] : memref<72x8xbf16, #tpu.memory_space<vmem>>, vector<8x8xbf16>
    %cst_26 = arith.constant dense<0.000000e+00> : vector<256x8xf32>
    %54 = tpu.matmul %52, %53, %cst_26 {dimension_numbers = #tpu.dot_dimension_numbers<[1], [0], [0], [1], [0, 0, 1, 1], [], []>} : vector<256x8xbf16>, vector<8x8xbf16>, vector<256x8xf32> -> vector<256x8xf32>
    %55 = arith.addf %50, %54 : vector<256x8xf32>
    %c2 = arith.constant 2 : index
    %c0_27 = arith.constant 0 : index
    %56 = vector.load %arg12[%c2, %c0_27] : memref<290x8xf32, #tpu.memory_space<vmem>>, vector<256x8xf32>
    %57 = vector.broadcast %37 : vector<256x1xf32> to vector<256x8xf32>
    %58 = arith.mulf %56, %57 : vector<256x8xf32>
    %59 = arith.truncf %58 : vector<256x8xf32> to vector<256x8xbf16>
    %c16 = arith.constant 16 : index
    %c0_28 = arith.constant 0 : index
    %60 = vector.load %arg5[%c16, %c0_28] : memref<72x8xbf16, #tpu.memory_space<vmem>>, vector<8x8xbf16>
    %cst_29 = arith.constant dense<0.000000e+00> : vector<256x8xf32>
    %61 = tpu.matmul %59, %60, %cst_29 {dimension_numbers = #tpu.dot_dimension_numbers<[1], [0], [0], [1], [0, 0, 1, 1], [], []>} : vector<256x8xbf16>, vector<8x8xbf16>, vector<256x8xf32> -> vector<256x8xf32>
    %62 = arith.addf %55, %61 : vector<256x8xf32>
    %c16_30 = arith.constant 16 : index
    %c0_31 = arith.constant 0 : index
    %63 = vector.load %arg12[%c16_30, %c0_31] : memref<290x8xf32, #tpu.memory_space<vmem>>, vector<256x8xf32>
    %64 = vector.broadcast %33 : vector<256x1xf32> to vector<256x8xf32>
    %65 = arith.mulf %63, %64 : vector<256x8xf32>
    %66 = arith.truncf %65 : vector<256x8xf32> to vector<256x8xbf16>
    %c24 = arith.constant 24 : index
    %c0_32 = arith.constant 0 : index
    %67 = vector.load %arg5[%c24, %c0_32] : memref<72x8xbf16, #tpu.memory_space<vmem>>, vector<8x8xbf16>
    %cst_33 = arith.constant dense<0.000000e+00> : vector<256x8xf32>
    %68 = tpu.matmul %66, %67, %cst_33 {dimension_numbers = #tpu.dot_dimension_numbers<[1], [0], [0], [1], [0, 0, 1, 1], [], []>} : vector<256x8xbf16>, vector<8x8xbf16>, vector<256x8xf32> -> vector<256x8xf32>
    %69 = arith.addf %62, %68 : vector<256x8xf32>
    %c17_34 = arith.constant 17 : index
    %c0_35 = arith.constant 0 : index
    %70 = vector.load %arg12[%c17_34, %c0_35] : memref<290x8xf32, #tpu.memory_space<vmem>>, vector<256x8xf32>
    %71 = arith.truncf %70 : vector<256x8xf32> to vector<256x8xbf16>
    %c32 = arith.constant 32 : index
    %c0_36 = arith.constant 0 : index
    %72 = vector.load %arg5[%c32, %c0_36] : memref<72x8xbf16, #tpu.memory_space<vmem>>, vector<8x8xbf16>
    %cst_37 = arith.constant dense<0.000000e+00> : vector<256x8xf32>
    %73 = tpu.matmul %71, %72, %cst_37 {dimension_numbers = #tpu.dot_dimension_numbers<[1], [0], [0], [1], [0, 0, 1, 1], [], []>} : vector<256x8xbf16>, vector<8x8xbf16>, vector<256x8xf32> -> vector<256x8xf32>
    %74 = arith.addf %69, %73 : vector<256x8xf32>
    %c18 = arith.constant 18 : index
    %c0_38 = arith.constant 0 : index
    %75 = vector.load %arg12[%c18, %c0_38] : memref<290x8xf32, #tpu.memory_space<vmem>>, vector<256x8xf32>
    %76 = vector.broadcast %37 : vector<256x1xf32> to vector<256x8xf32>
    %77 = arith.mulf %75, %76 : vector<256x8xf32>
    %78 = arith.truncf %77 : vector<256x8xf32> to vector<256x8xbf16>
    %c40 = arith.constant 40 : index
    %c0_39 = arith.constant 0 : index
    %79 = vector.load %arg5[%c40, %c0_39] : memref<72x8xbf16, #tpu.memory_space<vmem>>, vector<8x8xbf16>
    %cst_40 = arith.constant dense<0.000000e+00> : vector<256x8xf32>
    %80 = tpu.matmul %78, %79, %cst_40 {dimension_numbers = #tpu.dot_dimension_numbers<[1], [0], [0], [1], [0, 0, 1, 1], [], []>} : vector<256x8xbf16>, vector<8x8xbf16>, vector<256x8xf32> -> vector<256x8xf32>
    %81 = arith.addf %74, %80 : vector<256x8xf32>
    %c32_41 = arith.constant 32 : index
    %c0_42 = arith.constant 0 : index
    %82 = vector.load %arg12[%c32_41, %c0_42] : memref<290x8xf32, #tpu.memory_space<vmem>>, vector<256x8xf32>
    %83 = vector.broadcast %33 : vector<256x1xf32> to vector<256x8xf32>
    %84 = arith.mulf %82, %83 : vector<256x8xf32>
    %85 = arith.truncf %84 : vector<256x8xf32> to vector<256x8xbf16>
    %c48 = arith.constant 48 : index
    %c0_43 = arith.constant 0 : index
    %86 = vector.load %arg5[%c48, %c0_43] : memref<72x8xbf16, #tpu.memory_space<vmem>>, vector<8x8xbf16>
    %cst_44 = arith.constant dense<0.000000e+00> : vector<256x8xf32>
    %87 = tpu.matmul %85, %86, %cst_44 {dimension_numbers = #tpu.dot_dimension_numbers<[1], [0], [0], [1], [0, 0, 1, 1], [], []>} : vector<256x8xbf16>, vector<8x8xbf16>, vector<256x8xf32> -> vector<256x8xf32>
    %88 = arith.addf %81, %87 : vector<256x8xf32>
    %c33 = arith.constant 33 : index
    %c0_45 = arith.constant 0 : index
    %89 = vector.load %arg12[%c33, %c0_45] : memref<290x8xf32, #tpu.memory_space<vmem>>, vector<256x8xf32>
    %90 = arith.truncf %89 : vector<256x8xf32> to vector<256x8xbf16>
    %c56 = arith.constant 56 : index
    %c0_46 = arith.constant 0 : index
    %91 = vector.load %arg5[%c56, %c0_46] : memref<72x8xbf16, #tpu.memory_space<vmem>>, vector<8x8xbf16>
    %cst_47 = arith.constant dense<0.000000e+00> : vector<256x8xf32>
    %92 = tpu.matmul %90, %91, %cst_47 {dimension_numbers = #tpu.dot_dimension_numbers<[1], [0], [0], [1], [0, 0, 1, 1], [], []>} : vector<256x8xbf16>, vector<8x8xbf16>, vector<256x8xf32> -> vector<256x8xf32>
    %93 = arith.addf %88, %92 : vector<256x8xf32>
    %c34 = arith.constant 34 : index
    %c0_48 = arith.constant 0 : index
    %94 = vector.load %arg12[%c34, %c0_48] : memref<290x8xf32, #tpu.memory_space<vmem>>, vector<256x8xf32>
    %95 = vector.broadcast %37 : vector<256x1xf32> to vector<256x8xf32>
    %96 = arith.mulf %94, %95 : vector<256x8xf32>
    %97 = arith.truncf %96 : vector<256x8xf32> to vector<256x8xbf16>
    %c64 = arith.constant 64 : index
    %c0_49 = arith.constant 0 : index
    %98 = vector.load %arg5[%c64, %c0_49] : memref<72x8xbf16, #tpu.memory_space<vmem>>, vector<8x8xbf16>
    %cst_50 = arith.constant dense<0.000000e+00> : vector<256x8xf32>
    %99 = tpu.matmul %97, %98, %cst_50 {dimension_numbers = #tpu.dot_dimension_numbers<[1], [0], [0], [1], [0, 0, 1, 1], [], []>} : vector<256x8xbf16>, vector<8x8xbf16>, vector<256x8xf32> -> vector<256x8xf32>
    %100 = arith.addf %93, %99 : vector<256x8xf32>
    %c0_51 = arith.constant 0 : index
    %c0_52 = arith.constant 0 : index
    %101 = vector.load %arg6[%c0_51, %c0_52] : memref<1x8xf32, #tpu.memory_space<vmem>>, vector<1x8xf32>
    %102 = vector.broadcast %101 : vector<1x8xf32> to vector<256x8xf32>
    %103 = arith.mulf %100, %102 : vector<256x8xf32>
    %c0_53 = arith.constant 0 : index
    %c0_54 = arith.constant 0 : index
    %104 = vector.load %arg7[%c0_53, %c0_54] : memref<1x8xf32, #tpu.memory_space<vmem>>, vector<1x8xf32>
    %105 = vector.broadcast %104 : vector<1x8xf32> to vector<256x8xf32>
    %106 = arith.addf %103, %105 : vector<256x8xf32>
    %cst_55 = arith.constant 0.000000e+00 : f32
    %107 = vector.broadcast %cst_55 : f32 to vector<256x8xf32>
    %108 = arith.maximumf %106, %107 : vector<256x8xf32>
    %109 = arith.truncf %108 : vector<256x8xf32> to vector<256x8xbf16>
    %c0_56 = arith.constant 0 : index
    %c0_57 = arith.constant 0 : index
    %110 = vector.load %arg8[%c0_56, %c0_57] : memref<8x32xbf16, #tpu.memory_space<vmem>>, vector<8x32xbf16>
    %cst_58 = arith.constant dense<0.000000e+00> : vector<256x32xf32>
    %111 = tpu.matmul %109, %110, %cst_58 {dimension_numbers = #tpu.dot_dimension_numbers<[1], [0], [0], [1], [0, 0, 1, 1], [], []>} : vector<256x8xbf16>, vector<8x32xbf16>, vector<256x32xf32> -> vector<256x32xf32>
    %c0_59 = arith.constant 0 : index
    %c0_60 = arith.constant 0 : index
    %112 = vector.load %arg9[%c0_59, %c0_60] : memref<1x32xf32, #tpu.memory_space<vmem>>, vector<1x32xf32>
    %113 = vector.broadcast %112 : vector<1x32xf32> to vector<256x32xf32>
    %114 = arith.mulf %111, %113 : vector<256x32xf32>
    %c0_61 = arith.constant 0 : index
    %c0_62 = arith.constant 0 : index
    %115 = vector.load %arg10[%c0_61, %c0_62] : memref<1x32xf32, #tpu.memory_space<vmem>>, vector<1x32xf32>
    %116 = vector.broadcast %115 : vector<1x32xf32> to vector<256x32xf32>
    %117 = arith.addf %114, %116 : vector<256x32xf32>
    %118 = vector.extract_strided_slice %1 {offsets = [0, 0], sizes = [256, 32], strides = [1, 1]} : vector<512x32xf32> to vector<256x32xf32>
    %119 = arith.addf %117, %118 : vector<256x32xf32>
    %cst_63 = arith.constant 0.000000e+00 : f32
    %120 = vector.broadcast %cst_63 : f32 to vector<256x32xf32>
    %121 = arith.maximumf %119, %120 : vector<256x32xf32>
    %c0_64 = arith.constant 0 : index
    %c0_65 = arith.constant 0 : index
    %c0_66 = arith.constant 0 : index
    %122 = vector.load %arg11[%c0_64, %c0_65, %c0_66] : memref<1x512x32xf32, #tpu.memory_space<vmem>>, vector<1x256x32xf32>
    %123 = vector.shape_cast %122 : vector<1x256x32xf32> to vector<256x32xf32>
    %124 = vector.shape_cast %121 : vector<256x32xf32> to vector<1x256x32xf32>
    tpu.vector_store %arg11[%c0_64, %c0_65, %c0_66], %124 {strides = array<i32>} : memref<1x512x32xf32, #tpu.memory_space<vmem>>, vector<1x256x32xf32>,
    %c0_67 = arith.constant 0 : index
    %c0_68 = arith.constant 0 : index
    %125 = vector.load %arg12[%c0_67, %c0_68] : memref<290x8xf32, #tpu.memory_space<vmem>>, vector<17x8xf32>
    tpu.vector_store %arg12[%c0_67, %c0_68], %38 {strides = array<i32>} : memref<290x8xf32, #tpu.memory_space<vmem>>, vector<17x8xf32>,
    %c273_69 = arith.constant 273 : index
    %c0_70 = arith.constant 0 : index
    %126 = vector.load %arg12[%c273_69, %c0_70] : memref<290x8xf32, #tpu.memory_space<vmem>>, vector<17x8xf32>
    tpu.vector_store %arg12[%c273_69, %c0_70], %38 {strides = array<i32>} : memref<290x8xf32, #tpu.memory_space<vmem>>, vector<17x8xf32>,
    %127 = vector.extract_strided_slice %12 {offsets = [256, 0], sizes = [256, 8], strides = [1, 1]} : vector<512x8xf32> to vector<256x8xf32>
    %c17_71 = arith.constant 17 : index
    %c0_72 = arith.constant 0 : index
    %128 = vector.load %arg12[%c17_71, %c0_72] : memref<290x8xf32, #tpu.memory_space<vmem>>, vector<256x8xf32>
    tpu.vector_store %arg12[%c17_71, %c0_72], %127 {strides = array<i32>} : memref<290x8xf32, #tpu.memory_space<vmem>>, vector<256x8xf32>,
    %cst_73 = arith.constant 0.000000e+00 : f32
    %129 = vector.broadcast %cst_73 : f32 to vector<256x8xf32>
    %c0_74 = arith.constant 0 : index
    %c0_75 = arith.constant 0 : index
    %130 = vector.load %arg12[%c0_74, %c0_75] : memref<290x8xf32, #tpu.memory_space<vmem>>, vector<256x8xf32>
    %131 = vector.broadcast %33 : vector<256x1xf32> to vector<256x8xf32>
    %132 = arith.mulf %130, %131 : vector<256x8xf32>
    %133 = arith.truncf %132 : vector<256x8xf32> to vector<256x8xbf16>
    %c0_76 = arith.constant 0 : index
    %c0_77 = arith.constant 0 : index
    %134 = vector.load %arg5[%c0_76, %c0_77] : memref<72x8xbf16, #tpu.memory_space<vmem>>, vector<8x8xbf16>
    %cst_78 = arith.constant dense<0.000000e+00> : vector<256x8xf32>
    %135 = tpu.matmul %133, %134, %cst_78 {dimension_numbers = #tpu.dot_dimension_numbers<[1], [0], [0], [1], [0, 0, 1, 1], [], []>} : vector<256x8xbf16>, vector<8x8xbf16>, vector<256x8xf32> -> vector<256x8xf32>
    %136 = arith.addf %129, %135 : vector<256x8xf32>
    %c1_79 = arith.constant 1 : index
    %c0_80 = arith.constant 0 : index
    %137 = vector.load %arg12[%c1_79, %c0_80] : memref<290x8xf32, #tpu.memory_space<vmem>>, vector<256x8xf32>
    %138 = arith.truncf %137 : vector<256x8xf32> to vector<256x8xbf16>
    %c8_81 = arith.constant 8 : index
    %c0_82 = arith.constant 0 : index
    %139 = vector.load %arg5[%c8_81, %c0_82] : memref<72x8xbf16, #tpu.memory_space<vmem>>, vector<8x8xbf16>
    %cst_83 = arith.constant dense<0.000000e+00> : vector<256x8xf32>
    %140 = tpu.matmul %138, %139, %cst_83 {dimension_numbers = #tpu.dot_dimension_numbers<[1], [0], [0], [1], [0, 0, 1, 1], [], []>} : vector<256x8xbf16>, vector<8x8xbf16>, vector<256x8xf32> -> vector<256x8xf32>
    %141 = arith.addf %136, %140 : vector<256x8xf32>
    %c2_84 = arith.constant 2 : index
    %c0_85 = arith.constant 0 : index
    %142 = vector.load %arg12[%c2_84, %c0_85] : memref<290x8xf32, #tpu.memory_space<vmem>>, vector<256x8xf32>
    %143 = vector.broadcast %37 : vector<256x1xf32> to vector<256x8xf32>
    %144 = arith.mulf %142, %143 : vector<256x8xf32>
    %145 = arith.truncf %144 : vector<256x8xf32> to vector<256x8xbf16>
    %c16_86 = arith.constant 16 : index
    %c0_87 = arith.constant 0 : index
    %146 = vector.load %arg5[%c16_86, %c0_87] : memref<72x8xbf16, #tpu.memory_space<vmem>>, vector<8x8xbf16>
    %cst_88 = arith.constant dense<0.000000e+00> : vector<256x8xf32>
    %147 = tpu.matmul %145, %146, %cst_88 {dimension_numbers = #tpu.dot_dimension_numbers<[1], [0], [0], [1], [0, 0, 1, 1], [], []>} : vector<256x8xbf16>, vector<8x8xbf16>, vector<256x8xf32> -> vector<256x8xf32>
    %148 = arith.addf %141, %147 : vector<256x8xf32>
    %c16_89 = arith.constant 16 : index
    %c0_90 = arith.constant 0 : index
    %149 = vector.load %arg12[%c16_89, %c0_90] : memref<290x8xf32, #tpu.memory_space<vmem>>, vector<256x8xf32>
    %150 = vector.broadcast %33 : vector<256x1xf32> to vector<256x8xf32>
    %151 = arith.mulf %149, %150 : vector<256x8xf32>
    %152 = arith.truncf %151 : vector<256x8xf32> to vector<256x8xbf16>
    %c24_91 = arith.constant 24 : index
    %c0_92 = arith.constant 0 : index
    %153 = vector.load %arg5[%c24_91, %c0_92] : memref<72x8xbf16, #tpu.memory_space<vmem>>, vector<8x8xbf16>
    %cst_93 = arith.constant dense<0.000000e+00> : vector<256x8xf32>
    %154 = tpu.matmul %152, %153, %cst_93 {dimension_numbers = #tpu.dot_dimension_numbers<[1], [0], [0], [1], [0, 0, 1, 1], [], []>} : vector<256x8xbf16>, vector<8x8xbf16>, vector<256x8xf32> -> vector<256x8xf32>
    %155 = arith.addf %148, %154 : vector<256x8xf32>
    %c17_94 = arith.constant 17 : index
    %c0_95 = arith.constant 0 : index
    %156 = vector.load %arg12[%c17_94, %c0_95] : memref<290x8xf32, #tpu.memory_space<vmem>>, vector<256x8xf32>
    %157 = arith.truncf %156 : vector<256x8xf32> to vector<256x8xbf16>
    %c32_96 = arith.constant 32 : index
    %c0_97 = arith.constant 0 : index
    %158 = vector.load %arg5[%c32_96, %c0_97] : memref<72x8xbf16, #tpu.memory_space<vmem>>, vector<8x8xbf16>
    %cst_98 = arith.constant dense<0.000000e+00> : vector<256x8xf32>
    %159 = tpu.matmul %157, %158, %cst_98 {dimension_numbers = #tpu.dot_dimension_numbers<[1], [0], [0], [1], [0, 0, 1, 1], [], []>} : vector<256x8xbf16>, vector<8x8xbf16>, vector<256x8xf32> -> vector<256x8xf32>
    %160 = arith.addf %155, %159 : vector<256x8xf32>
    %c18_99 = arith.constant 18 : index
    %c0_100 = arith.constant 0 : index
    %161 = vector.load %arg12[%c18_99, %c0_100] : memref<290x8xf32, #tpu.memory_space<vmem>>, vector<256x8xf32>
    %162 = vector.broadcast %37 : vector<256x1xf32> to vector<256x8xf32>
    %163 = arith.mulf %161, %162 : vector<256x8xf32>
    %164 = arith.truncf %163 : vector<256x8xf32> to vector<256x8xbf16>
    %c40_101 = arith.constant 40 : index
    %c0_102 = arith.constant 0 : index
    %165 = vector.load %arg5[%c40_101, %c0_102] : memref<72x8xbf16, #tpu.memory_space<vmem>>, vector<8x8xbf16>
    %cst_103 = arith.constant dense<0.000000e+00> : vector<256x8xf32>
    %166 = tpu.matmul %164, %165, %cst_103 {dimension_numbers = #tpu.dot_dimension_numbers<[1], [0], [0], [1], [0, 0, 1, 1], [], []>} : vector<256x8xbf16>, vector<8x8xbf16>, vector<256x8xf32> -> vector<256x8xf32>
    %167 = arith.addf %160, %166 : vector<256x8xf32>
    %c32_104 = arith.constant 32 : index
    %c0_105 = arith.constant 0 : index
    %168 = vector.load %arg12[%c32_104, %c0_105] : memref<290x8xf32, #tpu.memory_space<vmem>>, vector<256x8xf32>
    %169 = vector.broadcast %33 : vector<256x1xf32> to vector<256x8xf32>
    %170 = arith.mulf %168, %169 : vector<256x8xf32>
    %171 = arith.truncf %170 : vector<256x8xf32> to vector<256x8xbf16>
    %c48_106 = arith.constant 48 : index
    %c0_107 = arith.constant 0 : index
    %172 = vector.load %arg5[%c48_106, %c0_107] : memref<72x8xbf16, #tpu.memory_space<vmem>>, vector<8x8xbf16>
    %cst_108 = arith.constant dense<0.000000e+00> : vector<256x8xf32>
    %173 = tpu.matmul %171, %172, %cst_108 {dimension_numbers = #tpu.dot_dimension_numbers<[1], [0], [0], [1], [0, 0, 1, 1], [], []>} : vector<256x8xbf16>, vector<8x8xbf16>, vector<256x8xf32> -> vector<256x8xf32>
    %174 = arith.addf %167, %173 : vector<256x8xf32>
    %c33_109 = arith.constant 33 : index
    %c0_110 = arith.constant 0 : index
    %175 = vector.load %arg12[%c33_109, %c0_110] : memref<290x8xf32, #tpu.memory_space<vmem>>, vector<256x8xf32>
    %176 = arith.truncf %175 : vector<256x8xf32> to vector<256x8xbf16>
    %c56_111 = arith.constant 56 : index
    %c0_112 = arith.constant 0 : index
    %177 = vector.load %arg5[%c56_111, %c0_112] : memref<72x8xbf16, #tpu.memory_space<vmem>>, vector<8x8xbf16>
    %cst_113 = arith.constant dense<0.000000e+00> : vector<256x8xf32>
    %178 = tpu.matmul %176, %177, %cst_113 {dimension_numbers = #tpu.dot_dimension_numbers<[1], [0], [0], [1], [0, 0, 1, 1], [], []>} : vector<256x8xbf16>, vector<8x8xbf16>, vector<256x8xf32> -> vector<256x8xf32>
    %179 = arith.addf %174, %178 : vector<256x8xf32>
    %c34_114 = arith.constant 34 : index
    %c0_115 = arith.constant 0 : index
    %180 = vector.load %arg12[%c34_114, %c0_115] : memref<290x8xf32, #tpu.memory_space<vmem>>, vector<256x8xf32>
    %181 = vector.broadcast %37 : vector<256x1xf32> to vector<256x8xf32>
    %182 = arith.mulf %180, %181 : vector<256x8xf32>
    %183 = arith.truncf %182 : vector<256x8xf32> to vector<256x8xbf16>
    %c64_116 = arith.constant 64 : index
    %c0_117 = arith.constant 0 : index
    %184 = vector.load %arg5[%c64_116, %c0_117] : memref<72x8xbf16, #tpu.memory_space<vmem>>, vector<8x8xbf16>
    %cst_118 = arith.constant dense<0.000000e+00> : vector<256x8xf32>
    %185 = tpu.matmul %183, %184, %cst_118 {dimension_numbers = #tpu.dot_dimension_numbers<[1], [0], [0], [1], [0, 0, 1, 1], [], []>} : vector<256x8xbf16>, vector<8x8xbf16>, vector<256x8xf32> -> vector<256x8xf32>
    %186 = arith.addf %179, %185 : vector<256x8xf32>
    %c0_119 = arith.constant 0 : index
    %c0_120 = arith.constant 0 : index
    %187 = vector.load %arg6[%c0_119, %c0_120] : memref<1x8xf32, #tpu.memory_space<vmem>>, vector<1x8xf32>
    %188 = vector.broadcast %187 : vector<1x8xf32> to vector<256x8xf32>
    %189 = arith.mulf %186, %188 : vector<256x8xf32>
    %c0_121 = arith.constant 0 : index
    %c0_122 = arith.constant 0 : index
    %190 = vector.load %arg7[%c0_121, %c0_122] : memref<1x8xf32, #tpu.memory_space<vmem>>, vector<1x8xf32>
    %191 = vector.broadcast %190 : vector<1x8xf32> to vector<256x8xf32>
    %192 = arith.addf %189, %191 : vector<256x8xf32>
    %cst_123 = arith.constant 0.000000e+00 : f32
    %193 = vector.broadcast %cst_123 : f32 to vector<256x8xf32>
    %194 = arith.maximumf %192, %193 : vector<256x8xf32>
    %195 = arith.truncf %194 : vector<256x8xf32> to vector<256x8xbf16>
    %c0_124 = arith.constant 0 : index
    %c0_125 = arith.constant 0 : index
    %196 = vector.load %arg8[%c0_124, %c0_125] : memref<8x32xbf16, #tpu.memory_space<vmem>>, vector<8x32xbf16>
    %cst_126 = arith.constant dense<0.000000e+00> : vector<256x32xf32>
    %197 = tpu.matmul %195, %196, %cst_126 {dimension_numbers = #tpu.dot_dimension_numbers<[1], [0], [0], [1], [0, 0, 1, 1], [], []>} : vector<256x8xbf16>, vector<8x32xbf16>, vector<256x32xf32> -> vector<256x32xf32>
    %c0_127 = arith.constant 0 : index
    %c0_128 = arith.constant 0 : index
    %198 = vector.load %arg9[%c0_127, %c0_128] : memref<1x32xf32, #tpu.memory_space<vmem>>, vector<1x32xf32>
    %199 = vector.broadcast %198 : vector<1x32xf32> to vector<256x32xf32>
    %200 = arith.mulf %197, %199 : vector<256x32xf32>
    %c0_129 = arith.constant 0 : index
    %c0_130 = arith.constant 0 : index
    %201 = vector.load %arg10[%c0_129, %c0_130] : memref<1x32xf32, #tpu.memory_space<vmem>>, vector<1x32xf32>
    %202 = vector.broadcast %201 : vector<1x32xf32> to vector<256x32xf32>
    %203 = arith.addf %200, %202 : vector<256x32xf32>
    %204 = vector.extract_strided_slice %1 {offsets = [256, 0], sizes = [256, 32], strides = [1, 1]} : vector<512x32xf32> to vector<256x32xf32>
    %205 = arith.addf %203, %204 : vector<256x32xf32>
    %cst_131 = arith.constant 0.000000e+00 : f32
    %206 = vector.broadcast %cst_131 : f32 to vector<256x32xf32>
    %207 = arith.maximumf %205, %206 : vector<256x32xf32>
    %c0_132 = arith.constant 0 : index
    %c256 = arith.constant 256 : index
    %c0_133 = arith.constant 0 : index
    %208 = vector.load %arg11[%c0_132, %c256, %c0_133] : memref<1x512x32xf32, #tpu.memory_space<vmem>>, vector<1x256x32xf32>
    %209 = vector.shape_cast %208 : vector<1x256x32xf32> to vector<256x32xf32>
    %210 = vector.shape_cast %207 : vector<256x32xf32> to vector<1x256x32xf32>
    tpu.vector_store %arg11[%c0_132, %c256, %c0_133], %210 {strides = array<i32>} : memref<1x512x32xf32, #tpu.memory_space<vmem>>, vector<1x256x32xf32>,
    return
  }
  func.func @transform_0(%arg0: i32) -> (i32, i32, i32) {
    %c0_i32 = arith.constant 0 : i32
    %c0_i32_0 = arith.constant 0 : i32
    %c0_i32_1 = arith.constant 0 : i32
    return %arg0, %c0_i32, %c0_i32_0 : i32, i32, i32
  }
  func.func @transform_1(%arg0: i32) -> (i32, i32) {
    %c0_i32 = arith.constant 0 : i32
    %c0_i32_0 = arith.constant 0 : i32
    %c0_i32_1 = arith.constant 0 : i32
    return %c0_i32, %c0_i32_0 : i32, i32
  }
  func.func @transform_2(%arg0: i32) -> (i32, i32) {
    %c0_i32 = arith.constant 0 : i32
    %c0_i32_0 = arith.constant 0 : i32
    %c0_i32_1 = arith.constant 0 : i32
    return %c0_i32, %c0_i32_0 : i32, i32
  }
  func.func @transform_3(%arg0: i32) -> (i32, i32) {
    %c0_i32 = arith.constant 0 : i32
    %c0_i32_0 = arith.constant 0 : i32
    %c0_i32_1 = arith.constant 0 : i32
    return %c0_i32, %c0_i32_0 : i32, i32
  }
  func.func @transform_4(%arg0: i32) -> (i32, i32) {
    %c0_i32 = arith.constant 0 : i32
    %c0_i32_0 = arith.constant 0 : i32
    %c0_i32_1 = arith.constant 0 : i32
    return %c0_i32, %c0_i32_0 : i32, i32
  }
  func.func @transform_5(%arg0: i32) -> (i32, i32) {
    %c0_i32 = arith.constant 0 : i32
    %c0_i32_0 = arith.constant 0 : i32
    %c0_i32_1 = arith.constant 0 : i32
    return %c0_i32, %c0_i32_0 : i32, i32
  }
  func.func @transform_6(%arg0: i32) -> (i32, i32) {
    %c0_i32 = arith.constant 0 : i32
    %c0_i32_0 = arith.constant 0 : i32
    %c0_i32_1 = arith.constant 0 : i32
    return %c0_i32, %c0_i32_0 : i32, i32
  }
  func.func @transform_7(%arg0: i32) -> (i32, i32) {
    %c0_i32 = arith.constant 0 : i32
    %c0_i32_0 = arith.constant 0 : i32
    %c0_i32_1 = arith.constant 0 : i32
    return %c0_i32, %c0_i32_0 : i32, i32
  }
  func.func @transform_8(%arg0: i32) -> (i32, i32) {
    %c0_i32 = arith.constant 0 : i32
    %c0_i32_0 = arith.constant 0 : i32
    %c0_i32_1 = arith.constant 0 : i32
    return %c0_i32, %c0_i32_0 : i32, i32
  }
  func.func @transform_9(%arg0: i32) -> (i32, i32) {
    %c0_i32 = arith.constant 0 : i32
    %c0_i32_0 = arith.constant 0 : i32
    %c0_i32_1 = arith.constant 0 : i32
    return %c0_i32, %c0_i32_0 : i32, i32
  }
  func.func @transform_10(%arg0: i32) -> (i32, i32, i32) {
    %c0_i32 = arith.constant 0 : i32
    %c0_i32_0 = arith.constant 0 : i32
    %c0_i32_1 = arith.constant 0 : i32
    return %arg0, %c0_i32, %c0_i32_0 : i32, i32, i32
  }
}

</mosaic_0001>

<llo_original>
// kernel: tpu_custom_call.1
$region0: #{tpu_custom_call.1}
  #allocation0 [shape = 'u32[]', space=smem, size = 0x4, offset = 0x4, fixed_abs, tag = 'smem constant byte address 0x4 - core index']
  #allocation1 [shape = 'u32[144,128]{1,0:T(1,128)}', space=vmem, size = 0x12000, scoped, tag = 'internal scratch']
  #allocation2 [shape = 'f32[290,8]{1,0:T(8,128)}', space=vmem, size = 0x25000, scoped, tag = 'scratch operand']
  %s0 = inlined_call_operand.vmem [shape: f32[1,512,32], index: 0, kind: input, shape index: {}]
  %s1 = inlined_call_operand.vmem [shape: bf16[32,8], index: 1, kind: input, shape index: {}]
  %s2 = inlined_call_operand.vmem [shape: f32[1,8], index: 2, kind: input, shape index: {}]
  %s3 = inlined_call_operand.vmem [shape: f32[1,8], index: 3, kind: input, shape index: {}]
  %s4 = inlined_call_operand.vmem [shape: bf16[72,8], index: 4, kind: input, shape index: {}]
  %s5 = inlined_call_operand.vmem [shape: f32[1,8], index: 5, kind: input, shape index: {}]
  %s6 = inlined_call_operand.vmem [shape: f32[1,8], index: 6, kind: input, shape index: {}]
  %s7 = inlined_call_operand.vmem [shape: bf16[8,32], index: 7, kind: input, shape index: {}]
  %s8 = inlined_call_operand.vmem [shape: f32[1,32], index: 8, kind: input, shape index: {}]
  %s9 = inlined_call_operand.vmem [shape: f32[1,32], index: 9, kind: input, shape index: {}]
  %s10 = inlined_call_operand.vmem [shape: f32[1,512,32], index: 10, kind: output, shape index: {}]
  %s11 = sld [smem:[#allocation0]]
  $region50: #{tpu_custom_call.1} parent=0
    _
  %s13 = ssub.s32 1, %s11
  %s14 = scalar_select 0, %s13, %s11
  // Predicated region
  $region2: #{tpu_custom_call.1} parent=0 // pred_check
    _
  $region3: #{tpu_custom_call.1} parent=0 // pred_check_branch
    %16 = sbr.rel (0) target = $region5
  $region4: #{tpu_custom_call.1} parent=0 // pred_region
    _
  $region5: #{tpu_custom_call.1} parent=0 // pred_fallthru
    _
  // Predicated region
  $region6: #{tpu_custom_call.1} parent=0 // pred_check
    _
  $region7: #{tpu_custom_call.1} parent=0 // pred_check_branch
    %18 = sbr.rel (0) target = $region9
  $region8: #{tpu_custom_call.1} parent=0 // pred_region
    _
  $region9: #{tpu_custom_call.1} parent=0 // pred_fallthru
    _
  // Predicated region
  $region10: #{tpu_custom_call.1} parent=0 // pred_check
    _
  $region11: #{tpu_custom_call.1} parent=0 // pred_check_branch
    %20 = sbr.rel (0) target = $region13
  $region12: #{tpu_custom_call.1} parent=0 // pred_region
    _
  $region13: #{tpu_custom_call.1} parent=0 // pred_fallthru
    _
  // Predicated region
  $region14: #{tpu_custom_call.1} parent=0 // pred_check
    _
  $region15: #{tpu_custom_call.1} parent=0 // pred_check_branch
    %22 = sbr.rel (0) target = $region17
  $region16: #{tpu_custom_call.1} parent=0 // pred_region
    _
  $region17: #{tpu_custom_call.1} parent=0 // pred_fallthru
    _
  // Predicated region
  $region18: #{tpu_custom_call.1} parent=0 // pred_check
    _
  $region19: #{tpu_custom_call.1} parent=0 // pred_check_branch
    %24 = sbr.rel (0) target = $region21
  $region20: #{tpu_custom_call.1} parent=0 // pred_region
    _
  $region21: #{tpu_custom_call.1} parent=0 // pred_fallthru
    _
  // Predicated region
  $region22: #{tpu_custom_call.1} parent=0 // pred_check
    _
  $region23: #{tpu_custom_call.1} parent=0 // pred_check_branch
    %26 = sbr.rel (0) target = $region25
  $region24: #{tpu_custom_call.1} parent=0 // pred_region
    _
  $region25: #{tpu_custom_call.1} parent=0 // pred_fallthru
    _
  // Predicated region
  $region26: #{tpu_custom_call.1} parent=0 // pred_check
    _
  $region27: #{tpu_custom_call.1} parent=0 // pred_check_branch
    %28 = sbr.rel (0) target = $region29
  $region28: #{tpu_custom_call.1} parent=0 // pred_region
    _
  $region29: #{tpu_custom_call.1} parent=0 // pred_fallthru
    _
  // Predicated region
  $region30: #{tpu_custom_call.1} parent=0 // pred_check
    _
  $region31: #{tpu_custom_call.1} parent=0 // pred_check_branch
    %30 = sbr.rel (0) target = $region33
  $region32: #{tpu_custom_call.1} parent=0 // pred_region
    _
  $region33: #{tpu_custom_call.1} parent=0 // pred_fallthru
    _
  // Predicated region
  $region34: #{tpu_custom_call.1} parent=0 // pred_check
    _
  $region35: #{tpu_custom_call.1} parent=0 // pred_check_branch
    %32 = sbr.rel (0) target = $region37
  $region36: #{tpu_custom_call.1} parent=0 // pred_region
    _
  $region37: #{tpu_custom_call.1} parent=0 // pred_fallthru
    _
  // Predicated region
  $region38: #{tpu_custom_call.1} parent=0 // pred_check
    _
  $region39: #{tpu_custom_call.1} parent=0 // pred_check_branch
    %34 = sbr.rel (0) target = $region41
  $region40: #{tpu_custom_call.1} parent=0 // pred_region
    _
  $region41: #{tpu_custom_call.1} parent=0 // pred_fallthru
    _
  %v36 = vld [vmem:[%s0] sm:$0xff]
  %v37 = vld [vmem:[%s0 + $0x8] sm:$0xff]
  %v38 = vld [vmem:[%s0 + $0x10] sm:$0xff]
  %v39 = vld [vmem:[%s0 + $0x18] sm:$0xff]
  %v40 = vld [vmem:[%s0 + $0x20] sm:$0xff]
  %v41 = vld [vmem:[%s0 + $0x28] sm:$0xff]
  %v42 = vld [vmem:[%s0 + $0x30] sm:$0xff]
  %v43 = vld [vmem:[%s0 + $0x38] sm:$0xff]
  %v44 = vld [vmem:[%s0 + $0x40] sm:$0xff]
  %v45 = vld [vmem:[%s0 + $0x48] sm:$0xff]
  %v46 = vld [vmem:[%s0 + $0x50] sm:$0xff]
  %v47 = vld [vmem:[%s0 + $0x58] sm:$0xff]
  %v48 = vld [vmem:[%s0 + $0x60] sm:$0xff]
  %v49 = vld [vmem:[%s0 + $0x68] sm:$0xff]
  %v50 = vld [vmem:[%s0 + $0x70] sm:$0xff]
  %v51 = vld [vmem:[%s0 + $0x78] sm:$0xff]
  %v52 = vld [vmem:[%s0 + $0x80] sm:$0xff]
  %v53 = vld [vmem:[%s0 + $0x88] sm:$0xff]
  %v54 = vld [vmem:[%s0 + $0x90] sm:$0xff]
  %v55 = vld [vmem:[%s0 + $0x98] sm:$0xff]
  %v56 = vld [vmem:[%s0 + $0xa0] sm:$0xff]
  %v57 = vld [vmem:[%s0 + $0xa8] sm:$0xff]
  %v58 = vld [vmem:[%s0 + $0xb0] sm:$0xff]
  %v59 = vld [vmem:[%s0 + $0xb8] sm:$0xff]
  %v60 = vld [vmem:[%s0 + $0xc0] sm:$0xff]
  %v61 = vld [vmem:[%s0 + $0xc8] sm:$0xff]
  %v62 = vld [vmem:[%s0 + $0xd0] sm:$0xff]
  %v63 = vld [vmem:[%s0 + $0xd8] sm:$0xff]
  %v64 = vld [vmem:[%s0 + $0xe0] sm:$0xff]
  %v65 = vld [vmem:[%s0 + $0xe8] sm:$0xff]
  %v66 = vld [vmem:[%s0 + $0xf0] sm:$0xff]
  %v67 = vld [vmem:[%s0 + $0xf8] sm:$0xff]
  %v68 = vld [vmem:[%s0 + $0x100] sm:$0xff]
  %v69 = vld [vmem:[%s0 + $0x108] sm:$0xff]
  %v70 = vld [vmem:[%s0 + $0x110] sm:$0xff]
  %v71 = vld [vmem:[%s0 + $0x118] sm:$0xff]
  %v72 = vld [vmem:[%s0 + $0x120] sm:$0xff]
  %v73 = vld [vmem:[%s0 + $0x128] sm:$0xff]
  %v74 = vld [vmem:[%s0 + $0x130] sm:$0xff]
  %v75 = vld [vmem:[%s0 + $0x138] sm:$0xff]
  %v76 = vld [vmem:[%s0 + $0x140] sm:$0xff]
  %v77 = vld [vmem:[%s0 + $0x148] sm:$0xff]
  %v78 = vld [vmem:[%s0 + $0x150] sm:$0xff]
  %v79 = vld [vmem:[%s0 + $0x158] sm:$0xff]
  %v80 = vld [vmem:[%s0 + $0x160] sm:$0xff]
  %v81 = vld [vmem:[%s0 + $0x168] sm:$0xff]
  %v82 = vld [vmem:[%s0 + $0x170] sm:$0xff]
  %v83 = vld [vmem:[%s0 + $0x178] sm:$0xff]
  %v84 = vld [vmem:[%s0 + $0x180] sm:$0xff]
  %v85 = vld [vmem:[%s0 + $0x188] sm:$0xff]
  %v86 = vld [vmem:[%s0 + $0x190] sm:$0xff]
  %v87 = vld [vmem:[%s0 + $0x198] sm:$0xff]
  %v88 = vld [vmem:[%s0 + $0x1a0] sm:$0xff]
  %v89 = vld [vmem:[%s0 + $0x1a8] sm:$0xff]
  %v90 = vld [vmem:[%s0 + $0x1b0] sm:$0xff]
  %v91 = vld [vmem:[%s0 + $0x1b8] sm:$0xff]
  %v92 = vld [vmem:[%s0 + $0x1c0] sm:$0xff]
  %v93 = vld [vmem:[%s0 + $0x1c8] sm:$0xff]
  %v94 = vld [vmem:[%s0 + $0x1d0] sm:$0xff]
  %v95 = vld [vmem:[%s0 + $0x1d8] sm:$0xff]
  %v96 = vld [vmem:[%s0 + $0x1e0] sm:$0xff]
  %v97 = vld [vmem:[%s0 + $0x1e8] sm:$0xff]
  %v98 = vld [vmem:[%s0 + $0x1f0] sm:$0xff]
  %v99 = vld [vmem:[%s0 + $0x1f8] sm:$0xff]
  %v100 = vpack.c.bf16 %v37, %v36
  %v101 = vpack.c.bf16 %v39, %v38
  %v102 = vpack.c.bf16 %v41, %v40
  %v103 = vpack.c.bf16 %v43, %v42
  %v104 = vpack.c.bf16 %v45, %v44
  %v105 = vpack.c.bf16 %v47, %v46
  %v106 = vpack.c.bf16 %v49, %v48
  %v107 = vpack.c.bf16 %v51, %v50
  %v108 = vpack.c.bf16 %v53, %v52
  %v109 = vpack.c.bf16 %v55, %v54
  %v110 = vpack.c.bf16 %v57, %v56
  %v111 = vpack.c.bf16 %v59, %v58
  %v112 = vpack.c.bf16 %v61, %v60
  %v113 = vpack.c.bf16 %v63, %v62
  %v114 = vpack.c.bf16 %v65, %v64
  %v115 = vpack.c.bf16 %v67, %v66
  %v116 = vpack.c.bf16 %v69, %v68
  %v117 = vpack.c.bf16 %v71, %v70
  %v118 = vpack.c.bf16 %v73, %v72
  %v119 = vpack.c.bf16 %v75, %v74
  %v120 = vpack.c.bf16 %v77, %v76
  %v121 = vpack.c.bf16 %v79, %v78
  %v122 = vpack.c.bf16 %v81, %v80
  %v123 = vpack.c.bf16 %v83, %v82
  %v124 = vpack.c.bf16 %v85, %v84
  %v125 = vpack.c.bf16 %v87, %v86
  %v126 = vpack.c.bf16 %v89, %v88
  %v127 = vpack.c.bf16 %v91, %v90
  %v128 = vpack.c.bf16 %v93, %v92
  %v129 = vpack.c.bf16 %v95, %v94
  %v130 = vpack.c.bf16 %v97, %v96
  %v131 = vpack.c.bf16 %v99, %v98
  %v132 = vld [vmem:[%s1] sm:$0xf]
  %v133 = vld [vmem:[%s1 + $0x4] sm:$0xf]
  %v134 = vld [vmem:[%s1 + $0x8] sm:$0xf]
  %v135 = vld [vmem:[%s1 + $0xc] sm:$0xf]
  %v140 = vunpack.c.l.b16 %v132
  %v141 = vunpack.c.l.b16 %v133
  %v142 = vunpack.c.l.b16 %v134
  %v143 = vunpack.c.l.b16 %v135
  %v144 = vpack.c.b16 %v141, %v140
  %v145 = vpack.c.b16 %v143, %v142
  %vm148 = vcmask 261120
  %v150 = vsel %vm148, %v100, 0
  %v153 = vsel %vm148, %v101, 0
  %v156 = vsel %vm148, %v102, 0
  %v159 = vsel %vm148, %v103, 0
  %v162 = vsel %vm148, %v104, 0
  %v165 = vsel %vm148, %v105, 0
  %v168 = vsel %vm148, %v106, 0
  %v171 = vsel %vm148, %v107, 0
  %v174 = vsel %vm148, %v108, 0
  %v177 = vsel %vm148, %v109, 0
  %v180 = vsel %vm148, %v110, 0
  %v183 = vsel %vm148, %v111, 0
  %v186 = vsel %vm148, %v112, 0
  %v189 = vsel %vm148, %v113, 0
  %v192 = vsel %vm148, %v114, 0
  %v195 = vsel %vm148, %v115, 0
  %v198 = vsel %vm148, %v116, 0
  %v201 = vsel %vm148, %v117, 0
  %v204 = vsel %vm148, %v118, 0
  %v207 = vsel %vm148, %v119, 0
  %v210 = vsel %vm148, %v120, 0
  %v213 = vsel %vm148, %v121, 0
  %v216 = vsel %vm148, %v122, 0
  %v219 = vsel %vm148, %v123, 0
  %v222 = vsel %vm148, %v124, 0
  %v225 = vsel %vm148, %v125, 0
  %v228 = vsel %vm148, %v126, 0
  %v231 = vsel %vm148, %v127, 0
  %v234 = vsel %vm148, %v128, 0
  %v237 = vsel %vm148, %v129, 0
  %v240 = vsel %vm148, %v130, 0
  %v243 = vsel %vm148, %v131, 0
  %245 = vmatprep.subr.bf16.mxu0 0
  %246 = vmatpush1.bf16.msra.mxu0 0
  %247 = vmatprep.subr.bf16.mxu0 0
  %248 = vmatpush1.bf16.msra.mxu0 0
  %249 = vmatprep.subr.bf16.mxu0 0
  %250 = vmatpush1.bf16.msra.mxu0 0
  %251 = vmatprep.subr.bf16.mxu0 0
  %252 = vmatpush1.bf16.msra.mxu0 0
  %253 = vmatprep.subr.bf16.mxu0 0
  %254 = vmatpush1.bf16.msra.mxu0 0
  %255 = vmatprep.subr.bf16.mxu0 0
  %256 = vmatpush1.bf16.msra.mxu0 0
  %257 = vmatprep.subr.bf16.mxu0 0
  %258 = vmatpush1.bf16.msra.mxu0 %v145
  %259 = vmatprep.subr.bf16.mxu0 0
  %260 = vmatpush1.bf16.msra.mxu0 %v144
  %261 = vmatprep.subr.bf16.mxu0 0
  %262 = vmatpush2.bf16.msra.mxu0 0
  %263 = vmatprep.subr.bf16.mxu0 0
  %264 = vmatpush2.bf16.msra.mxu0 0
  %265 = vmatprep.subr.bf16.mxu0 0
  %266 = vmatpush2.bf16.msra.mxu0 0
  %267 = vmatprep.subr.bf16.mxu0 0
  %268 = vmatpush2.bf16.msra.mxu0 0
  %269 = vmatprep.subr.bf16.mxu0 0
  %270 = vmatpush2.bf16.msra.mxu0 0
  %271 = vmatprep.subr.bf16.mxu0 0
  %272 = vmatpush2.bf16.msra.mxu0 0
  %273 = vmatprep.subr.bf16.mxu0 0
  %274 = vmatpush2.bf16.msra.mxu0 0
  %275 = vmatprep.subr.bf16.mxu0 0
  %276 = vmatpush2.bf16.msra.mxu0 0
  %277 = vmatprep.mubr.bf16.mxu0 0
  %278 = vmatmul.mubr.bf16.gmra.mxu0 %v150
  %v279 = vpop.f32.mrf.mxu0
  %v280 = vadd.f32 0.0, %v279
  %v281 = vpop.f32.mrf.mxu0
  %v282 = vpop.f32.mrf.mxu0
  %v283 = vadd.f32 0.0, %v282
  %v284 = vpop.f32.mrf.mxu0
  %285 = vmatprep.mubr.bf16.mxu0 0
  %286 = vmatmul.mubr.bf16.gmra.mxu0 %v153
  %v287 = vpop.f32.mrf.mxu0
  %v288 = vadd.f32 0.0, %v287
  %v289 = vpop.f32.mrf.mxu0
  %v290 = vpop.f32.mrf.mxu0
  %v291 = vadd.f32 0.0, %v290
  %v292 = vpop.f32.mrf.mxu0
  %293 = vmatprep.mubr.bf16.mxu0 0
  %294 = vmatmul.mubr.bf16.gmra.mxu0 %v156
  %v295 = vpop.f32.mrf.mxu0
  %v296 = vadd.f32 0.0, %v295
  %v297 = vpop.f32.mrf.mxu0
  %v298 = vpop.f32.mrf.mxu0
  %v299 = vadd.f32 0.0, %v298
  %v300 = vpop.f32.mrf.mxu0
  %301 = vmatprep.mubr.bf16.mxu0 0
  %302 = vmatmul.mubr.bf16.gmra.mxu0 %v159
  %v303 = vpop.f32.mrf.mxu0
  %v304 = vadd.f32 0.0, %v303
  %v305 = vpop.f32.mrf.mxu0
  %v306 = vpop.f32.mrf.mxu0
  %v307 = vadd.f32 0.0, %v306
  %v308 = vpop.f32.mrf.mxu0
  %309 = vmatprep.mubr.bf16.mxu0 0
  %310 = vmatmul.mubr.bf16.gmra.mxu0 %v162
  %v311 = vpop.f32.mrf.mxu0
  %v312 = vadd.f32 0.0, %v311
  %v313 = vpop.f32.mrf.mxu0
  %v314 = vpop.f32.mrf.mxu0
  %v315 = vadd.f32 0.0, %v314
  %v316 = vpop.f32.mrf.mxu0
  %317 = vmatprep.mubr.bf16.mxu0 0
  %318 = vmatmul.mubr.bf16.gmra.mxu0 %v165
  %v319 = vpop.f32.mrf.mxu0
  %v320 = vadd.f32 0.0, %v319
  %v321 = vpop.f32.mrf.mxu0
  %v322 = vpop.f32.mrf.mxu0
  %v323 = vadd.f32 0.0, %v322
  %v324 = vpop.f32.mrf.mxu0
  %325 = vmatprep.mubr.bf16.mxu0 0
  %326 = vmatmul.mubr.bf16.gmra.mxu0 %v168
  %v327 = vpop.f32.mrf.mxu0
  %v328 = vadd.f32 0.0, %v327
  %v329 = vpop.f32.mrf.mxu0
  %v330 = vpop.f32.mrf.mxu0
  %v331 = vadd.f32 0.0, %v330
  %v332 = vpop.f32.mrf.mxu0
  %333 = vmatprep.mubr.bf16.mxu0 0
  %334 = vmatmul.mubr.bf16.gmra.mxu0 %v171
  %v335 = vpop.f32.mrf.mxu0
  %v336 = vadd.f32 0.0, %v335
  %v337 = vpop.f32.mrf.mxu0
  %v338 = vpop.f32.mrf.mxu0
  %v339 = vadd.f32 0.0, %v338
  %v340 = vpop.f32.mrf.mxu0
  %341 = vmatprep.mubr.bf16.mxu0 0
  %342 = vmatmul.mubr.bf16.gmra.mxu0 %v174
  %v343 = vpop.f32.mrf.mxu0
  %v344 = vadd.f32 0.0, %v343
  %v345 = vpop.f32.mrf.mxu0
  %v346 = vpop.f32.mrf.mxu0
  %v347 = vadd.f32 0.0, %v346
  %v348 = vpop.f32.mrf.mxu0
  %349 = vmatprep.mubr.bf16.mxu0 0
  %350 = vmatmul.mubr.bf16.gmra.mxu0 %v177
  %v351 = vpop.f32.mrf.mxu0
  %v352 = vadd.f32 0.0, %v351
  %v353 = vpop.f32.mrf.mxu0
  %v354 = vpop.f32.mrf.mxu0
  %v355 = vadd.f32 0.0, %v354
  %v356 = vpop.f32.mrf.mxu0
  %357 = vmatprep.mubr.bf16.mxu0 0
  %358 = vmatmul.mubr.bf16.gmra.mxu0 %v180
  %v359 = vpop.f32.mrf.mxu0
  %v360 = vadd.f32 0.0, %v359
  %v361 = vpop.f32.mrf.mxu0
  %v362 = vpop.f32.mrf.mxu0
  %v363 = vadd.f32 0.0, %v362
  %v364 = vpop.f32.mrf.mxu0
  %365 = vmatprep.mubr.bf16.mxu0 0
  %366 = vmatmul.mubr.bf16.gmra.mxu0 %v183
  %v367 = vpop.f32.mrf.mxu0
  %v368 = vadd.f32 0.0, %v367
  %v369 = vpop.f32.mrf.mxu0
  %v370 = vpop.f32.mrf.mxu0
  %v371 = vadd.f32 0.0, %v370
  %v372 = vpop.f32.mrf.mxu0
  %373 = vmatprep.mubr.bf16.mxu0 0
  %374 = vmatmul.mubr.bf16.gmra.mxu0 %v186
  %v375 = vpop.f32.mrf.mxu0
  %v376 = vadd.f32 0.0, %v375
  %v377 = vpop.f32.mrf.mxu0
  %v378 = vpop.f32.mrf.mxu0
  %v379 = vadd.f32 0.0, %v378
  %v380 = vpop.f32.mrf.mxu0
  %381 = vmatprep.mubr.bf16.mxu0 0
  %382 = vmatmul.mubr.bf16.gmra.mxu0 %v189
  %v383 = vpop.f32.mrf.mxu0
  %v384 = vadd.f32 0.0, %v383
  %v385 = vpop.f32.mrf.mxu0
  %v386 = vpop.f32.mrf.mxu0
  %v387 = vadd.f32 0.0, %v386
  %v388 = vpop.f32.mrf.mxu0
  %389 = vmatprep.mubr.bf16.mxu0 0
  %390 = vmatmul.mubr.bf16.gmra.mxu0 %v192
  %v391 = vpop.f32.mrf.mxu0
  %v392 = vadd.f32 0.0, %v391
  %v393 = vpop.f32.mrf.mxu0
  %v394 = vpop.f32.mrf.mxu0
  %v395 = vadd.f32 0.0, %v394
  %v396 = vpop.f32.mrf.mxu0
  %397 = vmatprep.mubr.bf16.mxu0 0
  %398 = vmatmul.mubr.bf16.gmra.mxu0 %v195
  %v399 = vpop.f32.mrf.mxu0
  %v400 = vadd.f32 0.0, %v399
  %v401 = vpop.f32.mrf.mxu0
  %v402 = vpop.f32.mrf.mxu0
  %v403 = vadd.f32 0.0, %v402
  %v404 = vpop.f32.mrf.mxu0
  %405 = vmatprep.mubr.bf16.mxu0 0
  %406 = vmatmul.mubr.bf16.gmra.mxu0 %v198
  %v407 = vpop.f32.mrf.mxu0
  %v408 = vadd.f32 0.0, %v407
  %v409 = vpop.f32.mrf.mxu0
  %v410 = vpop.f32.mrf.mxu0
  %v411 = vadd.f32 0.0, %v410
  %v412 = vpop.f32.mrf.mxu0
  %413 = vmatprep.mubr.bf16.mxu0 0
  %414 = vmatmul.mubr.bf16.gmra.mxu0 %v201
  %v415 = vpop.f32.mrf.mxu0
  %v416 = vadd.f32 0.0, %v415
  %v417 = vpop.f32.mrf.mxu0
  %v418 = vpop.f32.mrf.mxu0
  %v419 = vadd.f32 0.0, %v418
  %v420 = vpop.f32.mrf.mxu0
  %421 = vmatprep.mubr.bf16.mxu0 0
  %422 = vmatmul.mubr.bf16.gmra.mxu0 %v204
  %v423 = vpop.f32.mrf.mxu0
  %v424 = vadd.f32 0.0, %v423
  %v425 = vpop.f32.mrf.mxu0
  %v426 = vpop.f32.mrf.mxu0
  %v427 = vadd.f32 0.0, %v426
  %v428 = vpop.f32.mrf.mxu0
  %429 = vmatprep.mubr.bf16.mxu0 0
  %430 = vmatmul.mubr.bf16.gmra.mxu0 %v207
  %v431 = vpop.f32.mrf.mxu0
  %v432 = vadd.f32 0.0, %v431
  %v433 = vpop.f32.mrf.mxu0
  %v434 = vpop.f32.mrf.mxu0
  %v435 = vadd.f32 0.0, %v434
  %v436 = vpop.f32.mrf.mxu0
  %437 = vmatprep.mubr.bf16.mxu0 0
  %438 = vmatmul.mubr.bf16.gmra.mxu0 %v210
  %v439 = vpop.f32.mrf.mxu0
  %v440 = vadd.f32 0.0, %v439
  %v441 = vpop.f32.mrf.mxu0
  %v442 = vpop.f32.mrf.mxu0
  %v443 = vadd.f32 0.0, %v442
  %v444 = vpop.f32.mrf.mxu0
  %445 = vmatprep.mubr.bf16.mxu0 0
  %446 = vmatmul.mubr.bf16.gmra.mxu0 %v213
  %v447 = vpop.f32.mrf.mxu0
  %v448 = vadd.f32 0.0, %v447
  %v449 = vpop.f32.mrf.mxu0
  %v450 = vpop.f32.mrf.mxu0
  %v451 = vadd.f32 0.0, %v450
  %v452 = vpop.f32.mrf.mxu0
  %453 = vmatprep.mubr.bf16.mxu0 0
  %454 = vmatmul.mubr.bf16.gmra.mxu0 %v216
  %v455 = vpop.f32.mrf.mxu0
  %v456 = vadd.f32 0.0, %v455
  %v457 = vpop.f32.mrf.mxu0
  %v458 = vpop.f32.mrf.mxu0
  %v459 = vadd.f32 0.0, %v458
  %v460 = vpop.f32.mrf.mxu0
  %461 = vmatprep.mubr.bf16.mxu0 0
  %462 = vmatmul.mubr.bf16.gmra.mxu0 %v219
  %v463 = vpop.f32.mrf.mxu0
  %v464 = vadd.f32 0.0, %v463
  %v465 = vpop.f32.mrf.mxu0
  %v466 = vpop.f32.mrf.mxu0
  %v467 = vadd.f32 0.0, %v466
  %v468 = vpop.f32.mrf.mxu0
  %469 = vmatprep.mubr.bf16.mxu0 0
  %470 = vmatmul.mubr.bf16.gmra.mxu0 %v222
  %v471 = vpop.f32.mrf.mxu0
  %v472 = vadd.f32 0.0, %v471
  %v473 = vpop.f32.mrf.mxu0
  %v474 = vpop.f32.mrf.mxu0
  %v475 = vadd.f32 0.0, %v474
  %v476 = vpop.f32.mrf.mxu0
  %477 = vmatprep.mubr.bf16.mxu0 0
  %478 = vmatmul.mubr.bf16.gmra.mxu0 %v225
  %v479 = vpop.f32.mrf.mxu0
  %v480 = vadd.f32 0.0, %v479
  %v481 = vpop.f32.mrf.mxu0
  %v482 = vpop.f32.mrf.mxu0
  %v483 = vadd.f32 0.0, %v482
  %v484 = vpop.f32.mrf.mxu0
  %485 = vmatprep.mubr.bf16.mxu0 0
  %486 = vmatmul.mubr.bf16.gmra.mxu0 %v228
  %v487 = vpop.f32.mrf.mxu0
  %v488 = vadd.f32 0.0, %v487
  %v489 = vpop.f32.mrf.mxu0
  %v490 = vpop.f32.mrf.mxu0
  %v491 = vadd.f32 0.0, %v490
  %v492 = vpop.f32.mrf.mxu0
  %493 = vmatprep.mubr.bf16.mxu0 0
  %494 = vmatmul.mubr.bf16.gmra.mxu0 %v231
  %v495 = vpop.f32.mrf.mxu0
  %v496 = vadd.f32 0.0, %v495
  %v497 = vpop.f32.mrf.mxu0
  %v498 = vpop.f32.mrf.mxu0
  %v499 = vadd.f32 0.0, %v498
  %v500 = vpop.f32.mrf.mxu0
  %501 = vmatprep.mubr.bf16.mxu0 0
  %502 = vmatmul.mubr.bf16.gmra.mxu0 %v234
  %v503 = vpop.f32.mrf.mxu0
  %v504 = vadd.f32 0.0, %v503
  %v505 = vpop.f32.mrf.mxu0
  %v506 = vpop.f32.mrf.mxu0
  %v507 = vadd.f32 0.0, %v506
  %v508 = vpop.f32.mrf.mxu0
  %509 = vmatprep.mubr.bf16.mxu0 0
  %510 = vmatmul.mubr.bf16.gmra.mxu0 %v237
  %v511 = vpop.f32.mrf.mxu0
  %v512 = vadd.f32 0.0, %v511
  %v513 = vpop.f32.mrf.mxu0
  %v514 = vpop.f32.mrf.mxu0
  %v515 = vadd.f32 0.0, %v514
  %v516 = vpop.f32.mrf.mxu0
  %517 = vmatprep.mubr.bf16.mxu0 0
  %518 = vmatmul.mubr.bf16.gmra.mxu0 %v240
  %v519 = vpop.f32.mrf.mxu0
  %v520 = vadd.f32 0.0, %v519
  %v521 = vpop.f32.mrf.mxu0
  %v522 = vpop.f32.mrf.mxu0
  %v523 = vadd.f32 0.0, %v522
  %v524 = vpop.f32.mrf.mxu0
  %525 = vmatprep.mubr.bf16.mxu0 0
  %526 = vmatmul.mubr.bf16.gmra.mxu0 %v243
  %v527 = vpop.f32.mrf.mxu0
  %v528 = vadd.f32 0.0, %v527
  %v529 = vpop.f32.mrf.mxu0
  %v530 = vpop.f32.mrf.mxu0
  %v531 = vadd.f32 0.0, %v530
  %v532 = vpop.f32.mrf.mxu0
  %533 = vdwg.mxu0
  %v534 = vld [vmem:[%s2] sm:$0x1]
  %v536 = vlaneseq
  %v537 = vshrl.u32 %v536, 7
  %v538 = vsub.s32 0, %v537
  %v539 = vrot.slane %v534, %v538
  %v541 = vmul.f32 %v280, %v539
  %v542 = vmul.f32 %v283, %v539
  %v543 = vmul.f32 %v288, %v539
  %v544 = vmul.f32 %v291, %v539
  %v545 = vmul.f32 %v296, %v539
  %v546 = vmul.f32 %v299, %v539
  %v547 = vmul.f32 %v304, %v539
  %v548 = vmul.f32 %v307, %v539
  %v549 = vmul.f32 %v312, %v539
  %v550 = vmul.f32 %v315, %v539
  %v551 = vmul.f32 %v320, %v539
  %v552 = vmul.f32 %v323, %v539
  %v553 = vmul.f32 %v328, %v539
  %v554 = vmul.f32 %v331, %v539
  %v555 = vmul.f32 %v336, %v539
  %v556 = vmul.f32 %v339, %v539
  %v557 = vmul.f32 %v344, %v539
  %v558 = vmul.f32 %v347, %v539
  %v559 = vmul.f32 %v352, %v539
  %v560 = vmul.f32 %v355, %v539
  %v561 = vmul.f32 %v360, %v539
  %v562 = vmul.f32 %v363, %v539
  %v563 = vmul.f32 %v368, %v539
  %v564 = vmul.f32 %v371, %v539
  %v565 = vmul.f32 %v376, %v539
  %v566 = vmul.f32 %v379, %v539
  %v567 = vmul.f32 %v384, %v539
  %v568 = vmul.f32 %v387, %v539
  %v569 = vmul.f32 %v392, %v539
  %v570 = vmul.f32 %v395, %v539
  %v571 = vmul.f32 %v400, %v539
  %v572 = vmul.f32 %v403, %v539
  %v573 = vmul.f32 %v408, %v539
  %v574 = vmul.f32 %v411, %v539
  %v575 = vmul.f32 %v416, %v539
  %v576 = vmul.f32 %v419, %v539
  %v577 = vmul.f32 %v424, %v539
  %v578 = vmul.f32 %v427, %v539
  %v579 = vmul.f32 %v432, %v539
  %v580 = vmul.f32 %v435, %v539
  %v581 = vmul.f32 %v440, %v539
  %v582 = vmul.f32 %v443, %v539
  %v583 = vmul.f32 %v448, %v539
  %v584 = vmul.f32 %v451, %v539
  %v585 = vmul.f32 %v456, %v539
  %v586 = vmul.f32 %v459, %v539
  %v587 = vmul.f32 %v464, %v539
  %v588 = vmul.f32 %v467, %v539
  %v589 = vmul.f32 %v472, %v539
  %v590 = vmul.f32 %v475, %v539
  %v591 = vmul.f32 %v480, %v539
  %v592 = vmul.f32 %v483, %v539
  %v593 = vmul.f32 %v488, %v539
  %v594 = vmul.f32 %v491, %v539
  %v595 = vmul.f32 %v496, %v539
  %v596 = vmul.f32 %v499, %v539
  %v597 = vmul.f32 %v504, %v539
  %v598 = vmul.f32 %v507, %v539
  %v599 = vmul.f32 %v512, %v539
  %v600 = vmul.f32 %v515, %v539
  %v601 = vmul.f32 %v520, %v539
  %v602 = vmul.f32 %v523, %v539
  %v603 = vmul.f32 %v528, %v539
  %v604 = vmul.f32 %v531, %v539
  %v605 = vld [vmem:[%s3] sm:$0x1]
  %v607 = vlaneseq
  %v608 = vshrl.u32 %v607, 7
  %v609 = vsub.s32 0, %v608
  %v610 = vrot.slane %v605, %v609
  %v612 = vadd.f32 %v541, %v610
  %v613 = vadd.f32 %v542, %v610
  %v614 = vadd.f32 %v543, %v610
  %v615 = vadd.f32 %v544, %v610
  %v616 = vadd.f32 %v545, %v610
  %v617 = vadd.f32 %v546, %v610
  %v618 = vadd.f32 %v547, %v610
  %v619 = vadd.f32 %v548, %v610
  %v620 = vadd.f32 %v549, %v610
  %v621 = vadd.f32 %v550, %v610
  %v622 = vadd.f32 %v551, %v610
  %v623 = vadd.f32 %v552, %v610
  %v624 = vadd.f32 %v553, %v610
  %v625 = vadd.f32 %v554, %v610
  %v626 = vadd.f32 %v555, %v610
  %v627 = vadd.f32 %v556, %v610
  %v628 = vadd.f32 %v557, %v610
  %v629 = vadd.f32 %v558, %v610
  %v630 = vadd.f32 %v559, %v610
  %v631 = vadd.f32 %v560, %v610
  %v632 = vadd.f32 %v561, %v610
  %v633 = vadd.f32 %v562, %v610
  %v634 = vadd.f32 %v563, %v610
  %v635 = vadd.f32 %v564, %v610
  %v636 = vadd.f32 %v565, %v610
  %v637 = vadd.f32 %v566, %v610
  %v638 = vadd.f32 %v567, %v610
  %v639 = vadd.f32 %v568, %v610
  %v640 = vadd.f32 %v569, %v610
  %v641 = vadd.f32 %v570, %v610
  %v642 = vadd.f32 %v571, %v610
  %v643 = vadd.f32 %v572, %v610
  %v644 = vadd.f32 %v573, %v610
  %v645 = vadd.f32 %v574, %v610
  %v646 = vadd.f32 %v575, %v610
  %v647 = vadd.f32 %v576, %v610
  %v648 = vadd.f32 %v577, %v610
  %v649 = vadd.f32 %v578, %v610
  %v650 = vadd.f32 %v579, %v610
  %v651 = vadd.f32 %v580, %v610
  %v652 = vadd.f32 %v581, %v610
  %v653 = vadd.f32 %v582, %v610
  %v654 = vadd.f32 %v583, %v610
  %v655 = vadd.f32 %v584, %v610
  %v656 = vadd.f32 %v585, %v610
  %v657 = vadd.f32 %v586, %v610
  %v658 = vadd.f32 %v587, %v610
  %v659 = vadd.f32 %v588, %v610
  %v660 = vadd.f32 %v589, %v610
  %v661 = vadd.f32 %v590, %v610
  %v662 = vadd.f32 %v591, %v610
  %v663 = vadd.f32 %v592, %v610
  %v664 = vadd.f32 %v593, %v610
  %v665 = vadd.f32 %v594, %v610
  %v666 = vadd.f32 %v595, %v610
  %v667 = vadd.f32 %v596, %v610
  %v668 = vadd.f32 %v597, %v610
  %v669 = vadd.f32 %v598, %v610
  %v670 = vadd.f32 %v599, %v610
  %v671 = vadd.f32 %v600, %v610
  %v672 = vadd.f32 %v601, %v610
  %v673 = vadd.f32 %v602, %v610
  %v674 = vadd.f32 %v603, %v610
  %v675 = vadd.f32 %v604, %v610
  %v676 = vmax.f32 %v612, 0.0
  %v677 = vmax.f32 %v613, 0.0
  %v678 = vmax.f32 %v614, 0.0
  %v679 = vmax.f32 %v615, 0.0
  %v680 = vmax.f32 %v616, 0.0
  %v681 = vmax.f32 %v617, 0.0
  %v682 = vmax.f32 %v618, 0.0
  %v683 = vmax.f32 %v619, 0.0
  %v684 = vmax.f32 %v620, 0.0
  %v685 = vmax.f32 %v621, 0.0
  %v686 = vmax.f32 %v622, 0.0
  %v687 = vmax.f32 %v623, 0.0
  %v688 = vmax.f32 %v624, 0.0
  %v689 = vmax.f32 %v625, 0.0
  %v690 = vmax.f32 %v626, 0.0
  %v691 = vmax.f32 %v627, 0.0
  %v692 = vmax.f32 %v628, 0.0
  %v693 = vmax.f32 %v629, 0.0
  %v694 = vmax.f32 %v630, 0.0
  %v695 = vmax.f32 %v631, 0.0
  %v696 = vmax.f32 %v632, 0.0
  %v697 = vmax.f32 %v633, 0.0
  %v698 = vmax.f32 %v634, 0.0
  %v699 = vmax.f32 %v635, 0.0
  %v700 = vmax.f32 %v636, 0.0
  %v701 = vmax.f32 %v637, 0.0
  %v702 = vmax.f32 %v638, 0.0
  %v703 = vmax.f32 %v639, 0.0
  %v704 = vmax.f32 %v640, 0.0
  %v705 = vmax.f32 %v641, 0.0
  %v706 = vmax.f32 %v642, 0.0
  %v707 = vmax.f32 %v643, 0.0
  %v708 = vmax.f32 %v644, 0.0
  %v709 = vmax.f32 %v645, 0.0
  %v710 = vmax.f32 %v646, 0.0
  %v711 = vmax.f32 %v647, 0.0
  %v712 = vmax.f32 %v648, 0.0
  %v713 = vmax.f32 %v649, 0.0
  %v714 = vmax.f32 %v650, 0.0
  %v715 = vmax.f32 %v651, 0.0
  %v716 = vmax.f32 %v652, 0.0
  %v717 = vmax.f32 %v653, 0.0
  %v718 = vmax.f32 %v654, 0.0
  %v719 = vmax.f32 %v655, 0.0
  %v720 = vmax.f32 %v656, 0.0
  %v721 = vmax.f32 %v657, 0.0
  %v722 = vmax.f32 %v658, 0.0
  %v723 = vmax.f32 %v659, 0.0
  %v724 = vmax.f32 %v660, 0.0
  %v725 = vmax.f32 %v661, 0.0
  %v726 = vmax.f32 %v662, 0.0
  %v727 = vmax.f32 %v663, 0.0
  %v728 = vmax.f32 %v664, 0.0
  %v729 = vmax.f32 %v665, 0.0
  %v730 = vmax.f32 %v666, 0.0
  %v731 = vmax.f32 %v667, 0.0
  %v732 = vmax.f32 %v668, 0.0
  %v733 = vmax.f32 %v669, 0.0
  %v734 = vmax.f32 %v670, 0.0
  %v735 = vmax.f32 %v671, 0.0
  %v736 = vmax.f32 %v672, 0.0
  %v737 = vmax.f32 %v673, 0.0
  %v738 = vmax.f32 %v674, 0.0
  %v739 = vmax.f32 %v675, 0.0
  %v740 = vlaneseq
  %v741 = vshrl.u32 %v740, 7
  %v742 = vadd.s32 %v741, 8
  %v743 = vadd.s32 %v741, 16
  %v744 = vadd.s32 %v741, 24
  %v745 = vadd.s32 %v741, 32
  %v746 = vadd.s32 %v741, 40
  %v747 = vadd.s32 %v741, 48
  %v748 = vadd.s32 %v741, 56
  %v749 = vadd.s32 %v741, 64
  %v750 = vadd.s32 %v741, 72
  %v751 = vadd.s32 %v741, 80
  %v752 = vadd.s32 %v741, 88
  %v753 = vadd.s32 %v741, 96
  %v754 = vadd.s32 %v741, 104
  %v755 = vadd.s32 %v741, 112
  %v756 = vadd.s32 %v741, 120
  %v757 = vadd.s32 %v741, 128
  %v758 = vadd.s32 %v741, 136
  %v759 = vadd.s32 %v741, 144
  %v760 = vadd.s32 %v741, 152
  %v761 = vadd.s32 %v741, 160
  %v762 = vadd.s32 %v741, 168
  %v763 = vadd.s32 %v741, 176
  %v764 = vadd.s32 %v741, 184
  %v765 = vadd.s32 %v741, 192
  %v766 = vadd.s32 %v741, 200
  %v767 = vadd.s32 %v741, 208
  %v768 = vadd.s32 %v741, 216
  %v769 = vadd.s32 %v741, 224
  %v770 = vadd.s32 %v741, 232
  %v771 = vadd.s32 %v741, 240
  %v772 = vadd.s32 %v741, 248
  %vm773 = vcmp.lt.s32.totalorder %v741, 0
  %v774 = vsub.s32 0, %v741
  %v775 = vsel %vm773, %v774, %v741
  %v776 = vshrl.u32 %v775, 4
  %v777 = vand.u32 %v775, 15
  %v778 = vsub.s32 0, %v777
  %v779 = vsel %vm773, %v778, %v777
  %vm780 = vcmp.lt.s32.totalorder %v742, 0
  %v781 = vsub.s32 0, %v742
  %v782 = vsel %vm780, %v781, %v742
  %v783 = vshrl.u32 %v782, 4
  %v784 = vand.u32 %v782, 15
  %v785 = vsub.s32 0, %v784
  %v786 = vsel %vm780, %v785, %v784
  %vm787 = vcmp.lt.s32.totalorder %v743, 0
  %v788 = vsub.s32 0, %v743
  %v789 = vsel %vm787, %v788, %v743
  %v790 = vshrl.u32 %v789, 4
  %v791 = vand.u32 %v789, 15
  %v792 = vsub.s32 0, %v791
  %v793 = vsel %vm787, %v792, %v791
  %vm794 = vcmp.lt.s32.totalorder %v744, 0
  %v795 = vsub.s32 0, %v744
  %v796 = vsel %vm794, %v795, %v744
  %v797 = vshrl.u32 %v796, 4
  %v798 = vand.u32 %v796, 15
  %v799 = vsub.s32 0, %v798
  %v800 = vsel %vm794, %v799, %v798
  %vm801 = vcmp.lt.s32.totalorder %v745, 0
  %v802 = vsub.s32 0, %v745
  %v803 = vsel %vm801, %v802, %v745
  %v804 = vshrl.u32 %v803, 4
  %v805 = vand.u32 %v803, 15
  %v806 = vsub.s32 0, %v805
  %v807 = vsel %vm801, %v806, %v805
  %vm808 = vcmp.lt.s32.totalorder %v746, 0
  %v809 = vsub.s32 0, %v746
  %v810 = vsel %vm808, %v809, %v746
  %v811 = vshrl.u32 %v810, 4
  %v812 = vand.u32 %v810, 15
  %v813 = vsub.s32 0, %v812
  %v814 = vsel %vm808, %v813, %v812
  %vm815 = vcmp.lt.s32.totalorder %v747, 0
  %v816 = vsub.s32 0, %v747
  %v817 = vsel %vm815, %v816, %v747
  %v818 = vshrl.u32 %v817, 4
  %v819 = vand.u32 %v817, 15
  %v820 = vsub.s32 0, %v819
  %v821 = vsel %vm815, %v820, %v819
  %vm822 = vcmp.lt.s32.totalorder %v748, 0
  %v823 = vsub.s32 0, %v748
  %v824 = vsel %vm822, %v823, %v748
  %v825 = vshrl.u32 %v824, 4
  %v826 = vand.u32 %v824, 15
  %v827 = vsub.s32 0, %v826
  %v828 = vsel %vm822, %v827, %v826
  %vm829 = vcmp.lt.s32.totalorder %v749, 0
  %v830 = vsub.s32 0, %v749
  %v831 = vsel %vm829, %v830, %v749
  %v832 = vshrl.u32 %v831, 4
  %v833 = vand.u32 %v831, 15
  %v834 = vsub.s32 0, %v833
  %v835 = vsel %vm829, %v834, %v833
  %vm836 = vcmp.lt.s32.totalorder %v750, 0
  %v837 = vsub.s32 0, %v750
  %v838 = vsel %vm836, %v837, %v750
  %v839 = vshrl.u32 %v838, 4
  %v840 = vand.u32 %v838, 15
  %v841 = vsub.s32 0, %v840
  %v842 = vsel %vm836, %v841, %v840
  %vm843 = vcmp.lt.s32.totalorder %v751, 0
  %v844 = vsub.s32 0, %v751
  %v845 = vsel %vm843, %v844, %v751
  %v846 = vshrl.u32 %v845, 4
  %v847 = vand.u32 %v845, 15
  %v848 = vsub.s32 0, %v847
  %v849 = vsel %vm843, %v848, %v847
  %vm850 = vcmp.lt.s32.totalorder %v752, 0
  %v851 = vsub.s32 0, %v752
  %v852 = vsel %vm850, %v851, %v752
  %v853 = vshrl.u32 %v852, 4
  %v854 = vand.u32 %v852, 15
  %v855 = vsub.s32 0, %v854
  %v856 = vsel %vm850, %v855, %v854
  %vm857 = vcmp.lt.s32.totalorder %v753, 0
  %v858 = vsub.s32 0, %v753
  %v859 = vsel %vm857, %v858, %v753
  %v860 = vshrl.u32 %v859, 4
  %v861 = vand.u32 %v859, 15
  %v862 = vsub.s32 0, %v861
  %v863 = vsel %vm857, %v862, %v861
  %vm864 = vcmp.lt.s32.totalorder %v754, 0
  %v865 = vsub.s32 0, %v754
  %v866 = vsel %vm864, %v865, %v754
  %v867 = vshrl.u32 %v866, 4
  %v868 = vand.u32 %v866, 15
  %v869 = vsub.s32 0, %v868
  %v870 = vsel %vm864, %v869, %v868
  %vm871 = vcmp.lt.s32.totalorder %v755, 0
  %v872 = vsub.s32 0, %v755
  %v873 = vsel %vm871, %v872, %v755
  %v874 = vshrl.u32 %v873, 4
  %v875 = vand.u32 %v873, 15
  %v876 = vsub.s32 0, %v875
  %v877 = vsel %vm871, %v876, %v875
  %vm878 = vcmp.lt.s32.totalorder %v756, 0
  %v879 = vsub.s32 0, %v756
  %v880 = vsel %vm878, %v879, %v756
  %v881 = vshrl.u32 %v880, 4
  %v882 = vand.u32 %v880, 15
  %v883 = vsub.s32 0, %v882
  %v884 = vsel %vm878, %v883, %v882
  %vm885 = vcmp.lt.s32.totalorder %v757, 0
  %v886 = vsub.s32 0, %v757
  %v887 = vsel %vm885, %v886, %v757
  %v888 = vshrl.u32 %v887, 4
  %v889 = vand.u32 %v887, 15
  %v890 = vsub.s32 0, %v889
  %v891 = vsel %vm885, %v890, %v889
  %vm892 = vcmp.lt.s32.totalorder %v758, 0
  %v893 = vsub.s32 0, %v758
  %v894 = vsel %vm892, %v893, %v758
  %v895 = vshrl.u32 %v894, 4
  %v896 = vand.u32 %v894, 15
  %v897 = vsub.s32 0, %v896
  %v898 = vsel %vm892, %v897, %v896
  %vm899 = vcmp.lt.s32.totalorder %v759, 0
  %v900 = vsub.s32 0, %v759
  %v901 = vsel %vm899, %v900, %v759
  %v902 = vshrl.u32 %v901, 4
  %v903 = vand.u32 %v901, 15
  %v904 = vsub.s32 0, %v903
  %v905 = vsel %vm899, %v904, %v903
  %vm906 = vcmp.lt.s32.totalorder %v760, 0
  %v907 = vsub.s32 0, %v760
  %v908 = vsel %vm906, %v907, %v760
  %v909 = vshrl.u32 %v908, 4
  %v910 = vand.u32 %v908, 15
  %v911 = vsub.s32 0, %v910
  %v912 = vsel %vm906, %v911, %v910
  %vm913 = vcmp.lt.s32.totalorder %v761, 0
  %v914 = vsub.s32 0, %v761
  %v915 = vsel %vm913, %v914, %v761
  %v916 = vshrl.u32 %v915, 4
  %v917 = vand.u32 %v915, 15
  %v918 = vsub.s32 0, %v917
  %v919 = vsel %vm913, %v918, %v917
  %vm920 = vcmp.lt.s32.totalorder %v762, 0
  %v921 = vsub.s32 0, %v762
  %v922 = vsel %vm920, %v921, %v762
  %v923 = vshrl.u32 %v922, 4
  %v924 = vand.u32 %v922, 15
  %v925 = vsub.s32 0, %v924
  %v926 = vsel %vm920, %v925, %v924
  %vm927 = vcmp.lt.s32.totalorder %v763, 0
  %v928 = vsub.s32 0, %v763
  %v929 = vsel %vm927, %v928, %v763
  %v930 = vshrl.u32 %v929, 4
  %v931 = vand.u32 %v929, 15
  %v932 = vsub.s32 0, %v931
  %v933 = vsel %vm927, %v932, %v931
  %vm934 = vcmp.lt.s32.totalorder %v764, 0
  %v935 = vsub.s32 0, %v764
  %v936 = vsel %vm934, %v935, %v764
  %v937 = vshrl.u32 %v936, 4
  %v938 = vand.u32 %v936, 15
  %v939 = vsub.s32 0, %v938
  %v940 = vsel %vm934, %v939, %v938
  %vm941 = vcmp.lt.s32.totalorder %v765, 0
  %v942 = vsub.s32 0, %v765
  %v943 = vsel %vm941, %v942, %v765
  %v944 = vshrl.u32 %v943, 4
  %v945 = vand.u32 %v943, 15
  %v946 = vsub.s32 0, %v945
  %v947 = vsel %vm941, %v946, %v945
  %vm948 = vcmp.lt.s32.totalorder %v766, 0
  %v949 = vsub.s32 0, %v766
  %v950 = vsel %vm948, %v949, %v766
  %v951 = vshrl.u32 %v950, 4
  %v952 = vand.u32 %v950, 15
  %v953 = vsub.s32 0, %v952
  %v954 = vsel %vm948, %v953, %v952
  %vm955 = vcmp.lt.s32.totalorder %v767, 0
  %v956 = vsub.s32 0, %v767
  %v957 = vsel %vm955, %v956, %v767
  %v958 = vshrl.u32 %v957, 4
  %v959 = vand.u32 %v957, 15
  %v960 = vsub.s32 0, %v959
  %v961 = vsel %vm955, %v960, %v959
  %vm962 = vcmp.lt.s32.totalorder %v768, 0
  %v963 = vsub.s32 0, %v768
  %v964 = vsel %vm962, %v963, %v768
  %v965 = vshrl.u32 %v964, 4
  %v966 = vand.u32 %v964, 15
  %v967 = vsub.s32 0, %v966
  %v968 = vsel %vm962, %v967, %v966
  %vm969 = vcmp.lt.s32.totalorder %v769, 0
  %v970 = vsub.s32 0, %v769
  %v971 = vsel %vm969, %v970, %v769
  %v972 = vshrl.u32 %v971, 4
  %v973 = vand.u32 %v971, 15
  %v974 = vsub.s32 0, %v973
  %v975 = vsel %vm969, %v974, %v973
  %vm976 = vcmp.lt.s32.totalorder %v770, 0
  %v977 = vsub.s32 0, %v770
  %v978 = vsel %vm976, %v977, %v770
  %v979 = vshrl.u32 %v978, 4
  %v980 = vand.u32 %v978, 15
  %v981 = vsub.s32 0, %v980
  %v982 = vsel %vm976, %v981, %v980
  %vm983 = vcmp.lt.s32.totalorder %v771, 0
  %v984 = vsub.s32 0, %v771
  %v985 = vsel %vm983, %v984, %v771
  %v986 = vshrl.u32 %v985, 4
  %v987 = vand.u32 %v985, 15
  %v988 = vsub.s32 0, %v987
  %v989 = vsel %vm983, %v988, %v987
  %vm990 = vcmp.lt.s32.totalorder %v772, 0
  %v991 = vsub.s32 0, %v772
  %v992 = vsel %vm990, %v991, %v772
  %v993 = vshrl.u32 %v992, 4
  %v994 = vand.u32 %v992, 15
  %v995 = vsub.s32 0, %v994
  %v996 = vsel %vm990, %v995, %v994
  %vm997 = vcmp.ne.s32.totalorder %v779, 0
  %vm998 = vcmp.ne.s32.totalorder %v786, 0
  %vm999 = vcmp.ne.s32.totalorder %v793, 0
  %vm1000 = vcmp.ne.s32.totalorder %v800, 0
  %vm1001 = vcmp.ne.s32.totalorder %v807, 0
  %vm1002 = vcmp.ne.s32.totalorder %v814, 0
  %vm1003 = vcmp.ne.s32.totalorder %v821, 0
  %vm1004 = vcmp.ne.s32.totalorder %v828, 0
  %vm1005 = vcmp.ne.s32.totalorder %v835, 0
  %vm1006 = vcmp.ne.s32.totalorder %v842, 0
  %vm1007 = vcmp.ne.s32.totalorder %v849, 0
  %vm1008 = vcmp.ne.s32.totalorder %v856, 0
  %vm1009 = vcmp.ne.s32.totalorder %v863, 0
  %vm1010 = vcmp.ne.s32.totalorder %v870, 0
  %vm1011 = vcmp.ne.s32.totalorder %v877, 0
  %vm1012 = vcmp.ne.s32.totalorder %v884, 0
  %vm1013 = vcmp.ne.s32.totalorder %v891, 0
  %vm1014 = vcmp.ne.s32.totalorder %v898, 0
  %vm1015 = vcmp.ne.s32.totalorder %v905, 0
  %vm1016 = vcmp.ne.s32.totalorder %v912, 0
  %vm1017 = vcmp.ne.s32.totalorder %v919, 0
  %vm1018 = vcmp.ne.s32.totalorder %v926, 0
  %vm1019 = vcmp.ne.s32.totalorder %v933, 0
  %vm1020 = vcmp.ne.s32.totalorder %v940, 0
  %vm1021 = vcmp.ne.s32.totalorder %v947, 0
  %vm1022 = vcmp.ne.s32.totalorder %v954, 0
  %vm1023 = vcmp.ne.s32.totalorder %v961, 0
  %vm1024 = vcmp.ne.s32.totalorder %v968, 0
  %vm1025 = vcmp.ne.s32.totalorder %v975, 0
  %vm1026 = vcmp.ne.s32.totalorder %v982, 0
  %vm1027 = vcmp.ne.s32.totalorder %v989, 0
  %vm1028 = vcmp.ne.s32.totalorder %v996, 0
  %vm1029 = vcmp.lt.s32.totalorder %v779, 0
  %vm1030 = vcmp.lt.s32.totalorder %v786, 0
  %vm1031 = vcmp.lt.s32.totalorder %v793, 0
  %vm1032 = vcmp.lt.s32.totalorder %v800, 0
  %vm1033 = vcmp.lt.s32.totalorder %v807, 0
  %vm1034 = vcmp.lt.s32.totalorder %v814, 0
  %vm1035 = vcmp.lt.s32.totalorder %v821, 0
  %vm1036 = vcmp.lt.s32.totalorder %v828, 0
  %vm1037 = vcmp.lt.s32.totalorder %v835, 0
  %vm1038 = vcmp.lt.s32.totalorder %v842, 0
  %vm1039 = vcmp.lt.s32.totalorder %v849, 0
  %vm1040 = vcmp.lt.s32.totalorder %v856, 0
  %vm1041 = vcmp.lt.s32.totalorder %v863, 0
  %vm1042 = vcmp.lt.s32.totalorder %v870, 0
  %vm1043 = vcmp.lt.s32.totalorder %v877, 0
  %vm1044 = vcmp.lt.s32.totalorder %v884, 0
  %vm1045 = vcmp.lt.s32.totalorder %v891, 0
  %vm1046 = vcmp.lt.s32.totalorder %v898, 0
  %vm1047 = vcmp.lt.s32.totalorder %v905, 0
  %vm1048 = vcmp.lt.s32.totalorder %v912, 0
  %vm1049 = vcmp.lt.s32.totalorder %v919, 0
  %vm1050 = vcmp.lt.s32.totalorder %v926, 0
  %vm1051 = vcmp.lt.s32.totalorder %v933, 0
  %vm1052 = vcmp.lt.s32.totalorder %v940, 0
  %vm1053 = vcmp.lt.s32.totalorder %v947, 0
  %vm1054 = vcmp.lt.s32.totalorder %v954, 0
  %vm1055 = vcmp.lt.s32.totalorder %v961, 0
  %vm1056 = vcmp.lt.s32.totalorder %v968, 0
  %vm1057 = vcmp.lt.s32.totalorder %v975, 0
  %vm1058 = vcmp.lt.s32.totalorder %v982, 0
  %vm1059 = vcmp.lt.s32.totalorder %v989, 0
  %vm1060 = vcmp.lt.s32.totalorder %v996, 0
  %vm1061 = vmand %vm1029, %vm997
  %vm1062 = vmand %vm1030, %vm998
  %vm1063 = vmand %vm1031, %vm999
  %vm1064 = vmand %vm1032, %vm1000
  %vm1065 = vmand %vm1033, %vm1001
  %vm1066 = vmand %vm1034, %vm1002
  %vm1067 = vmand %vm1035, %vm1003
  %vm1068 = vmand %vm1036, %vm1004
  %vm1069 = vmand %vm1037, %vm1005
  %vm1070 = vmand %vm1038, %vm1006
  %vm1071 = vmand %vm1039, %vm1007
  %vm1072 = vmand %vm1040, %vm1008
  %vm1073 = vmand %vm1041, %vm1009
  %vm1074 = vmand %vm1042, %vm1010
  %vm1075 = vmand %vm1043, %vm1011
  %vm1076 = vmand %vm1044, %vm1012
  %vm1077 = vmand %vm1045, %vm1013
  %vm1078 = vmand %vm1046, %vm1014
  %vm1079 = vmand %vm1047, %vm1015
  %vm1080 = vmand %vm1048, %vm1016
  %vm1081 = vmand %vm1049, %vm1017
  %vm1082 = vmand %vm1050, %vm1018
  %vm1083 = vmand %vm1051, %vm1019
  %vm1084 = vmand %vm1052, %vm1020
  %vm1085 = vmand %vm1053, %vm1021
  %vm1086 = vmand %vm1054, %vm1022
  %vm1087 = vmand %vm1055, %vm1023
  %vm1088 = vmand %vm1056, %vm1024
  %vm1089 = vmand %vm1057, %vm1025
  %vm1090 = vmand %vm1058, %vm1026
  %vm1091 = vmand %vm1059, %vm1027
  %vm1092 = vmand %vm1060, %vm1028
  %v1093 = vadd.s32 %v779, 16
  %v1094 = vadd.s32 %v786, 16
  %v1095 = vadd.s32 %v793, 16
  %v1096 = vadd.s32 %v800, 16
  %v1097 = vadd.s32 %v807, 16
  %v1098 = vadd.s32 %v814, 16
  %v1099 = vadd.s32 %v821, 16
  %v1100 = vadd.s32 %v828, 16
  %v1101 = vadd.s32 %v835, 16
  %v1102 = vadd.s32 %v842, 16
  %v1103 = vadd.s32 %v849, 16
  %v1104 = vadd.s32 %v856, 16
  %v1105 = vadd.s32 %v863, 16
  %v1106 = vadd.s32 %v870, 16
  %v1107 = vadd.s32 %v877, 16
  %v1108 = vadd.s32 %v884, 16
  %v1109 = vadd.s32 %v891, 16
  %v1110 = vadd.s32 %v898, 16
  %v1111 = vadd.s32 %v905, 16
  %v1112 = vadd.s32 %v912, 16
  %v1113 = vadd.s32 %v919, 16
  %v1114 = vadd.s32 %v926, 16
  %v1115 = vadd.s32 %v933, 16
  %v1116 = vadd.s32 %v940, 16
  %v1117 = vadd.s32 %v947, 16
  %v1118 = vadd.s32 %v954, 16
  %v1119 = vadd.s32 %v961, 16
  %v1120 = vadd.s32 %v968, 16
  %v1121 = vadd.s32 %v975, 16
  %v1122 = vadd.s32 %v982, 16
  %v1123 = vadd.s32 %v989, 16
  %v1124 = vadd.s32 %v996, 16
  %v1125 = vsel %vm1061, %v1093, %v779
  %v1126 = vsel %vm1062, %v1094, %v786
  %v1127 = vsel %vm1063, %v1095, %v793
  %v1128 = vsel %vm1064, %v1096, %v800
  %v1129 = vsel %vm1065, %v1097, %v807
  %v1130 = vsel %vm1066, %v1098, %v814
  %v1131 = vsel %vm1067, %v1099, %v821
  %v1132 = vsel %vm1068, %v1100, %v828
  %v1133 = vsel %vm1069, %v1101, %v835
  %v1134 = vsel %vm1070, %v1102, %v842
  %v1135 = vsel %vm1071, %v1103, %v849
  %v1136 = vsel %vm1072, %v1104, %v856
  %v1137 = vsel %vm1073, %v1105, %v863
  %v1138 = vsel %vm1074, %v1106, %v870
  %v1139 = vsel %vm1075, %v1107, %v877
  %v1140 = vsel %vm1076, %v1108, %v884
  %v1141 = vsel %vm1077, %v1109, %v891
  %v1142 = vsel %vm1078, %v1110, %v898
  %v1143 = vsel %vm1079, %v1111, %v905
  %v1144 = vsel %vm1080, %v1112, %v912
  %v1145 = vsel %vm1081, %v1113, %v919
  %v1146 = vsel %vm1082, %v1114, %v926
  %v1147 = vsel %vm1083, %v1115, %v933
  %v1148 = vsel %vm1084, %v1116, %v940
  %v1149 = vsel %vm1085, %v1117, %v947
  %v1150 = vsel %vm1086, %v1118, %v954
  %v1151 = vsel %vm1087, %v1119, %v961
  %v1152 = vsel %vm1088, %v1120, %v968
  %v1153 = vsel %vm1089, %v1121, %v975
  %v1154 = vsel %vm1090, %v1122, %v982
  %v1155 = vsel %vm1091, %v1123, %v989
  %v1156 = vsel %vm1092, %v1124, %v996
  %vm1157 = vcmp.ne.s32.totalorder %v1125, 0
  %vm1158 = vcmp.ne.s32.totalorder %v1126, 0
  %vm1159 = vcmp.ne.s32.totalorder %v1127, 0
  %vm1160 = vcmp.ne.s32.totalorder %v1128, 0
  %vm1161 = vcmp.ne.s32.totalorder %v1129, 0
  %vm1162 = vcmp.ne.s32.totalorder %v1130, 0
  %vm1163 = vcmp.ne.s32.totalorder %v1131, 0
  %vm1164 = vcmp.ne.s32.totalorder %v1132, 0
  %vm1165 = vcmp.ne.s32.totalorder %v1133, 0
  %vm1166 = vcmp.ne.s32.totalorder %v1134, 0
  %vm1167 = vcmp.ne.s32.totalorder %v1135, 0
  %vm1168 = vcmp.ne.s32.totalorder %v1136, 0
  %vm1169 = vcmp.ne.s32.totalorder %v1137, 0
  %vm1170 = vcmp.ne.s32.totalorder %v1138, 0
  %vm1171 = vcmp.ne.s32.totalorder %v1139, 0
  %vm1172 = vcmp.ne.s32.totalorder %v1140, 0
  %vm1173 = vcmp.ne.s32.totalorder %v1141, 0
  %vm1174 = vcmp.ne.s32.totalorder %v1142, 0
  %vm1175 = vcmp.ne.s32.totalorder %v1143, 0
  %vm1176 = vcmp.ne.s32.totalorder %v1144, 0
  %vm1177 = vcmp.ne.s32.totalorder %v1145, 0
  %vm1178 = vcmp.ne.s32.totalorder %v1146, 0
  %vm1179 = vcmp.ne.s32.totalorder %v1147, 0
  %vm1180 = vcmp.ne.s32.totalorder %v1148, 0
  %vm1181 = vcmp.ne.s32.totalorder %v1149, 0
  %vm1182 = vcmp.ne.s32.totalorder %v1150, 0
  %vm1183 = vcmp.ne.s32.totalorder %v1151, 0
  %vm1184 = vcmp.ne.s32.totalorder %v1152, 0
  %vm1185 = vcmp.ne.s32.totalorder %v1153, 0
  %vm1186 = vcmp.ne.s32.totalorder %v1154, 0
  %vm1187 = vcmp.ne.s32.totalorder %v1155, 0
  %vm1188 = vcmp.ne.s32.totalorder %v1156, 0
  %v1189 = vsel %vm1157, 1, 0
  %v1190 = vsel %vm1158, 1, 0
  %v1191 = vsel %vm1159, 1, 0
  %v1192 = vsel %vm1160, 1, 0
  %v1193 = vsel %vm1161, 1, 0
  %v1194 = vsel %vm1162, 1, 0
  %v1195 = vsel %vm1163, 1, 0
  %v1196 = vsel %vm1164, 1, 0
  %v1197 = vsel %vm1165, 1, 0
  %v1198 = vsel %vm1166, 1, 0
  %v1199 = vsel %vm1167, 1, 0
  %v1200 = vsel %vm1168, 1, 0
  %v1201 = vsel %vm1169, 1, 0
  %v1202 = vsel %vm1170, 1, 0
  %v1203 = vsel %vm1171, 1, 0
  %v1204 = vsel %vm1172, 1, 0
  %v1205 = vsel %vm1173, 1, 0
  %v1206 = vsel %vm1174, 1, 0
  %v1207 = vsel %vm1175, 1, 0
  %v1208 = vsel %vm1176, 1, 0
  %v1209 = vsel %vm1177, 1, 0
  %v1210 = vsel %vm1178, 1, 0
  %v1211 = vsel %vm1179, 1, 0
  %v1212 = vsel %vm1180, 1, 0
  %v1213 = vsel %vm1181, 1, 0
  %v1214 = vsel %vm1182, 1, 0
  %v1215 = vsel %vm1183, 1, 0
  %v1216 = vsel %vm1184, 1, 0
  %v1217 = vsel %vm1185, 1, 0
  %v1218 = vsel %vm1186, 1, 0
  %v1219 = vsel %vm1187, 1, 0
  %v1220 = vsel %vm1188, 1, 0
  %v1221 = vcvt.s32.f32 %v1189
  %v1222 = vcvt.s32.f32 %v1190
  %v1223 = vcvt.s32.f32 %v1191
  %v1224 = vcvt.s32.f32 %v1192
  %v1225 = vcvt.s32.f32 %v1193
  %v1226 = vcvt.s32.f32 %v1194
  %v1227 = vcvt.s32.f32 %v1195
  %v1228 = vcvt.s32.f32 %v1196
  %v1229 = vcvt.s32.f32 %v1197
  %v1230 = vcvt.s32.f32 %v1198
  %v1231 = vcvt.s32.f32 %v1199
  %v1232 = vcvt.s32.f32 %v1200
  %v1233 = vcvt.s32.f32 %v1201
  %v1234 = vcvt.s32.f32 %v1202
  %v1235 = vcvt.s32.f32 %v1203
  %v1236 = vcvt.s32.f32 %v1204
  %v1237 = vcvt.s32.f32 %v1205
  %v1238 = vcvt.s32.f32 %v1206
  %v1239 = vcvt.s32.f32 %v1207
  %v1240 = vcvt.s32.f32 %v1208
  %v1241 = vcvt.s32.f32 %v1209
  %v1242 = vcvt.s32.f32 %v1210
  %v1243 = vcvt.s32.f32 %v1211
  %v1244 = vcvt.s32.f32 %v1212
  %v1245 = vcvt.s32.f32 %v1213
  %v1246 = vcvt.s32.f32 %v1214
  %v1247 = vcvt.s32.f32 %v1215
  %v1248 = vcvt.s32.f32 %v1216
  %v1249 = vcvt.s32.f32 %v1217
  %v1250 = vcvt.s32.f32 %v1218
  %v1251 = vcvt.s32.f32 %v1219
  %v1252 = vcvt.s32.f32 %v1220
  %vm1253 = vcmp.ne.s32.totalorder %v1125, 15
  %vm1254 = vcmp.ne.s32.totalorder %v1126, 15
  %vm1255 = vcmp.ne.s32.totalorder %v1127, 15
  %vm1256 = vcmp.ne.s32.totalorder %v1128, 15
  %vm1257 = vcmp.ne.s32.totalorder %v1129, 15
  %vm1258 = vcmp.ne.s32.totalorder %v1130, 15
  %vm1259 = vcmp.ne.s32.totalorder %v1131, 15
  %vm1260 = vcmp.ne.s32.totalorder %v1132, 15
  %vm1261 = vcmp.ne.s32.totalorder %v1133, 15
  %vm1262 = vcmp.ne.s32.totalorder %v1134, 15
  %vm1263 = vcmp.ne.s32.totalorder %v1135, 15
  %vm1264 = vcmp.ne.s32.totalorder %v1136, 15
  %vm1265 = vcmp.ne.s32.totalorder %v1137, 15
  %vm1266 = vcmp.ne.s32.totalorder %v1138, 15
  %vm1267 = vcmp.ne.s32.totalorder %v1139, 15
  %vm1268 = vcmp.ne.s32.totalorder %v1140, 15
  %vm1269 = vcmp.ne.s32.totalorder %v1141, 15
  %vm1270 = vcmp.ne.s32.totalorder %v1142, 15
  %vm1271 = vcmp.ne.s32.totalorder %v1143, 15
  %vm1272 = vcmp.ne.s32.totalorder %v1144, 15
  %vm1273 = vcmp.ne.s32.totalorder %v1145, 15
  %vm1274 = vcmp.ne.s32.totalorder %v1146, 15
  %vm1275 = vcmp.ne.s32.totalorder %v1147, 15
  %vm1276 = vcmp.ne.s32.totalorder %v1148, 15
  %vm1277 = vcmp.ne.s32.totalorder %v1149, 15
  %vm1278 = vcmp.ne.s32.totalorder %v1150, 15
  %vm1279 = vcmp.ne.s32.totalorder %v1151, 15
  %vm1280 = vcmp.ne.s32.totalorder %v1152, 15
  %vm1281 = vcmp.ne.s32.totalorder %v1153, 15
  %vm1282 = vcmp.ne.s32.totalorder %v1154, 15
  %vm1283 = vcmp.ne.s32.totalorder %v1155, 15
  %vm1284 = vcmp.ne.s32.totalorder %v1156, 15
  %v1285 = vsel %vm1253, 1, 0
  %v1286 = vsel %vm1254, 1, 0
  %v1287 = vsel %vm1255, 1, 0
  %v1288 = vsel %vm1256, 1, 0
  %v1289 = vsel %vm1257, 1, 0
  %v1290 = vsel %vm1258, 1, 0
  %v1291 = vsel %vm1259, 1, 0
  %v1292 = vsel %vm1260, 1, 0
  %v1293 = vsel %vm1261, 1, 0
  %v1294 = vsel %vm1262, 1, 0
  %v1295 = vsel %vm1263, 1, 0
  %v1296 = vsel %vm1264, 1, 0
  %v1297 = vsel %vm1265, 1, 0
  %v1298 = vsel %vm1266, 1, 0
  %v1299 = vsel %vm1267, 1, 0
  %v1300 = vsel %vm1268, 1, 0
  %v1301 = vsel %vm1269, 1, 0
  %v1302 = vsel %vm1270, 1, 0
  %v1303 = vsel %vm1271, 1, 0
  %v1304 = vsel %vm1272, 1, 0
  %v1305 = vsel %vm1273, 1, 0
  %v1306 = vsel %vm1274, 1, 0
  %v1307 = vsel %vm1275, 1, 0
  %v1308 = vsel %vm1276, 1, 0
  %v1309 = vsel %vm1277, 1, 0
  %v1310 = vsel %vm1278, 1, 0
  %v1311 = vsel %vm1279, 1, 0
  %v1312 = vsel %vm1280, 1, 0
  %v1313 = vsel %vm1281, 1, 0
  %v1314 = vsel %vm1282, 1, 0
  %v1315 = vsel %vm1283, 1, 0
  %v1316 = vsel %vm1284, 1, 0
  %v1317 = vcvt.s32.f32 %v1285
  %v1318 = vcvt.s32.f32 %v1286
  %v1319 = vcvt.s32.f32 %v1287
  %v1320 = vcvt.s32.f32 %v1288
  %v1321 = vcvt.s32.f32 %v1289
  %v1322 = vcvt.s32.f32 %v1290
  %v1323 = vcvt.s32.f32 %v1291
  %v1324 = vcvt.s32.f32 %v1292
  %v1325 = vcvt.s32.f32 %v1293
  %v1326 = vcvt.s32.f32 %v1294
  %v1327 = vcvt.s32.f32 %v1295
  %v1328 = vcvt.s32.f32 %v1296
  %v1329 = vcvt.s32.f32 %v1297
  %v1330 = vcvt.s32.f32 %v1298
  %v1331 = vcvt.s32.f32 %v1299
  %v1332 = vcvt.s32.f32 %v1300
  %v1333 = vcvt.s32.f32 %v1301
  %v1334 = vcvt.s32.f32 %v1302
  %v1335 = vcvt.s32.f32 %v1303
  %v1336 = vcvt.s32.f32 %v1304
  %v1337 = vcvt.s32.f32 %v1305
  %v1338 = vcvt.s32.f32 %v1306
  %v1339 = vcvt.s32.f32 %v1307
  %v1340 = vcvt.s32.f32 %v1308
  %v1341 = vcvt.s32.f32 %v1309
  %v1342 = vcvt.s32.f32 %v1310
  %v1343 = vcvt.s32.f32 %v1311
  %v1344 = vcvt.s32.f32 %v1312
  %v1345 = vcvt.s32.f32 %v1313
  %v1346 = vcvt.s32.f32 %v1314
  %v1347 = vcvt.s32.f32 %v1315
  %v1348 = vcvt.s32.f32 %v1316
  %vm1349 = vcmask 64512
  %1350 = vst.msk [vmem:[#allocation2] sm:$0xff] %vm1349, 0.0
  %1351 = vst.msk [vmem:[#allocation2 + $0x8] sm:$0xff] %vm1349, 0.0
  %vm1352 = vcmask 57344
  %1353 = vst.msk [vmem:[#allocation2 + $0x10] sm:$0x1] %vm1352, 0.0
  %1354 = vst.msk [vmem:[#allocation2 + $0x111] sm:$0xff] %vm1349, 0.0
  %1355 = vst.msk [vmem:[#allocation2 + $0x119] sm:$0xff] %vm1349, 0.0
  %1356 = vst.msk [vmem:[#allocation2 + $0x121] sm:$0x1] %vm1352, 0.0
  %1357 = vst.msk [vmem:[#allocation2 + $0x11] sm:$0xff] %vm1349, %v676
  %1358 = vst.msk [vmem:[#allocation2 + $0x19] sm:$0xff] %vm1349, %v677
  %1359 = vst.msk [vmem:[#allocation2 + $0x21] sm:$0xff] %vm1349, %v678
  %1360 = vst.msk [vmem:[#allocation2 + $0x29] sm:$0xff] %vm1349, %v679
  %1361 = vst.msk [vmem:[#allocation2 + $0x31] sm:$0xff] %vm1349, %v680
  %1362 = vst.msk [vmem:[#allocation2 + $0x39] sm:$0xff] %vm1349, %v681
  %1363 = vst.msk [vmem:[#allocation2 + $0x41] sm:$0xff] %vm1349, %v682
  %1364 = vst.msk [vmem:[#allocation2 + $0x49] sm:$0xff] %vm1349, %v683
  %1365 = vst.msk [vmem:[#allocation2 + $0x51] sm:$0xff] %vm1349, %v684
  %1366 = vst.msk [vmem:[#allocation2 + $0x59] sm:$0xff] %vm1349, %v685
  %1367 = vst.msk [vmem:[#allocation2 + $0x61] sm:$0xff] %vm1349, %v686
  %1368 = vst.msk [vmem:[#allocation2 + $0x69] sm:$0xff] %vm1349, %v687
  %1369 = vst.msk [vmem:[#allocation2 + $0x71] sm:$0xff] %vm1349, %v688
  %1370 = vst.msk [vmem:[#allocation2 + $0x79] sm:$0xff] %vm1349, %v689
  %1371 = vst.msk [vmem:[#allocation2 + $0x81] sm:$0xff] %vm1349, %v690
  %1372 = vst.msk [vmem:[#allocation2 + $0x89] sm:$0xff] %vm1349, %v691
  %1373 = vst.msk [vmem:[#allocation2 + $0x91] sm:$0xff] %vm1349, %v692
  %1374 = vst.msk [vmem:[#allocation2 + $0x99] sm:$0xff] %vm1349, %v693
  %1375 = vst.msk [vmem:[#allocation2 + $0xa1] sm:$0xff] %vm1349, %v694
  %1376 = vst.msk [vmem:[#allocation2 + $0xa9] sm:$0xff] %vm1349, %v695
  %1377 = vst.msk [vmem:[#allocation2 + $0xb1] sm:$0xff] %vm1349, %v696
  %1378 = vst.msk [vmem:[#allocation2 + $0xb9] sm:$0xff] %vm1349, %v697
  %1379 = vst.msk [vmem:[#allocation2 + $0xc1] sm:$0xff] %vm1349, %v698
  %1380 = vst.msk [vmem:[#allocation2 + $0xc9] sm:$0xff] %vm1349, %v699
  %1381 = vst.msk [vmem:[#allocation2 + $0xd1] sm:$0xff] %vm1349, %v700
  %1382 = vst.msk [vmem:[#allocation2 + $0xd9] sm:$0xff] %vm1349, %v701
  %1383 = vst.msk [vmem:[#allocation2 + $0xe1] sm:$0xff] %vm1349, %v702
  %1384 = vst.msk [vmem:[#allocation2 + $0xe9] sm:$0xff] %vm1349, %v703
  %1385 = vst.msk [vmem:[#allocation2 + $0xf1] sm:$0xff] %vm1349, %v704
  %1386 = vst.msk [vmem:[#allocation2 + $0xf9] sm:$0xff] %vm1349, %v705
  %1387 = vst.msk [vmem:[#allocation2 + $0x101] sm:$0xff] %vm1349, %v706
  %1388 = vst.msk [vmem:[#allocation2 + $0x109] sm:$0xff] %vm1349, %v707
  %v1389 = vld [vmem:[#allocation2] sm:$0xff]
  %v1390 = vld [vmem:[#allocation2 + $0x8] sm:$0xff]
  %v1391 = vld [vmem:[#allocation2 + $0x10] sm:$0xff]
  %v1392 = vld [vmem:[#allocation2 + $0x18] sm:$0xff]
  %v1393 = vld [vmem:[#allocation2 + $0x20] sm:$0xff]
  %v1394 = vld [vmem:[#allocation2 + $0x28] sm:$0xff]
  %v1395 = vld [vmem:[#allocation2 + $0x30] sm:$0xff]
  %v1396 = vld [vmem:[#allocation2 + $0x38] sm:$0xff]
  %v1397 = vld [vmem:[#allocation2 + $0x40] sm:$0xff]
  %v1398 = vld [vmem:[#allocation2 + $0x48] sm:$0xff]
  %v1399 = vld [vmem:[#allocation2 + $0x50] sm:$0xff]
  %v1400 = vld [vmem:[#allocation2 + $0x58] sm:$0xff]
  %v1401 = vld [vmem:[#allocation2 + $0x60] sm:$0xff]
  %v1402 = vld [vmem:[#allocation2 + $0x68] sm:$0xff]
  %v1403 = vld [vmem:[#allocation2 + $0x70] sm:$0xff]
  %v1404 = vld [vmem:[#allocation2 + $0x78] sm:$0xff]
  %v1405 = vld [vmem:[#allocation2 + $0x80] sm:$0xff]
  %v1406 = vld [vmem:[#allocation2 + $0x88] sm:$0xff]
  %v1407 = vld [vmem:[#allocation2 + $0x90] sm:$0xff]
  %v1408 = vld [vmem:[#allocation2 + $0x98] sm:$0xff]
  %v1409 = vld [vmem:[#allocation2 + $0xa0] sm:$0xff]
  %v1410 = vld [vmem:[#allocation2 + $0xa8] sm:$0xff]
  %v1411 = vld [vmem:[#allocation2 + $0xb0] sm:$0xff]
  %v1412 = vld [vmem:[#allocation2 + $0xb8] sm:$0xff]
  %v1413 = vld [vmem:[#allocation2 + $0xc0] sm:$0xff]
  %v1414 = vld [vmem:[#allocation2 + $0xc8] sm:$0xff]
  %v1415 = vld [vmem:[#allocation2 + $0xd0] sm:$0xff]
  %v1416 = vld [vmem:[#allocation2 + $0xd8] sm:$0xff]
  %v1417 = vld [vmem:[#allocation2 + $0xe0] sm:$0xff]
  %v1418 = vld [vmem:[#allocation2 + $0xe8] sm:$0xff]
  %v1419 = vld [vmem:[#allocation2 + $0xf0] sm:$0xff]
  %v1420 = vld [vmem:[#allocation2 + $0xf8] sm:$0xff]
  %v1421 = vmul.f32 %v1389, %v1221
  %v1422 = vmul.f32 %v1390, %v1222
  %v1423 = vmul.f32 %v1391, %v1223
  %v1424 = vmul.f32 %v1392, %v1224
  %v1425 = vmul.f32 %v1393, %v1225
  %v1426 = vmul.f32 %v1394, %v1226
  %v1427 = vmul.f32 %v1395, %v1227
  %v1428 = vmul.f32 %v1396, %v1228
  %v1429 = vmul.f32 %v1397, %v1229
  %v1430 = vmul.f32 %v1398, %v1230
  %v1431 = vmul.f32 %v1399, %v1231
  %v1432 = vmul.f32 %v1400, %v1232
  %v1433 = vmul.f32 %v1401, %v1233
  %v1434 = vmul.f32 %v1402, %v1234
  %v1435 = vmul.f32 %v1403, %v1235
  %v1436 = vmul.f32 %v1404, %v1236
  %v1437 = vmul.f32 %v1405, %v1237
  %v1438 = vmul.f32 %v1406, %v1238
  %v1439 = vmul.f32 %v1407, %v1239
  %v1440 = vmul.f32 %v1408, %v1240
  %v1441 = vmul.f32 %v1409, %v1241
  %v1442 = vmul.f32 %v1410, %v1242
  %v1443 = vmul.f32 %v1411, %v1243
  %v1444 = vmul.f32 %v1412, %v1244
  %v1445 = vmul.f32 %v1413, %v1245
  %v1446 = vmul.f32 %v1414, %v1246
  %v1447 = vmul.f32 %v1415, %v1247
  %v1448 = vmul.f32 %v1416, %v1248
  %v1449 = vmul.f32 %v1417, %v1249
  %v1450 = vmul.f32 %v1418, %v1250
  %v1451 = vmul.f32 %v1419, %v1251
  %v1452 = vmul.f32 %v1420, %v1252
  %v1453 = vpack.c.bf16 %v1422, %v1421
  %v1454 = vpack.c.bf16 %v1424, %v1423
  %v1455 = vpack.c.bf16 %v1426, %v1425
  %v1456 = vpack.c.bf16 %v1428, %v1427
  %v1457 = vpack.c.bf16 %v1430, %v1429
  %v1458 = vpack.c.bf16 %v1432, %v1431
  %v1459 = vpack.c.bf16 %v1434, %v1433
  %v1460 = vpack.c.bf16 %v1436, %v1435
  %v1461 = vpack.c.bf16 %v1438, %v1437
  %v1462 = vpack.c.bf16 %v1440, %v1439
  %v1463 = vpack.c.bf16 %v1442, %v1441
  %v1464 = vpack.c.bf16 %v1444, %v1443
  %v1465 = vpack.c.bf16 %v1446, %v1445
  %v1466 = vpack.c.bf16 %v1448, %v1447
  %v1467 = vpack.c.bf16 %v1450, %v1449
  %v1468 = vpack.c.bf16 %v1452, %v1451
  %v1469 = vld [vmem:[%s4] sm:$0xf]
  %v1470 = vld [vmem:[#allocation2 + $0x1] sm:$0xff]
  %v1471 = vld [vmem:[#allocation2 + $0x9] sm:$0xff]
  %v1472 = vld [vmem:[#allocation2 + $0x11] sm:$0xff]
  %v1473 = vld [vmem:[#allocation2 + $0x19] sm:$0xff]
  %v1474 = vld [vmem:[#allocation2 + $0x21] sm:$0xff]
  %v1475 = vld [vmem:[#allocation2 + $0x29] sm:$0xff]
  %v1476 = vld [vmem:[#allocation2 + $0x31] sm:$0xff]
  %v1477 = vld [vmem:[#allocation2 + $0x39] sm:$0xff]
  %v1478 = vld [vmem:[#allocation2 + $0x41] sm:$0xff]
  %v1479 = vld [vmem:[#allocation2 + $0x49] sm:$0xff]
  %v1480 = vld [vmem:[#allocation2 + $0x51] sm:$0xff]
  %v1481 = vld [vmem:[#allocation2 + $0x59] sm:$0xff]
  %v1482 = vld [vmem:[#allocation2 + $0x61] sm:$0xff]
  %v1483 = vld [vmem:[#allocation2 + $0x69] sm:$0xff]
  %v1484 = vld [vmem:[#allocation2 + $0x71] sm:$0xff]
  %v1485 = vld [vmem:[#allocation2 + $0x79] sm:$0xff]
  %v1486 = vld [vmem:[#allocation2 + $0x81] sm:$0xff]
  %v1487 = vld [vmem:[#allocation2 + $0x89] sm:$0xff]
  %v1488 = vld [vmem:[#allocation2 + $0x91] sm:$0xff]
  %v1489 = vld [vmem:[#allocation2 + $0x99] sm:$0xff]
  %v1490 = vld [vmem:[#allocation2 + $0xa1] sm:$0xff]
  %v1491 = vld [vmem:[#allocation2 + $0xa9] sm:$0xff]
  %v1492 = vld [vmem:[#allocation2 + $0xb1] sm:$0xff]
  %v1493 = vld [vmem:[#allocation2 + $0xb9] sm:$0xff]
  %v1494 = vld [vmem:[#allocation2 + $0xc1] sm:$0xff]
  %v1495 = vld [vmem:[#allocation2 + $0xc9] sm:$0xff]
  %v1496 = vld [vmem:[#allocation2 + $0xd1] sm:$0xff]
  %v1497 = vld [vmem:[#allocation2 + $0xd9] sm:$0xff]
  %v1498 = vld [vmem:[#allocation2 + $0xe1] sm:$0xff]
  %v1499 = vld [vmem:[#allocation2 + $0xe9] sm:$0xff]
  %v1500 = vld [vmem:[#allocation2 + $0xf1] sm:$0xff]
  %v1501 = vld [vmem:[#allocation2 + $0xf9] sm:$0xff]
  %v1502 = vpack.c.bf16 %v1471, %v1470
  %v1503 = vpack.c.bf16 %v1473, %v1472
  %v1504 = vpack.c.bf16 %v1475, %v1474
  %v1505 = vpack.c.bf16 %v1477, %v1476
  %v1506 = vpack.c.bf16 %v1479, %v1478
  %v1507 = vpack.c.bf16 %v1481, %v1480
  %v1508 = vpack.c.bf16 %v1483, %v1482
  %v1509 = vpack.c.bf16 %v1485, %v1484
  %v1510 = vpack.c.bf16 %v1487, %v1486
  %v1511 = vpack.c.bf16 %v1489, %v1488
  %v1512 = vpack.c.bf16 %v1491, %v1490
  %v1513 = vpack.c.bf16 %v1493, %v1492
  %v1514 = vpack.c.bf16 %v1495, %v1494
  %v1515 = vpack.c.bf16 %v1497, %v1496
  %v1516 = vpack.c.bf16 %v1499, %v1498
  %v1517 = vpack.c.bf16 %v1501, %v1500
  %v1518 = vld [vmem:[%s4 + $0x4] sm:$0xf]
  %v1520 = vsel %vm1349, %v1502, 0
  %v1523 = vsel %vm1349, %v1503, 0
  %v1526 = vsel %vm1349, %v1504, 0
  %v1529 = vsel %vm1349, %v1505, 0
  %v1532 = vsel %vm1349, %v1506, 0
  %v1535 = vsel %vm1349, %v1507, 0
  %v1538 = vsel %vm1349, %v1508, 0
  %v1541 = vsel %vm1349, %v1509, 0
  %v1544 = vsel %vm1349, %v1510, 0
  %v1547 = vsel %vm1349, %v1511, 0
  %v1550 = vsel %vm1349, %v1512, 0
  %v1553 = vsel %vm1349, %v1513, 0
  %v1556 = vsel %vm1349, %v1514, 0
  %v1559 = vsel %vm1349, %v1515, 0
  %v1562 = vsel %vm1349, %v1516, 0
  %v1565 = vsel %vm1349, %v1517, 0
  %vm1567 = vcmask 1043456
  %v1569 = vsel %vm1567, %v1518, 0
  %1571 = vmatprep.subr.bf16.mxu0 0
  %1572 = vmatpush1.bf16.msra.mxu0 0
  %1573 = vmatprep.subr.bf16.mxu0 0
  %1574 = vmatpush1.bf16.msra.mxu0 0
  %1575 = vmatprep.subr.bf16.mxu0 0
  %1576 = vmatpush1.bf16.msra.mxu0 0
  %1577 = vmatprep.subr.bf16.mxu0 0
  %1578 = vmatpush1.bf16.msra.mxu0 0
  %1579 = vmatprep.subr.bf16.mxu0 0
  %1580 = vmatpush1.bf16.msra.mxu0 0
  %1581 = vmatprep.subr.bf16.mxu0 0
  %1582 = vmatpush1.bf16.msra.mxu0 0
  %1583 = vmatprep.subr.bf16.mxu0 0
  %1584 = vmatpush1.bf16.msra.mxu0 0
  %1585 = vmatprep.subr.bf16.mxu0 0
  %1586 = vmatpush1.bf16.msra.mxu0 %v1569
  %1587 = vmatprep.subr.bf16.mxu0 0
  %1588 = vmatpush2.bf16.msra.mxu0 0
  %1589 = vmatprep.subr.bf16.mxu0 0
  %1590 = vmatpush2.bf16.msra.mxu0 0
  %1591 = vmatprep.subr.bf16.mxu0 0
  %1592 = vmatpush2.bf16.msra.mxu0 0
  %1593 = vmatprep.subr.bf16.mxu0 0
  %1594 = vmatpush2.bf16.msra.mxu0 0
  %1595 = vmatprep.subr.bf16.mxu0 0
  %1596 = vmatpush2.bf16.msra.mxu0 0
  %1597 = vmatprep.subr.bf16.mxu0 0
  %1598 = vmatpush2.bf16.msra.mxu0 0
  %1599 = vmatprep.subr.bf16.mxu0 0
  %1600 = vmatpush2.bf16.msra.mxu0 0
  %1601 = vmatprep.subr.bf16.mxu0 0
  %1602 = vmatpush2.bf16.msra.mxu0 0
  %1603 = vmatprep.mubr.bf16.mxu0 0
  %1604 = vmatmul.mubr.bf16.gmra.mxu0 %v1520
  %v1605 = vpop.f32.mrf.mxu0
  %v1606 = vadd.f32 0.0, %v1605
  %v1607 = vpop.f32.mrf.mxu0
  %v1608 = vpop.f32.mrf.mxu0
  %v1609 = vadd.f32 0.0, %v1608
  %v1610 = vpop.f32.mrf.mxu0
  %1611 = vmatprep.mubr.bf16.mxu0 0
  %1612 = vmatmul.mubr.bf16.gmra.mxu0 %v1523
  %v1613 = vpop.f32.mrf.mxu0
  %v1614 = vadd.f32 0.0, %v1613
  %v1615 = vpop.f32.mrf.mxu0
  %v1616 = vpop.f32.mrf.mxu0
  %v1617 = vadd.f32 0.0, %v1616
  %v1618 = vpop.f32.mrf.mxu0
  %1619 = vmatprep.mubr.bf16.mxu0 0
  %1620 = vmatmul.mubr.bf16.gmra.mxu0 %v1526
  %v1621 = vpop.f32.mrf.mxu0
  %v1622 = vadd.f32 0.0, %v1621
  %v1623 = vpop.f32.mrf.mxu0
  %v1624 = vpop.f32.mrf.mxu0
  %v1625 = vadd.f32 0.0, %v1624
  %v1626 = vpop.f32.mrf.mxu0
  %1627 = vmatprep.mubr.bf16.mxu0 0
  %1628 = vmatmul.mubr.bf16.gmra.mxu0 %v1529
  %v1629 = vpop.f32.mrf.mxu0
  %v1630 = vadd.f32 0.0, %v1629
  %v1631 = vpop.f32.mrf.mxu0
  %v1632 = vpop.f32.mrf.mxu0
  %v1633 = vadd.f32 0.0, %v1632
  %v1634 = vpop.f32.mrf.mxu0
  %1635 = vmatprep.mubr.bf16.mxu0 0
  %1636 = vmatmul.mubr.bf16.gmra.mxu0 %v1532
  %v1637 = vpop.f32.mrf.mxu0
  %v1638 = vadd.f32 0.0, %v1637
  %v1639 = vpop.f32.mrf.mxu0
  %v1640 = vpop.f32.mrf.mxu0
  %v1641 = vadd.f32 0.0, %v1640
  %v1642 = vpop.f32.mrf.mxu0
  %1643 = vmatprep.mubr.bf16.mxu0 0
  %1644 = vmatmul.mubr.bf16.gmra.mxu0 %v1535
  %v1645 = vpop.f32.mrf.mxu0
  %v1646 = vadd.f32 0.0, %v1645
  %v1647 = vpop.f32.mrf.mxu0
  %v1648 = vpop.f32.mrf.mxu0
  %v1649 = vadd.f32 0.0, %v1648
  %v1650 = vpop.f32.mrf.mxu0
  %1651 = vmatprep.mubr.bf16.mxu0 0
  %1652 = vmatmul.mubr.bf16.gmra.mxu0 %v1538
  %v1653 = vpop.f32.mrf.mxu0
  %v1654 = vadd.f32 0.0, %v1653
  %v1655 = vpop.f32.mrf.mxu0
  %v1656 = vpop.f32.mrf.mxu0
  %v1657 = vadd.f32 0.0, %v1656
  %v1658 = vpop.f32.mrf.mxu0
  %1659 = vmatprep.mubr.bf16.mxu0 0
  %1660 = vmatmul.mubr.bf16.gmra.mxu0 %v1541
  %v1661 = vpop.f32.mrf.mxu0
  %v1662 = vadd.f32 0.0, %v1661
  %v1663 = vpop.f32.mrf.mxu0
  %v1664 = vpop.f32.mrf.mxu0
  %v1665 = vadd.f32 0.0, %v1664
  %v1666 = vpop.f32.mrf.mxu0
  %1667 = vmatprep.mubr.bf16.mxu0 0
  %1668 = vmatmul.mubr.bf16.gmra.mxu0 %v1544
  %v1669 = vpop.f32.mrf.mxu0
  %v1670 = vadd.f32 0.0, %v1669
  %v1671 = vpop.f32.mrf.mxu0
  %v1672 = vpop.f32.mrf.mxu0
  %v1673 = vadd.f32 0.0, %v1672
  %v1674 = vpop.f32.mrf.mxu0
  %1675 = vmatprep.mubr.bf16.mxu0 0
  %1676 = vmatmul.mubr.bf16.gmra.mxu0 %v1547
  %v1677 = vpop.f32.mrf.mxu0
  %v1678 = vadd.f32 0.0, %v1677
  %v1679 = vpop.f32.mrf.mxu0
  %v1680 = vpop.f32.mrf.mxu0
  %v1681 = vadd.f32 0.0, %v1680
  %v1682 = vpop.f32.mrf.mxu0
  %1683 = vmatprep.mubr.bf16.mxu0 0
  %1684 = vmatmul.mubr.bf16.gmra.mxu0 %v1550
  %v1685 = vpop.f32.mrf.mxu0
  %v1686 = vadd.f32 0.0, %v1685
  %v1687 = vpop.f32.mrf.mxu0
  %v1688 = vpop.f32.mrf.mxu0
  %v1689 = vadd.f32 0.0, %v1688
  %v1690 = vpop.f32.mrf.mxu0
  %1691 = vmatprep.mubr.bf16.mxu0 0
  %1692 = vmatmul.mubr.bf16.gmra.mxu0 %v1553
  %v1693 = vpop.f32.mrf.mxu0
  %v1694 = vadd.f32 0.0, %v1693
  %v1695 = vpop.f32.mrf.mxu0
  %v1696 = vpop.f32.mrf.mxu0
  %v1697 = vadd.f32 0.0, %v1696
  %v1698 = vpop.f32.mrf.mxu0
  %1699 = vmatprep.mubr.bf16.mxu0 0
  %1700 = vmatmul.mubr.bf16.gmra.mxu0 %v1556
  %v1701 = vpop.f32.mrf.mxu0
  %v1702 = vadd.f32 0.0, %v1701
  %v1703 = vpop.f32.mrf.mxu0
  %v1704 = vpop.f32.mrf.mxu0
  %v1705 = vadd.f32 0.0, %v1704
  %v1706 = vpop.f32.mrf.mxu0
  %1707 = vmatprep.mubr.bf16.mxu0 0
  %1708 = vmatmul.mubr.bf16.gmra.mxu0 %v1559
  %v1709 = vpop.f32.mrf.mxu0
  %v1710 = vadd.f32 0.0, %v1709
  %v1711 = vpop.f32.mrf.mxu0
  %v1712 = vpop.f32.mrf.mxu0
  %v1713 = vadd.f32 0.0, %v1712
  %v1714 = vpop.f32.mrf.mxu0
  %1715 = vmatprep.mubr.bf16.mxu0 0
  %1716 = vmatmul.mubr.bf16.gmra.mxu0 %v1562
  %v1717 = vpop.f32.mrf.mxu0
  %v1718 = vadd.f32 0.0, %v1717
  %v1719 = vpop.f32.mrf.mxu0
  %v1720 = vpop.f32.mrf.mxu0
  %v1721 = vadd.f32 0.0, %v1720
  %v1722 = vpop.f32.mrf.mxu0
  %1723 = vmatprep.mubr.bf16.mxu0 0
  %1724 = vmatmul.mubr.bf16.gmra.mxu0 %v1565
  %v1725 = vpop.f32.mrf.mxu0
  %v1726 = vadd.f32 0.0, %v1725
  %v1727 = vpop.f32.mrf.mxu0
  %v1728 = vpop.f32.mrf.mxu0
  %v1729 = vadd.f32 0.0, %v1728
  %v1730 = vpop.f32.mrf.mxu0
  %1731 = vdwg.mxu0
  %v1733 = vsel %vm1349, %v1453, 0
  %v1736 = vsel %vm1349, %v1454, 0
  %v1739 = vsel %vm1349, %v1455, 0
  %v1742 = vsel %vm1349, %v1456, 0
  %v1745 = vsel %vm1349, %v1457, 0
  %v1748 = vsel %vm1349, %v1458, 0
  %v1751 = vsel %vm1349, %v1459, 0
  %v1754 = vsel %vm1349, %v1460, 0
  %v1757 = vsel %vm1349, %v1461, 0
  %v1760 = vsel %vm1349, %v1462, 0
  %v1763 = vsel %vm1349, %v1463, 0
  %v1766 = vsel %vm1349, %v1464, 0
  %v1769 = vsel %vm1349, %v1465, 0
  %v1772 = vsel %vm1349, %v1466, 0
  %v1775 = vsel %vm1349, %v1467, 0
  %v1778 = vsel %vm1349, %v1468, 0
  %v1781 = vsel %vm1567, %v1469, 0
  %1783 = vmatprep.subr.bf16.mxu0 0
  %1784 = vmatpush1.bf16.msra.mxu0 0
  %1785 = vmatprep.subr.bf16.mxu0 0
  %1786 = vmatpush1.bf16.msra.mxu0 0
  %1787 = vmatprep.subr.bf16.mxu0 0
  %1788 = vmatpush1.bf16.msra.mxu0 0
  %1789 = vmatprep.subr.bf16.mxu0 0
  %1790 = vmatpush1.bf16.msra.mxu0 0
  %1791 = vmatprep.subr.bf16.mxu0 0
  %1792 = vmatpush1.bf16.msra.mxu0 0
  %1793 = vmatprep.subr.bf16.mxu0 0
  %1794 = vmatpush1.bf16.msra.mxu0 0
  %1795 = vmatprep.subr.bf16.mxu0 0
  %1796 = vmatpush1.bf16.msra.mxu0 0
  %1797 = vmatprep.subr.bf16.mxu0 0
  %1798 = vmatpush1.bf16.msra.mxu0 %v1781
  %1799 = vmatprep.subr.bf16.mxu0 0
  %1800 = vmatpush2.bf16.msra.mxu0 0
  %1801 = vmatprep.subr.bf16.mxu0 0
  %1802 = vmatpush2.bf16.msra.mxu0 0
  %1803 = vmatprep.subr.bf16.mxu0 0
  %1804 = vmatpush2.bf16.msra.mxu0 0
  %1805 = vmatprep.subr.bf16.mxu0 0
  %1806 = vmatpush2.bf16.msra.mxu0 0
  %1807 = vmatprep.subr.bf16.mxu0 0
  %1808 = vmatpush2.bf16.msra.mxu0 0
  %1809 = vmatprep.subr.bf16.mxu0 0
  %1810 = vmatpush2.bf16.msra.mxu0 0
  %1811 = vmatprep.subr.bf16.mxu0 0
  %1812 = vmatpush2.bf16.msra.mxu0 0
  %1813 = vmatprep.subr.bf16.mxu0 0
  %1814 = vmatpush2.bf16.msra.mxu0 0
  %1815 = vmatprep.mubr.bf16.mxu0 0
  %1816 = vmatmul.mubr.bf16.gmra.mxu0 %v1733
  %v1817 = vpop.f32.mrf.mxu0
  %v1818 = vadd.f32 %v1606, %v1817
  %v1819 = vpop.f32.mrf.mxu0
  %v1820 = vpop.f32.mrf.mxu0
  %v1821 = vadd.f32 %v1609, %v1820
  %v1822 = vpop.f32.mrf.mxu0
  %1823 = vmatprep.mubr.bf16.mxu0 0
  %1824 = vmatmul.mubr.bf16.gmra.mxu0 %v1736
  %v1825 = vpop.f32.mrf.mxu0
  %v1826 = vadd.f32 %v1614, %v1825
  %v1827 = vpop.f32.mrf.mxu0
  %v1828 = vpop.f32.mrf.mxu0
  %v1829 = vadd.f32 %v1617, %v1828
  %v1830 = vpop.f32.mrf.mxu0
  %1831 = vmatprep.mubr.bf16.mxu0 0
  %1832 = vmatmul.mubr.bf16.gmra.mxu0 %v1739
  %v1833 = vpop.f32.mrf.mxu0
  %v1834 = vadd.f32 %v1622, %v1833
  %v1835 = vpop.f32.mrf.mxu0
  %v1836 = vpop.f32.mrf.mxu0
  %v1837 = vadd.f32 %v1625, %v1836
  %v1838 = vpop.f32.mrf.mxu0
  %1839 = vmatprep.mubr.bf16.mxu0 0
  %1840 = vmatmul.mubr.bf16.gmra.mxu0 %v1742
  %v1841 = vpop.f32.mrf.mxu0
  %v1842 = vadd.f32 %v1630, %v1841
  %v1843 = vpop.f32.mrf.mxu0
  %v1844 = vpop.f32.mrf.mxu0
  %v1845 = vadd.f32 %v1633, %v1844
  %v1846 = vpop.f32.mrf.mxu0
  %1847 = vmatprep.mubr.bf16.mxu0 0
  %1848 = vmatmul.mubr.bf16.gmra.mxu0 %v1745
  %v1849 = vpop.f32.mrf.mxu0
  %v1850 = vadd.f32 %v1638, %v1849
  %v1851 = vpop.f32.mrf.mxu0
  %v1852 = vpop.f32.mrf.mxu0
  %v1853 = vadd.f32 %v1641, %v1852
  %v1854 = vpop.f32.mrf.mxu0
  %1855 = vmatprep.mubr.bf16.mxu0 0
  %1856 = vmatmul.mubr.bf16.gmra.mxu0 %v1748
  %v1857 = vpop.f32.mrf.mxu0
  %v1858 = vadd.f32 %v1646, %v1857
  %v1859 = vpop.f32.mrf.mxu0
  %v1860 = vpop.f32.mrf.mxu0
  %v1861 = vadd.f32 %v1649, %v1860
  %v1862 = vpop.f32.mrf.mxu0
  %1863 = vmatprep.mubr.bf16.mxu0 0
  %1864 = vmatmul.mubr.bf16.gmra.mxu0 %v1751
  %v1865 = vpop.f32.mrf.mxu0
  %v1866 = vadd.f32 %v1654, %v1865
  %v1867 = vpop.f32.mrf.mxu0
  %v1868 = vpop.f32.mrf.mxu0
  %v1869 = vadd.f32 %v1657, %v1868
  %v1870 = vpop.f32.mrf.mxu0
  %1871 = vmatprep.mubr.bf16.mxu0 0
  %1872 = vmatmul.mubr.bf16.gmra.mxu0 %v1754
  %v1873 = vpop.f32.mrf.mxu0
  %v1874 = vadd.f32 %v1662, %v1873
  %v1875 = vpop.f32.mrf.mxu0
  %v1876 = vpop.f32.mrf.mxu0
  %v1877 = vadd.f32 %v1665, %v1876
  %v1878 = vpop.f32.mrf.mxu0
  %1879 = vmatprep.mubr.bf16.mxu0 0
  %1880 = vmatmul.mubr.bf16.gmra.mxu0 %v1757
  %v1881 = vpop.f32.mrf.mxu0
  %v1882 = vadd.f32 %v1670, %v1881
  %v1883 = vpop.f32.mrf.mxu0
  %v1884 = vpop.f32.mrf.mxu0
  %v1885 = vadd.f32 %v1673, %v1884
  %v1886 = vpop.f32.mrf.mxu0
  %1887 = vmatprep.mubr.bf16.mxu0 0
  %1888 = vmatmul.mubr.bf16.gmra.mxu0 %v1760
  %v1889 = vpop.f32.mrf.mxu0
  %v1890 = vadd.f32 %v1678, %v1889
  %v1891 = vpop.f32.mrf.mxu0
  %v1892 = vpop.f32.mrf.mxu0
  %v1893 = vadd.f32 %v1681, %v1892
  %v1894 = vpop.f32.mrf.mxu0
  %1895 = vmatprep.mubr.bf16.mxu0 0
  %1896 = vmatmul.mubr.bf16.gmra.mxu0 %v1763
  %v1897 = vpop.f32.mrf.mxu0
  %v1898 = vadd.f32 %v1686, %v1897
  %v1899 = vpop.f32.mrf.mxu0
  %v1900 = vpop.f32.mrf.mxu0
  %v1901 = vadd.f32 %v1689, %v1900
  %v1902 = vpop.f32.mrf.mxu0
  %1903 = vmatprep.mubr.bf16.mxu0 0
  %1904 = vmatmul.mubr.bf16.gmra.mxu0 %v1766
  %v1905 = vpop.f32.mrf.mxu0
  %v1906 = vadd.f32 %v1694, %v1905
  %v1907 = vpop.f32.mrf.mxu0
  %v1908 = vpop.f32.mrf.mxu0
  %v1909 = vadd.f32 %v1697, %v1908
  %v1910 = vpop.f32.mrf.mxu0
  %1911 = vmatprep.mubr.bf16.mxu0 0
  %1912 = vmatmul.mubr.bf16.gmra.mxu0 %v1769
  %v1913 = vpop.f32.mrf.mxu0
  %v1914 = vadd.f32 %v1702, %v1913
  %v1915 = vpop.f32.mrf.mxu0
  %v1916 = vpop.f32.mrf.mxu0
  %v1917 = vadd.f32 %v1705, %v1916
  %v1918 = vpop.f32.mrf.mxu0
  %1919 = vmatprep.mubr.bf16.mxu0 0
  %1920 = vmatmul.mubr.bf16.gmra.mxu0 %v1772
  %v1921 = vpop.f32.mrf.mxu0
  %v1922 = vadd.f32 %v1710, %v1921
  %v1923 = vpop.f32.mrf.mxu0
  %v1924 = vpop.f32.mrf.mxu0
  %v1925 = vadd.f32 %v1713, %v1924
  %v1926 = vpop.f32.mrf.mxu0
  %1927 = vmatprep.mubr.bf16.mxu0 0
  %1928 = vmatmul.mubr.bf16.gmra.mxu0 %v1775
  %v1929 = vpop.f32.mrf.mxu0
  %v1930 = vadd.f32 %v1718, %v1929
  %v1931 = vpop.f32.mrf.mxu0
  %v1932 = vpop.f32.mrf.mxu0
  %v1933 = vadd.f32 %v1721, %v1932
  %v1934 = vpop.f32.mrf.mxu0
  %1935 = vmatprep.mubr.bf16.mxu0 0
  %1936 = vmatmul.mubr.bf16.gmra.mxu0 %v1778
  %v1937 = vpop.f32.mrf.mxu0
  %v1938 = vadd.f32 %v1726, %v1937
  %v1939 = vpop.f32.mrf.mxu0
  %v1940 = vpop.f32.mrf.mxu0
  %v1941 = vadd.f32 %v1729, %v1940
  %v1942 = vpop.f32.mrf.mxu0
  %1943 = vdwg.mxu0
  %v1944 = vld [vmem:[#allocation2 + $0x2] sm:$0xff]
  %v1945 = vld [vmem:[#allocation2 + $0xa] sm:$0xff]
  %v1946 = vld [vmem:[#allocation2 + $0x12] sm:$0xff]
  %v1947 = vld [vmem:[#allocation2 + $0x1a] sm:$0xff]
  %v1948 = vld [vmem:[#allocation2 + $0x22] sm:$0xff]
  %v1949 = vld [vmem:[#allocation2 + $0x2a] sm:$0xff]
  %v1950 = vld [vmem:[#allocation2 + $0x32] sm:$0xff]
  %v1951 = vld [vmem:[#allocation2 + $0x3a] sm:$0xff]
  %v1952 = vld [vmem:[#allocation2 + $0x42] sm:$0xff]
  %v1953 = vld [vmem:[#allocation2 + $0x4a] sm:$0xff]
  %v1954 = vld [vmem:[#allocation2 + $0x52] sm:$0xff]
  %v1955 = vld [vmem:[#allocation2 + $0x5a] sm:$0xff]
  %v1956 = vld [vmem:[#allocation2 + $0x62] sm:$0xff]
  %v1957 = vld [vmem:[#allocation2 + $0x6a] sm:$0xff]
  %v1958 = vld [vmem:[#allocation2 + $0x72] sm:$0xff]
  %v1959 = vld [vmem:[#allocation2 + $0x7a] sm:$0xff]
  %v1960 = vld [vmem:[#allocation2 + $0x82] sm:$0xff]
  %v1961 = vld [vmem:[#allocation2 + $0x8a] sm:$0xff]
  %v1962 = vld [vmem:[#allocation2 + $0x92] sm:$0xff]
  %v1963 = vld [vmem:[#allocation2 + $0x9a] sm:$0xff]
  %v1964 = vld [vmem:[#allocation2 + $0xa2] sm:$0xff]
  %v1965 = vld [vmem:[#allocation2 + $0xaa] sm:$0xff]
  %v1966 = vld [vmem:[#allocation2 + $0xb2] sm:$0xff]
  %v1967 = vld [vmem:[#allocation2 + $0xba] sm:$0xff]
  %v1968 = vld [vmem:[#allocation2 + $0xc2] sm:$0xff]
  %v1969 = vld [vmem:[#allocation2 + $0xca] sm:$0xff]
  %v1970 = vld [vmem:[#allocation2 + $0xd2] sm:$0xff]
  %v1971 = vld [vmem:[#allocation2 + $0xda] sm:$0xff]
  %v1972 = vld [vmem:[#allocation2 + $0xe2] sm:$0xff]
  %v1973 = vld [vmem:[#allocation2 + $0xea] sm:$0xff]
  %v1974 = vld [vmem:[#allocation2 + $0xf2] sm:$0xff]
  %v1975 = vld [vmem:[#allocation2 + $0xfa] sm:$0xff]
  %v1976 = vmul.f32 %v1944, %v1317
  %v1977 = vmul.f32 %v1945, %v1318
  %v1978 = vmul.f32 %v1946, %v1319
  %v1979 = vmul.f32 %v1947, %v1320
  %v1980 = vmul.f32 %v1948, %v1321
  %v1981 = vmul.f32 %v1949, %v1322
  %v1982 = vmul.f32 %v1950, %v1323
  %v1983 = vmul.f32 %v1951, %v1324
  %v1984 = vmul.f32 %v1952, %v1325
  %v1985 = vmul.f32 %v1953, %v1326
  %v1986 = vmul.f32 %v1954, %v1327
  %v1987 = vmul.f32 %v1955, %v1328
  %v1988 = vmul.f32 %v1956, %v1329
  %v1989 = vmul.f32 %v1957, %v1330
  %v1990 = vmul.f32 %v1958, %v1331
  %v1991 = vmul.f32 %v1959, %v1332
  %v1992 = vmul.f32 %v1960, %v1333
  %v1993 = vmul.f32 %v1961, %v1334
  %v1994 = vmul.f32 %v1962, %v1335
  %v1995 = vmul.f32 %v1963, %v1336
  %v1996 = vmul.f32 %v1964, %v1337
  %v1997 = vmul.f32 %v1965, %v1338
  %v1998 = vmul.f32 %v1966, %v1339
  %v1999 = vmul.f32 %v1967, %v1340
  %v2000 = vmul.f32 %v1968, %v1341
  %v2001 = vmul.f32 %v1969, %v1342
  %v2002 = vmul.f32 %v1970, %v1343
  %v2003 = vmul.f32 %v1971, %v1344
  %v2004 = vmul.f32 %v1972, %v1345
  %v2005 = vmul.f32 %v1973, %v1346
  %v2006 = vmul.f32 %v1974, %v1347
  %v2007 = vmul.f32 %v1975, %v1348
  %v2008 = vpack.c.bf16 %v1977, %v1976
  %v2009 = vpack.c.bf16 %v1979, %v1978
  %v2010 = vpack.c.bf16 %v1981, %v1980
  %v2011 = vpack.c.bf16 %v1983, %v1982
  %v2012 = vpack.c.bf16 %v1985, %v1984
  %v2013 = vpack.c.bf16 %v1987, %v1986
  %v2014 = vpack.c.bf16 %v1989, %v1988
  %v2015 = vpack.c.bf16 %v1991, %v1990
  %v2016 = vpack.c.bf16 %v1993, %v1992
  %v2017 = vpack.c.bf16 %v1995, %v1994
  %v2018 = vpack.c.bf16 %v1997, %v1996
  %v2019 = vpack.c.bf16 %v1999, %v1998
  %v2020 = vpack.c.bf16 %v2001, %v2000
  %v2021 = vpack.c.bf16 %v2003, %v2002
  %v2022 = vpack.c.bf16 %v2005, %v2004
  %v2023 = vpack.c.bf16 %v2007, %v2006
  %v2024 = vld [vmem:[%s4 + $0x8] sm:$0xf]
  %v2026 = vsel %vm1349, %v2008, 0
  %v2029 = vsel %vm1349, %v2009, 0
  %v2032 = vsel %vm1349, %v2010, 0
  %v2035 = vsel %vm1349, %v2011, 0
  %v2038 = vsel %vm1349, %v2012, 0
  %v2041 = vsel %vm1349, %v2013, 0
  %v2044 = vsel %vm1349, %v2014, 0
  %v2047 = vsel %vm1349, %v2015, 0
  %v2050 = vsel %vm1349, %v2016, 0
  %v2053 = vsel %vm1349, %v2017, 0
  %v2056 = vsel %vm1349, %v2018, 0
  %v2059 = vsel %vm1349, %v2019, 0
  %v2062 = vsel %vm1349, %v2020, 0
  %v2065 = vsel %vm1349, %v2021, 0
  %v2068 = vsel %vm1349, %v2022, 0
  %v2071 = vsel %vm1349, %v2023, 0
  %v2074 = vsel %vm1567, %v2024, 0
  %2076 = vmatprep.subr.bf16.mxu0 0
  %2077 = vmatpush1.bf16.msra.mxu0 0
  %2078 = vmatprep.subr.bf16.mxu0 0
  %2079 = vmatpush1.bf16.msra.mxu0 0
  %2080 = vmatprep.subr.bf16.mxu0 0
  %2081 = vmatpush1.bf16.msra.mxu0 0
  %2082 = vmatprep.subr.bf16.mxu0 0
  %2083 = vmatpush1.bf16.msra.mxu0 0
  %2084 = vmatprep.subr.bf16.mxu0 0
  %2085 = vmatpush1.bf16.msra.mxu0 0
  %2086 = vmatprep.subr.bf16.mxu0 0
  %2087 = vmatpush1.bf16.msra.mxu0 0
  %2088 = vmatprep.subr.bf16.mxu0 0
  %2089 = vmatpush1.bf16.msra.mxu0 0
  %2090 = vmatprep.subr.bf16.mxu0 0
  %2091 = vmatpush1.bf16.msra.mxu0 %v2074
  %2092 = vmatprep.subr.bf16.mxu0 0
  %2093 = vmatpush2.bf16.msra.mxu0 0
  %2094 = vmatprep.subr.bf16.mxu0 0
  %2095 = vmatpush2.bf16.msra.mxu0 0
  %2096 = vmatprep.subr.bf16.mxu0 0
  %2097 = vmatpush2.bf16.msra.mxu0 0
  %2098 = vmatprep.subr.bf16.mxu0 0
  %2099 = vmatpush2.bf16.msra.mxu0 0
  %2100 = vmatprep.subr.bf16.mxu0 0
  %2101 = vmatpush2.bf16.msra.mxu0 0
  %2102 = vmatprep.subr.bf16.mxu0 0
  %2103 = vmatpush2.bf16.msra.mxu0 0
  %2104 = vmatprep.subr.bf16.mxu0 0
  %2105 = vmatpush2.bf16.msra.mxu0 0
  %2106 = vmatprep.subr.bf16.mxu0 0
  %2107 = vmatpush2.bf16.msra.mxu0 0
  %2108 = vmatprep.mubr.bf16.mxu0 0
  %2109 = vmatmul.mubr.bf16.gmra.mxu0 %v2026
  %v2110 = vpop.f32.mrf.mxu0
  %v2111 = vadd.f32 0.0, %v2110
  %v2112 = vpop.f32.mrf.mxu0
  %v2113 = vpop.f32.mrf.mxu0
  %v2114 = vadd.f32 0.0, %v2113
  %v2115 = vpop.f32.mrf.mxu0
  %2116 = vmatprep.mubr.bf16.mxu0 0
  %2117 = vmatmul.mubr.bf16.gmra.mxu0 %v2029
  %v2118 = vpop.f32.mrf.mxu0
  %v2119 = vadd.f32 0.0, %v2118
  %v2120 = vpop.f32.mrf.mxu0
  %v2121 = vpop.f32.mrf.mxu0
  %v2122 = vadd.f32 0.0, %v2121
  %v2123 = vpop.f32.mrf.mxu0
  %2124 = vmatprep.mubr.bf16.mxu0 0
  %2125 = vmatmul.mubr.bf16.gmra.mxu0 %v2032
  %v2126 = vpop.f32.mrf.mxu0
  %v2127 = vadd.f32 0.0, %v2126
  %v2128 = vpop.f32.mrf.mxu0
  %v2129 = vpop.f32.mrf.mxu0
  %v2130 = vadd.f32 0.0, %v2129
  %v2131 = vpop.f32.mrf.mxu0
  %2132 = vmatprep.mubr.bf16.mxu0 0
  %2133 = vmatmul.mubr.bf16.gmra.mxu0 %v2035
  %v2134 = vpop.f32.mrf.mxu0
  %v2135 = vadd.f32 0.0, %v2134
  %v2136 = vpop.f32.mrf.mxu0
  %v2137 = vpop.f32.mrf.mxu0
  %v2138 = vadd.f32 0.0, %v2137
  %v2139 = vpop.f32.mrf.mxu0
  %2140 = vmatprep.mubr.bf16.mxu0 0
  %2141 = vmatmul.mubr.bf16.gmra.mxu0 %v2038
  %v2142 = vpop.f32.mrf.mxu0
  %v2143 = vadd.f32 0.0, %v2142
  %v2144 = vpop.f32.mrf.mxu0
  %v2145 = vpop.f32.mrf.mxu0
  %v2146 = vadd.f32 0.0, %v2145
  %v2147 = vpop.f32.mrf.mxu0
  %2148 = vmatprep.mubr.bf16.mxu0 0
  %2149 = vmatmul.mubr.bf16.gmra.mxu0 %v2041
  %v2150 = vpop.f32.mrf.mxu0
  %v2151 = vadd.f32 0.0, %v2150
  %v2152 = vpop.f32.mrf.mxu0
  %v2153 = vpop.f32.mrf.mxu0
  %v2154 = vadd.f32 0.0, %v2153
  %v2155 = vpop.f32.mrf.mxu0
  %2156 = vmatprep.mubr.bf16.mxu0 0
  %2157 = vmatmul.mubr.bf16.gmra.mxu0 %v2044
  %v2158 = vpop.f32.mrf.mxu0
  %v2159 = vadd.f32 0.0, %v2158
  %v2160 = vpop.f32.mrf.mxu0
  %v2161 = vpop.f32.mrf.mxu0
  %v2162 = vadd.f32 0.0, %v2161
  %v2163 = vpop.f32.mrf.mxu0
  %2164 = vmatprep.mubr.bf16.mxu0 0
  %2165 = vmatmul.mubr.bf16.gmra.mxu0 %v2047
  %v2166 = vpop.f32.mrf.mxu0
  %v2167 = vadd.f32 0.0, %v2166
  %v2168 = vpop.f32.mrf.mxu0
  %v2169 = vpop.f32.mrf.mxu0
  %v2170 = vadd.f32 0.0, %v2169
  %v2171 = vpop.f32.mrf.mxu0
  %2172 = vmatprep.mubr.bf16.mxu0 0
  %2173 = vmatmul.mubr.bf16.gmra.mxu0 %v2050
  %v2174 = vpop.f32.mrf.mxu0
  %v2175 = vadd.f32 0.0, %v2174
  %v2176 = vpop.f32.mrf.mxu0
  %v2177 = vpop.f32.mrf.mxu0
  %v2178 = vadd.f32 0.0, %v2177
  %v2179 = vpop.f32.mrf.mxu0
  %2180 = vmatprep.mubr.bf16.mxu0 0
  %2181 = vmatmul.mubr.bf16.gmra.mxu0 %v2053
  %v2182 = vpop.f32.mrf.mxu0
  %v2183 = vadd.f32 0.0, %v2182
  %v2184 = vpop.f32.mrf.mxu0
  %v2185 = vpop.f32.mrf.mxu0
  %v2186 = vadd.f32 0.0, %v2185
  %v2187 = vpop.f32.mrf.mxu0
  %2188 = vmatprep.mubr.bf16.mxu0 0
  %2189 = vmatmul.mubr.bf16.gmra.mxu0 %v2056
  %v2190 = vpop.f32.mrf.mxu0
  %v2191 = vadd.f32 0.0, %v2190
  %v2192 = vpop.f32.mrf.mxu0
  %v2193 = vpop.f32.mrf.mxu0
  %v2194 = vadd.f32 0.0, %v2193
  %v2195 = vpop.f32.mrf.mxu0
  %2196 = vmatprep.mubr.bf16.mxu0 0
  %2197 = vmatmul.mubr.bf16.gmra.mxu0 %v2059
  %v2198 = vpop.f32.mrf.mxu0
  %v2199 = vadd.f32 0.0, %v2198
  %v2200 = vpop.f32.mrf.mxu0
  %v2201 = vpop.f32.mrf.mxu0
  %v2202 = vadd.f32 0.0, %v2201
  %v2203 = vpop.f32.mrf.mxu0
  %2204 = vmatprep.mubr.bf16.mxu0 0
  %2205 = vmatmul.mubr.bf16.gmra.mxu0 %v2062
  %v2206 = vpop.f32.mrf.mxu0
  %v2207 = vadd.f32 0.0, %v2206
  %v2208 = vpop.f32.mrf.mxu0
  %v2209 = vpop.f32.mrf.mxu0
  %v2210 = vadd.f32 0.0, %v2209
  %v2211 = vpop.f32.mrf.mxu0
  %2212 = vmatprep.mubr.bf16.mxu0 0
  %2213 = vmatmul.mubr.bf16.gmra.mxu0 %v2065
  %v2214 = vpop.f32.mrf.mxu0
  %v2215 = vadd.f32 0.0, %v2214
  %v2216 = vpop.f32.mrf.mxu0
  %v2217 = vpop.f32.mrf.mxu0
  %v2218 = vadd.f32 0.0, %v2217
  %v2219 = vpop.f32.mrf.mxu0
  %2220 = vmatprep.mubr.bf16.mxu0 0
  %2221 = vmatmul.mubr.bf16.gmra.mxu0 %v2068
  %v2222 = vpop.f32.mrf.mxu0
  %v2223 = vadd.f32 0.0, %v2222
  %v2224 = vpop.f32.mrf.mxu0
  %v2225 = vpop.f32.mrf.mxu0
  %v2226 = vadd.f32 0.0, %v2225
  %v2227 = vpop.f32.mrf.mxu0
  %2228 = vmatprep.mubr.bf16.mxu0 0
  %2229 = vmatmul.mubr.bf16.gmra.mxu0 %v2071
  %v2230 = vpop.f32.mrf.mxu0
  %v2231 = vadd.f32 0.0, %v2230
  %v2232 = vpop.f32.mrf.mxu0
  %v2233 = vpop.f32.mrf.mxu0
  %v2234 = vadd.f32 0.0, %v2233
  %v2235 = vpop.f32.mrf.mxu0
  %2236 = vdwg.mxu0
  %v2237 = vadd.f32 %v1818, %v2111
  %v2238 = vadd.f32 %v1821, %v2114
  %v2239 = vadd.f32 %v1826, %v2119
  %v2240 = vadd.f32 %v1829, %v2122
  %v2241 = vadd.f32 %v1834, %v2127
  %v2242 = vadd.f32 %v1837, %v2130
  %v2243 = vadd.f32 %v1842, %v2135
  %v2244 = vadd.f32 %v1845, %v2138
  %v2245 = vadd.f32 %v1850, %v2143
  %v2246 = vadd.f32 %v1853, %v2146
  %v2247 = vadd.f32 %v1858, %v2151
  %v2248 = vadd.f32 %v1861, %v2154
  %v2249 = vadd.f32 %v1866, %v2159
  %v2250 = vadd.f32 %v1869, %v2162
  %v2251 = vadd.f32 %v1874, %v2167
  %v2252 = vadd.f32 %v1877, %v2170
  %v2253 = vadd.f32 %v1882, %v2175
  %v2254 = vadd.f32 %v1885, %v2178
  %v2255 = vadd.f32 %v1890, %v2183
  %v2256 = vadd.f32 %v1893, %v2186
  %v2257 = vadd.f32 %v1898, %v2191
  %v2258 = vadd.f32 %v1901, %v2194
  %v2259 = vadd.f32 %v1906, %v2199
  %v2260 = vadd.f32 %v1909, %v2202
  %v2261 = vadd.f32 %v1914, %v2207
  %v2262 = vadd.f32 %v1917, %v2210
  %v2263 = vadd.f32 %v1922, %v2215
  %v2264 = vadd.f32 %v1925, %v2218
  %v2265 = vadd.f32 %v1930, %v2223
  %v2266 = vadd.f32 %v1933, %v2226
  %v2267 = vadd.f32 %v1938, %v2231
  %v2268 = vadd.f32 %v1941, %v2234
  %v2269 = vld [vmem:[#allocation2 + $0x10] sm:$0xff]
  %v2270 = vld [vmem:[#allocation2 + $0x18] sm:$0xff]
  %v2271 = vld [vmem:[#allocation2 + $0x20] sm:$0xff]
  %v2272 = vld [vmem:[#allocation2 + $0x28] sm:$0xff]
  %v2273 = vld [vmem:[#allocation2 + $0x30] sm:$0xff]
  %v2274 = vld [vmem:[#allocation2 + $0x38] sm:$0xff]
  %v2275 = vld [vmem:[#allocation2 + $0x40] sm:$0xff]
  %v2276 = vld [vmem:[#allocation2 + $0x48] sm:$0xff]
  %v2277 = vld [vmem:[#allocation2 + $0x50] sm:$0xff]
  %v2278 = vld [vmem:[#allocation2 + $0x58] sm:$0xff]
  %v2279 = vld [vmem:[#allocation2 + $0x60] sm:$0xff]
  %v2280 = vld [vmem:[#allocation2 + $0x68] sm:$0xff]
  %v2281 = vld [vmem:[#allocation2 + $0x70] sm:$0xff]
  %v2282 = vld [vmem:[#allocation2 + $0x78] sm:$0xff]
  %v2283 = vld [vmem:[#allocation2 + $0x80] sm:$0xff]
  %v2284 = vld [vmem:[#allocation2 + $0x88] sm:$0xff]
  %v2285 = vld [vmem:[#allocation2 + $0x90] sm:$0xff]
  %v2286 = vld [vmem:[#allocation2 + $0x98] sm:$0xff]
  %v2287 = vld [vmem:[#allocation2 + $0xa0] sm:$0xff]
  %v2288 = vld [vmem:[#allocation2 + $0xa8] sm:$0xff]
  %v2289 = vld [vmem:[#allocation2 + $0xb0] sm:$0xff]
  %v2290 = vld [vmem:[#allocation2 + $0xb8] sm:$0xff]
  %v2291 = vld [vmem:[#allocation2 + $0xc0] sm:$0xff]
  %v2292 = vld [vmem:[#allocation2 + $0xc8] sm:$0xff]
  %v2293 = vld [vmem:[#allocation2 + $0xd0] sm:$0xff]
  %v2294 = vld [vmem:[#allocation2 + $0xd8] sm:$0xff]
  %v2295 = vld [vmem:[#allocation2 + $0xe0] sm:$0xff]
  %v2296 = vld [vmem:[#allocation2 + $0xe8] sm:$0xff]
  %v2297 = vld [vmem:[#allocation2 + $0xf0] sm:$0xff]
  %v2298 = vld [vmem:[#allocation2 + $0xf8] sm:$0xff]
  %v2299 = vld [vmem:[#allocation2 + $0x100] sm:$0xff]
  %v2300 = vld [vmem:[#allocation2 + $0x108] sm:$0xff]
  %v2301 = vmul.f32 %v2269, %v1221
  %v2302 = vmul.f32 %v2270, %v1222
  %v2303 = vmul.f32 %v2271, %v1223
  %v2304 = vmul.f32 %v2272, %v1224
  %v2305 = vmul.f32 %v2273, %v1225
  %v2306 = vmul.f32 %v2274, %v1226
  %v2307 = vmul.f32 %v2275, %v1227
  %v2308 = vmul.f32 %v2276, %v1228
  %v2309 = vmul.f32 %v2277, %v1229
  %v2310 = vmul.f32 %v2278, %v1230
  %v2311 = vmul.f32 %v2279, %v1231
  %v2312 = vmul.f32 %v2280, %v1232
  %v2313 = vmul.f32 %v2281, %v1233
  %v2314 = vmul.f32 %v2282, %v1234
  %v2315 = vmul.f32 %v2283, %v1235
  %v2316 = vmul.f32 %v2284, %v1236
  %v2317 = vmul.f32 %v2285, %v1237
  %v2318 = vmul.f32 %v2286, %v1238
  %v2319 = vmul.f32 %v2287, %v1239
  %v2320 = vmul.f32 %v2288, %v1240
  %v2321 = vmul.f32 %v2289, %v1241
  %v2322 = vmul.f32 %v2290, %v1242
  %v2323 = vmul.f32 %v2291, %v1243
  %v2324 = vmul.f32 %v2292, %v1244
  %v2325 = vmul.f32 %v2293, %v1245
  %v2326 = vmul.f32 %v2294, %v1246
  %v2327 = vmul.f32 %v2295, %v1247
  %v2328 = vmul.f32 %v2296, %v1248
  %v2329 = vmul.f32 %v2297, %v1249
  %v2330 = vmul.f32 %v2298, %v1250
  %v2331 = vmul.f32 %v2299, %v1251
  %v2332 = vmul.f32 %v2300, %v1252
  %v2333 = vpack.c.bf16 %v2302, %v2301
  %v2334 = vpack.c.bf16 %v2304, %v2303
  %v2335 = vpack.c.bf16 %v2306, %v2305
  %v2336 = vpack.c.bf16 %v2308, %v2307
  %v2337 = vpack.c.bf16 %v2310, %v2309
  %v2338 = vpack.c.bf16 %v2312, %v2311
  %v2339 = vpack.c.bf16 %v2314, %v2313
  %v2340 = vpack.c.bf16 %v2316, %v2315
  %v2341 = vpack.c.bf16 %v2318, %v2317
  %v2342 = vpack.c.bf16 %v2320, %v2319
  %v2343 = vpack.c.bf16 %v2322, %v2321
  %v2344 = vpack.c.bf16 %v2324, %v2323
  %v2345 = vpack.c.bf16 %v2326, %v2325
  %v2346 = vpack.c.bf16 %v2328, %v2327
  %v2347 = vpack.c.bf16 %v2330, %v2329
  %v2348 = vpack.c.bf16 %v2332, %v2331
  %v2349 = vld [vmem:[%s4 + $0xc] sm:$0xf]
  %v2351 = vsel %vm1349, %v2333, 0
  %v2354 = vsel %vm1349, %v2334, 0
  %v2357 = vsel %vm1349, %v2335, 0
  %v2360 = vsel %vm1349, %v2336, 0
  %v2363 = vsel %vm1349, %v2337, 0
  %v2366 = vsel %vm1349, %v2338, 0
  %v2369 = vsel %vm1349, %v2339, 0
  %v2372 = vsel %vm1349, %v2340, 0
  %v2375 = vsel %vm1349, %v2341, 0
  %v2378 = vsel %vm1349, %v2342, 0
  %v2381 = vsel %vm1349, %v2343, 0
  %v2384 = vsel %vm1349, %v2344, 0
  %v2387 = vsel %vm1349, %v2345, 0
  %v2390 = vsel %vm1349, %v2346, 0
  %v2393 = vsel %vm1349, %v2347, 0
  %v2396 = vsel %vm1349, %v2348, 0
  %v2399 = vsel %vm1567, %v2349, 0
  %2401 = vmatprep.subr.bf16.mxu0 0
  %2402 = vmatpush1.bf16.msra.mxu0 0
  %2403 = vmatprep.subr.bf16.mxu0 0
  %2404 = vmatpush1.bf16.msra.mxu0 0
  %2405 = vmatprep.subr.bf16.mxu0 0
  %2406 = vmatpush1.bf16.msra.mxu0 0
  %2407 = vmatprep.subr.bf16.mxu0 0
  %2408 = vmatpush1.bf16.msra.mxu0 0
  %2409 = vmatprep.subr.bf16.mxu0 0
  %2410 = vmatpush1.bf16.msra.mxu0 0
  %2411 = vmatprep.subr.bf16.mxu0 0
  %2412 = vmatpush1.bf16.msra.mxu0 0
  %2413 = vmatprep.subr.bf16.mxu0 0
  %2414 = vmatpush1.bf16.msra.mxu0 0
  %2415 = vmatprep.subr.bf16.mxu0 0
  %2416 = vmatpush1.bf16.msra.mxu0 %v2399
  %2417 = vmatprep.subr.bf16.mxu0 0
  %2418 = vmatpush2.bf16.msra.mxu0 0
  %2419 = vmatprep.subr.bf16.mxu0 0
  %2420 = vmatpush2.bf16.msra.mxu0 0
  %2421 = vmatprep.subr.bf16.mxu0 0
  %2422 = vmatpush2.bf16.msra.mxu0 0
  %2423 = vmatprep.subr.bf16.mxu0 0
  %2424 = vmatpush2.bf16.msra.mxu0 0
  %2425 = vmatprep.subr.bf16.mxu0 0
  %2426 = vmatpush2.bf16.msra.mxu0 0
  %2427 = vmatprep.subr.bf16.mxu0 0
  %2428 = vmatpush2.bf16.msra.mxu0 0
  %2429 = vmatprep.subr.bf16.mxu0 0
  %2430 = vmatpush2.bf16.msra.mxu0 0
  %2431 = vmatprep.subr.bf16.mxu0 0
  %2432 = vmatpush2.bf16.msra.mxu0 0
  %2433 = vmatprep.mubr.bf16.mxu0 0
  %2434 = vmatmul.mubr.bf16.gmra.mxu0 %v2351
  %v2435 = vpop.f32.mrf.mxu0
  %v2436 = vadd.f32 0.0, %v2435
  %v2437 = vpop.f32.mrf.mxu0
  %v2438 = vpop.f32.mrf.mxu0
  %v2439 = vadd.f32 0.0, %v2438
  %v2440 = vpop.f32.mrf.mxu0
  %2441 = vmatprep.mubr.bf16.mxu0 0
  %2442 = vmatmul.mubr.bf16.gmra.mxu0 %v2354
  %v2443 = vpop.f32.mrf.mxu0
  %v2444 = vadd.f32 0.0, %v2443
  %v2445 = vpop.f32.mrf.mxu0
  %v2446 = vpop.f32.mrf.mxu0
  %v2447 = vadd.f32 0.0, %v2446
  %v2448 = vpop.f32.mrf.mxu0
  %2449 = vmatprep.mubr.bf16.mxu0 0
  %2450 = vmatmul.mubr.bf16.gmra.mxu0 %v2357
  %v2451 = vpop.f32.mrf.mxu0
  %v2452 = vadd.f32 0.0, %v2451
  %v2453 = vpop.f32.mrf.mxu0
  %v2454 = vpop.f32.mrf.mxu0
  %v2455 = vadd.f32 0.0, %v2454
  %v2456 = vpop.f32.mrf.mxu0
  %2457 = vmatprep.mubr.bf16.mxu0 0
  %2458 = vmatmul.mubr.bf16.gmra.mxu0 %v2360
  %v2459 = vpop.f32.mrf.mxu0
  %v2460 = vadd.f32 0.0, %v2459
  %v2461 = vpop.f32.mrf.mxu0
  %v2462 = vpop.f32.mrf.mxu0
  %v2463 = vadd.f32 0.0, %v2462
  %v2464 = vpop.f32.mrf.mxu0
  %2465 = vmatprep.mubr.bf16.mxu0 0
  %2466 = vmatmul.mubr.bf16.gmra.mxu0 %v2363
  %v2467 = vpop.f32.mrf.mxu0
  %v2468 = vadd.f32 0.0, %v2467
  %v2469 = vpop.f32.mrf.mxu0
  %v2470 = vpop.f32.mrf.mxu0
  %v2471 = vadd.f32 0.0, %v2470
  %v2472 = vpop.f32.mrf.mxu0
  %2473 = vmatprep.mubr.bf16.mxu0 0
  %2474 = vmatmul.mubr.bf16.gmra.mxu0 %v2366
  %v2475 = vpop.f32.mrf.mxu0
  %v2476 = vadd.f32 0.0, %v2475
  %v2477 = vpop.f32.mrf.mxu0
  %v2478 = vpop.f32.mrf.mxu0
  %v2479 = vadd.f32 0.0, %v2478
  %v2480 = vpop.f32.mrf.mxu0
  %2481 = vmatprep.mubr.bf16.mxu0 0
  %2482 = vmatmul.mubr.bf16.gmra.mxu0 %v2369
  %v2483 = vpop.f32.mrf.mxu0
  %v2484 = vadd.f32 0.0, %v2483
  %v2485 = vpop.f32.mrf.mxu0
  %v2486 = vpop.f32.mrf.mxu0
  %v2487 = vadd.f32 0.0, %v2486
  %v2488 = vpop.f32.mrf.mxu0
  %2489 = vmatprep.mubr.bf16.mxu0 0
  %2490 = vmatmul.mubr.bf16.gmra.mxu0 %v2372
  %v2491 = vpop.f32.mrf.mxu0
  %v2492 = vadd.f32 0.0, %v2491
  %v2493 = vpop.f32.mrf.mxu0
  %v2494 = vpop.f32.mrf.mxu0
  %v2495 = vadd.f32 0.0, %v2494
  %v2496 = vpop.f32.mrf.mxu0
  %2497 = vmatprep.mubr.bf16.mxu0 0
  %2498 = vmatmul.mubr.bf16.gmra.mxu0 %v2375
  %v2499 = vpop.f32.mrf.mxu0
  %v2500 = vadd.f32 0.0, %v2499
  %v2501 = vpop.f32.mrf.mxu0
  %v2502 = vpop.f32.mrf.mxu0
  %v2503 = vadd.f32 0.0, %v2502
  %v2504 = vpop.f32.mrf.mxu0
  %2505 = vmatprep.mubr.bf16.mxu0 0
  %2506 = vmatmul.mubr.bf16.gmra.mxu0 %v2378
  %v2507 = vpop.f32.mrf.mxu0
  %v2508 = vadd.f32 0.0, %v2507
  %v2509 = vpop.f32.mrf.mxu0
  %v2510 = vpop.f32.mrf.mxu0
  %v2511 = vadd.f32 0.0, %v2510
  %v2512 = vpop.f32.mrf.mxu0
  %2513 = vmatprep.mubr.bf16.mxu0 0
  %2514 = vmatmul.mubr.bf16.gmra.mxu0 %v2381
  %v2515 = vpop.f32.mrf.mxu0
  %v2516 = vadd.f32 0.0, %v2515
  %v2517 = vpop.f32.mrf.mxu0
  %v2518 = vpop.f32.mrf.mxu0
  %v2519 = vadd.f32 0.0, %v2518
  %v2520 = vpop.f32.mrf.mxu0
  %2521 = vmatprep.mubr.bf16.mxu0 0
  %2522 = vmatmul.mubr.bf16.gmra.mxu0 %v2384
  %v2523 = vpop.f32.mrf.mxu0
  %v2524 = vadd.f32 0.0, %v2523
  %v2525 = vpop.f32.mrf.mxu0
  %v2526 = vpop.f32.mrf.mxu0
  %v2527 = vadd.f32 0.0, %v2526
  %v2528 = vpop.f32.mrf.mxu0
  %2529 = vmatprep.mubr.bf16.mxu0 0
  %2530 = vmatmul.mubr.bf16.gmra.mxu0 %v2387
  %v2531 = vpop.f32.mrf.mxu0
  %v2532 = vadd.f32 0.0, %v2531
  %v2533 = vpop.f32.mrf.mxu0
  %v2534 = vpop.f32.mrf.mxu0
  %v2535 = vadd.f32 0.0, %v2534
  %v2536 = vpop.f32.mrf.mxu0
  %2537 = vmatprep.mubr.bf16.mxu0 0
  %2538 = vmatmul.mubr.bf16.gmra.mxu0 %v2390
  %v2539 = vpop.f32.mrf.mxu0
  %v2540 = vadd.f32 0.0, %v2539
  %v2541 = vpop.f32.mrf.mxu0
  %v2542 = vpop.f32.mrf.mxu0
  %v2543 = vadd.f32 0.0, %v2542
  %v2544 = vpop.f32.mrf.mxu0
  %2545 = vmatprep.mubr.bf16.mxu0 0
  %2546 = vmatmul.mubr.bf16.gmra.mxu0 %v2393
  %v2547 = vpop.f32.mrf.mxu0
  %v2548 = vadd.f32 0.0, %v2547
  %v2549 = vpop.f32.mrf.mxu0
  %v2550 = vpop.f32.mrf.mxu0
  %v2551 = vadd.f32 0.0, %v2550
  %v2552 = vpop.f32.mrf.mxu0
  %2553 = vmatprep.mubr.bf16.mxu0 0
  %2554 = vmatmul.mubr.bf16.gmra.mxu0 %v2396
  %v2555 = vpop.f32.mrf.mxu0
  %v2556 = vadd.f32 0.0, %v2555
  %v2557 = vpop.f32.mrf.mxu0
  %v2558 = vpop.f32.mrf.mxu0
  %v2559 = vadd.f32 0.0, %v2558
  %v2560 = vpop.f32.mrf.mxu0
  %2561 = vdwg.mxu0
  %v2562 = vadd.f32 %v2237, %v2436
  %v2563 = vadd.f32 %v2238, %v2439
  %v2564 = vadd.f32 %v2239, %v2444
  %v2565 = vadd.f32 %v2240, %v2447
  %v2566 = vadd.f32 %v2241, %v2452
  %v2567 = vadd.f32 %v2242, %v2455
  %v2568 = vadd.f32 %v2243, %v2460
  %v2569 = vadd.f32 %v2244, %v2463
  %v2570 = vadd.f32 %v2245, %v2468
  %v2571 = vadd.f32 %v2246, %v2471
  %v2572 = vadd.f32 %v2247, %v2476
  %v2573 = vadd.f32 %v2248, %v2479
  %v2574 = vadd.f32 %v2249, %v2484
  %v2575 = vadd.f32 %v2250, %v2487
  %v2576 = vadd.f32 %v2251, %v2492
  %v2577 = vadd.f32 %v2252, %v2495
  %v2578 = vadd.f32 %v2253, %v2500
  %v2579 = vadd.f32 %v2254, %v2503
  %v2580 = vadd.f32 %v2255, %v2508
  %v2581 = vadd.f32 %v2256, %v2511
  %v2582 = vadd.f32 %v2257, %v2516
  %v2583 = vadd.f32 %v2258, %v2519
  %v2584 = vadd.f32 %v2259, %v2524
  %v2585 = vadd.f32 %v2260, %v2527
  %v2586 = vadd.f32 %v2261, %v2532
  %v2587 = vadd.f32 %v2262, %v2535
  %v2588 = vadd.f32 %v2263, %v2540
  %v2589 = vadd.f32 %v2264, %v2543
  %v2590 = vadd.f32 %v2265, %v2548
  %v2591 = vadd.f32 %v2266, %v2551
  %v2592 = vadd.f32 %v2267, %v2556
  %v2593 = vadd.f32 %v2268, %v2559
  %v2594 = vld [vmem:[#allocation2 + $0x11] sm:$0xff]
  %v2595 = vld [vmem:[#allocation2 + $0x19] sm:$0xff]
  %v2596 = vld [vmem:[#allocation2 + $0x21] sm:$0xff]
  %v2597 = vld [vmem:[#allocation2 + $0x29] sm:$0xff]
  %v2598 = vld [vmem:[#allocation2 + $0x31] sm:$0xff]
  %v2599 = vld [vmem:[#allocation2 + $0x39] sm:$0xff]
  %v2600 = vld [vmem:[#allocation2 + $0x41] sm:$0xff]
  %v2601 = vld [vmem:[#allocation2 + $0x49] sm:$0xff]
  %v2602 = vld [vmem:[#allocation2 + $0x51] sm:$0xff]
  %v2603 = vld [vmem:[#allocation2 + $0x59] sm:$0xff]
  %v2604 = vld [vmem:[#allocation2 + $0x61] sm:$0xff]
  %v2605 = vld [vmem:[#allocation2 + $0x69] sm:$0xff]
  %v2606 = vld [vmem:[#allocation2 + $0x71] sm:$0xff]
  %v2607 = vld [vmem:[#allocation2 + $0x79] sm:$0xff]
  %v2608 = vld [vmem:[#allocation2 + $0x81] sm:$0xff]
  %v2609 = vld [vmem:[#allocation2 + $0x89] sm:$0xff]
  %v2610 = vld [vmem:[#allocation2 + $0x91] sm:$0xff]
  %v2611 = vld [vmem:[#allocation2 + $0x99] sm:$0xff]
  %v2612 = vld [vmem:[#allocation2 + $0xa1] sm:$0xff]
  %v2613 = vld [vmem:[#allocation2 + $0xa9] sm:$0xff]
  %v2614 = vld [vmem:[#allocation2 + $0xb1] sm:$0xff]
  %v2615 = vld [vmem:[#allocation2 + $0xb9] sm:$0xff]
  %v2616 = vld [vmem:[#allocation2 + $0xc1] sm:$0xff]
  %v2617 = vld [vmem:[#allocation2 + $0xc9] sm:$0xff]
  %v2618 = vld [vmem:[#allocation2 + $0xd1] sm:$0xff]
  %v2619 = vld [vmem:[#allocation2 + $0xd9] sm:$0xff]
  %v2620 = vld [vmem:[#allocation2 + $0xe1] sm:$0xff]
  %v2621 = vld [vmem:[#allocation2 + $0xe9] sm:$0xff]
  %v2622 = vld [vmem:[#allocation2 + $0xf1] sm:$0xff]
  %v2623 = vld [vmem:[#allocation2 + $0xf9] sm:$0xff]
  %v2624 = vld [vmem:[#allocation2 + $0x101] sm:$0xff]
  %v2625 = vld [vmem:[#allocation2 + $0x109] sm:$0xff]
  %v2626 = vpack.c.bf16 %v2595, %v2594
  %v2627 = vpack.c.bf16 %v2597, %v2596
  %v2628 = vpack.c.bf16 %v2599, %v2598
  %v2629 = vpack.c.bf16 %v2601, %v2600
  %v2630 = vpack.c.bf16 %v2603, %v2602
  %v2631 = vpack.c.bf16 %v2605, %v2604
  %v2632 = vpack.c.bf16 %v2607, %v2606
  %v2633 = vpack.c.bf16 %v2609, %v2608
  %v2634 = vpack.c.bf16 %v2611, %v2610
  %v2635 = vpack.c.bf16 %v2613, %v2612
  %v2636 = vpack.c.bf16 %v2615, %v2614
  %v2637 = vpack.c.bf16 %v2617, %v2616
  %v2638 = vpack.c.bf16 %v2619, %v2618
  %v2639 = vpack.c.bf16 %v2621, %v2620
  %v2640 = vpack.c.bf16 %v2623, %v2622
  %v2641 = vpack.c.bf16 %v2625, %v2624
  %v2642 = vld [vmem:[%s4 + $0x10] sm:$0xf]
  %v2644 = vsel %vm1349, %v2626, 0
  %v2647 = vsel %vm1349, %v2627, 0
  %v2650 = vsel %vm1349, %v2628, 0
  %v2653 = vsel %vm1349, %v2629, 0
  %v2656 = vsel %vm1349, %v2630, 0
  %v2659 = vsel %vm1349, %v2631, 0
  %v2662 = vsel %vm1349, %v2632, 0
  %v2665 = vsel %vm1349, %v2633, 0
  %v2668 = vsel %vm1349, %v2634, 0
  %v2671 = vsel %vm1349, %v2635, 0
  %v2674 = vsel %vm1349, %v2636, 0
  %v2677 = vsel %vm1349, %v2637, 0
  %v2680 = vsel %vm1349, %v2638, 0
  %v2683 = vsel %vm1349, %v2639, 0
  %v2686 = vsel %vm1349, %v2640, 0
  %v2689 = vsel %vm1349, %v2641, 0
  %v2692 = vsel %vm1567, %v2642, 0
  %2694 = vmatprep.subr.bf16.mxu0 0
  %2695 = vmatpush1.bf16.msra.mxu0 0
  %2696 = vmatprep.subr.bf16.mxu0 0
  %2697 = vmatpush1.bf16.msra.mxu0 0
  %2698 = vmatprep.subr.bf16.mxu0 0
  %2699 = vmatpush1.bf16.msra.mxu0 0
  %2700 = vmatprep.subr.bf16.mxu0 0
  %2701 = vmatpush1.bf16.msra.mxu0 0
  %2702 = vmatprep.subr.bf16.mxu0 0
  %2703 = vmatpush1.bf16.msra.mxu0 0
  %2704 = vmatprep.subr.bf16.mxu0 0
  %2705 = vmatpush1.bf16.msra.mxu0 0
  %2706 = vmatprep.subr.bf16.mxu0 0
  %2707 = vmatpush1.bf16.msra.mxu0 0
  %2708 = vmatprep.subr.bf16.mxu0 0
  %2709 = vmatpush1.bf16.msra.mxu0 %v2692
  %2710 = vmatprep.subr.bf16.mxu0 0
  %2711 = vmatpush2.bf16.msra.mxu0 0
  %2712 = vmatprep.subr.bf16.mxu0 0
  %2713 = vmatpush2.bf16.msra.mxu0 0
  %2714 = vmatprep.subr.bf16.mxu0 0
  %2715 = vmatpush2.bf16.msra.mxu0 0
  %2716 = vmatprep.subr.bf16.mxu0 0
  %2717 = vmatpush2.bf16.msra.mxu0 0
  %2718 = vmatprep.subr.bf16.mxu0 0
  %2719 = vmatpush2.bf16.msra.mxu0 0
  %2720 = vmatprep.subr.bf16.mxu0 0
  %2721 = vmatpush2.bf16.msra.mxu0 0
  %2722 = vmatprep.subr.bf16.mxu0 0
  %2723 = vmatpush2.bf16.msra.mxu0 0
  %2724 = vmatprep.subr.bf16.mxu0 0
  %2725 = vmatpush2.bf16.msra.mxu0 0
  %2726 = vmatprep.mubr.bf16.mxu0 0
  %2727 = vmatmul.mubr.bf16.gmra.mxu0 %v2644
  %v2728 = vpop.f32.mrf.mxu0
  %v2729 = vadd.f32 0.0, %v2728
  %v2730 = vpop.f32.mrf.mxu0
  %v2731 = vpop.f32.mrf.mxu0
  %v2732 = vadd.f32 0.0, %v2731
  %v2733 = vpop.f32.mrf.mxu0
  %2734 = vmatprep.mubr.bf16.mxu0 0
  %2735 = vmatmul.mubr.bf16.gmra.mxu0 %v2647
  %v2736 = vpop.f32.mrf.mxu0
  %v2737 = vadd.f32 0.0, %v2736
  %v2738 = vpop.f32.mrf.mxu0
  %v2739 = vpop.f32.mrf.mxu0
  %v2740 = vadd.f32 0.0, %v2739
  %v2741 = vpop.f32.mrf.mxu0
  %2742 = vmatprep.mubr.bf16.mxu0 0
  %2743 = vmatmul.mubr.bf16.gmra.mxu0 %v2650
  %v2744 = vpop.f32.mrf.mxu0
  %v2745 = vadd.f32 0.0, %v2744
  %v2746 = vpop.f32.mrf.mxu0
  %v2747 = vpop.f32.mrf.mxu0
  %v2748 = vadd.f32 0.0, %v2747
  %v2749 = vpop.f32.mrf.mxu0
  %2750 = vmatprep.mubr.bf16.mxu0 0
  %2751 = vmatmul.mubr.bf16.gmra.mxu0 %v2653
  %v2752 = vpop.f32.mrf.mxu0
  %v2753 = vadd.f32 0.0, %v2752
  %v2754 = vpop.f32.mrf.mxu0
  %v2755 = vpop.f32.mrf.mxu0
  %v2756 = vadd.f32 0.0, %v2755
  %v2757 = vpop.f32.mrf.mxu0
  %2758 = vmatprep.mubr.bf16.mxu0 0
  %2759 = vmatmul.mubr.bf16.gmra.mxu0 %v2656
  %v2760 = vpop.f32.mrf.mxu0
  %v2761 = vadd.f32 0.0, %v2760
  %v2762 = vpop.f32.mrf.mxu0
  %v2763 = vpop.f32.mrf.mxu0
  %v2764 = vadd.f32 0.0, %v2763
  %v2765 = vpop.f32.mrf.mxu0
  %2766 = vmatprep.mubr.bf16.mxu0 0
  %2767 = vmatmul.mubr.bf16.gmra.mxu0 %v2659
  %v2768 = vpop.f32.mrf.mxu0
  %v2769 = vadd.f32 0.0, %v2768
  %v2770 = vpop.f32.mrf.mxu0
  %v2771 = vpop.f32.mrf.mxu0
  %v2772 = vadd.f32 0.0, %v2771
  %v2773 = vpop.f32.mrf.mxu0
  %2774 = vmatprep.mubr.bf16.mxu0 0
  %2775 = vmatmul.mubr.bf16.gmra.mxu0 %v2662
  %v2776 = vpop.f32.mrf.mxu0
  %v2777 = vadd.f32 0.0, %v2776
  %v2778 = vpop.f32.mrf.mxu0
  %v2779 = vpop.f32.mrf.mxu0
  %v2780 = vadd.f32 0.0, %v2779
  %v2781 = vpop.f32.mrf.mxu0
  %2782 = vmatprep.mubr.bf16.mxu0 0
  %2783 = vmatmul.mubr.bf16.gmra.mxu0 %v2665
  %v2784 = vpop.f32.mrf.mxu0
  %v2785 = vadd.f32 0.0, %v2784
  %v2786 = vpop.f32.mrf.mxu0
  %v2787 = vpop.f32.mrf.mxu0
  %v2788 = vadd.f32 0.0, %v2787
  %v2789 = vpop.f32.mrf.mxu0
  %2790 = vmatprep.mubr.bf16.mxu0 0
  %2791 = vmatmul.mubr.bf16.gmra.mxu0 %v2668
  %v2792 = vpop.f32.mrf.mxu0
  %v2793 = vadd.f32 0.0, %v2792
  %v2794 = vpop.f32.mrf.mxu0
  %v2795 = vpop.f32.mrf.mxu0
  %v2796 = vadd.f32 0.0, %v2795
  %v2797 = vpop.f32.mrf.mxu0
  %2798 = vmatprep.mubr.bf16.mxu0 0
  %2799 = vmatmul.mubr.bf16.gmra.mxu0 %v2671
  %v2800 = vpop.f32.mrf.mxu0
  %v2801 = vadd.f32 0.0, %v2800
  %v2802 = vpop.f32.mrf.mxu0
  %v2803 = vpop.f32.mrf.mxu0
  %v2804 = vadd.f32 0.0, %v2803
  %v2805 = vpop.f32.mrf.mxu0
  %2806 = vmatprep.mubr.bf16.mxu0 0
  %2807 = vmatmul.mubr.bf16.gmra.mxu0 %v2674
  %v2808 = vpop.f32.mrf.mxu0
  %v2809 = vadd.f32 0.0, %v2808
  %v2810 = vpop.f32.mrf.mxu0
  %v2811 = vpop.f32.mrf.mxu0
  %v2812 = vadd.f32 0.0, %v2811
  %v2813 = vpop.f32.mrf.mxu0
  %2814 = vmatprep.mubr.bf16.mxu0 0
  %2815 = vmatmul.mubr.bf16.gmra.mxu0 %v2677
  %v2816 = vpop.f32.mrf.mxu0
  %v2817 = vadd.f32 0.0, %v2816
  %v2818 = vpop.f32.mrf.mxu0
  %v2819 = vpop.f32.mrf.mxu0
  %v2820 = vadd.f32 0.0, %v2819
  %v2821 = vpop.f32.mrf.mxu0
  %2822 = vmatprep.mubr.bf16.mxu0 0
  %2823 = vmatmul.mubr.bf16.gmra.mxu0 %v2680
  %v2824 = vpop.f32.mrf.mxu0
  %v2825 = vadd.f32 0.0, %v2824
  %v2826 = vpop.f32.mrf.mxu0
  %v2827 = vpop.f32.mrf.mxu0
  %v2828 = vadd.f32 0.0, %v2827
  %v2829 = vpop.f32.mrf.mxu0
  %2830 = vmatprep.mubr.bf16.mxu0 0
  %2831 = vmatmul.mubr.bf16.gmra.mxu0 %v2683
  %v2832 = vpop.f32.mrf.mxu0
  %v2833 = vadd.f32 0.0, %v2832
  %v2834 = vpop.f32.mrf.mxu0
  %v2835 = vpop.f32.mrf.mxu0
  %v2836 = vadd.f32 0.0, %v2835
  %v2837 = vpop.f32.mrf.mxu0
  %2838 = vmatprep.mubr.bf16.mxu0 0
  %2839 = vmatmul.mubr.bf16.gmra.mxu0 %v2686
  %v2840 = vpop.f32.mrf.mxu0
  %v2841 = vadd.f32 0.0, %v2840
  %v2842 = vpop.f32.mrf.mxu0
  %v2843 = vpop.f32.mrf.mxu0
  %v2844 = vadd.f32 0.0, %v2843
  %v2845 = vpop.f32.mrf.mxu0
  %2846 = vmatprep.mubr.bf16.mxu0 0
  %2847 = vmatmul.mubr.bf16.gmra.mxu0 %v2689
  %v2848 = vpop.f32.mrf.mxu0
  %v2849 = vadd.f32 0.0, %v2848
  %v2850 = vpop.f32.mrf.mxu0
  %v2851 = vpop.f32.mrf.mxu0
  %v2852 = vadd.f32 0.0, %v2851
  %v2853 = vpop.f32.mrf.mxu0
  %2854 = vdwg.mxu0
  %v2855 = vadd.f32 %v2562, %v2729
  %v2856 = vadd.f32 %v2563, %v2732
  %v2857 = vadd.f32 %v2564, %v2737
  %v2858 = vadd.f32 %v2565, %v2740
  %v2859 = vadd.f32 %v2566, %v2745
  %v2860 = vadd.f32 %v2567, %v2748
  %v2861 = vadd.f32 %v2568, %v2753
  %v2862 = vadd.f32 %v2569, %v2756
  %v2863 = vadd.f32 %v2570, %v2761
  %v2864 = vadd.f32 %v2571, %v2764
  %v2865 = vadd.f32 %v2572, %v2769
  %v2866 = vadd.f32 %v2573, %v2772
  %v2867 = vadd.f32 %v2574, %v2777
  %v2868 = vadd.f32 %v2575, %v2780
  %v2869 = vadd.f32 %v2576, %v2785
  %v2870 = vadd.f32 %v2577, %v2788
  %v2871 = vadd.f32 %v2578, %v2793
  %v2872 = vadd.f32 %v2579, %v2796
  %v2873 = vadd.f32 %v2580, %v2801
  %v2874 = vadd.f32 %v2581, %v2804
  %v2875 = vadd.f32 %v2582, %v2809
  %v2876 = vadd.f32 %v2583, %v2812
  %v2877 = vadd.f32 %v2584, %v2817
  %v2878 = vadd.f32 %v2585, %v2820
  %v2879 = vadd.f32 %v2586, %v2825
  %v2880 = vadd.f32 %v2587, %v2828
  %v2881 = vadd.f32 %v2588, %v2833
  %v2882 = vadd.f32 %v2589, %v2836
  %v2883 = vadd.f32 %v2590, %v2841
  %v2884 = vadd.f32 %v2591, %v2844
  %v2885 = vadd.f32 %v2592, %v2849
  %v2886 = vadd.f32 %v2593, %v2852
  %v2887 = vld [vmem:[#allocation2 + $0x12] sm:$0xff]
  %v2888 = vld [vmem:[#allocation2 + $0x1a] sm:$0xff]
  %v2889 = vld [vmem:[#allocation2 + $0x22] sm:$0xff]
  %v2890 = vld [vmem:[#allocation2 + $0x2a] sm:$0xff]
  %v2891 = vld [vmem:[#allocation2 + $0x32] sm:$0xff]
  %v2892 = vld [vmem:[#allocation2 + $0x3a] sm:$0xff]
  %v2893 = vld [vmem:[#allocation2 + $0x42] sm:$0xff]
  %v2894 = vld [vmem:[#allocation2 + $0x4a] sm:$0xff]
  %v2895 = vld [vmem:[#allocation2 + $0x52] sm:$0xff]
  %v2896 = vld [vmem:[#allocation2 + $0x5a] sm:$0xff]
  %v2897 = vld [vmem:[#allocation2 + $0x62] sm:$0xff]
  %v2898 = vld [vmem:[#allocation2 + $0x6a] sm:$0xff]
  %v2899 = vld [vmem:[#allocation2 + $0x72] sm:$0xff]
  %v2900 = vld [vmem:[#allocation2 + $0x7a] sm:$0xff]
  %v2901 = vld [vmem:[#allocation2 + $0x82] sm:$0xff]
  %v2902 = vld [vmem:[#allocation2 + $0x8a] sm:$0xff]
  %v2903 = vld [vmem:[#allocation2 + $0x92] sm:$0xff]
  %v2904 = vld [vmem:[#allocation2 + $0x9a] sm:$0xff]
  %v2905 = vld [vmem:[#allocation2 + $0xa2] sm:$0xff]
  %v2906 = vld [vmem:[#allocation2 + $0xaa] sm:$0xff]
  %v2907 = vld [vmem:[#allocation2 + $0xb2] sm:$0xff]
  %v2908 = vld [vmem:[#allocation2 + $0xba] sm:$0xff]
  %v2909 = vld [vmem:[#allocation2 + $0xc2] sm:$0xff]
  %v2910 = vld [vmem:[#allocation2 + $0xca] sm:$0xff]
  %v2911 = vld [vmem:[#allocation2 + $0xd2] sm:$0xff]
  %v2912 = vld [vmem:[#allocation2 + $0xda] sm:$0xff]
  %v2913 = vld [vmem:[#allocation2 + $0xe2] sm:$0xff]
  %v2914 = vld [vmem:[#allocation2 + $0xea] sm:$0xff]
  %v2915 = vld [vmem:[#allocation2 + $0xf2] sm:$0xff]
  %v2916 = vld [vmem:[#allocation2 + $0xfa] sm:$0xff]
  %v2917 = vld [vmem:[#allocation2 + $0x102] sm:$0xff]
  %v2918 = vld [vmem:[#allocation2 + $0x10a] sm:$0xff]
  %v2919 = vmul.f32 %v2887, %v1317
  %v2920 = vmul.f32 %v2888, %v1318
  %v2921 = vmul.f32 %v2889, %v1319
  %v2922 = vmul.f32 %v2890, %v1320
  %v2923 = vmul.f32 %v2891, %v1321
  %v2924 = vmul.f32 %v2892, %v1322
  %v2925 = vmul.f32 %v2893, %v1323
  %v2926 = vmul.f32 %v2894, %v1324
  %v2927 = vmul.f32 %v2895, %v1325
  %v2928 = vmul.f32 %v2896, %v1326
  %v2929 = vmul.f32 %v2897, %v1327
  %v2930 = vmul.f32 %v2898, %v1328
  %v2931 = vmul.f32 %v2899, %v1329
  %v2932 = vmul.f32 %v2900, %v1330
  %v2933 = vmul.f32 %v2901, %v1331
  %v2934 = vmul.f32 %v2902, %v1332
  %v2935 = vmul.f32 %v2903, %v1333
  %v2936 = vmul.f32 %v2904, %v1334
  %v2937 = vmul.f32 %v2905, %v1335
  %v2938 = vmul.f32 %v2906, %v1336
  %v2939 = vmul.f32 %v2907, %v1337
  %v2940 = vmul.f32 %v2908, %v1338
  %v2941 = vmul.f32 %v2909, %v1339
  %v2942 = vmul.f32 %v2910, %v1340
  %v2943 = vmul.f32 %v2911, %v1341
  %v2944 = vmul.f32 %v2912, %v1342
  %v2945 = vmul.f32 %v2913, %v1343
  %v2946 = vmul.f32 %v2914, %v1344
  %v2947 = vmul.f32 %v2915, %v1345
  %v2948 = vmul.f32 %v2916, %v1346
  %v2949 = vmul.f32 %v2917, %v1347
  %v2950 = vmul.f32 %v2918, %v1348
  %v2951 = vpack.c.bf16 %v2920, %v2919
  %v2952 = vpack.c.bf16 %v2922, %v2921
  %v2953 = vpack.c.bf16 %v2924, %v2923
  %v2954 = vpack.c.bf16 %v2926, %v2925
  %v2955 = vpack.c.bf16 %v2928, %v2927
  %v2956 = vpack.c.bf16 %v2930, %v2929
  %v2957 = vpack.c.bf16 %v2932, %v2931
  %v2958 = vpack.c.bf16 %v2934, %v2933
  %v2959 = vpack.c.bf16 %v2936, %v2935
  %v2960 = vpack.c.bf16 %v2938, %v2937
  %v2961 = vpack.c.bf16 %v2940, %v2939
  %v2962 = vpack.c.bf16 %v2942, %v2941
  %v2963 = vpack.c.bf16 %v2944, %v2943
  %v2964 = vpack.c.bf16 %v2946, %v2945
  %v2965 = vpack.c.bf16 %v2948, %v2947
  %v2966 = vpack.c.bf16 %v2950, %v2949
  %v2967 = vld [vmem:[%s4 + $0x14] sm:$0xf]
  %v2969 = vsel %vm1349, %v2951, 0
  %v2972 = vsel %vm1349, %v2952, 0
  %v2975 = vsel %vm1349, %v2953, 0
  %v2978 = vsel %vm1349, %v2954, 0
  %v2981 = vsel %vm1349, %v2955, 0
  %v2984 = vsel %vm1349, %v2956, 0
  %v2987 = vsel %vm1349, %v2957, 0
  %v2990 = vsel %vm1349, %v2958, 0
  %v2993 = vsel %vm1349, %v2959, 0
  %v2996 = vsel %vm1349, %v2960, 0
  %v2999 = vsel %vm1349, %v2961, 0
  %v3002 = vsel %vm1349, %v2962, 0
  %v3005 = vsel %vm1349, %v2963, 0
  %v3008 = vsel %vm1349, %v2964, 0
  %v3011 = vsel %vm1349, %v2965, 0
  %v3014 = vsel %vm1349, %v2966, 0
  %v3017 = vsel %vm1567, %v2967, 0
  %3019 = vmatprep.subr.bf16.mxu0 0
  %3020 = vmatpush1.bf16.msra.mxu0 0
  %3021 = vmatprep.subr.bf16.mxu0 0
  %3022 = vmatpush1.bf16.msra.mxu0 0
  %3023 = vmatprep.subr.bf16.mxu0 0
  %3024 = vmatpush1.bf16.msra.mxu0 0
  %3025 = vmatprep.subr.bf16.mxu0 0
  %3026 = vmatpush1.bf16.msra.mxu0 0
  %3027 = vmatprep.subr.bf16.mxu0 0
  %3028 = vmatpush1.bf16.msra.mxu0 0
  %3029 = vmatprep.subr.bf16.mxu0 0
  %3030 = vmatpush1.bf16.msra.mxu0 0
  %3031 = vmatprep.subr.bf16.mxu0 0
  %3032 = vmatpush1.bf16.msra.mxu0 0
  %3033 = vmatprep.subr.bf16.mxu0 0
  %3034 = vmatpush1.bf16.msra.mxu0 %v3017
  %3035 = vmatprep.subr.bf16.mxu0 0
  %3036 = vmatpush2.bf16.msra.mxu0 0
  %3037 = vmatprep.subr.bf16.mxu0 0
  %3038 = vmatpush2.bf16.msra.mxu0 0
  %3039 = vmatprep.subr.bf16.mxu0 0
  %3040 = vmatpush2.bf16.msra.mxu0 0
  %3041 = vmatprep.subr.bf16.mxu0 0
  %3042 = vmatpush2.bf16.msra.mxu0 0
  %3043 = vmatprep.subr.bf16.mxu0 0
  %3044 = vmatpush2.bf16.msra.mxu0 0
  %3045 = vmatprep.subr.bf16.mxu0 0
  %3046 = vmatpush2.bf16.msra.mxu0 0
  %3047 = vmatprep.subr.bf16.mxu0 0
  %3048 = vmatpush2.bf16.msra.mxu0 0
  %3049 = vmatprep.subr.bf16.mxu0 0
  %3050 = vmatpush2.bf16.msra.mxu0 0
  %3051 = vmatprep.mubr.bf16.mxu0 0
  %3052 = vmatmul.mubr.bf16.gmra.mxu0 %v2969
  %v3053 = vpop.f32.mrf.mxu0
  %v3054 = vadd.f32 0.0, %v3053
  %v3055 = vpop.f32.mrf.mxu0
  %v3056 = vpop.f32.mrf.mxu0
  %v3057 = vadd.f32 0.0, %v3056
  %v3058 = vpop.f32.mrf.mxu0
  %3059 = vmatprep.mubr.bf16.mxu0 0
  %3060 = vmatmul.mubr.bf16.gmra.mxu0 %v2972
  %v3061 = vpop.f32.mrf.mxu0
  %v3062 = vadd.f32 0.0, %v3061
  %v3063 = vpop.f32.mrf.mxu0
  %v3064 = vpop.f32.mrf.mxu0
  %v3065 = vadd.f32 0.0, %v3064
  %v3066 = vpop.f32.mrf.mxu0
  %3067 = vmatprep.mubr.bf16.mxu0 0
  %3068 = vmatmul.mubr.bf16.gmra.mxu0 %v2975
  %v3069 = vpop.f32.mrf.mxu0
  %v3070 = vadd.f32 0.0, %v3069
  %v3071 = vpop.f32.mrf.mxu0
  %v3072 = vpop.f32.mrf.mxu0
  %v3073 = vadd.f32 0.0, %v3072
  %v3074 = vpop.f32.mrf.mxu0
  %3075 = vmatprep.mubr.bf16.mxu0 0
  %3076 = vmatmul.mubr.bf16.gmra.mxu0 %v2978
  %v3077 = vpop.f32.mrf.mxu0
  %v3078 = vadd.f32 0.0, %v3077
  %v3079 = vpop.f32.mrf.mxu0
  %v3080 = vpop.f32.mrf.mxu0
  %v3081 = vadd.f32 0.0, %v3080
  %v3082 = vpop.f32.mrf.mxu0
  %3083 = vmatprep.mubr.bf16.mxu0 0
  %3084 = vmatmul.mubr.bf16.gmra.mxu0 %v2981
  %v3085 = vpop.f32.mrf.mxu0
  %v3086 = vadd.f32 0.0, %v3085
  %v3087 = vpop.f32.mrf.mxu0
  %v3088 = vpop.f32.mrf.mxu0
  %v3089 = vadd.f32 0.0, %v3088
  %v3090 = vpop.f32.mrf.mxu0
  %3091 = vmatprep.mubr.bf16.mxu0 0
  %3092 = vmatmul.mubr.bf16.gmra.mxu0 %v2984
  %v3093 = vpop.f32.mrf.mxu0
  %v3094 = vadd.f32 0.0, %v3093
  %v3095 = vpop.f32.mrf.mxu0
  %v3096 = vpop.f32.mrf.mxu0
  %v3097 = vadd.f32 0.0, %v3096
  %v3098 = vpop.f32.mrf.mxu0
  %3099 = vmatprep.mubr.bf16.mxu0 0
  %3100 = vmatmul.mubr.bf16.gmra.mxu0 %v2987
  %v3101 = vpop.f32.mrf.mxu0
  %v3102 = vadd.f32 0.0, %v3101
  %v3103 = vpop.f32.mrf.mxu0
  %v3104 = vpop.f32.mrf.mxu0
  %v3105 = vadd.f32 0.0, %v3104
  %v3106 = vpop.f32.mrf.mxu0
  %3107 = vmatprep.mubr.bf16.mxu0 0
  %3108 = vmatmul.mubr.bf16.gmra.mxu0 %v2990
  %v3109 = vpop.f32.mrf.mxu0
  %v3110 = vadd.f32 0.0, %v3109
  %v3111 = vpop.f32.mrf.mxu0
  %v3112 = vpop.f32.mrf.mxu0
  %v3113 = vadd.f32 0.0, %v3112
  %v3114 = vpop.f32.mrf.mxu0
  %3115 = vmatprep.mubr.bf16.mxu0 0
  %3116 = vmatmul.mubr.bf16.gmra.mxu0 %v2993
  %v3117 = vpop.f32.mrf.mxu0
  %v3118 = vadd.f32 0.0, %v3117
  %v3119 = vpop.f32.mrf.mxu0
  %v3120 = vpop.f32.mrf.mxu0
  %v3121 = vadd.f32 0.0, %v3120
  %v3122 = vpop.f32.mrf.mxu0
  %3123 = vmatprep.mubr.bf16.mxu0 0
  %3124 = vmatmul.mubr.bf16.gmra.mxu0 %v2996
  %v3125 = vpop.f32.mrf.mxu0
  %v3126 = vadd.f32 0.0, %v3125
  %v3127 = vpop.f32.mrf.mxu0
  %v3128 = vpop.f32.mrf.mxu0
  %v3129 = vadd.f32 0.0, %v3128
  %v3130 = vpop.f32.mrf.mxu0
  %3131 = vmatprep.mubr.bf16.mxu0 0
  %3132 = vmatmul.mubr.bf16.gmra.mxu0 %v2999
  %v3133 = vpop.f32.mrf.mxu0
  %v3134 = vadd.f32 0.0, %v3133
  %v3135 = vpop.f32.mrf.mxu0
  %v3136 = vpop.f32.mrf.mxu0
  %v3137 = vadd.f32 0.0, %v3136
  %v3138 = vpop.f32.mrf.mxu0
  %3139 = vmatprep.mubr.bf16.mxu0 0
  %3140 = vmatmul.mubr.bf16.gmra.mxu0 %v3002
  %v3141 = vpop.f32.mrf.mxu0
  %v3142 = vadd.f32 0.0, %v3141
  %v3143 = vpop.f32.mrf.mxu0
  %v3144 = vpop.f32.mrf.mxu0
  %v3145 = vadd.f32 0.0, %v3144
  %v3146 = vpop.f32.mrf.mxu0
  %3147 = vmatprep.mubr.bf16.mxu0 0
  %3148 = vmatmul.mubr.bf16.gmra.mxu0 %v3005
  %v3149 = vpop.f32.mrf.mxu0
  %v3150 = vadd.f32 0.0, %v3149
  %v3151 = vpop.f32.mrf.mxu0
  %v3152 = vpop.f32.mrf.mxu0
  %v3153 = vadd.f32 0.0, %v3152
  %v3154 = vpop.f32.mrf.mxu0
  %3155 = vmatprep.mubr.bf16.mxu0 0
  %3156 = vmatmul.mubr.bf16.gmra.mxu0 %v3008
  %v3157 = vpop.f32.mrf.mxu0
  %v3158 = vadd.f32 0.0, %v3157
  %v3159 = vpop.f32.mrf.mxu0
  %v3160 = vpop.f32.mrf.mxu0
  %v3161 = vadd.f32 0.0, %v3160
  %v3162 = vpop.f32.mrf.mxu0
  %3163 = vmatprep.mubr.bf16.mxu0 0
  %3164 = vmatmul.mubr.bf16.gmra.mxu0 %v3011
  %v3165 = vpop.f32.mrf.mxu0
  %v3166 = vadd.f32 0.0, %v3165
  %v3167 = vpop.f32.mrf.mxu0
  %v3168 = vpop.f32.mrf.mxu0
  %v3169 = vadd.f32 0.0, %v3168
  %v3170 = vpop.f32.mrf.mxu0
  %3171 = vmatprep.mubr.bf16.mxu0 0
  %3172 = vmatmul.mubr.bf16.gmra.mxu0 %v3014
  %v3173 = vpop.f32.mrf.mxu0
  %v3174 = vadd.f32 0.0, %v3173
  %v3175 = vpop.f32.mrf.mxu0
  %v3176 = vpop.f32.mrf.mxu0
  %v3177 = vadd.f32 0.0, %v3176
  %v3178 = vpop.f32.mrf.mxu0
  %3179 = vdwg.mxu0
  %v3180 = vadd.f32 %v2855, %v3054
  %v3181 = vadd.f32 %v2856, %v3057
  %v3182 = vadd.f32 %v2857, %v3062
  %v3183 = vadd.f32 %v2858, %v3065
  %v3184 = vadd.f32 %v2859, %v3070
  %v3185 = vadd.f32 %v2860, %v3073
  %v3186 = vadd.f32 %v2861, %v3078
  %v3187 = vadd.f32 %v2862, %v3081
  %v3188 = vadd.f32 %v2863, %v3086
  %v3189 = vadd.f32 %v2864, %v3089
  %v3190 = vadd.f32 %v2865, %v3094
  %v3191 = vadd.f32 %v2866, %v3097
  %v3192 = vadd.f32 %v2867, %v3102
  %v3193 = vadd.f32 %v2868, %v3105
  %v3194 = vadd.f32 %v2869, %v3110
  %v3195 = vadd.f32 %v2870, %v3113
  %v3196 = vadd.f32 %v2871, %v3118
  %v3197 = vadd.f32 %v2872, %v3121
  %v3198 = vadd.f32 %v2873, %v3126
  %v3199 = vadd.f32 %v2874, %v3129
  %v3200 = vadd.f32 %v2875, %v3134
  %v3201 = vadd.f32 %v2876, %v3137
  %v3202 = vadd.f32 %v2877, %v3142
  %v3203 = vadd.f32 %v2878, %v3145
  %v3204 = vadd.f32 %v2879, %v3150
  %v3205 = vadd.f32 %v2880, %v3153
  %v3206 = vadd.f32 %v2881, %v3158
  %v3207 = vadd.f32 %v2882, %v3161
  %v3208 = vadd.f32 %v2883, %v3166
  %v3209 = vadd.f32 %v2884, %v3169
  %v3210 = vadd.f32 %v2885, %v3174
  %v3211 = vadd.f32 %v2886, %v3177
  %v3212 = vld [vmem:[#allocation2 + $0x20] sm:$0xff]
  %v3213 = vld [vmem:[#allocation2 + $0x28] sm:$0xff]
  %v3214 = vld [vmem:[#allocation2 + $0x30] sm:$0xff]
  %v3215 = vld [vmem:[#allocation2 + $0x38] sm:$0xff]
  %v3216 = vld [vmem:[#allocation2 + $0x40] sm:$0xff]
  %v3217 = vld [vmem:[#allocation2 + $0x48] sm:$0xff]
  %v3218 = vld [vmem:[#allocation2 + $0x50] sm:$0xff]
  %v3219 = vld [vmem:[#allocation2 + $0x58] sm:$0xff]
  %v3220 = vld [vmem:[#allocation2 + $0x60] sm:$0xff]
  %v3221 = vld [vmem:[#allocation2 + $0x68] sm:$0xff]
  %v3222 = vld [vmem:[#allocation2 + $0x70] sm:$0xff]
  %v3223 = vld [vmem:[#allocation2 + $0x78] sm:$0xff]
  %v3224 = vld [vmem:[#allocation2 + $0x80] sm:$0xff]
  %v3225 = vld [vmem:[#allocation2 + $0x88] sm:$0xff]
  %v3226 = vld [vmem:[#allocation2 + $0x90] sm:$0xff]
  %v3227 = vld [vmem:[#allocation2 + $0x98] sm:$0xff]
  %v3228 = vld [vmem:[#allocation2 + $0xa0] sm:$0xff]
  %v3229 = vld [vmem:[#allocation2 + $0xa8] sm:$0xff]
  %v3230 = vld [vmem:[#allocation2 + $0xb0] sm:$0xff]
  %v3231 = vld [vmem:[#allocation2 + $0xb8] sm:$0xff]
  %v3232 = vld [vmem:[#allocation2 + $0xc0] sm:$0xff]
  %v3233 = vld [vmem:[#allocation2 + $0xc8] sm:$0xff]
  %v3234 = vld [vmem:[#allocation2 + $0xd0] sm:$0xff]
  %v3235 = vld [vmem:[#allocation2 + $0xd8] sm:$0xff]
  %v3236 = vld [vmem:[#allocation2 + $0xe0] sm:$0xff]
  %v3237 = vld [vmem:[#allocation2 + $0xe8] sm:$0xff]
  %v3238 = vld [vmem:[#allocation2 + $0xf0] sm:$0xff]
  %v3239 = vld [vmem:[#allocation2 + $0xf8] sm:$0xff]
  %v3240 = vld [vmem:[#allocation2 + $0x100] sm:$0xff]
  %v3241 = vld [vmem:[#allocation2 + $0x108] sm:$0xff]
  %v3242 = vld [vmem:[#allocation2 + $0x110] sm:$0xff]
  %v3243 = vld [vmem:[#allocation2 + $0x118] sm:$0xff]
  %v3244 = vmul.f32 %v3212, %v1221
  %v3245 = vmul.f32 %v3213, %v1222
  %v3246 = vmul.f32 %v3214, %v1223
  %v3247 = vmul.f32 %v3215, %v1224
  %v3248 = vmul.f32 %v3216, %v1225
  %v3249 = vmul.f32 %v3217, %v1226
  %v3250 = vmul.f32 %v3218, %v1227
  %v3251 = vmul.f32 %v3219, %v1228
  %v3252 = vmul.f32 %v3220, %v1229
  %v3253 = vmul.f32 %v3221, %v1230
  %v3254 = vmul.f32 %v3222, %v1231
  %v3255 = vmul.f32 %v3223, %v1232
  %v3256 = vmul.f32 %v3224, %v1233
  %v3257 = vmul.f32 %v3225, %v1234
  %v3258 = vmul.f32 %v3226, %v1235
  %v3259 = vmul.f32 %v3227, %v1236
  %v3260 = vmul.f32 %v3228, %v1237
  %v3261 = vmul.f32 %v3229, %v1238
  %v3262 = vmul.f32 %v3230, %v1239
  %v3263 = vmul.f32 %v3231, %v1240
  %v3264 = vmul.f32 %v3232, %v1241
  %v3265 = vmul.f32 %v3233, %v1242
  %v3266 = vmul.f32 %v3234, %v1243
  %v3267 = vmul.f32 %v3235, %v1244
  %v3268 = vmul.f32 %v3236, %v1245
  %v3269 = vmul.f32 %v3237, %v1246
  %v3270 = vmul.f32 %v3238, %v1247
  %v3271 = vmul.f32 %v3239, %v1248
  %v3272 = vmul.f32 %v3240, %v1249
  %v3273 = vmul.f32 %v3241, %v1250
  %v3274 = vmul.f32 %v3242, %v1251
  %v3275 = vmul.f32 %v3243, %v1252
  %v3276 = vpack.c.bf16 %v3245, %v3244
  %v3277 = vpack.c.bf16 %v3247, %v3246
  %v3278 = vpack.c.bf16 %v3249, %v3248
  %v3279 = vpack.c.bf16 %v3251, %v3250
  %v3280 = vpack.c.bf16 %v3253, %v3252
  %v3281 = vpack.c.bf16 %v3255, %v3254
  %v3282 = vpack.c.bf16 %v3257, %v3256
  %v3283 = vpack.c.bf16 %v3259, %v3258
  %v3284 = vpack.c.bf16 %v3261, %v3260
  %v3285 = vpack.c.bf16 %v3263, %v3262
  %v3286 = vpack.c.bf16 %v3265, %v3264
  %v3287 = vpack.c.bf16 %v3267, %v3266
  %v3288 = vpack.c.bf16 %v3269, %v3268
  %v3289 = vpack.c.bf16 %v3271, %v3270
  %v3290 = vpack.c.bf16 %v3273, %v3272
  %v3291 = vpack.c.bf16 %v3275, %v3274
  %v3292 = vld [vmem:[%s4 + $0x18] sm:$0xf]
  %v3294 = vsel %vm1349, %v3276, 0
  %v3297 = vsel %vm1349, %v3277, 0
  %v3300 = vsel %vm1349, %v3278, 0
  %v3303 = vsel %vm1349, %v3279, 0
  %v3306 = vsel %vm1349, %v3280, 0
  %v3309 = vsel %vm1349, %v3281, 0
  %v3312 = vsel %vm1349, %v3282, 0
  %v3315 = vsel %vm1349, %v3283, 0
  %v3318 = vsel %vm1349, %v3284, 0
  %v3321 = vsel %vm1349, %v3285, 0
  %v3324 = vsel %vm1349, %v3286, 0
  %v3327 = vsel %vm1349, %v3287, 0
  %v3330 = vsel %vm1349, %v3288, 0
  %v3333 = vsel %vm1349, %v3289, 0
  %v3336 = vsel %vm1349, %v3290, 0
  %v3339 = vsel %vm1349, %v3291, 0
  %v3342 = vsel %vm1567, %v3292, 0
  %3344 = vmatprep.subr.bf16.mxu0 0
  %3345 = vmatpush1.bf16.msra.mxu0 0
  %3346 = vmatprep.subr.bf16.mxu0 0
  %3347 = vmatpush1.bf16.msra.mxu0 0
  %3348 = vmatprep.subr.bf16.mxu0 0
  %3349 = vmatpush1.bf16.msra.mxu0 0
  %3350 = vmatprep.subr.bf16.mxu0 0
  %3351 = vmatpush1.bf16.msra.mxu0 0
  %3352 = vmatprep.subr.bf16.mxu0 0
  %3353 = vmatpush1.bf16.msra.mxu0 0
  %3354 = vmatprep.subr.bf16.mxu0 0
  %3355 = vmatpush1.bf16.msra.mxu0 0
  %3356 = vmatprep.subr.bf16.mxu0 0
  %3357 = vmatpush1.bf16.msra.mxu0 0
  %3358 = vmatprep.subr.bf16.mxu0 0
  %3359 = vmatpush1.bf16.msra.mxu0 %v3342
  %3360 = vmatprep.subr.bf16.mxu0 0
  %3361 = vmatpush2.bf16.msra.mxu0 0
  %3362 = vmatprep.subr.bf16.mxu0 0
  %3363 = vmatpush2.bf16.msra.mxu0 0
  %3364 = vmatprep.subr.bf16.mxu0 0
  %3365 = vmatpush2.bf16.msra.mxu0 0
  %3366 = vmatprep.subr.bf16.mxu0 0
  %3367 = vmatpush2.bf16.msra.mxu0 0
  %3368 = vmatprep.subr.bf16.mxu0 0
  %3369 = vmatpush2.bf16.msra.mxu0 0
  %3370 = vmatprep.subr.bf16.mxu0 0
  %3371 = vmatpush2.bf16.msra.mxu0 0
  %3372 = vmatprep.subr.bf16.mxu0 0
  %3373 = vmatpush2.bf16.msra.mxu0 0
  %3374 = vmatprep.subr.bf16.mxu0 0
  %3375 = vmatpush2.bf16.msra.mxu0 0
  %3376 = vmatprep.mubr.bf16.mxu0 0
  %3377 = vmatmul.mubr.bf16.gmra.mxu0 %v3294
  %v3378 = vpop.f32.mrf.mxu0
  %v3379 = vadd.f32 0.0, %v3378
  %v3380 = vpop.f32.mrf.mxu0
  %v3381 = vpop.f32.mrf.mxu0
  %v3382 = vadd.f32 0.0, %v3381
  %v3383 = vpop.f32.mrf.mxu0
  %3384 = vmatprep.mubr.bf16.mxu0 0
  %3385 = vmatmul.mubr.bf16.gmra.mxu0 %v3297
  %v3386 = vpop.f32.mrf.mxu0
  %v3387 = vadd.f32 0.0, %v3386
  %v3388 = vpop.f32.mrf.mxu0
  %v3389 = vpop.f32.mrf.mxu0
  %v3390 = vadd.f32 0.0, %v3389
  %v3391 = vpop.f32.mrf.mxu0
  %3392 = vmatprep.mubr.bf16.mxu0 0
  %3393 = vmatmul.mubr.bf16.gmra.mxu0 %v3300
  %v3394 = vpop.f32.mrf.mxu0
  %v3395 = vadd.f32 0.0, %v3394
  %v3396 = vpop.f32.mrf.mxu0
  %v3397 = vpop.f32.mrf.mxu0
  %v3398 = vadd.f32 0.0, %v3397
  %v3399 = vpop.f32.mrf.mxu0
  %3400 = vmatprep.mubr.bf16.mxu0 0
  %3401 = vmatmul.mubr.bf16.gmra.mxu0 %v3303
  %v3402 = vpop.f32.mrf.mxu0
  %v3403 = vadd.f32 0.0, %v3402
  %v3404 = vpop.f32.mrf.mxu0
  %v3405 = vpop.f32.mrf.mxu0
  %v3406 = vadd.f32 0.0, %v3405
  %v3407 = vpop.f32.mrf.mxu0
  %3408 = vmatprep.mubr.bf16.mxu0 0
  %3409 = vmatmul.mubr.bf16.gmra.mxu0 %v3306
  %v3410 = vpop.f32.mrf.mxu0
  %v3411 = vadd.f32 0.0, %v3410
  %v3412 = vpop.f32.mrf.mxu0
  %v3413 = vpop.f32.mrf.mxu0
  %v3414 = vadd.f32 0.0, %v3413
  %v3415 = vpop.f32.mrf.mxu0
  %3416 = vmatprep.mubr.bf16.mxu0 0
  %3417 = vmatmul.mubr.bf16.gmra.mxu0 %v3309
  %v3418 = vpop.f32.mrf.mxu0
  %v3419 = vadd.f32 0.0, %v3418
  %v3420 = vpop.f32.mrf.mxu0
  %v3421 = vpop.f32.mrf.mxu0
  %v3422 = vadd.f32 0.0, %v3421
  %v3423 = vpop.f32.mrf.mxu0
  %3424 = vmatprep.mubr.bf16.mxu0 0
  %3425 = vmatmul.mubr.bf16.gmra.mxu0 %v3312
  %v3426 = vpop.f32.mrf.mxu0
  %v3427 = vadd.f32 0.0, %v3426
  %v3428 = vpop.f32.mrf.mxu0
  %v3429 = vpop.f32.mrf.mxu0
  %v3430 = vadd.f32 0.0, %v3429
  %v3431 = vpop.f32.mrf.mxu0
  %3432 = vmatprep.mubr.bf16.mxu0 0
  %3433 = vmatmul.mubr.bf16.gmra.mxu0 %v3315
  %v3434 = vpop.f32.mrf.mxu0
  %v3435 = vadd.f32 0.0, %v3434
  %v3436 = vpop.f32.mrf.mxu0
  %v3437 = vpop.f32.mrf.mxu0
  %v3438 = vadd.f32 0.0, %v3437
  %v3439 = vpop.f32.mrf.mxu0
  %3440 = vmatprep.mubr.bf16.mxu0 0
  %3441 = vmatmul.mubr.bf16.gmra.mxu0 %v3318
  %v3442 = vpop.f32.mrf.mxu0
  %v3443 = vadd.f32 0.0, %v3442
  %v3444 = vpop.f32.mrf.mxu0
  %v3445 = vpop.f32.mrf.mxu0
  %v3446 = vadd.f32 0.0, %v3445
  %v3447 = vpop.f32.mrf.mxu0
  %3448 = vmatprep.mubr.bf16.mxu0 0
  %3449 = vmatmul.mubr.bf16.gmra.mxu0 %v3321
  %v3450 = vpop.f32.mrf.mxu0
  %v3451 = vadd.f32 0.0, %v3450
  %v3452 = vpop.f32.mrf.mxu0
  %v3453 = vpop.f32.mrf.mxu0
  %v3454 = vadd.f32 0.0, %v3453
  %v3455 = vpop.f32.mrf.mxu0
  %3456 = vmatprep.mubr.bf16.mxu0 0
  %3457 = vmatmul.mubr.bf16.gmra.mxu0 %v3324
  %v3458 = vpop.f32.mrf.mxu0
  %v3459 = vadd.f32 0.0, %v3458
  %v3460 = vpop.f32.mrf.mxu0
  %v3461 = vpop.f32.mrf.mxu0
  %v3462 = vadd.f32 0.0, %v3461
  %v3463 = vpop.f32.mrf.mxu0
  %3464 = vmatprep.mubr.bf16.mxu0 0
  %3465 = vmatmul.mubr.bf16.gmra.mxu0 %v3327
  %v3466 = vpop.f32.mrf.mxu0
  %v3467 = vadd.f32 0.0, %v3466
  %v3468 = vpop.f32.mrf.mxu0
  %v3469 = vpop.f32.mrf.mxu0
  %v3470 = vadd.f32 0.0, %v3469
  %v3471 = vpop.f32.mrf.mxu0
  %3472 = vmatprep.mubr.bf16.mxu0 0
  %3473 = vmatmul.mubr.bf16.gmra.mxu0 %v3330
  %v3474 = vpop.f32.mrf.mxu0
  %v3475 = vadd.f32 0.0, %v3474
  %v3476 = vpop.f32.mrf.mxu0
  %v3477 = vpop.f32.mrf.mxu0
  %v3478 = vadd.f32 0.0, %v3477
  %v3479 = vpop.f32.mrf.mxu0
  %3480 = vmatprep.mubr.bf16.mxu0 0
  %3481 = vmatmul.mubr.bf16.gmra.mxu0 %v3333
  %v3482 = vpop.f32.mrf.mxu0
  %v3483 = vadd.f32 0.0, %v3482
  %v3484 = vpop.f32.mrf.mxu0
  %v3485 = vpop.f32.mrf.mxu0
  %v3486 = vadd.f32 0.0, %v3485
  %v3487 = vpop.f32.mrf.mxu0
  %3488 = vmatprep.mubr.bf16.mxu0 0
  %3489 = vmatmul.mubr.bf16.gmra.mxu0 %v3336
  %v3490 = vpop.f32.mrf.mxu0
  %v3491 = vadd.f32 0.0, %v3490
  %v3492 = vpop.f32.mrf.mxu0
  %v3493 = vpop.f32.mrf.mxu0
  %v3494 = vadd.f32 0.0, %v3493
  %v3495 = vpop.f32.mrf.mxu0
  %3496 = vmatprep.mubr.bf16.mxu0 0
  %3497 = vmatmul.mubr.bf16.gmra.mxu0 %v3339
  %v3498 = vpop.f32.mrf.mxu0
  %v3499 = vadd.f32 0.0, %v3498
  %v3500 = vpop.f32.mrf.mxu0
  %v3501 = vpop.f32.mrf.mxu0
  %v3502 = vadd.f32 0.0, %v3501
  %v3503 = vpop.f32.mrf.mxu0
  %3504 = vdwg.mxu0
  %v3505 = vadd.f32 %v3180, %v3379
  %v3506 = vadd.f32 %v3181, %v3382
  %v3507 = vadd.f32 %v3182, %v3387
  %v3508 = vadd.f32 %v3183, %v3390
  %v3509 = vadd.f32 %v3184, %v3395
  %v3510 = vadd.f32 %v3185, %v3398
  %v3511 = vadd.f32 %v3186, %v3403
  %v3512 = vadd.f32 %v3187, %v3406
  %v3513 = vadd.f32 %v3188, %v3411
  %v3514 = vadd.f32 %v3189, %v3414
  %v3515 = vadd.f32 %v3190, %v3419
  %v3516 = vadd.f32 %v3191, %v3422
  %v3517 = vadd.f32 %v3192, %v3427
  %v3518 = vadd.f32 %v3193, %v3430
  %v3519 = vadd.f32 %v3194, %v3435
  %v3520 = vadd.f32 %v3195, %v3438
  %v3521 = vadd.f32 %v3196, %v3443
  %v3522 = vadd.f32 %v3197, %v3446
  %v3523 = vadd.f32 %v3198, %v3451
  %v3524 = vadd.f32 %v3199, %v3454
  %v3525 = vadd.f32 %v3200, %v3459
  %v3526 = vadd.f32 %v3201, %v3462
  %v3527 = vadd.f32 %v3202, %v3467
  %v3528 = vadd.f32 %v3203, %v3470
  %v3529 = vadd.f32 %v3204, %v3475
  %v3530 = vadd.f32 %v3205, %v3478
  %v3531 = vadd.f32 %v3206, %v3483
  %v3532 = vadd.f32 %v3207, %v3486
  %v3533 = vadd.f32 %v3208, %v3491
  %v3534 = vadd.f32 %v3209, %v3494
  %v3535 = vadd.f32 %v3210, %v3499
  %v3536 = vadd.f32 %v3211, %v3502
  %v3537 = vld [vmem:[#allocation2 + $0x21] sm:$0xff]
  %v3538 = vld [vmem:[#allocation2 + $0x29] sm:$0xff]
  %v3539 = vld [vmem:[#allocation2 + $0x31] sm:$0xff]
  %v3540 = vld [vmem:[#allocation2 + $0x39] sm:$0xff]
  %v3541 = vld [vmem:[#allocation2 + $0x41] sm:$0xff]
  %v3542 = vld [vmem:[#allocation2 + $0x49] sm:$0xff]
  %v3543 = vld [vmem:[#allocation2 + $0x51] sm:$0xff]
  %v3544 = vld [vmem:[#allocation2 + $0x59] sm:$0xff]
  %v3545 = vld [vmem:[#allocation2 + $0x61] sm:$0xff]
  %v3546 = vld [vmem:[#allocation2 + $0x69] sm:$0xff]
  %v3547 = vld [vmem:[#allocation2 + $0x71] sm:$0xff]
  %v3548 = vld [vmem:[#allocation2 + $0x79] sm:$0xff]
  %v3549 = vld [vmem:[#allocation2 + $0x81] sm:$0xff]
  %v3550 = vld [vmem:[#allocation2 + $0x89] sm:$0xff]
  %v3551 = vld [vmem:[#allocation2 + $0x91] sm:$0xff]
  %v3552 = vld [vmem:[#allocation2 + $0x99] sm:$0xff]
  %v3553 = vld [vmem:[#allocation2 + $0xa1] sm:$0xff]
  %v3554 = vld [vmem:[#allocation2 + $0xa9] sm:$0xff]
  %v3555 = vld [vmem:[#allocation2 + $0xb1] sm:$0xff]
  %v3556 = vld [vmem:[#allocation2 + $0xb9] sm:$0xff]
  %v3557 = vld [vmem:[#allocation2 + $0xc1] sm:$0xff]
  %v3558 = vld [vmem:[#allocation2 + $0xc9] sm:$0xff]
  %v3559 = vld [vmem:[#allocation2 + $0xd1] sm:$0xff]
  %v3560 = vld [vmem:[#allocation2 + $0xd9] sm:$0xff]
  %v3561 = vld [vmem:[#allocation2 + $0xe1] sm:$0xff]
  %v3562 = vld [vmem:[#allocation2 + $0xe9] sm:$0xff]
  %v3563 = vld [vmem:[#allocation2 + $0xf1] sm:$0xff]
  %v3564 = vld [vmem:[#allocation2 + $0xf9] sm:$0xff]
  %v3565 = vld [vmem:[#allocation2 + $0x101] sm:$0xff]
  %v3566 = vld [vmem:[#allocation2 + $0x109] sm:$0xff]
  %v3567 = vld [vmem:[#allocation2 + $0x111] sm:$0xff]
  %v3568 = vld [vmem:[#allocation2 + $0x119] sm:$0xff]
  %v3569 = vpack.c.bf16 %v3538, %v3537
  %v3570 = vpack.c.bf16 %v3540, %v3539
  %v3571 = vpack.c.bf16 %v3542, %v3541
  %v3572 = vpack.c.bf16 %v3544, %v3543
  %v3573 = vpack.c.bf16 %v3546, %v3545
  %v3574 = vpack.c.bf16 %v3548, %v3547
  %v3575 = vpack.c.bf16 %v3550, %v3549
  %v3576 = vpack.c.bf16 %v3552, %v3551
  %v3577 = vpack.c.bf16 %v3554, %v3553
  %v3578 = vpack.c.bf16 %v3556, %v3555
  %v3579 = vpack.c.bf16 %v3558, %v3557
  %v3580 = vpack.c.bf16 %v3560, %v3559
  %v3581 = vpack.c.bf16 %v3562, %v3561
  %v3582 = vpack.c.bf16 %v3564, %v3563
  %v3583 = vpack.c.bf16 %v3566, %v3565
  %v3584 = vpack.c.bf16 %v3568, %v3567
  %v3585 = vld [vmem:[%s4 + $0x1c] sm:$0xf]
  %v3587 = vsel %vm1349, %v3569, 0
  %v3590 = vsel %vm1349, %v3570, 0
  %v3593 = vsel %vm1349, %v3571, 0
  %v3596 = vsel %vm1349, %v3572, 0
  %v3599 = vsel %vm1349, %v3573, 0
  %v3602 = vsel %vm1349, %v3574, 0
  %v3605 = vsel %vm1349, %v3575, 0
  %v3608 = vsel %vm1349, %v3576, 0
  %v3611 = vsel %vm1349, %v3577, 0
  %v3614 = vsel %vm1349, %v3578, 0
  %v3617 = vsel %vm1349, %v3579, 0
  %v3620 = vsel %vm1349, %v3580, 0
  %v3623 = vsel %vm1349, %v3581, 0
  %v3626 = vsel %vm1349, %v3582, 0
  %v3629 = vsel %vm1349, %v3583, 0
  %v3632 = vsel %vm1349, %v3584, 0
  %v3635 = vsel %vm1567, %v3585, 0
  %3637 = vmatprep.subr.bf16.mxu0 0
  %3638 = vmatpush1.bf16.msra.mxu0 0
  %3639 = vmatprep.subr.bf16.mxu0 0
  %3640 = vmatpush1.bf16.msra.mxu0 0
  %3641 = vmatprep.subr.bf16.mxu0 0
  %3642 = vmatpush1.bf16.msra.mxu0 0
  %3643 = vmatprep.subr.bf16.mxu0 0
  %3644 = vmatpush1.bf16.msra.mxu0 0
  %3645 = vmatprep.subr.bf16.mxu0 0
  %3646 = vmatpush1.bf16.msra.mxu0 0
  %3647 = vmatprep.subr.bf16.mxu0 0
  %3648 = vmatpush1.bf16.msra.mxu0 0
  %3649 = vmatprep.subr.bf16.mxu0 0
  %3650 = vmatpush1.bf16.msra.mxu0 0
  %3651 = vmatprep.subr.bf16.mxu0 0
  %3652 = vmatpush1.bf16.msra.mxu0 %v3635
  %3653 = vmatprep.subr.bf16.mxu0 0
  %3654 = vmatpush2.bf16.msra.mxu0 0
  %3655 = vmatprep.subr.bf16.mxu0 0
  %3656 = vmatpush2.bf16.msra.mxu0 0
  %3657 = vmatprep.subr.bf16.mxu0 0
  %3658 = vmatpush2.bf16.msra.mxu0 0
  %3659 = vmatprep.subr.bf16.mxu0 0
  %3660 = vmatpush2.bf16.msra.mxu0 0
  %3661 = vmatprep.subr.bf16.mxu0 0
  %3662 = vmatpush2.bf16.msra.mxu0 0
  %3663 = vmatprep.subr.bf16.mxu0 0
  %3664 = vmatpush2.bf16.msra.mxu0 0
  %3665 = vmatprep.subr.bf16.mxu0 0
  %3666 = vmatpush2.bf16.msra.mxu0 0
  %3667 = vmatprep.subr.bf16.mxu0 0
  %3668 = vmatpush2.bf16.msra.mxu0 0
  %3669 = vmatprep.mubr.bf16.mxu0 0
  %3670 = vmatmul.mubr.bf16.gmra.mxu0 %v3587
  %v3671 = vpop.f32.mrf.mxu0
  %v3672 = vadd.f32 0.0, %v3671
  %v3673 = vpop.f32.mrf.mxu0
  %v3674 = vpop.f32.mrf.mxu0
  %v3675 = vadd.f32 0.0, %v3674
  %v3676 = vpop.f32.mrf.mxu0
  %3677 = vmatprep.mubr.bf16.mxu0 0
  %3678 = vmatmul.mubr.bf16.gmra.mxu0 %v3590
  %v3679 = vpop.f32.mrf.mxu0
  %v3680 = vadd.f32 0.0, %v3679
  %v3681 = vpop.f32.mrf.mxu0
  %v3682 = vpop.f32.mrf.mxu0
  %v3683 = vadd.f32 0.0, %v3682
  %v3684 = vpop.f32.mrf.mxu0
  %3685 = vmatprep.mubr.bf16.mxu0 0
  %3686 = vmatmul.mubr.bf16.gmra.mxu0 %v3593
  %v3687 = vpop.f32.mrf.mxu0
  %v3688 = vadd.f32 0.0, %v3687
  %v3689 = vpop.f32.mrf.mxu0
  %v3690 = vpop.f32.mrf.mxu0
  %v3691 = vadd.f32 0.0, %v3690
  %v3692 = vpop.f32.mrf.mxu0
  %3693 = vmatprep.mubr.bf16.mxu0 0
  %3694 = vmatmul.mubr.bf16.gmra.mxu0 %v3596
  %v3695 = vpop.f32.mrf.mxu0
  %v3696 = vadd.f32 0.0, %v3695
  %v3697 = vpop.f32.mrf.mxu0
  %v3698 = vpop.f32.mrf.mxu0
  %v3699 = vadd.f32 0.0, %v3698
  %v3700 = vpop.f32.mrf.mxu0
  %3701 = vmatprep.mubr.bf16.mxu0 0
  %3702 = vmatmul.mubr.bf16.gmra.mxu0 %v3599
  %v3703 = vpop.f32.mrf.mxu0
  %v3704 = vadd.f32 0.0, %v3703
  %v3705 = vpop.f32.mrf.mxu0
  %v3706 = vpop.f32.mrf.mxu0
  %v3707 = vadd.f32 0.0, %v3706
  %v3708 = vpop.f32.mrf.mxu0
  %3709 = vmatprep.mubr.bf16.mxu0 0
  %3710 = vmatmul.mubr.bf16.gmra.mxu0 %v3602
  %v3711 = vpop.f32.mrf.mxu0
  %v3712 = vadd.f32 0.0, %v3711
  %v3713 = vpop.f32.mrf.mxu0
  %v3714 = vpop.f32.mrf.mxu0
  %v3715 = vadd.f32 0.0, %v3714
  %v3716 = vpop.f32.mrf.mxu0
  %3717 = vmatprep.mubr.bf16.mxu0 0
  %3718 = vmatmul.mubr.bf16.gmra.mxu0 %v3605
  %v3719 = vpop.f32.mrf.mxu0
  %v3720 = vadd.f32 0.0, %v3719
  %v3721 = vpop.f32.mrf.mxu0
  %v3722 = vpop.f32.mrf.mxu0
  %v3723 = vadd.f32 0.0, %v3722
  %v3724 = vpop.f32.mrf.mxu0
  %3725 = vmatprep.mubr.bf16.mxu0 0
  %3726 = vmatmul.mubr.bf16.gmra.mxu0 %v3608
  %v3727 = vpop.f32.mrf.mxu0
  %v3728 = vadd.f32 0.0, %v3727
  %v3729 = vpop.f32.mrf.mxu0
  %v3730 = vpop.f32.mrf.mxu0
  %v3731 = vadd.f32 0.0, %v3730
  %v3732 = vpop.f32.mrf.mxu0
  %3733 = vmatprep.mubr.bf16.mxu0 0
  %3734 = vmatmul.mubr.bf16.gmra.mxu0 %v3611
  %v3735 = vpop.f32.mrf.mxu0
  %v3736 = vadd.f32 0.0, %v3735
  %v3737 = vpop.f32.mrf.mxu0
  %v3738 = vpop.f32.mrf.mxu0
  %v3739 = vadd.f32 0.0, %v3738
  %v3740 = vpop.f32.mrf.mxu0
  %3741 = vmatprep.mubr.bf16.mxu0 0
  %3742 = vmatmul.mubr.bf16.gmra.mxu0 %v3614
  %v3743 = vpop.f32.mrf.mxu0
  %v3744 = vadd.f32 0.0, %v3743
  %v3745 = vpop.f32.mrf.mxu0
  %v3746 = vpop.f32.mrf.mxu0
  %v3747 = vadd.f32 0.0, %v3746
  %v3748 = vpop.f32.mrf.mxu0
  %3749 = vmatprep.mubr.bf16.mxu0 0
  %3750 = vmatmul.mubr.bf16.gmra.mxu0 %v3617
  %v3751 = vpop.f32.mrf.mxu0
  %v3752 = vadd.f32 0.0, %v3751
  %v3753 = vpop.f32.mrf.mxu0
  %v3754 = vpop.f32.mrf.mxu0
  %v3755 = vadd.f32 0.0, %v3754
  %v3756 = vpop.f32.mrf.mxu0
  %3757 = vmatprep.mubr.bf16.mxu0 0
  %3758 = vmatmul.mubr.bf16.gmra.mxu0 %v3620
  %v3759 = vpop.f32.mrf.mxu0
  %v3760 = vadd.f32 0.0, %v3759
  %v3761 = vpop.f32.mrf.mxu0
  %v3762 = vpop.f32.mrf.mxu0
  %v3763 = vadd.f32 0.0, %v3762
  %v3764 = vpop.f32.mrf.mxu0
  %3765 = vmatprep.mubr.bf16.mxu0 0
  %3766 = vmatmul.mubr.bf16.gmra.mxu0 %v3623
  %v3767 = vpop.f32.mrf.mxu0
  %v3768 = vadd.f32 0.0, %v3767
  %v3769 = vpop.f32.mrf.mxu0
  %v3770 = vpop.f32.mrf.mxu0
  %v3771 = vadd.f32 0.0, %v3770
  %v3772 = vpop.f32.mrf.mxu0
  %3773 = vmatprep.mubr.bf16.mxu0 0
  %3774 = vmatmul.mubr.bf16.gmra.mxu0 %v3626
  %v3775 = vpop.f32.mrf.mxu0
  %v3776 = vadd.f32 0.0, %v3775
  %v3777 = vpop.f32.mrf.mxu0
  %v3778 = vpop.f32.mrf.mxu0
  %v3779 = vadd.f32 0.0, %v3778
  %v3780 = vpop.f32.mrf.mxu0
  %3781 = vmatprep.mubr.bf16.mxu0 0
  %3782 = vmatmul.mubr.bf16.gmra.mxu0 %v3629
  %v3783 = vpop.f32.mrf.mxu0
  %v3784 = vadd.f32 0.0, %v3783
  %v3785 = vpop.f32.mrf.mxu0
  %v3786 = vpop.f32.mrf.mxu0
  %v3787 = vadd.f32 0.0, %v3786
  %v3788 = vpop.f32.mrf.mxu0
  %3789 = vmatprep.mubr.bf16.mxu0 0
  %3790 = vmatmul.mubr.bf16.gmra.mxu0 %v3632
  %v3791 = vpop.f32.mrf.mxu0
  %v3792 = vadd.f32 0.0, %v3791
  %v3793 = vpop.f32.mrf.mxu0
  %v3794 = vpop.f32.mrf.mxu0
  %v3795 = vadd.f32 0.0, %v3794
  %v3796 = vpop.f32.mrf.mxu0
  %3797 = vdwg.mxu0
  %v3798 = vadd.f32 %v3505, %v3672
  %v3799 = vadd.f32 %v3506, %v3675
  %v3800 = vadd.f32 %v3507, %v3680
  %v3801 = vadd.f32 %v3508, %v3683
  %v3802 = vadd.f32 %v3509, %v3688
  %v3803 = vadd.f32 %v3510, %v3691
  %v3804 = vadd.f32 %v3511, %v3696
  %v3805 = vadd.f32 %v3512, %v3699
  %v3806 = vadd.f32 %v3513, %v3704
  %v3807 = vadd.f32 %v3514, %v3707
  %v3808 = vadd.f32 %v3515, %v3712
  %v3809 = vadd.f32 %v3516, %v3715
  %v3810 = vadd.f32 %v3517, %v3720
  %v3811 = vadd.f32 %v3518, %v3723
  %v3812 = vadd.f32 %v3519, %v3728
  %v3813 = vadd.f32 %v3520, %v3731
  %v3814 = vadd.f32 %v3521, %v3736
  %v3815 = vadd.f32 %v3522, %v3739
  %v3816 = vadd.f32 %v3523, %v3744
  %v3817 = vadd.f32 %v3524, %v3747
  %v3818 = vadd.f32 %v3525, %v3752
  %v3819 = vadd.f32 %v3526, %v3755
  %v3820 = vadd.f32 %v3527, %v3760
  %v3821 = vadd.f32 %v3528, %v3763
  %v3822 = vadd.f32 %v3529, %v3768
  %v3823 = vadd.f32 %v3530, %v3771
  %v3824 = vadd.f32 %v3531, %v3776
  %v3825 = vadd.f32 %v3532, %v3779
  %v3826 = vadd.f32 %v3533, %v3784
  %v3827 = vadd.f32 %v3534, %v3787
  %v3828 = vadd.f32 %v3535, %v3792
  %v3829 = vadd.f32 %v3536, %v3795
  %v3830 = vld [vmem:[#allocation2 + $0x22] sm:$0xff]
  %v3831 = vld [vmem:[#allocation2 + $0x2a] sm:$0xff]
  %v3832 = vld [vmem:[#allocation2 + $0x32] sm:$0xff]
  %v3833 = vld [vmem:[#allocation2 + $0x3a] sm:$0xff]
  %v3834 = vld [vmem:[#allocation2 + $0x42] sm:$0xff]
  %v3835 = vld [vmem:[#allocation2 + $0x4a] sm:$0xff]
  %v3836 = vld [vmem:[#allocation2 + $0x52] sm:$0xff]
  %v3837 = vld [vmem:[#allocation2 + $0x5a] sm:$0xff]
  %v3838 = vld [vmem:[#allocation2 + $0x62] sm:$0xff]
  %v3839 = vld [vmem:[#allocation2 + $0x6a] sm:$0xff]
  %v3840 = vld [vmem:[#allocation2 + $0x72] sm:$0xff]
  %v3841 = vld [vmem:[#allocation2 + $0x7a] sm:$0xff]
  %v3842 = vld [vmem:[#allocation2 + $0x82] sm:$0xff]
  %v3843 = vld [vmem:[#allocation2 + $0x8a] sm:$0xff]
  %v3844 = vld [vmem:[#allocation2 + $0x92] sm:$0xff]
  %v3845 = vld [vmem:[#allocation2 + $0x9a] sm:$0xff]
  %v3846 = vld [vmem:[#allocation2 + $0xa2] sm:$0xff]
  %v3847 = vld [vmem:[#allocation2 + $0xaa] sm:$0xff]
  %v3848 = vld [vmem:[#allocation2 + $0xb2] sm:$0xff]
  %v3849 = vld [vmem:[#allocation2 + $0xba] sm:$0xff]
  %v3850 = vld [vmem:[#allocation2 + $0xc2] sm:$0xff]
  %v3851 = vld [vmem:[#allocation2 + $0xca] sm:$0xff]
  %v3852 = vld [vmem:[#allocation2 + $0xd2] sm:$0xff]
  %v3853 = vld [vmem:[#allocation2 + $0xda] sm:$0xff]
  %v3854 = vld [vmem:[#allocation2 + $0xe2] sm:$0xff]
  %v3855 = vld [vmem:[#allocation2 + $0xea] sm:$0xff]
  %v3856 = vld [vmem:[#allocation2 + $0xf2] sm:$0xff]
  %v3857 = vld [vmem:[#allocation2 + $0xfa] sm:$0xff]
  %v3858 = vld [vmem:[#allocation2 + $0x102] sm:$0xff]
  %v3859 = vld [vmem:[#allocation2 + $0x10a] sm:$0xff]
  %v3860 = vld [vmem:[#allocation2 + $0x112] sm:$0xff]
  %v3861 = vld [vmem:[#allocation2 + $0x11a] sm:$0xff]
  %v3862 = vmul.f32 %v3830, %v1317
  %v3863 = vmul.f32 %v3831, %v1318
  %v3864 = vmul.f32 %v3832, %v1319
  %v3865 = vmul.f32 %v3833, %v1320
  %v3866 = vmul.f32 %v3834, %v1321
  %v3867 = vmul.f32 %v3835, %v1322
  %v3868 = vmul.f32 %v3836, %v1323
  %v3869 = vmul.f32 %v3837, %v1324
  %v3870 = vmul.f32 %v3838, %v1325
  %v3871 = vmul.f32 %v3839, %v1326
  %v3872 = vmul.f32 %v3840, %v1327
  %v3873 = vmul.f32 %v3841, %v1328
  %v3874 = vmul.f32 %v3842, %v1329
  %v3875 = vmul.f32 %v3843, %v1330
  %v3876 = vmul.f32 %v3844, %v1331
  %v3877 = vmul.f32 %v3845, %v1332
  %v3878 = vmul.f32 %v3846, %v1333
  %v3879 = vmul.f32 %v3847, %v1334
  %v3880 = vmul.f32 %v3848, %v1335
  %v3881 = vmul.f32 %v3849, %v1336
  %v3882 = vmul.f32 %v3850, %v1337
  %v3883 = vmul.f32 %v3851, %v1338
  %v3884 = vmul.f32 %v3852, %v1339
  %v3885 = vmul.f32 %v3853, %v1340
  %v3886 = vmul.f32 %v3854, %v1341
  %v3887 = vmul.f32 %v3855, %v1342
  %v3888 = vmul.f32 %v3856, %v1343
  %v3889 = vmul.f32 %v3857, %v1344
  %v3890 = vmul.f32 %v3858, %v1345
  %v3891 = vmul.f32 %v3859, %v1346
  %v3892 = vmul.f32 %v3860, %v1347
  %v3893 = vmul.f32 %v3861, %v1348
  %v3894 = vpack.c.bf16 %v3863, %v3862
  %v3895 = vpack.c.bf16 %v3865, %v3864
  %v3896 = vpack.c.bf16 %v3867, %v3866
  %v3897 = vpack.c.bf16 %v3869, %v3868
  %v3898 = vpack.c.bf16 %v3871, %v3870
  %v3899 = vpack.c.bf16 %v3873, %v3872
  %v3900 = vpack.c.bf16 %v3875, %v3874
  %v3901 = vpack.c.bf16 %v3877, %v3876
  %v3902 = vpack.c.bf16 %v3879, %v3878
  %v3903 = vpack.c.bf16 %v3881, %v3880
  %v3904 = vpack.c.bf16 %v3883, %v3882
  %v3905 = vpack.c.bf16 %v3885, %v3884
  %v3906 = vpack.c.bf16 %v3887, %v3886
  %v3907 = vpack.c.bf16 %v3889, %v3888
  %v3908 = vpack.c.bf16 %v3891, %v3890
  %v3909 = vpack.c.bf16 %v3893, %v3892
  %v3910 = vld [vmem:[%s4 + $0x20] sm:$0xf]
  %v3912 = vsel %vm1349, %v3894, 0
  %v3915 = vsel %vm1349, %v3895, 0
  %v3918 = vsel %vm1349, %v3896, 0
  %v3921 = vsel %vm1349, %v3897, 0
  %v3924 = vsel %vm1349, %v3898, 0
  %v3927 = vsel %vm1349, %v3899, 0
  %v3930 = vsel %vm1349, %v3900, 0
  %v3933 = vsel %vm1349, %v3901, 0
  %v3936 = vsel %vm1349, %v3902, 0
  %v3939 = vsel %vm1349, %v3903, 0
  %v3942 = vsel %vm1349, %v3904, 0
  %v3945 = vsel %vm1349, %v3905, 0
  %v3948 = vsel %vm1349, %v3906, 0
  %v3951 = vsel %vm1349, %v3907, 0
  %v3954 = vsel %vm1349, %v3908, 0
  %v3957 = vsel %vm1349, %v3909, 0
  %v3960 = vsel %vm1567, %v3910, 0
  %3962 = vmatprep.subr.bf16.mxu0 0
  %3963 = vmatpush1.bf16.msra.mxu0 0
  %3964 = vmatprep.subr.bf16.mxu0 0
  %3965 = vmatpush1.bf16.msra.mxu0 0
  %3966 = vmatprep.subr.bf16.mxu0 0
  %3967 = vmatpush1.bf16.msra.mxu0 0
  %3968 = vmatprep.subr.bf16.mxu0 0
  %3969 = vmatpush1.bf16.msra.mxu0 0
  %3970 = vmatprep.subr.bf16.mxu0 0
  %3971 = vmatpush1.bf16.msra.mxu0 0
  %3972 = vmatprep.subr.bf16.mxu0 0
  %3973 = vmatpush1.bf16.msra.mxu0 0
  %3974 = vmatprep.subr.bf16.mxu0 0
  %3975 = vmatpush1.bf16.msra.mxu0 0
  %3976 = vmatprep.subr.bf16.mxu0 0
  %3977 = vmatpush1.bf16.msra.mxu0 %v3960
  %3978 = vmatprep.subr.bf16.mxu0 0
  %3979 = vmatpush2.bf16.msra.mxu0 0
  %3980 = vmatprep.subr.bf16.mxu0 0
  %3981 = vmatpush2.bf16.msra.mxu0 0
  %3982 = vmatprep.subr.bf16.mxu0 0
  %3983 = vmatpush2.bf16.msra.mxu0 0
  %3984 = vmatprep.subr.bf16.mxu0 0
  %3985 = vmatpush2.bf16.msra.mxu0 0
  %3986 = vmatprep.subr.bf16.mxu0 0
  %3987 = vmatpush2.bf16.msra.mxu0 0
  %3988 = vmatprep.subr.bf16.mxu0 0
  %3989 = vmatpush2.bf16.msra.mxu0 0
  %3990 = vmatprep.subr.bf16.mxu0 0
  %3991 = vmatpush2.bf16.msra.mxu0 0
  %3992 = vmatprep.subr.bf16.mxu0 0
  %3993 = vmatpush2.bf16.msra.mxu0 0
  %3994 = vmatprep.mubr.bf16.mxu0 0
  %3995 = vmatmul.mubr.bf16.gmra.mxu0 %v3912
  %v3996 = vpop.f32.mrf.mxu0
  %v3997 = vadd.f32 0.0, %v3996
  %v3998 = vpop.f32.mrf.mxu0
  %v3999 = vpop.f32.mrf.mxu0
  %v4000 = vadd.f32 0.0, %v3999
  %v4001 = vpop.f32.mrf.mxu0
  %4002 = vmatprep.mubr.bf16.mxu0 0
  %4003 = vmatmul.mubr.bf16.gmra.mxu0 %v3915
  %v4004 = vpop.f32.mrf.mxu0
  %v4005 = vadd.f32 0.0, %v4004
  %v4006 = vpop.f32.mrf.mxu0
  %v4007 = vpop.f32.mrf.mxu0
  %v4008 = vadd.f32 0.0, %v4007
  %v4009 = vpop.f32.mrf.mxu0
  %4010 = vmatprep.mubr.bf16.mxu0 0
  %4011 = vmatmul.mubr.bf16.gmra.mxu0 %v3918
  %v4012 = vpop.f32.mrf.mxu0
  %v4013 = vadd.f32 0.0, %v4012
  %v4014 = vpop.f32.mrf.mxu0
  %v4015 = vpop.f32.mrf.mxu0
  %v4016 = vadd.f32 0.0, %v4015
  %v4017 = vpop.f32.mrf.mxu0
  %4018 = vmatprep.mubr.bf16.mxu0 0
  %4019 = vmatmul.mubr.bf16.gmra.mxu0 %v3921
  %v4020 = vpop.f32.mrf.mxu0
  %v4021 = vadd.f32 0.0, %v4020
  %v4022 = vpop.f32.mrf.mxu0
  %v4023 = vpop.f32.mrf.mxu0
  %v4024 = vadd.f32 0.0, %v4023
  %v4025 = vpop.f32.mrf.mxu0
  %4026 = vmatprep.mubr.bf16.mxu0 0
  %4027 = vmatmul.mubr.bf16.gmra.mxu0 %v3924
  %v4028 = vpop.f32.mrf.mxu0
  %v4029 = vadd.f32 0.0, %v4028
  %v4030 = vpop.f32.mrf.mxu0
  %v4031 = vpop.f32.mrf.mxu0
  %v4032 = vadd.f32 0.0, %v4031
  %v4033 = vpop.f32.mrf.mxu0
  %4034 = vmatprep.mubr.bf16.mxu0 0
  %4035 = vmatmul.mubr.bf16.gmra.mxu0 %v3927
  %v4036 = vpop.f32.mrf.mxu0
  %v4037 = vadd.f32 0.0, %v4036
  %v4038 = vpop.f32.mrf.mxu0
  %v4039 = vpop.f32.mrf.mxu0
  %v4040 = vadd.f32 0.0, %v4039
  %v4041 = vpop.f32.mrf.mxu0
  %4042 = vmatprep.mubr.bf16.mxu0 0
  %4043 = vmatmul.mubr.bf16.gmra.mxu0 %v3930
  %v4044 = vpop.f32.mrf.mxu0
  %v4045 = vadd.f32 0.0, %v4044
  %v4046 = vpop.f32.mrf.mxu0
  %v4047 = vpop.f32.mrf.mxu0
  %v4048 = vadd.f32 0.0, %v4047
  %v4049 = vpop.f32.mrf.mxu0
  %4050 = vmatprep.mubr.bf16.mxu0 0
  %4051 = vmatmul.mubr.bf16.gmra.mxu0 %v3933
  %v4052 = vpop.f32.mrf.mxu0
  %v4053 = vadd.f32 0.0, %v4052
  %v4054 = vpop.f32.mrf.mxu0
  %v4055 = vpop.f32.mrf.mxu0
  %v4056 = vadd.f32 0.0, %v4055
  %v4057 = vpop.f32.mrf.mxu0
  %4058 = vmatprep.mubr.bf16.mxu0 0
  %4059 = vmatmul.mubr.bf16.gmra.mxu0 %v3936
  %v4060 = vpop.f32.mrf.mxu0
  %v4061 = vadd.f32 0.0, %v4060
  %v4062 = vpop.f32.mrf.mxu0
  %v4063 = vpop.f32.mrf.mxu0
  %v4064 = vadd.f32 0.0, %v4063
  %v4065 = vpop.f32.mrf.mxu0
  %4066 = vmatprep.mubr.bf16.mxu0 0
  %4067 = vmatmul.mubr.bf16.gmra.mxu0 %v3939
  %v4068 = vpop.f32.mrf.mxu0
  %v4069 = vadd.f32 0.0, %v4068
  %v4070 = vpop.f32.mrf.mxu0
  %v4071 = vpop.f32.mrf.mxu0
  %v4072 = vadd.f32 0.0, %v4071
  %v4073 = vpop.f32.mrf.mxu0
  %4074 = vmatprep.mubr.bf16.mxu0 0
  %4075 = vmatmul.mubr.bf16.gmra.mxu0 %v3942
  %v4076 = vpop.f32.mrf.mxu0
  %v4077 = vadd.f32 0.0, %v4076
  %v4078 = vpop.f32.mrf.mxu0
  %v4079 = vpop.f32.mrf.mxu0
  %v4080 = vadd.f32 0.0, %v4079
  %v4081 = vpop.f32.mrf.mxu0
  %4082 = vmatprep.mubr.bf16.mxu0 0
  %4083 = vmatmul.mubr.bf16.gmra.mxu0 %v3945
  %v4084 = vpop.f32.mrf.mxu0
  %v4085 = vadd.f32 0.0, %v4084
  %v4086 = vpop.f32.mrf.mxu0
  %v4087 = vpop.f32.mrf.mxu0
  %v4088 = vadd.f32 0.0, %v4087
  %v4089 = vpop.f32.mrf.mxu0
  %4090 = vmatprep.mubr.bf16.mxu0 0
  %4091 = vmatmul.mubr.bf16.gmra.mxu0 %v3948
  %v4092 = vpop.f32.mrf.mxu0
  %v4093 = vadd.f32 0.0, %v4092
  %v4094 = vpop.f32.mrf.mxu0
  %v4095 = vpop.f32.mrf.mxu0
  %v4096 = vadd.f32 0.0, %v4095
  %v4097 = vpop.f32.mrf.mxu0
  %4098 = vmatprep.mubr.bf16.mxu0 0
  %4099 = vmatmul.mubr.bf16.gmra.mxu0 %v3951
  %v4100 = vpop.f32.mrf.mxu0
  %v4101 = vadd.f32 0.0, %v4100
  %v4102 = vpop.f32.mrf.mxu0
  %v4103 = vpop.f32.mrf.mxu0
  %v4104 = vadd.f32 0.0, %v4103
  %v4105 = vpop.f32.mrf.mxu0
  %4106 = vmatprep.mubr.bf16.mxu0 0
  %4107 = vmatmul.mubr.bf16.gmra.mxu0 %v3954
  %v4108 = vpop.f32.mrf.mxu0
  %v4109 = vadd.f32 0.0, %v4108
  %v4110 = vpop.f32.mrf.mxu0
  %v4111 = vpop.f32.mrf.mxu0
  %v4112 = vadd.f32 0.0, %v4111
  %v4113 = vpop.f32.mrf.mxu0
  %4114 = vmatprep.mubr.bf16.mxu0 0
  %4115 = vmatmul.mubr.bf16.gmra.mxu0 %v3957
  %v4116 = vpop.f32.mrf.mxu0
  %v4117 = vadd.f32 0.0, %v4116
  %v4118 = vpop.f32.mrf.mxu0
  %v4119 = vpop.f32.mrf.mxu0
  %v4120 = vadd.f32 0.0, %v4119
  %v4121 = vpop.f32.mrf.mxu0
  %4122 = vdwg.mxu0
  %v4123 = vadd.f32 %v3798, %v3997
  %v4124 = vadd.f32 %v3799, %v4000
  %v4125 = vadd.f32 %v3800, %v4005
  %v4126 = vadd.f32 %v3801, %v4008
  %v4127 = vadd.f32 %v3802, %v4013
  %v4128 = vadd.f32 %v3803, %v4016
  %v4129 = vadd.f32 %v3804, %v4021
  %v4130 = vadd.f32 %v3805, %v4024
  %v4131 = vadd.f32 %v3806, %v4029
  %v4132 = vadd.f32 %v3807, %v4032
  %v4133 = vadd.f32 %v3808, %v4037
  %v4134 = vadd.f32 %v3809, %v4040
  %v4135 = vadd.f32 %v3810, %v4045
  %v4136 = vadd.f32 %v3811, %v4048
  %v4137 = vadd.f32 %v3812, %v4053
  %v4138 = vadd.f32 %v3813, %v4056
  %v4139 = vadd.f32 %v3814, %v4061
  %v4140 = vadd.f32 %v3815, %v4064
  %v4141 = vadd.f32 %v3816, %v4069
  %v4142 = vadd.f32 %v3817, %v4072
  %v4143 = vadd.f32 %v3818, %v4077
  %v4144 = vadd.f32 %v3819, %v4080
  %v4145 = vadd.f32 %v3820, %v4085
  %v4146 = vadd.f32 %v3821, %v4088
  %v4147 = vadd.f32 %v3822, %v4093
  %v4148 = vadd.f32 %v3823, %v4096
  %v4149 = vadd.f32 %v3824, %v4101
  %v4150 = vadd.f32 %v3825, %v4104
  %v4151 = vadd.f32 %v3826, %v4109
  %v4152 = vadd.f32 %v3827, %v4112
  %v4153 = vadd.f32 %v3828, %v4117
  %v4154 = vadd.f32 %v3829, %v4120
  %v4155 = vld [vmem:[%s5] sm:$0x1]
  %v4157 = vlaneseq
  %v4158 = vshrl.u32 %v4157, 7
  %v4159 = vsub.s32 0, %v4158
  %v4160 = vrot.slane %v4155, %v4159
  %v4162 = vmul.f32 %v4123, %v4160
  %v4163 = vmul.f32 %v4124, %v4160
  %v4164 = vmul.f32 %v4125, %v4160
  %v4165 = vmul.f32 %v4126, %v4160
  %v4166 = vmul.f32 %v4127, %v4160
  %v4167 = vmul.f32 %v4128, %v4160
  %v4168 = vmul.f32 %v4129, %v4160
  %v4169 = vmul.f32 %v4130, %v4160
  %v4170 = vmul.f32 %v4131, %v4160
  %v4171 = vmul.f32 %v4132, %v4160
  %v4172 = vmul.f32 %v4133, %v4160
  %v4173 = vmul.f32 %v4134, %v4160
  %v4174 = vmul.f32 %v4135, %v4160
  %v4175 = vmul.f32 %v4136, %v4160
  %v4176 = vmul.f32 %v4137, %v4160
  %v4177 = vmul.f32 %v4138, %v4160
  %v4178 = vmul.f32 %v4139, %v4160
  %v4179 = vmul.f32 %v4140, %v4160
  %v4180 = vmul.f32 %v4141, %v4160
  %v4181 = vmul.f32 %v4142, %v4160
  %v4182 = vmul.f32 %v4143, %v4160
  %v4183 = vmul.f32 %v4144, %v4160
  %v4184 = vmul.f32 %v4145, %v4160
  %v4185 = vmul.f32 %v4146, %v4160
  %v4186 = vmul.f32 %v4147, %v4160
  %v4187 = vmul.f32 %v4148, %v4160
  %v4188 = vmul.f32 %v4149, %v4160
  %v4189 = vmul.f32 %v4150, %v4160
  %v4190 = vmul.f32 %v4151, %v4160
  %v4191 = vmul.f32 %v4152, %v4160
  %v4192 = vmul.f32 %v4153, %v4160
  %v4193 = vmul.f32 %v4154, %v4160
  %v4194 = vld [vmem:[%s6] sm:$0x1]
  %v4196 = vlaneseq
  %v4197 = vshrl.u32 %v4196, 7
  %v4198 = vsub.s32 0, %v4197
  %v4199 = vrot.slane %v4194, %v4198
  %v4201 = vadd.f32 %v4162, %v4199
  %v4202 = vadd.f32 %v4163, %v4199
  %v4203 = vadd.f32 %v4164, %v4199
  %v4204 = vadd.f32 %v4165, %v4199
  %v4205 = vadd.f32 %v4166, %v4199
  %v4206 = vadd.f32 %v4167, %v4199
  %v4207 = vadd.f32 %v4168, %v4199
  %v4208 = vadd.f32 %v4169, %v4199
  %v4209 = vadd.f32 %v4170, %v4199
  %v4210 = vadd.f32 %v4171, %v4199
  %v4211 = vadd.f32 %v4172, %v4199
  %v4212 = vadd.f32 %v4173, %v4199
  %v4213 = vadd.f32 %v4174, %v4199
  %v4214 = vadd.f32 %v4175, %v4199
  %v4215 = vadd.f32 %v4176, %v4199
  %v4216 = vadd.f32 %v4177, %v4199
  %v4217 = vadd.f32 %v4178, %v4199
  %v4218 = vadd.f32 %v4179, %v4199
  %v4219 = vadd.f32 %v4180, %v4199
  %v4220 = vadd.f32 %v4181, %v4199
  %v4221 = vadd.f32 %v4182, %v4199
  %v4222 = vadd.f32 %v4183, %v4199
  %v4223 = vadd.f32 %v4184, %v4199
  %v4224 = vadd.f32 %v4185, %v4199
  %v4225 = vadd.f32 %v4186, %v4199
  %v4226 = vadd.f32 %v4187, %v4199
  %v4227 = vadd.f32 %v4188, %v4199
  %v4228 = vadd.f32 %v4189, %v4199
  %v4229 = vadd.f32 %v4190, %v4199
  %v4230 = vadd.f32 %v4191, %v4199
  %v4231 = vadd.f32 %v4192, %v4199
  %v4232 = vadd.f32 %v4193, %v4199
  %v4233 = vmax.f32 %v4201, 0.0
  %v4234 = vmax.f32 %v4202, 0.0
  %v4235 = vmax.f32 %v4203, 0.0
  %v4236 = vmax.f32 %v4204, 0.0
  %v4237 = vmax.f32 %v4205, 0.0
  %v4238 = vmax.f32 %v4206, 0.0
  %v4239 = vmax.f32 %v4207, 0.0
  %v4240 = vmax.f32 %v4208, 0.0
  %v4241 = vmax.f32 %v4209, 0.0
  %v4242 = vmax.f32 %v4210, 0.0
  %v4243 = vmax.f32 %v4211, 0.0
  %v4244 = vmax.f32 %v4212, 0.0
  %v4245 = vmax.f32 %v4213, 0.0
  %v4246 = vmax.f32 %v4214, 0.0
  %v4247 = vmax.f32 %v4215, 0.0
  %v4248 = vmax.f32 %v4216, 0.0
  %v4249 = vmax.f32 %v4217, 0.0
  %v4250 = vmax.f32 %v4218, 0.0
  %v4251 = vmax.f32 %v4219, 0.0
  %v4252 = vmax.f32 %v4220, 0.0
  %v4253 = vmax.f32 %v4221, 0.0
  %v4254 = vmax.f32 %v4222, 0.0
  %v4255 = vmax.f32 %v4223, 0.0
  %v4256 = vmax.f32 %v4224, 0.0
  %v4257 = vmax.f32 %v4225, 0.0
  %v4258 = vmax.f32 %v4226, 0.0
  %v4259 = vmax.f32 %v4227, 0.0
  %v4260 = vmax.f32 %v4228, 0.0
  %v4261 = vmax.f32 %v4229, 0.0
  %v4262 = vmax.f32 %v4230, 0.0
  %v4263 = vmax.f32 %v4231, 0.0
  %v4264 = vmax.f32 %v4232, 0.0
  %v4265 = vpack.c.bf16 %v4234, %v4233
  %v4266 = vpack.c.bf16 %v4236, %v4235
  %v4267 = vpack.c.bf16 %v4238, %v4237
  %v4268 = vpack.c.bf16 %v4240, %v4239
  %v4269 = vpack.c.bf16 %v4242, %v4241
  %v4270 = vpack.c.bf16 %v4244, %v4243
  %v4271 = vpack.c.bf16 %v4246, %v4245
  %v4272 = vpack.c.bf16 %v4248, %v4247
  %v4273 = vpack.c.bf16 %v4250, %v4249
  %v4274 = vpack.c.bf16 %v4252, %v4251
  %v4275 = vpack.c.bf16 %v4254, %v4253
  %v4276 = vpack.c.bf16 %v4256, %v4255
  %v4277 = vpack.c.bf16 %v4258, %v4257
  %v4278 = vpack.c.bf16 %v4260, %v4259
  %v4279 = vpack.c.bf16 %v4262, %v4261
  %v4280 = vpack.c.bf16 %v4264, %v4263
  %v4281 = vld [vmem:[%s7] sm:$0xf]
  %v4283 = vsel %vm1349, %v4265, 0
  %v4286 = vsel %vm1349, %v4266, 0
  %v4289 = vsel %vm1349, %v4267, 0
  %v4292 = vsel %vm1349, %v4268, 0
  %v4295 = vsel %vm1349, %v4269, 0
  %v4298 = vsel %vm1349, %v4270, 0
  %v4301 = vsel %vm1349, %v4271, 0
  %v4304 = vsel %vm1349, %v4272, 0
  %v4307 = vsel %vm1349, %v4273, 0
  %v4310 = vsel %vm1349, %v4274, 0
  %v4313 = vsel %vm1349, %v4275, 0
  %v4316 = vsel %vm1349, %v4276, 0
  %v4319 = vsel %vm1349, %v4277, 0
  %v4322 = vsel %vm1349, %v4278, 0
  %v4325 = vsel %vm1349, %v4279, 0
  %v4328 = vsel %vm1349, %v4280, 0
  %v4331 = vsel %vm1567, %v4281, 0
  %4333 = vmatprep.subr.bf16.mxu0 0
  %4334 = vmatpush1.bf16.msra.mxu0 0
  %4335 = vmatprep.subr.bf16.mxu0 0
  %4336 = vmatpush1.bf16.msra.mxu0 0
  %4337 = vmatprep.subr.bf16.mxu0 0
  %4338 = vmatpush1.bf16.msra.mxu0 0
  %4339 = vmatprep.subr.bf16.mxu0 0
  %4340 = vmatpush1.bf16.msra.mxu0 0
  %4341 = vmatprep.subr.bf16.mxu0 0
  %4342 = vmatpush1.bf16.msra.mxu0 0
  %4343 = vmatprep.subr.bf16.mxu0 0
  %4344 = vmatpush1.bf16.msra.mxu0 0
  %4345 = vmatprep.subr.bf16.mxu0 0
  %4346 = vmatpush1.bf16.msra.mxu0 0
  %4347 = vmatprep.subr.bf16.mxu0 0
  %4348 = vmatpush1.bf16.msra.mxu0 %v4331
  %4349 = vmatprep.subr.bf16.mxu0 0
  %4350 = vmatpush2.bf16.msra.mxu0 0
  %4351 = vmatprep.subr.bf16.mxu0 0
  %4352 = vmatpush2.bf16.msra.mxu0 0
  %4353 = vmatprep.subr.bf16.mxu0 0
  %4354 = vmatpush2.bf16.msra.mxu0 0
  %4355 = vmatprep.subr.bf16.mxu0 0
  %4356 = vmatpush2.bf16.msra.mxu0 0
  %4357 = vmatprep.subr.bf16.mxu0 0
  %4358 = vmatpush2.bf16.msra.mxu0 0
  %4359 = vmatprep.subr.bf16.mxu0 0
  %4360 = vmatpush2.bf16.msra.mxu0 0
  %4361 = vmatprep.subr.bf16.mxu0 0
  %4362 = vmatpush2.bf16.msra.mxu0 0
  %4363 = vmatprep.subr.bf16.mxu0 0
  %4364 = vmatpush2.bf16.msra.mxu0 0
  %4365 = vmatprep.mubr.bf16.mxu0 0
  %4366 = vmatmul.mubr.bf16.gmra.mxu0 %v4283
  %v4367 = vpop.f32.mrf.mxu0
  %v4368 = vadd.f32 0.0, %v4367
  %v4369 = vpop.f32.mrf.mxu0
  %v4370 = vpop.f32.mrf.mxu0
  %v4371 = vadd.f32 0.0, %v4370
  %v4372 = vpop.f32.mrf.mxu0
  %4373 = vmatprep.mubr.bf16.mxu0 0
  %4374 = vmatmul.mubr.bf16.gmra.mxu0 %v4286
  %v4375 = vpop.f32.mrf.mxu0
  %v4376 = vadd.f32 0.0, %v4375
  %v4377 = vpop.f32.mrf.mxu0
  %v4378 = vpop.f32.mrf.mxu0
  %v4379 = vadd.f32 0.0, %v4378
  %v4380 = vpop.f32.mrf.mxu0
  %4381 = vmatprep.mubr.bf16.mxu0 0
  %4382 = vmatmul.mubr.bf16.gmra.mxu0 %v4289
  %v4383 = vpop.f32.mrf.mxu0
  %v4384 = vadd.f32 0.0, %v4383
  %v4385 = vpop.f32.mrf.mxu0
  %v4386 = vpop.f32.mrf.mxu0
  %v4387 = vadd.f32 0.0, %v4386
  %v4388 = vpop.f32.mrf.mxu0
  %4389 = vmatprep.mubr.bf16.mxu0 0
  %4390 = vmatmul.mubr.bf16.gmra.mxu0 %v4292
  %v4391 = vpop.f32.mrf.mxu0
  %v4392 = vadd.f32 0.0, %v4391
  %v4393 = vpop.f32.mrf.mxu0
  %v4394 = vpop.f32.mrf.mxu0
  %v4395 = vadd.f32 0.0, %v4394
  %v4396 = vpop.f32.mrf.mxu0
  %4397 = vmatprep.mubr.bf16.mxu0 0
  %4398 = vmatmul.mubr.bf16.gmra.mxu0 %v4295
  %v4399 = vpop.f32.mrf.mxu0
  %v4400 = vadd.f32 0.0, %v4399
  %v4401 = vpop.f32.mrf.mxu0
  %v4402 = vpop.f32.mrf.mxu0
  %v4403 = vadd.f32 0.0, %v4402
  %v4404 = vpop.f32.mrf.mxu0
  %4405 = vmatprep.mubr.bf16.mxu0 0
  %4406 = vmatmul.mubr.bf16.gmra.mxu0 %v4298
  %v4407 = vpop.f32.mrf.mxu0
  %v4408 = vadd.f32 0.0, %v4407
  %v4409 = vpop.f32.mrf.mxu0
  %v4410 = vpop.f32.mrf.mxu0
  %v4411 = vadd.f32 0.0, %v4410
  %v4412 = vpop.f32.mrf.mxu0
  %4413 = vmatprep.mubr.bf16.mxu0 0
  %4414 = vmatmul.mubr.bf16.gmra.mxu0 %v4301
  %v4415 = vpop.f32.mrf.mxu0
  %v4416 = vadd.f32 0.0, %v4415
  %v4417 = vpop.f32.mrf.mxu0
  %v4418 = vpop.f32.mrf.mxu0
  %v4419 = vadd.f32 0.0, %v4418
  %v4420 = vpop.f32.mrf.mxu0
  %4421 = vmatprep.mubr.bf16.mxu0 0
  %4422 = vmatmul.mubr.bf16.gmra.mxu0 %v4304
  %v4423 = vpop.f32.mrf.mxu0
  %v4424 = vadd.f32 0.0, %v4423
  %v4425 = vpop.f32.mrf.mxu0
  %v4426 = vpop.f32.mrf.mxu0
  %v4427 = vadd.f32 0.0, %v4426
  %v4428 = vpop.f32.mrf.mxu0
  %4429 = vmatprep.mubr.bf16.mxu0 0
  %4430 = vmatmul.mubr.bf16.gmra.mxu0 %v4307
  %v4431 = vpop.f32.mrf.mxu0
  %v4432 = vadd.f32 0.0, %v4431
  %v4433 = vpop.f32.mrf.mxu0
  %v4434 = vpop.f32.mrf.mxu0
  %v4435 = vadd.f32 0.0, %v4434
  %v4436 = vpop.f32.mrf.mxu0
  %4437 = vmatprep.mubr.bf16.mxu0 0
  %4438 = vmatmul.mubr.bf16.gmra.mxu0 %v4310
  %v4439 = vpop.f32.mrf.mxu0
  %v4440 = vadd.f32 0.0, %v4439
  %v4441 = vpop.f32.mrf.mxu0
  %v4442 = vpop.f32.mrf.mxu0
  %v4443 = vadd.f32 0.0, %v4442
  %v4444 = vpop.f32.mrf.mxu0
  %4445 = vmatprep.mubr.bf16.mxu0 0
  %4446 = vmatmul.mubr.bf16.gmra.mxu0 %v4313
  %v4447 = vpop.f32.mrf.mxu0
  %v4448 = vadd.f32 0.0, %v4447
  %v4449 = vpop.f32.mrf.mxu0
  %v4450 = vpop.f32.mrf.mxu0
  %v4451 = vadd.f32 0.0, %v4450
  %v4452 = vpop.f32.mrf.mxu0
  %4453 = vmatprep.mubr.bf16.mxu0 0
  %4454 = vmatmul.mubr.bf16.gmra.mxu0 %v4316
  %v4455 = vpop.f32.mrf.mxu0
  %v4456 = vadd.f32 0.0, %v4455
  %v4457 = vpop.f32.mrf.mxu0
  %v4458 = vpop.f32.mrf.mxu0
  %v4459 = vadd.f32 0.0, %v4458
  %v4460 = vpop.f32.mrf.mxu0
  %4461 = vmatprep.mubr.bf16.mxu0 0
  %4462 = vmatmul.mubr.bf16.gmra.mxu0 %v4319
  %v4463 = vpop.f32.mrf.mxu0
  %v4464 = vadd.f32 0.0, %v4463
  %v4465 = vpop.f32.mrf.mxu0
  %v4466 = vpop.f32.mrf.mxu0
  %v4467 = vadd.f32 0.0, %v4466
  %v4468 = vpop.f32.mrf.mxu0
  %4469 = vmatprep.mubr.bf16.mxu0 0
  %4470 = vmatmul.mubr.bf16.gmra.mxu0 %v4322
  %v4471 = vpop.f32.mrf.mxu0
  %v4472 = vadd.f32 0.0, %v4471
  %v4473 = vpop.f32.mrf.mxu0
  %v4474 = vpop.f32.mrf.mxu0
  %v4475 = vadd.f32 0.0, %v4474
  %v4476 = vpop.f32.mrf.mxu0
  %4477 = vmatprep.mubr.bf16.mxu0 0
  %4478 = vmatmul.mubr.bf16.gmra.mxu0 %v4325
  %v4479 = vpop.f32.mrf.mxu0
  %v4480 = vadd.f32 0.0, %v4479
  %v4481 = vpop.f32.mrf.mxu0
  %v4482 = vpop.f32.mrf.mxu0
  %v4483 = vadd.f32 0.0, %v4482
  %v4484 = vpop.f32.mrf.mxu0
  %4485 = vmatprep.mubr.bf16.mxu0 0
  %4486 = vmatmul.mubr.bf16.gmra.mxu0 %v4328
  %v4487 = vpop.f32.mrf.mxu0
  %v4488 = vadd.f32 0.0, %v4487
  %v4489 = vpop.f32.mrf.mxu0
  %v4490 = vpop.f32.mrf.mxu0
  %v4491 = vadd.f32 0.0, %v4490
  %v4492 = vpop.f32.mrf.mxu0
  %4493 = vdwg.mxu0
  %v4494 = vld [vmem:[%s8] sm:$0x1]
  %v4496 = vlaneseq
  %v4497 = vshrl.u32 %v4496, 7
  %v4498 = vsub.s32 0, %v4497
  %v4499 = vrot.slane %v4494, %v4498
  %v4501 = vmul.f32 %v4368, %v4499
  %v4502 = vmul.f32 %v4371, %v4499
  %v4503 = vmul.f32 %v4376, %v4499
  %v4504 = vmul.f32 %v4379, %v4499
  %v4505 = vmul.f32 %v4384, %v4499
  %v4506 = vmul.f32 %v4387, %v4499
  %v4507 = vmul.f32 %v4392, %v4499
  %v4508 = vmul.f32 %v4395, %v4499
  %v4509 = vmul.f32 %v4400, %v4499
  %v4510 = vmul.f32 %v4403, %v4499
  %v4511 = vmul.f32 %v4408, %v4499
  %v4512 = vmul.f32 %v4411, %v4499
  %v4513 = vmul.f32 %v4416, %v4499
  %v4514 = vmul.f32 %v4419, %v4499
  %v4515 = vmul.f32 %v4424, %v4499
  %v4516 = vmul.f32 %v4427, %v4499
  %v4517 = vmul.f32 %v4432, %v4499
  %v4518 = vmul.f32 %v4435, %v4499
  %v4519 = vmul.f32 %v4440, %v4499
  %v4520 = vmul.f32 %v4443, %v4499
  %v4521 = vmul.f32 %v4448, %v4499
  %v4522 = vmul.f32 %v4451, %v4499
  %v4523 = vmul.f32 %v4456, %v4499
  %v4524 = vmul.f32 %v4459, %v4499
  %v4525 = vmul.f32 %v4464, %v4499
  %v4526 = vmul.f32 %v4467, %v4499
  %v4527 = vmul.f32 %v4472, %v4499
  %v4528 = vmul.f32 %v4475, %v4499
  %v4529 = vmul.f32 %v4480, %v4499
  %v4530 = vmul.f32 %v4483, %v4499
  %v4531 = vmul.f32 %v4488, %v4499
  %v4532 = vmul.f32 %v4491, %v4499
  %v4533 = vld [vmem:[%s9] sm:$0x1]
  %v4535 = vlaneseq
  %v4536 = vshrl.u32 %v4535, 7
  %v4537 = vsub.s32 0, %v4536
  %v4538 = vrot.slane %v4533, %v4537
  %v4540 = vadd.f32 %v4501, %v4538
  %v4541 = vadd.f32 %v4502, %v4538
  %v4542 = vadd.f32 %v4503, %v4538
  %v4543 = vadd.f32 %v4504, %v4538
  %v4544 = vadd.f32 %v4505, %v4538
  %v4545 = vadd.f32 %v4506, %v4538
  %v4546 = vadd.f32 %v4507, %v4538
  %v4547 = vadd.f32 %v4508, %v4538
  %v4548 = vadd.f32 %v4509, %v4538
  %v4549 = vadd.f32 %v4510, %v4538
  %v4550 = vadd.f32 %v4511, %v4538
  %v4551 = vadd.f32 %v4512, %v4538
  %v4552 = vadd.f32 %v4513, %v4538
  %v4553 = vadd.f32 %v4514, %v4538
  %v4554 = vadd.f32 %v4515, %v4538
  %v4555 = vadd.f32 %v4516, %v4538
  %v4556 = vadd.f32 %v4517, %v4538
  %v4557 = vadd.f32 %v4518, %v4538
  %v4558 = vadd.f32 %v4519, %v4538
  %v4559 = vadd.f32 %v4520, %v4538
  %v4560 = vadd.f32 %v4521, %v4538
  %v4561 = vadd.f32 %v4522, %v4538
  %v4562 = vadd.f32 %v4523, %v4538
  %v4563 = vadd.f32 %v4524, %v4538
  %v4564 = vadd.f32 %v4525, %v4538
  %v4565 = vadd.f32 %v4526, %v4538
  %v4566 = vadd.f32 %v4527, %v4538
  %v4567 = vadd.f32 %v4528, %v4538
  %v4568 = vadd.f32 %v4529, %v4538
  %v4569 = vadd.f32 %v4530, %v4538
  %v4570 = vadd.f32 %v4531, %v4538
  %v4571 = vadd.f32 %v4532, %v4538
  %v4572 = vadd.f32 %v4540, %v36
  %v4573 = vadd.f32 %v4541, %v37
  %v4574 = vadd.f32 %v4542, %v38
  %v4575 = vadd.f32 %v4543, %v39
  %v4576 = vadd.f32 %v4544, %v40
  %v4577 = vadd.f32 %v4545, %v41
  %v4578 = vadd.f32 %v4546, %v42
  %v4579 = vadd.f32 %v4547, %v43
  %v4580 = vadd.f32 %v4548, %v44
  %v4581 = vadd.f32 %v4549, %v45
  %v4582 = vadd.f32 %v4550, %v46
  %v4583 = vadd.f32 %v4551, %v47
  %v4584 = vadd.f32 %v4552, %v48
  %v4585 = vadd.f32 %v4553, %v49
  %v4586 = vadd.f32 %v4554, %v50
  %v4587 = vadd.f32 %v4555, %v51
  %v4588 = vadd.f32 %v4556, %v52
  %v4589 = vadd.f32 %v4557, %v53
  %v4590 = vadd.f32 %v4558, %v54
  %v4591 = vadd.f32 %v4559, %v55
  %v4592 = vadd.f32 %v4560, %v56
  %v4593 = vadd.f32 %v4561, %v57
  %v4594 = vadd.f32 %v4562, %v58
  %v4595 = vadd.f32 %v4563, %v59
  %v4596 = vadd.f32 %v4564, %v60
  %v4597 = vadd.f32 %v4565, %v61
  %v4598 = vadd.f32 %v4566, %v62
  %v4599 = vadd.f32 %v4567, %v63
  %v4600 = vadd.f32 %v4568, %v64
  %v4601 = vadd.f32 %v4569, %v65
  %v4602 = vadd.f32 %v4570, %v66
  %v4603 = vadd.f32 %v4571, %v67
  %v4604 = vmax.f32 %v4572, 0.0
  %v4605 = vmax.f32 %v4573, 0.0
  %v4606 = vmax.f32 %v4574, 0.0
  %v4607 = vmax.f32 %v4575, 0.0
  %v4608 = vmax.f32 %v4576, 0.0
  %v4609 = vmax.f32 %v4577, 0.0
  %v4610 = vmax.f32 %v4578, 0.0
  %v4611 = vmax.f32 %v4579, 0.0
  %v4612 = vmax.f32 %v4580, 0.0
  %v4613 = vmax.f32 %v4581, 0.0
  %v4614 = vmax.f32 %v4582, 0.0
  %v4615 = vmax.f32 %v4583, 0.0
  %v4616 = vmax.f32 %v4584, 0.0
  %v4617 = vmax.f32 %v4585, 0.0
  %v4618 = vmax.f32 %v4586, 0.0
  %v4619 = vmax.f32 %v4587, 0.0
  %v4620 = vmax.f32 %v4588, 0.0
  %v4621 = vmax.f32 %v4589, 0.0
  %v4622 = vmax.f32 %v4590, 0.0
  %v4623 = vmax.f32 %v4591, 0.0
  %v4624 = vmax.f32 %v4592, 0.0
  %v4625 = vmax.f32 %v4593, 0.0
  %v4626 = vmax.f32 %v4594, 0.0
  %v4627 = vmax.f32 %v4595, 0.0
  %v4628 = vmax.f32 %v4596, 0.0
  %v4629 = vmax.f32 %v4597, 0.0
  %v4630 = vmax.f32 %v4598, 0.0
  %v4631 = vmax.f32 %v4599, 0.0
  %v4632 = vmax.f32 %v4600, 0.0
  %v4633 = vmax.f32 %v4601, 0.0
  %v4634 = vmax.f32 %v4602, 0.0
  %v4635 = vmax.f32 %v4603, 0.0
  %4636 = vst.msk [vmem:[%s10] sm:$0xff] %vm148, %v4604
  %4637 = vst.msk [vmem:[%s10 + $0x8] sm:$0xff] %vm148, %v4605
  %4638 = vst.msk [vmem:[%s10 + $0x10] sm:$0xff] %vm148, %v4606
  %4639 = vst.msk [vmem:[%s10 + $0x18] sm:$0xff] %vm148, %v4607
  %4640 = vst.msk [vmem:[%s10 + $0x20] sm:$0xff] %vm148, %v4608
  %4641 = vst.msk [vmem:[%s10 + $0x28] sm:$0xff] %vm148, %v4609
  %4642 = vst.msk [vmem:[%s10 + $0x30] sm:$0xff] %vm148, %v4610
  %4643 = vst.msk [vmem:[%s10 + $0x38] sm:$0xff] %vm148, %v4611
  %4644 = vst.msk [vmem:[%s10 + $0x40] sm:$0xff] %vm148, %v4612
  %4645 = vst.msk [vmem:[%s10 + $0x48] sm:$0xff] %vm148, %v4613
  %4646 = vst.msk [vmem:[%s10 + $0x50] sm:$0xff] %vm148, %v4614
  %4647 = vst.msk [vmem:[%s10 + $0x58] sm:$0xff] %vm148, %v4615
  %4648 = vst.msk [vmem:[%s10 + $0x60] sm:$0xff] %vm148, %v4616
  %4649 = vst.msk [vmem:[%s10 + $0x68] sm:$0xff] %vm148, %v4617
  %4650 = vst.msk [vmem:[%s10 + $0x70] sm:$0xff] %vm148, %v4618
  %4651 = vst.msk [vmem:[%s10 + $0x78] sm:$0xff] %vm148, %v4619
  %4652 = vst.msk [vmem:[%s10 + $0x80] sm:$0xff] %vm148, %v4620
  %4653 = vst.msk [vmem:[%s10 + $0x88] sm:$0xff] %vm148, %v4621
  %4654 = vst.msk [vmem:[%s10 + $0x90] sm:$0xff] %vm148, %v4622
  %4655 = vst.msk [vmem:[%s10 + $0x98] sm:$0xff] %vm148, %v4623
  %4656 = vst.msk [vmem:[%s10 + $0xa0] sm:$0xff] %vm148, %v4624
  %4657 = vst.msk [vmem:[%s10 + $0xa8] sm:$0xff] %vm148, %v4625
  %4658 = vst.msk [vmem:[%s10 + $0xb0] sm:$0xff] %vm148, %v4626
  %4659 = vst.msk [vmem:[%s10 + $0xb8] sm:$0xff] %vm148, %v4627
  %4660 = vst.msk [vmem:[%s10 + $0xc0] sm:$0xff] %vm148, %v4628
  %4661 = vst.msk [vmem:[%s10 + $0xc8] sm:$0xff] %vm148, %v4629
  %4662 = vst.msk [vmem:[%s10 + $0xd0] sm:$0xff] %vm148, %v4630
  %4663 = vst.msk [vmem:[%s10 + $0xd8] sm:$0xff] %vm148, %v4631
  %4664 = vst.msk [vmem:[%s10 + $0xe0] sm:$0xff] %vm148, %v4632
  %4665 = vst.msk [vmem:[%s10 + $0xe8] sm:$0xff] %vm148, %v4633
  %4666 = vst.msk [vmem:[%s10 + $0xf0] sm:$0xff] %vm148, %v4634
  %4667 = vst.msk [vmem:[%s10 + $0xf8] sm:$0xff] %vm148, %v4635
  %4668 = vst.msk [vmem:[#allocation2] sm:$0xff] %vm1349, 0.0
  %4669 = vst.msk [vmem:[#allocation2 + $0x8] sm:$0xff] %vm1349, 0.0
  %4670 = vst.msk [vmem:[#allocation2 + $0x10] sm:$0x1] %vm1352, 0.0
  %4671 = vst.msk [vmem:[#allocation2 + $0x111] sm:$0xff] %vm1349, 0.0
  %4672 = vst.msk [vmem:[#allocation2 + $0x119] sm:$0xff] %vm1349, 0.0
  %4673 = vst.msk [vmem:[#allocation2 + $0x121] sm:$0x1] %vm1352, 0.0
  %4674 = vst.msk [vmem:[#allocation2 + $0x11] sm:$0xff] %vm1349, %v708
  %4675 = vst.msk [vmem:[#allocation2 + $0x19] sm:$0xff] %vm1349, %v709
  %4676 = vst.msk [vmem:[#allocation2 + $0x21] sm:$0xff] %vm1349, %v710
  %4677 = vst.msk [vmem:[#allocation2 + $0x29] sm:$0xff] %vm1349, %v711
  %4678 = vst.msk [vmem:[#allocation2 + $0x31] sm:$0xff] %vm1349, %v712
  %4679 = vst.msk [vmem:[#allocation2 + $0x39] sm:$0xff] %vm1349, %v713
  %4680 = vst.msk [vmem:[#allocation2 + $0x41] sm:$0xff] %vm1349, %v714
  %4681 = vst.msk [vmem:[#allocation2 + $0x49] sm:$0xff] %vm1349, %v715
  %4682 = vst.msk [vmem:[#allocation2 + $0x51] sm:$0xff] %vm1349, %v716
  %4683 = vst.msk [vmem:[#allocation2 + $0x59] sm:$0xff] %vm1349, %v717
  %4684 = vst.msk [vmem:[#allocation2 + $0x61] sm:$0xff] %vm1349, %v718
  %4685 = vst.msk [vmem:[#allocation2 + $0x69] sm:$0xff] %vm1349, %v719
  %4686 = vst.msk [vmem:[#allocation2 + $0x71] sm:$0xff] %vm1349, %v720
  %4687 = vst.msk [vmem:[#allocation2 + $0x79] sm:$0xff] %vm1349, %v721
  %4688 = vst.msk [vmem:[#allocation2 + $0x81] sm:$0xff] %vm1349, %v722
  %4689 = vst.msk [vmem:[#allocation2 + $0x89] sm:$0xff] %vm1349, %v723
  %4690 = vst.msk [vmem:[#allocation2 + $0x91] sm:$0xff] %vm1349, %v724
  %4691 = vst.msk [vmem:[#allocation2 + $0x99] sm:$0xff] %vm1349, %v725
  %4692 = vst.msk [vmem:[#allocation2 + $0xa1] sm:$0xff] %vm1349, %v726
  %4693 = vst.msk [vmem:[#allocation2 + $0xa9] sm:$0xff] %vm1349, %v727
  %4694 = vst.msk [vmem:[#allocation2 + $0xb1] sm:$0xff] %vm1349, %v728
  %4695 = vst.msk [vmem:[#allocation2 + $0xb9] sm:$0xff] %vm1349, %v729
  %4696 = vst.msk [vmem:[#allocation2 + $0xc1] sm:$0xff] %vm1349, %v730
  %4697 = vst.msk [vmem:[#allocation2 + $0xc9] sm:$0xff] %vm1349, %v731
  %4698 = vst.msk [vmem:[#allocation2 + $0xd1] sm:$0xff] %vm1349, %v732
  %4699 = vst.msk [vmem:[#allocation2 + $0xd9] sm:$0xff] %vm1349, %v733
  %4700 = vst.msk [vmem:[#allocation2 + $0xe1] sm:$0xff] %vm1349, %v734
  %4701 = vst.msk [vmem:[#allocation2 + $0xe9] sm:$0xff] %vm1349, %v735
  %4702 = vst.msk [vmem:[#allocation2 + $0xf1] sm:$0xff] %vm1349, %v736
  %4703 = vst.msk [vmem:[#allocation2 + $0xf9] sm:$0xff] %vm1349, %v737
  %4704 = vst.msk [vmem:[#allocation2 + $0x101] sm:$0xff] %vm1349, %v738
  %4705 = vst.msk [vmem:[#allocation2 + $0x109] sm:$0xff] %vm1349, %v739
  %v4706 = vld [vmem:[#allocation2] sm:$0xff]
  %v4707 = vld [vmem:[#allocation2 + $0x8] sm:$0xff]
  %v4708 = vld [vmem:[#allocation2 + $0x10] sm:$0xff]
  %v4709 = vld [vmem:[#allocation2 + $0x18] sm:$0xff]
  %v4710 = vld [vmem:[#allocation2 + $0x20] sm:$0xff]
  %v4711 = vld [vmem:[#allocation2 + $0x28] sm:$0xff]
  %v4712 = vld [vmem:[#allocation2 + $0x30] sm:$0xff]
  %v4713 = vld [vmem:[#allocation2 + $0x38] sm:$0xff]
  %v4714 = vld [vmem:[#allocation2 + $0x40] sm:$0xff]
  %v4715 = vld [vmem:[#allocation2 + $0x48] sm:$0xff]
  %v4716 = vld [vmem:[#allocation2 + $0x50] sm:$0xff]
  %v4717 = vld [vmem:[#allocation2 + $0x58] sm:$0xff]
  %v4718 = vld [vmem:[#allocation2 + $0x60] sm:$0xff]
  %v4719 = vld [vmem:[#allocation2 + $0x68] sm:$0xff]
  %v4720 = vld [vmem:[#allocation2 + $0x70] sm:$0xff]
  %v4721 = vld [vmem:[#allocation2 + $0x78] sm:$0xff]
  %v4722 = vld [vmem:[#allocation2 + $0x80] sm:$0xff]
  %v4723 = vld [vmem:[#allocation2 + $0x88] sm:$0xff]
  %v4724 = vld [vmem:[#allocation2 + $0x90] sm:$0xff]
  %v4725 = vld [vmem:[#allocation2 + $0x98] sm:$0xff]
  %v4726 = vld [vmem:[#allocation2 + $0xa0] sm:$0xff]
  %v4727 = vld [vmem:[#allocation2 + $0xa8] sm:$0xff]
  %v4728 = vld [vmem:[#allocation2 + $0xb0] sm:$0xff]
  %v4729 = vld [vmem:[#allocation2 + $0xb8] sm:$0xff]
  %v4730 = vld [vmem:[#allocation2 + $0xc0] sm:$0xff]
  %v4731 = vld [vmem:[#allocation2 + $0xc8] sm:$0xff]
  %v4732 = vld [vmem:[#allocation2 + $0xd0] sm:$0xff]
  %v4733 = vld [vmem:[#allocation2 + $0xd8] sm:$0xff]
  %v4734 = vld [vmem:[#allocation2 + $0xe0] sm:$0xff]
  %v4735 = vld [vmem:[#allocation2 + $0xe8] sm:$0xff]
  %v4736 = vld [vmem:[#allocation2 + $0xf0] sm:$0xff]
  %v4737 = vld [vmem:[#allocation2 + $0xf8] sm:$0xff]
  %v4738 = vmul.f32 %v4706, %v1221
  %v4739 = vmul.f32 %v4707, %v1222
  %v4740 = vmul.f32 %v4708, %v1223
  %v4741 = vmul.f32 %v4709, %v1224
  %v4742 = vmul.f32 %v4710, %v1225
  %v4743 = vmul.f32 %v4711, %v1226
  %v4744 = vmul.f32 %v4712, %v1227
  %v4745 = vmul.f32 %v4713, %v1228
  %v4746 = vmul.f32 %v4714, %v1229
  %v4747 = vmul.f32 %v4715, %v1230
  %v4748 = vmul.f32 %v4716, %v1231
  %v4749 = vmul.f32 %v4717, %v1232
  %v4750 = vmul.f32 %v4718, %v1233
  %v4751 = vmul.f32 %v4719, %v1234
  %v4752 = vmul.f32 %v4720, %v1235
  %v4753 = vmul.f32 %v4721, %v1236
  %v4754 = vmul.f32 %v4722, %v1237
  %v4755 = vmul.f32 %v4723, %v1238
  %v4756 = vmul.f32 %v4724, %v1239
  %v4757 = vmul.f32 %v4725, %v1240
  %v4758 = vmul.f32 %v4726, %v1241
  %v4759 = vmul.f32 %v4727, %v1242
  %v4760 = vmul.f32 %v4728, %v1243
  %v4761 = vmul.f32 %v4729, %v1244
  %v4762 = vmul.f32 %v4730, %v1245
  %v4763 = vmul.f32 %v4731, %v1246
  %v4764 = vmul.f32 %v4732, %v1247
  %v4765 = vmul.f32 %v4733, %v1248
  %v4766 = vmul.f32 %v4734, %v1249
  %v4767 = vmul.f32 %v4735, %v1250
  %v4768 = vmul.f32 %v4736, %v1251
  %v4769 = vmul.f32 %v4737, %v1252
  %v4770 = vpack.c.bf16 %v4739, %v4738
  %v4771 = vpack.c.bf16 %v4741, %v4740
  %v4772 = vpack.c.bf16 %v4743, %v4742
  %v4773 = vpack.c.bf16 %v4745, %v4744
  %v4774 = vpack.c.bf16 %v4747, %v4746
  %v4775 = vpack.c.bf16 %v4749, %v4748
  %v4776 = vpack.c.bf16 %v4751, %v4750
  %v4777 = vpack.c.bf16 %v4753, %v4752
  %v4778 = vpack.c.bf16 %v4755, %v4754
  %v4779 = vpack.c.bf16 %v4757, %v4756
  %v4780 = vpack.c.bf16 %v4759, %v4758
  %v4781 = vpack.c.bf16 %v4761, %v4760
  %v4782 = vpack.c.bf16 %v4763, %v4762
  %v4783 = vpack.c.bf16 %v4765, %v4764
  %v4784 = vpack.c.bf16 %v4767, %v4766
  %v4785 = vpack.c.bf16 %v4769, %v4768
  %v4786 = vld [vmem:[%s4] sm:$0xf]
  %v4787 = vld [vmem:[#allocation2 + $0x1] sm:$0xff]
  %v4788 = vld [vmem:[#allocation2 + $0x9] sm:$0xff]
  %v4789 = vld [vmem:[#allocation2 + $0x11] sm:$0xff]
  %v4790 = vld [vmem:[#allocation2 + $0x19] sm:$0xff]
  %v4791 = vld [vmem:[#allocation2 + $0x21] sm:$0xff]
  %v4792 = vld [vmem:[#allocation2 + $0x29] sm:$0xff]
  %v4793 = vld [vmem:[#allocation2 + $0x31] sm:$0xff]
  %v4794 = vld [vmem:[#allocation2 + $0x39] sm:$0xff]
  %v4795 = vld [vmem:[#allocation2 + $0x41] sm:$0xff]
  %v4796 = vld [vmem:[#allocation2 + $0x49] sm:$0xff]
  %v4797 = vld [vmem:[#allocation2 + $0x51] sm:$0xff]
  %v4798 = vld [vmem:[#allocation2 + $0x59] sm:$0xff]
  %v4799 = vld [vmem:[#allocation2 + $0x61] sm:$0xff]
  %v4800 = vld [vmem:[#allocation2 + $0x69] sm:$0xff]
  %v4801 = vld [vmem:[#allocation2 + $0x71] sm:$0xff]
  %v4802 = vld [vmem:[#allocation2 + $0x79] sm:$0xff]
  %v4803 = vld [vmem:[#allocation2 + $0x81] sm:$0xff]
  %v4804 = vld [vmem:[#allocation2 + $0x89] sm:$0xff]
  %v4805 = vld [vmem:[#allocation2 + $0x91] sm:$0xff]
  %v4806 = vld [vmem:[#allocation2 + $0x99] sm:$0xff]
  %v4807 = vld [vmem:[#allocation2 + $0xa1] sm:$0xff]
  %v4808 = vld [vmem:[#allocation2 + $0xa9] sm:$0xff]
  %v4809 = vld [vmem:[#allocation2 + $0xb1] sm:$0xff]
  %v4810 = vld [vmem:[#allocation2 + $0xb9] sm:$0xff]
  %v4811 = vld [vmem:[#allocation2 + $0xc1] sm:$0xff]
  %v4812 = vld [vmem:[#allocation2 + $0xc9] sm:$0xff]
  %v4813 = vld [vmem:[#allocation2 + $0xd1] sm:$0xff]
  %v4814 = vld [vmem:[#allocation2 + $0xd9] sm:$0xff]
  %v4815 = vld [vmem:[#allocation2 + $0xe1] sm:$0xff]
  %v4816 = vld [vmem:[#allocation2 + $0xe9] sm:$0xff]
  %v4817 = vld [vmem:[#allocation2 + $0xf1] sm:$0xff]
  %v4818 = vld [vmem:[#allocation2 + $0xf9] sm:$0xff]
  %v4819 = vpack.c.bf16 %v4788, %v4787
  %v4820 = vpack.c.bf16 %v4790, %v4789
  %v4821 = vpack.c.bf16 %v4792, %v4791
  %v4822 = vpack.c.bf16 %v4794, %v4793
  %v4823 = vpack.c.bf16 %v4796, %v4795
  %v4824 = vpack.c.bf16 %v4798, %v4797
  %v4825 = vpack.c.bf16 %v4800, %v4799
  %v4826 = vpack.c.bf16 %v4802, %v4801
  %v4827 = vpack.c.bf16 %v4804, %v4803
  %v4828 = vpack.c.bf16 %v4806, %v4805
  %v4829 = vpack.c.bf16 %v4808, %v4807
  %v4830 = vpack.c.bf16 %v4810, %v4809
  %v4831 = vpack.c.bf16 %v4812, %v4811
  %v4832 = vpack.c.bf16 %v4814, %v4813
  %v4833 = vpack.c.bf16 %v4816, %v4815
  %v4834 = vpack.c.bf16 %v4818, %v4817
  %v4835 = vld [vmem:[%s4 + $0x4] sm:$0xf]
  %v4837 = vsel %vm1349, %v4819, 0
  %v4840 = vsel %vm1349, %v4820, 0
  %v4843 = vsel %vm1349, %v4821, 0
  %v4846 = vsel %vm1349, %v4822, 0
  %v4849 = vsel %vm1349, %v4823, 0
  %v4852 = vsel %vm1349, %v4824, 0
  %v4855 = vsel %vm1349, %v4825, 0
  %v4858 = vsel %vm1349, %v4826, 0
  %v4861 = vsel %vm1349, %v4827, 0
  %v4864 = vsel %vm1349, %v4828, 0
  %v4867 = vsel %vm1349, %v4829, 0
  %v4870 = vsel %vm1349, %v4830, 0
  %v4873 = vsel %vm1349, %v4831, 0
  %v4876 = vsel %vm1349, %v4832, 0
  %v4879 = vsel %vm1349, %v4833, 0
  %v4882 = vsel %vm1349, %v4834, 0
  %v4885 = vsel %vm1567, %v4835, 0
  %4887 = vmatprep.subr.bf16.mxu0 0
  %4888 = vmatpush1.bf16.msra.mxu0 0
  %4889 = vmatprep.subr.bf16.mxu0 0
  %4890 = vmatpush1.bf16.msra.mxu0 0
  %4891 = vmatprep.subr.bf16.mxu0 0
  %4892 = vmatpush1.bf16.msra.mxu0 0
  %4893 = vmatprep.subr.bf16.mxu0 0
  %4894 = vmatpush1.bf16.msra.mxu0 0
  %4895 = vmatprep.subr.bf16.mxu0 0
  %4896 = vmatpush1.bf16.msra.mxu0 0
  %4897 = vmatprep.subr.bf16.mxu0 0
  %4898 = vmatpush1.bf16.msra.mxu0 0
  %4899 = vmatprep.subr.bf16.mxu0 0
  %4900 = vmatpush1.bf16.msra.mxu0 0
  %4901 = vmatprep.subr.bf16.mxu0 0
  %4902 = vmatpush1.bf16.msra.mxu0 %v4885
  %4903 = vmatprep.subr.bf16.mxu0 0
  %4904 = vmatpush2.bf16.msra.mxu0 0
  %4905 = vmatprep.subr.bf16.mxu0 0
  %4906 = vmatpush2.bf16.msra.mxu0 0
  %4907 = vmatprep.subr.bf16.mxu0 0
  %4908 = vmatpush2.bf16.msra.mxu0 0
  %4909 = vmatprep.subr.bf16.mxu0 0
  %4910 = vmatpush2.bf16.msra.mxu0 0
  %4911 = vmatprep.subr.bf16.mxu0 0
  %4912 = vmatpush2.bf16.msra.mxu0 0
  %4913 = vmatprep.subr.bf16.mxu0 0
  %4914 = vmatpush2.bf16.msra.mxu0 0
  %4915 = vmatprep.subr.bf16.mxu0 0
  %4916 = vmatpush2.bf16.msra.mxu0 0
  %4917 = vmatprep.subr.bf16.mxu0 0
  %4918 = vmatpush2.bf16.msra.mxu0 0
  %4919 = vmatprep.mubr.bf16.mxu0 0
  %4920 = vmatmul.mubr.bf16.gmra.mxu0 %v4837
  %v4921 = vpop.f32.mrf.mxu0
  %v4922 = vadd.f32 0.0, %v4921
  %v4923 = vpop.f32.mrf.mxu0
  %v4924 = vpop.f32.mrf.mxu0
  %v4925 = vadd.f32 0.0, %v4924
  %v4926 = vpop.f32.mrf.mxu0
  %4927 = vmatprep.mubr.bf16.mxu0 0
  %4928 = vmatmul.mubr.bf16.gmra.mxu0 %v4840
  %v4929 = vpop.f32.mrf.mxu0
  %v4930 = vadd.f32 0.0, %v4929
  %v4931 = vpop.f32.mrf.mxu0
  %v4932 = vpop.f32.mrf.mxu0
  %v4933 = vadd.f32 0.0, %v4932
  %v4934 = vpop.f32.mrf.mxu0
  %4935 = vmatprep.mubr.bf16.mxu0 0
  %4936 = vmatmul.mubr.bf16.gmra.mxu0 %v4843
  %v4937 = vpop.f32.mrf.mxu0
  %v4938 = vadd.f32 0.0, %v4937
  %v4939 = vpop.f32.mrf.mxu0
  %v4940 = vpop.f32.mrf.mxu0
  %v4941 = vadd.f32 0.0, %v4940
  %v4942 = vpop.f32.mrf.mxu0
  %4943 = vmatprep.mubr.bf16.mxu0 0
  %4944 = vmatmul.mubr.bf16.gmra.mxu0 %v4846
  %v4945 = vpop.f32.mrf.mxu0
  %v4946 = vadd.f32 0.0, %v4945
  %v4947 = vpop.f32.mrf.mxu0
  %v4948 = vpop.f32.mrf.mxu0
  %v4949 = vadd.f32 0.0, %v4948
  %v4950 = vpop.f32.mrf.mxu0
  %4951 = vmatprep.mubr.bf16.mxu0 0
  %4952 = vmatmul.mubr.bf16.gmra.mxu0 %v4849
  %v4953 = vpop.f32.mrf.mxu0
  %v4954 = vadd.f32 0.0, %v4953
  %v4955 = vpop.f32.mrf.mxu0
  %v4956 = vpop.f32.mrf.mxu0
  %v4957 = vadd.f32 0.0, %v4956
  %v4958 = vpop.f32.mrf.mxu0
  %4959 = vmatprep.mubr.bf16.mxu0 0
  %4960 = vmatmul.mubr.bf16.gmra.mxu0 %v4852
  %v4961 = vpop.f32.mrf.mxu0
  %v4962 = vadd.f32 0.0, %v4961
  %v4963 = vpop.f32.mrf.mxu0
  %v4964 = vpop.f32.mrf.mxu0
  %v4965 = vadd.f32 0.0, %v4964
  %v4966 = vpop.f32.mrf.mxu0
  %4967 = vmatprep.mubr.bf16.mxu0 0
  %4968 = vmatmul.mubr.bf16.gmra.mxu0 %v4855
  %v4969 = vpop.f32.mrf.mxu0
  %v4970 = vadd.f32 0.0, %v4969
  %v4971 = vpop.f32.mrf.mxu0
  %v4972 = vpop.f32.mrf.mxu0
  %v4973 = vadd.f32 0.0, %v4972
  %v4974 = vpop.f32.mrf.mxu0
  %4975 = vmatprep.mubr.bf16.mxu0 0
  %4976 = vmatmul.mubr.bf16.gmra.mxu0 %v4858
  %v4977 = vpop.f32.mrf.mxu0
  %v4978 = vadd.f32 0.0, %v4977
  %v4979 = vpop.f32.mrf.mxu0
  %v4980 = vpop.f32.mrf.mxu0
  %v4981 = vadd.f32 0.0, %v4980
  %v4982 = vpop.f32.mrf.mxu0
  %4983 = vmatprep.mubr.bf16.mxu0 0
  %4984 = vmatmul.mubr.bf16.gmra.mxu0 %v4861
  %v4985 = vpop.f32.mrf.mxu0
  %v4986 = vadd.f32 0.0, %v4985
  %v4987 = vpop.f32.mrf.mxu0
  %v4988 = vpop.f32.mrf.mxu0
  %v4989 = vadd.f32 0.0, %v4988
  %v4990 = vpop.f32.mrf.mxu0
  %4991 = vmatprep.mubr.bf16.mxu0 0
  %4992 = vmatmul.mubr.bf16.gmra.mxu0 %v4864
  %v4993 = vpop.f32.mrf.mxu0
  %v4994 = vadd.f32 0.0, %v4993
  %v4995 = vpop.f32.mrf.mxu0
  %v4996 = vpop.f32.mrf.mxu0
  %v4997 = vadd.f32 0.0, %v4996
  %v4998 = vpop.f32.mrf.mxu0
  %4999 = vmatprep.mubr.bf16.mxu0 0
  %5000 = vmatmul.mubr.bf16.gmra.mxu0 %v4867
  %v5001 = vpop.f32.mrf.mxu0
  %v5002 = vadd.f32 0.0, %v5001
  %v5003 = vpop.f32.mrf.mxu0
  %v5004 = vpop.f32.mrf.mxu0
  %v5005 = vadd.f32 0.0, %v5004
  %v5006 = vpop.f32.mrf.mxu0
  %5007 = vmatprep.mubr.bf16.mxu0 0
  %5008 = vmatmul.mubr.bf16.gmra.mxu0 %v4870
  %v5009 = vpop.f32.mrf.mxu0
  %v5010 = vadd.f32 0.0, %v5009
  %v5011 = vpop.f32.mrf.mxu0
  %v5012 = vpop.f32.mrf.mxu0
  %v5013 = vadd.f32 0.0, %v5012
  %v5014 = vpop.f32.mrf.mxu0
  %5015 = vmatprep.mubr.bf16.mxu0 0
  %5016 = vmatmul.mubr.bf16.gmra.mxu0 %v4873
  %v5017 = vpop.f32.mrf.mxu0
  %v5018 = vadd.f32 0.0, %v5017
  %v5019 = vpop.f32.mrf.mxu0
  %v5020 = vpop.f32.mrf.mxu0
  %v5021 = vadd.f32 0.0, %v5020
  %v5022 = vpop.f32.mrf.mxu0
  %5023 = vmatprep.mubr.bf16.mxu0 0
  %5024 = vmatmul.mubr.bf16.gmra.mxu0 %v4876
  %v5025 = vpop.f32.mrf.mxu0
  %v5026 = vadd.f32 0.0, %v5025
  %v5027 = vpop.f32.mrf.mxu0
  %v5028 = vpop.f32.mrf.mxu0
  %v5029 = vadd.f32 0.0, %v5028
  %v5030 = vpop.f32.mrf.mxu0
  %5031 = vmatprep.mubr.bf16.mxu0 0
  %5032 = vmatmul.mubr.bf16.gmra.mxu0 %v4879
  %v5033 = vpop.f32.mrf.mxu0
  %v5034 = vadd.f32 0.0, %v5033
  %v5035 = vpop.f32.mrf.mxu0
  %v5036 = vpop.f32.mrf.mxu0
  %v5037 = vadd.f32 0.0, %v5036
  %v5038 = vpop.f32.mrf.mxu0
  %5039 = vmatprep.mubr.bf16.mxu0 0
  %5040 = vmatmul.mubr.bf16.gmra.mxu0 %v4882
  %v5041 = vpop.f32.mrf.mxu0
  %v5042 = vadd.f32 0.0, %v5041
  %v5043 = vpop.f32.mrf.mxu0
  %v5044 = vpop.f32.mrf.mxu0
  %v5045 = vadd.f32 0.0, %v5044
  %v5046 = vpop.f32.mrf.mxu0
  %5047 = vdwg.mxu0
  %v5049 = vsel %vm1349, %v4770, 0
  %v5052 = vsel %vm1349, %v4771, 0
  %v5055 = vsel %vm1349, %v4772, 0
  %v5058 = vsel %vm1349, %v4773, 0
  %v5061 = vsel %vm1349, %v4774, 0
  %v5064 = vsel %vm1349, %v4775, 0
  %v5067 = vsel %vm1349, %v4776, 0
  %v5070 = vsel %vm1349, %v4777, 0
  %v5073 = vsel %vm1349, %v4778, 0
  %v5076 = vsel %vm1349, %v4779, 0
  %v5079 = vsel %vm1349, %v4780, 0
  %v5082 = vsel %vm1349, %v4781, 0
  %v5085 = vsel %vm1349, %v4782, 0
  %v5088 = vsel %vm1349, %v4783, 0
  %v5091 = vsel %vm1349, %v4784, 0
  %v5094 = vsel %vm1349, %v4785, 0
  %v5097 = vsel %vm1567, %v4786, 0
  %5099 = vmatprep.subr.bf16.mxu0 0
  %5100 = vmatpush1.bf16.msra.mxu0 0
  %5101 = vmatprep.subr.bf16.mxu0 0
  %5102 = vmatpush1.bf16.msra.mxu0 0
  %5103 = vmatprep.subr.bf16.mxu0 0
  %5104 = vmatpush1.bf16.msra.mxu0 0
  %5105 = vmatprep.subr.bf16.mxu0 0
  %5106 = vmatpush1.bf16.msra.mxu0 0
  %5107 = vmatprep.subr.bf16.mxu0 0
  %5108 = vmatpush1.bf16.msra.mxu0 0
  %5109 = vmatprep.subr.bf16.mxu0 0
  %5110 = vmatpush1.bf16.msra.mxu0 0
  %5111 = vmatprep.subr.bf16.mxu0 0
  %5112 = vmatpush1.bf16.msra.mxu0 0
  %5113 = vmatprep.subr.bf16.mxu0 0
  %5114 = vmatpush1.bf16.msra.mxu0 %v5097
  %5115 = vmatprep.subr.bf16.mxu0 0
  %5116 = vmatpush2.bf16.msra.mxu0 0
  %5117 = vmatprep.subr.bf16.mxu0 0
  %5118 = vmatpush2.bf16.msra.mxu0 0
  %5119 = vmatprep.subr.bf16.mxu0 0
  %5120 = vmatpush2.bf16.msra.mxu0 0
  %5121 = vmatprep.subr.bf16.mxu0 0
  %5122 = vmatpush2.bf16.msra.mxu0 0
  %5123 = vmatprep.subr.bf16.mxu0 0
  %5124 = vmatpush2.bf16.msra.mxu0 0
  %5125 = vmatprep.subr.bf16.mxu0 0
  %5126 = vmatpush2.bf16.msra.mxu0 0
  %5127 = vmatprep.subr.bf16.mxu0 0
  %5128 = vmatpush2.bf16.msra.mxu0 0
  %5129 = vmatprep.subr.bf16.mxu0 0
  %5130 = vmatpush2.bf16.msra.mxu0 0
  %5131 = vmatprep.mubr.bf16.mxu0 0
  %5132 = vmatmul.mubr.bf16.gmra.mxu0 %v5049
  %v5133 = vpop.f32.mrf.mxu0
  %v5134 = vadd.f32 %v4922, %v5133
  %v5135 = vpop.f32.mrf.mxu0
  %v5136 = vpop.f32.mrf.mxu0
  %v5137 = vadd.f32 %v4925, %v5136
  %v5138 = vpop.f32.mrf.mxu0
  %5139 = vmatprep.mubr.bf16.mxu0 0
  %5140 = vmatmul.mubr.bf16.gmra.mxu0 %v5052
  %v5141 = vpop.f32.mrf.mxu0
  %v5142 = vadd.f32 %v4930, %v5141
  %v5143 = vpop.f32.mrf.mxu0
  %v5144 = vpop.f32.mrf.mxu0
  %v5145 = vadd.f32 %v4933, %v5144
  %v5146 = vpop.f32.mrf.mxu0
  %5147 = vmatprep.mubr.bf16.mxu0 0
  %5148 = vmatmul.mubr.bf16.gmra.mxu0 %v5055
  %v5149 = vpop.f32.mrf.mxu0
  %v5150 = vadd.f32 %v4938, %v5149
  %v5151 = vpop.f32.mrf.mxu0
  %v5152 = vpop.f32.mrf.mxu0
  %v5153 = vadd.f32 %v4941, %v5152
  %v5154 = vpop.f32.mrf.mxu0
  %5155 = vmatprep.mubr.bf16.mxu0 0
  %5156 = vmatmul.mubr.bf16.gmra.mxu0 %v5058
  %v5157 = vpop.f32.mrf.mxu0
  %v5158 = vadd.f32 %v4946, %v5157
  %v5159 = vpop.f32.mrf.mxu0
  %v5160 = vpop.f32.mrf.mxu0
  %v5161 = vadd.f32 %v4949, %v5160
  %v5162 = vpop.f32.mrf.mxu0
  %5163 = vmatprep.mubr.bf16.mxu0 0
  %5164 = vmatmul.mubr.bf16.gmra.mxu0 %v5061
  %v5165 = vpop.f32.mrf.mxu0
  %v5166 = vadd.f32 %v4954, %v5165
  %v5167 = vpop.f32.mrf.mxu0
  %v5168 = vpop.f32.mrf.mxu0
  %v5169 = vadd.f32 %v4957, %v5168
  %v5170 = vpop.f32.mrf.mxu0
  %5171 = vmatprep.mubr.bf16.mxu0 0
  %5172 = vmatmul.mubr.bf16.gmra.mxu0 %v5064
  %v5173 = vpop.f32.mrf.mxu0
  %v5174 = vadd.f32 %v4962, %v5173
  %v5175 = vpop.f32.mrf.mxu0
  %v5176 = vpop.f32.mrf.mxu0
  %v5177 = vadd.f32 %v4965, %v5176
  %v5178 = vpop.f32.mrf.mxu0
  %5179 = vmatprep.mubr.bf16.mxu0 0
  %5180 = vmatmul.mubr.bf16.gmra.mxu0 %v5067
  %v5181 = vpop.f32.mrf.mxu0
  %v5182 = vadd.f32 %v4970, %v5181
  %v5183 = vpop.f32.mrf.mxu0
  %v5184 = vpop.f32.mrf.mxu0
  %v5185 = vadd.f32 %v4973, %v5184
  %v5186 = vpop.f32.mrf.mxu0
  %5187 = vmatprep.mubr.bf16.mxu0 0
  %5188 = vmatmul.mubr.bf16.gmra.mxu0 %v5070
  %v5189 = vpop.f32.mrf.mxu0
  %v5190 = vadd.f32 %v4978, %v5189
  %v5191 = vpop.f32.mrf.mxu0
  %v5192 = vpop.f32.mrf.mxu0
  %v5193 = vadd.f32 %v4981, %v5192
  %v5194 = vpop.f32.mrf.mxu0
  %5195 = vmatprep.mubr.bf16.mxu0 0
  %5196 = vmatmul.mubr.bf16.gmra.mxu0 %v5073
  %v5197 = vpop.f32.mrf.mxu0
  %v5198 = vadd.f32 %v4986, %v5197
  %v5199 = vpop.f32.mrf.mxu0
  %v5200 = vpop.f32.mrf.mxu0
  %v5201 = vadd.f32 %v4989, %v5200
  %v5202 = vpop.f32.mrf.mxu0
  %5203 = vmatprep.mubr.bf16.mxu0 0
  %5204 = vmatmul.mubr.bf16.gmra.mxu0 %v5076
  %v5205 = vpop.f32.mrf.mxu0
  %v5206 = vadd.f32 %v4994, %v5205
  %v5207 = vpop.f32.mrf.mxu0
  %v5208 = vpop.f32.mrf.mxu0
  %v5209 = vadd.f32 %v4997, %v5208
  %v5210 = vpop.f32.mrf.mxu0
  %5211 = vmatprep.mubr.bf16.mxu0 0
  %5212 = vmatmul.mubr.bf16.gmra.mxu0 %v5079
  %v5213 = vpop.f32.mrf.mxu0
  %v5214 = vadd.f32 %v5002, %v5213
  %v5215 = vpop.f32.mrf.mxu0
  %v5216 = vpop.f32.mrf.mxu0
  %v5217 = vadd.f32 %v5005, %v5216
  %v5218 = vpop.f32.mrf.mxu0
  %5219 = vmatprep.mubr.bf16.mxu0 0
  %5220 = vmatmul.mubr.bf16.gmra.mxu0 %v5082
  %v5221 = vpop.f32.mrf.mxu0
  %v5222 = vadd.f32 %v5010, %v5221
  %v5223 = vpop.f32.mrf.mxu0
  %v5224 = vpop.f32.mrf.mxu0
  %v5225 = vadd.f32 %v5013, %v5224
  %v5226 = vpop.f32.mrf.mxu0
  %5227 = vmatprep.mubr.bf16.mxu0 0
  %5228 = vmatmul.mubr.bf16.gmra.mxu0 %v5085
  %v5229 = vpop.f32.mrf.mxu0
  %v5230 = vadd.f32 %v5018, %v5229
  %v5231 = vpop.f32.mrf.mxu0
  %v5232 = vpop.f32.mrf.mxu0
  %v5233 = vadd.f32 %v5021, %v5232
  %v5234 = vpop.f32.mrf.mxu0
  %5235 = vmatprep.mubr.bf16.mxu0 0
  %5236 = vmatmul.mubr.bf16.gmra.mxu0 %v5088
  %v5237 = vpop.f32.mrf.mxu0
  %v5238 = vadd.f32 %v5026, %v5237
  %v5239 = vpop.f32.mrf.mxu0
  %v5240 = vpop.f32.mrf.mxu0
  %v5241 = vadd.f32 %v5029, %v5240
  %v5242 = vpop.f32.mrf.mxu0
  %5243 = vmatprep.mubr.bf16.mxu0 0
  %5244 = vmatmul.mubr.bf16.gmra.mxu0 %v5091
  %v5245 = vpop.f32.mrf.mxu0
  %v5246 = vadd.f32 %v5034, %v5245
  %v5247 = vpop.f32.mrf.mxu0
  %v5248 = vpop.f32.mrf.mxu0
  %v5249 = vadd.f32 %v5037, %v5248
  %v5250 = vpop.f32.mrf.mxu0
  %5251 = vmatprep.mubr.bf16.mxu0 0
  %5252 = vmatmul.mubr.bf16.gmra.mxu0 %v5094
  %v5253 = vpop.f32.mrf.mxu0
  %v5254 = vadd.f32 %v5042, %v5253
  %v5255 = vpop.f32.mrf.mxu0
  %v5256 = vpop.f32.mrf.mxu0
  %v5257 = vadd.f32 %v5045, %v5256
  %v5258 = vpop.f32.mrf.mxu0
  %5259 = vdwg.mxu0
  %v5260 = vld [vmem:[#allocation2 + $0x2] sm:$0xff]
  %v5261 = vld [vmem:[#allocation2 + $0xa] sm:$0xff]
  %v5262 = vld [vmem:[#allocation2 + $0x12] sm:$0xff]
  %v5263 = vld [vmem:[#allocation2 + $0x1a] sm:$0xff]
  %v5264 = vld [vmem:[#allocation2 + $0x22] sm:$0xff]
  %v5265 = vld [vmem:[#allocation2 + $0x2a] sm:$0xff]
  %v5266 = vld [vmem:[#allocation2 + $0x32] sm:$0xff]
  %v5267 = vld [vmem:[#allocation2 + $0x3a] sm:$0xff]
  %v5268 = vld [vmem:[#allocation2 + $0x42] sm:$0xff]
  %v5269 = vld [vmem:[#allocation2 + $0x4a] sm:$0xff]
  %v5270 = vld [vmem:[#allocation2 + $0x52] sm:$0xff]
  %v5271 = vld [vmem:[#allocation2 + $0x5a] sm:$0xff]
  %v5272 = vld [vmem:[#allocation2 + $0x62] sm:$0xff]
  %v5273 = vld [vmem:[#allocation2 + $0x6a] sm:$0xff]
  %v5274 = vld [vmem:[#allocation2 + $0x72] sm:$0xff]
  %v5275 = vld [vmem:[#allocation2 + $0x7a] sm:$0xff]
  %v5276 = vld [vmem:[#allocation2 + $0x82] sm:$0xff]
  %v5277 = vld [vmem:[#allocation2 + $0x8a] sm:$0xff]
  %v5278 = vld [vmem:[#allocation2 + $0x92] sm:$0xff]
  %v5279 = vld [vmem:[#allocation2 + $0x9a] sm:$0xff]
  %v5280 = vld [vmem:[#allocation2 + $0xa2] sm:$0xff]
  %v5281 = vld [vmem:[#allocation2 + $0xaa] sm:$0xff]
  %v5282 = vld [vmem:[#allocation2 + $0xb2] sm:$0xff]
  %v5283 = vld [vmem:[#allocation2 + $0xba] sm:$0xff]
  %v5284 = vld [vmem:[#allocation2 + $0xc2] sm:$0xff]
  %v5285 = vld [vmem:[#allocation2 + $0xca] sm:$0xff]
  %v5286 = vld [vmem:[#allocation2 + $0xd2] sm:$0xff]
  %v5287 = vld [vmem:[#allocation2 + $0xda] sm:$0xff]
  %v5288 = vld [vmem:[#allocation2 + $0xe2] sm:$0xff]
  %v5289 = vld [vmem:[#allocation2 + $0xea] sm:$0xff]
  %v5290 = vld [vmem:[#allocation2 + $0xf2] sm:$0xff]
  %v5291 = vld [vmem:[#allocation2 + $0xfa] sm:$0xff]
  %v5292 = vmul.f32 %v5260, %v1317
  %v5293 = vmul.f32 %v5261, %v1318
  %v5294 = vmul.f32 %v5262, %v1319
  %v5295 = vmul.f32 %v5263, %v1320
  %v5296 = vmul.f32 %v5264, %v1321
  %v5297 = vmul.f32 %v5265, %v1322
  %v5298 = vmul.f32 %v5266, %v1323
  %v5299 = vmul.f32 %v5267, %v1324
  %v5300 = vmul.f32 %v5268, %v1325
  %v5301 = vmul.f32 %v5269, %v1326
  %v5302 = vmul.f32 %v5270, %v1327
  %v5303 = vmul.f32 %v5271, %v1328
  %v5304 = vmul.f32 %v5272, %v1329
  %v5305 = vmul.f32 %v5273, %v1330
  %v5306 = vmul.f32 %v5274, %v1331
  %v5307 = vmul.f32 %v5275, %v1332
  %v5308 = vmul.f32 %v5276, %v1333
  %v5309 = vmul.f32 %v5277, %v1334
  %v5310 = vmul.f32 %v5278, %v1335
  %v5311 = vmul.f32 %v5279, %v1336
  %v5312 = vmul.f32 %v5280, %v1337
  %v5313 = vmul.f32 %v5281, %v1338
  %v5314 = vmul.f32 %v5282, %v1339
  %v5315 = vmul.f32 %v5283, %v1340
  %v5316 = vmul.f32 %v5284, %v1341
  %v5317 = vmul.f32 %v5285, %v1342
  %v5318 = vmul.f32 %v5286, %v1343
  %v5319 = vmul.f32 %v5287, %v1344
  %v5320 = vmul.f32 %v5288, %v1345
  %v5321 = vmul.f32 %v5289, %v1346
  %v5322 = vmul.f32 %v5290, %v1347
  %v5323 = vmul.f32 %v5291, %v1348
  %v5324 = vpack.c.bf16 %v5293, %v5292
  %v5325 = vpack.c.bf16 %v5295, %v5294
  %v5326 = vpack.c.bf16 %v5297, %v5296
  %v5327 = vpack.c.bf16 %v5299, %v5298
  %v5328 = vpack.c.bf16 %v5301, %v5300
  %v5329 = vpack.c.bf16 %v5303, %v5302
  %v5330 = vpack.c.bf16 %v5305, %v5304
  %v5331 = vpack.c.bf16 %v5307, %v5306
  %v5332 = vpack.c.bf16 %v5309, %v5308
  %v5333 = vpack.c.bf16 %v5311, %v5310
  %v5334 = vpack.c.bf16 %v5313, %v5312
  %v5335 = vpack.c.bf16 %v5315, %v5314
  %v5336 = vpack.c.bf16 %v5317, %v5316
  %v5337 = vpack.c.bf16 %v5319, %v5318
  %v5338 = vpack.c.bf16 %v5321, %v5320
  %v5339 = vpack.c.bf16 %v5323, %v5322
  %v5340 = vld [vmem:[%s4 + $0x8] sm:$0xf]
  %v5342 = vsel %vm1349, %v5324, 0
  %v5345 = vsel %vm1349, %v5325, 0
  %v5348 = vsel %vm1349, %v5326, 0
  %v5351 = vsel %vm1349, %v5327, 0
  %v5354 = vsel %vm1349, %v5328, 0
  %v5357 = vsel %vm1349, %v5329, 0
  %v5360 = vsel %vm1349, %v5330, 0
  %v5363 = vsel %vm1349, %v5331, 0
  %v5366 = vsel %vm1349, %v5332, 0
  %v5369 = vsel %vm1349, %v5333, 0
  %v5372 = vsel %vm1349, %v5334, 0
  %v5375 = vsel %vm1349, %v5335, 0
  %v5378 = vsel %vm1349, %v5336, 0
  %v5381 = vsel %vm1349, %v5337, 0
  %v5384 = vsel %vm1349, %v5338, 0
  %v5387 = vsel %vm1349, %v5339, 0
  %v5390 = vsel %vm1567, %v5340, 0
  %5392 = vmatprep.subr.bf16.mxu0 0
  %5393 = vmatpush1.bf16.msra.mxu0 0
  %5394 = vmatprep.subr.bf16.mxu0 0
  %5395 = vmatpush1.bf16.msra.mxu0 0
  %5396 = vmatprep.subr.bf16.mxu0 0
  %5397 = vmatpush1.bf16.msra.mxu0 0
  %5398 = vmatprep.subr.bf16.mxu0 0
  %5399 = vmatpush1.bf16.msra.mxu0 0
  %5400 = vmatprep.subr.bf16.mxu0 0
  %5401 = vmatpush1.bf16.msra.mxu0 0
  %5402 = vmatprep.subr.bf16.mxu0 0
  %5403 = vmatpush1.bf16.msra.mxu0 0
  %5404 = vmatprep.subr.bf16.mxu0 0
  %5405 = vmatpush1.bf16.msra.mxu0 0
  %5406 = vmatprep.subr.bf16.mxu0 0
  %5407 = vmatpush1.bf16.msra.mxu0 %v5390
  %5408 = vmatprep.subr.bf16.mxu0 0
  %5409 = vmatpush2.bf16.msra.mxu0 0
  %5410 = vmatprep.subr.bf16.mxu0 0
  %5411 = vmatpush2.bf16.msra.mxu0 0
  %5412 = vmatprep.subr.bf16.mxu0 0
  %5413 = vmatpush2.bf16.msra.mxu0 0
  %5414 = vmatprep.subr.bf16.mxu0 0
  %5415 = vmatpush2.bf16.msra.mxu0 0
  %5416 = vmatprep.subr.bf16.mxu0 0
  %5417 = vmatpush2.bf16.msra.mxu0 0
  %5418 = vmatprep.subr.bf16.mxu0 0
  %5419 = vmatpush2.bf16.msra.mxu0 0
  %5420 = vmatprep.subr.bf16.mxu0 0
  %5421 = vmatpush2.bf16.msra.mxu0 0
  %5422 = vmatprep.subr.bf16.mxu0 0
  %5423 = vmatpush2.bf16.msra.mxu0 0
  %5424 = vmatprep.mubr.bf16.mxu0 0
  %5425 = vmatmul.mubr.bf16.gmra.mxu0 %v5342
  %v5426 = vpop.f32.mrf.mxu0
  %v5427 = vadd.f32 0.0, %v5426
  %v5428 = vpop.f32.mrf.mxu0
  %v5429 = vpop.f32.mrf.mxu0
  %v5430 = vadd.f32 0.0, %v5429
  %v5431 = vpop.f32.mrf.mxu0
  %5432 = vmatprep.mubr.bf16.mxu0 0
  %5433 = vmatmul.mubr.bf16.gmra.mxu0 %v5345
  %v5434 = vpop.f32.mrf.mxu0
  %v5435 = vadd.f32 0.0, %v5434
  %v5436 = vpop.f32.mrf.mxu0
  %v5437 = vpop.f32.mrf.mxu0
  %v5438 = vadd.f32 0.0, %v5437
  %v5439 = vpop.f32.mrf.mxu0
  %5440 = vmatprep.mubr.bf16.mxu0 0
  %5441 = vmatmul.mubr.bf16.gmra.mxu0 %v5348
  %v5442 = vpop.f32.mrf.mxu0
  %v5443 = vadd.f32 0.0, %v5442
  %v5444 = vpop.f32.mrf.mxu0
  %v5445 = vpop.f32.mrf.mxu0
  %v5446 = vadd.f32 0.0, %v5445
  %v5447 = vpop.f32.mrf.mxu0
  %5448 = vmatprep.mubr.bf16.mxu0 0
  %5449 = vmatmul.mubr.bf16.gmra.mxu0 %v5351
  %v5450 = vpop.f32.mrf.mxu0
  %v5451 = vadd.f32 0.0, %v5450
  %v5452 = vpop.f32.mrf.mxu0
  %v5453 = vpop.f32.mrf.mxu0
  %v5454 = vadd.f32 0.0, %v5453
  %v5455 = vpop.f32.mrf.mxu0
  %5456 = vmatprep.mubr.bf16.mxu0 0
  %5457 = vmatmul.mubr.bf16.gmra.mxu0 %v5354
  %v5458 = vpop.f32.mrf.mxu0
  %v5459 = vadd.f32 0.0, %v5458
  %v5460 = vpop.f32.mrf.mxu0
  %v5461 = vpop.f32.mrf.mxu0
  %v5462 = vadd.f32 0.0, %v5461
  %v5463 = vpop.f32.mrf.mxu0
  %5464 = vmatprep.mubr.bf16.mxu0 0
  %5465 = vmatmul.mubr.bf16.gmra.mxu0 %v5357
  %v5466 = vpop.f32.mrf.mxu0
  %v5467 = vadd.f32 0.0, %v5466
  %v5468 = vpop.f32.mrf.mxu0
  %v5469 = vpop.f32.mrf.mxu0
  %v5470 = vadd.f32 0.0, %v5469
  %v5471 = vpop.f32.mrf.mxu0
  %5472 = vmatprep.mubr.bf16.mxu0 0
  %5473 = vmatmul.mubr.bf16.gmra.mxu0 %v5360
  %v5474 = vpop.f32.mrf.mxu0
  %v5475 = vadd.f32 0.0, %v5474
  %v5476 = vpop.f32.mrf.mxu0
  %v5477 = vpop.f32.mrf.mxu0
  %v5478 = vadd.f32 0.0, %v5477
  %v5479 = vpop.f32.mrf.mxu0
  %5480 = vmatprep.mubr.bf16.mxu0 0
  %5481 = vmatmul.mubr.bf16.gmra.mxu0 %v5363
  %v5482 = vpop.f32.mrf.mxu0
  %v5483 = vadd.f32 0.0, %v5482
  %v5484 = vpop.f32.mrf.mxu0
  %v5485 = vpop.f32.mrf.mxu0
  %v5486 = vadd.f32 0.0, %v5485
  %v5487 = vpop.f32.mrf.mxu0
  %5488 = vmatprep.mubr.bf16.mxu0 0
  %5489 = vmatmul.mubr.bf16.gmra.mxu0 %v5366
  %v5490 = vpop.f32.mrf.mxu0
  %v5491 = vadd.f32 0.0, %v5490
  %v5492 = vpop.f32.mrf.mxu0
  %v5493 = vpop.f32.mrf.mxu0
  %v5494 = vadd.f32 0.0, %v5493
  %v5495 = vpop.f32.mrf.mxu0
  %5496 = vmatprep.mubr.bf16.mxu0 0
  %5497 = vmatmul.mubr.bf16.gmra.mxu0 %v5369
  %v5498 = vpop.f32.mrf.mxu0
  %v5499 = vadd.f32 0.0, %v5498
  %v5500 = vpop.f32.mrf.mxu0
  %v5501 = vpop.f32.mrf.mxu0
  %v5502 = vadd.f32 0.0, %v5501
  %v5503 = vpop.f32.mrf.mxu0
  %5504 = vmatprep.mubr.bf16.mxu0 0
  %5505 = vmatmul.mubr.bf16.gmra.mxu0 %v5372
  %v5506 = vpop.f32.mrf.mxu0
  %v5507 = vadd.f32 0.0, %v5506
  %v5508 = vpop.f32.mrf.mxu0
  %v5509 = vpop.f32.mrf.mxu0
  %v5510 = vadd.f32 0.0, %v5509
  %v5511 = vpop.f32.mrf.mxu0
  %5512 = vmatprep.mubr.bf16.mxu0 0
  %5513 = vmatmul.mubr.bf16.gmra.mxu0 %v5375
  %v5514 = vpop.f32.mrf.mxu0
  %v5515 = vadd.f32 0.0, %v5514
  %v5516 = vpop.f32.mrf.mxu0
  %v5517 = vpop.f32.mrf.mxu0
  %v5518 = vadd.f32 0.0, %v5517
  %v5519 = vpop.f32.mrf.mxu0
  %5520 = vmatprep.mubr.bf16.mxu0 0
  %5521 = vmatmul.mubr.bf16.gmra.mxu0 %v5378
  %v5522 = vpop.f32.mrf.mxu0
  %v5523 = vadd.f32 0.0, %v5522
  %v5524 = vpop.f32.mrf.mxu0
  %v5525 = vpop.f32.mrf.mxu0
  %v5526 = vadd.f32 0.0, %v5525
  %v5527 = vpop.f32.mrf.mxu0
  %5528 = vmatprep.mubr.bf16.mxu0 0
  %5529 = vmatmul.mubr.bf16.gmra.mxu0 %v5381
  %v5530 = vpop.f32.mrf.mxu0
  %v5531 = vadd.f32 0.0, %v5530
  %v5532 = vpop.f32.mrf.mxu0
  %v5533 = vpop.f32.mrf.mxu0
  %v5534 = vadd.f32 0.0, %v5533
  %v5535 = vpop.f32.mrf.mxu0
  %5536 = vmatprep.mubr.bf16.mxu0 0
  %5537 = vmatmul.mubr.bf16.gmra.mxu0 %v5384
  %v5538 = vpop.f32.mrf.mxu0
  %v5539 = vadd.f32 0.0, %v5538
  %v5540 = vpop.f32.mrf.mxu0
  %v5541 = vpop.f32.mrf.mxu0
  %v5542 = vadd.f32 0.0, %v5541
  %v5543 = vpop.f32.mrf.mxu0
  %5544 = vmatprep.mubr.bf16.mxu0 0
  %5545 = vmatmul.mubr.bf16.gmra.mxu0 %v5387
  %v5546 = vpop.f32.mrf.mxu0
  %v5547 = vadd.f32 0.0, %v5546
  %v5548 = vpop.f32.mrf.mxu0
  %v5549 = vpop.f32.mrf.mxu0
  %v5550 = vadd.f32 0.0, %v5549
  %v5551 = vpop.f32.mrf.mxu0
  %5552 = vdwg.mxu0
  %v5553 = vadd.f32 %v5134, %v5427
  %v5554 = vadd.f32 %v5137, %v5430
  %v5555 = vadd.f32 %v5142, %v5435
  %v5556 = vadd.f32 %v5145, %v5438
  %v5557 = vadd.f32 %v5150, %v5443
  %v5558 = vadd.f32 %v5153, %v5446
  %v5559 = vadd.f32 %v5158, %v5451
  %v5560 = vadd.f32 %v5161, %v5454
  %v5561 = vadd.f32 %v5166, %v5459
  %v5562 = vadd.f32 %v5169, %v5462
  %v5563 = vadd.f32 %v5174, %v5467
  %v5564 = vadd.f32 %v5177, %v5470
  %v5565 = vadd.f32 %v5182, %v5475
  %v5566 = vadd.f32 %v5185, %v5478
  %v5567 = vadd.f32 %v5190, %v5483
  %v5568 = vadd.f32 %v5193, %v5486
  %v5569 = vadd.f32 %v5198, %v5491
  %v5570 = vadd.f32 %v5201, %v5494
  %v5571 = vadd.f32 %v5206, %v5499
  %v5572 = vadd.f32 %v5209, %v5502
  %v5573 = vadd.f32 %v5214, %v5507
  %v5574 = vadd.f32 %v5217, %v5510
  %v5575 = vadd.f32 %v5222, %v5515
  %v5576 = vadd.f32 %v5225, %v5518
  %v5577 = vadd.f32 %v5230, %v5523
  %v5578 = vadd.f32 %v5233, %v5526
  %v5579 = vadd.f32 %v5238, %v5531
  %v5580 = vadd.f32 %v5241, %v5534
  %v5581 = vadd.f32 %v5246, %v5539
  %v5582 = vadd.f32 %v5249, %v5542
  %v5583 = vadd.f32 %v5254, %v5547
  %v5584 = vadd.f32 %v5257, %v5550
  %v5585 = vld [vmem:[#allocation2 + $0x10] sm:$0xff]
  %v5586 = vld [vmem:[#allocation2 + $0x18] sm:$0xff]
  %v5587 = vld [vmem:[#allocation2 + $0x20] sm:$0xff]
  %v5588 = vld [vmem:[#allocation2 + $0x28] sm:$0xff]
  %v5589 = vld [vmem:[#allocation2 + $0x30] sm:$0xff]
  %v5590 = vld [vmem:[#allocation2 + $0x38] sm:$0xff]
  %v5591 = vld [vmem:[#allocation2 + $0x40] sm:$0xff]
  %v5592 = vld [vmem:[#allocation2 + $0x48] sm:$0xff]
  %v5593 = vld [vmem:[#allocation2 + $0x50] sm:$0xff]
  %v5594 = vld [vmem:[#allocation2 + $0x58] sm:$0xff]
  %v5595 = vld [vmem:[#allocation2 + $0x60] sm:$0xff]
  %v5596 = vld [vmem:[#allocation2 + $0x68] sm:$0xff]
  %v5597 = vld [vmem:[#allocation2 + $0x70] sm:$0xff]
  %v5598 = vld [vmem:[#allocation2 + $0x78] sm:$0xff]
  %v5599 = vld [vmem:[#allocation2 + $0x80] sm:$0xff]
  %v5600 = vld [vmem:[#allocation2 + $0x88] sm:$0xff]
  %v5601 = vld [vmem:[#allocation2 + $0x90] sm:$0xff]
  %v5602 = vld [vmem:[#allocation2 + $0x98] sm:$0xff]
  %v5603 = vld [vmem:[#allocation2 + $0xa0] sm:$0xff]
  %v5604 = vld [vmem:[#allocation2 + $0xa8] sm:$0xff]
  %v5605 = vld [vmem:[#allocation2 + $0xb0] sm:$0xff]
  %v5606 = vld [vmem:[#allocation2 + $0xb8] sm:$0xff]
  %v5607 = vld [vmem:[#allocation2 + $0xc0] sm:$0xff]
  %v5608 = vld [vmem:[#allocation2 + $0xc8] sm:$0xff]
  %v5609 = vld [vmem:[#allocation2 + $0xd0] sm:$0xff]
  %v5610 = vld [vmem:[#allocation2 + $0xd8] sm:$0xff]
  %v5611 = vld [vmem:[#allocation2 + $0xe0] sm:$0xff]
  %v5612 = vld [vmem:[#allocation2 + $0xe8] sm:$0xff]
  %v5613 = vld [vmem:[#allocation2 + $0xf0] sm:$0xff]
  %v5614 = vld [vmem:[#allocation2 + $0xf8] sm:$0xff]
  %v5615 = vld [vmem:[#allocation2 + $0x100] sm:$0xff]
  %v5616 = vld [vmem:[#allocation2 + $0x108] sm:$0xff]
  %v5617 = vmul.f32 %v5585, %v1221
  %v5618 = vmul.f32 %v5586, %v1222
  %v5619 = vmul.f32 %v5587, %v1223
  %v5620 = vmul.f32 %v5588, %v1224
  %v5621 = vmul.f32 %v5589, %v1225
  %v5622 = vmul.f32 %v5590, %v1226
  %v5623 = vmul.f32 %v5591, %v1227
  %v5624 = vmul.f32 %v5592, %v1228
  %v5625 = vmul.f32 %v5593, %v1229
  %v5626 = vmul.f32 %v5594, %v1230
  %v5627 = vmul.f32 %v5595, %v1231
  %v5628 = vmul.f32 %v5596, %v1232
  %v5629 = vmul.f32 %v5597, %v1233
  %v5630 = vmul.f32 %v5598, %v1234
  %v5631 = vmul.f32 %v5599, %v1235
  %v5632 = vmul.f32 %v5600, %v1236
  %v5633 = vmul.f32 %v5601, %v1237
  %v5634 = vmul.f32 %v5602, %v1238
  %v5635 = vmul.f32 %v5603, %v1239
  %v5636 = vmul.f32 %v5604, %v1240
  %v5637 = vmul.f32 %v5605, %v1241
  %v5638 = vmul.f32 %v5606, %v1242
  %v5639 = vmul.f32 %v5607, %v1243
  %v5640 = vmul.f32 %v5608, %v1244
  %v5641 = vmul.f32 %v5609, %v1245
  %v5642 = vmul.f32 %v5610, %v1246
  %v5643 = vmul.f32 %v5611, %v1247
  %v5644 = vmul.f32 %v5612, %v1248
  %v5645 = vmul.f32 %v5613, %v1249
  %v5646 = vmul.f32 %v5614, %v1250
  %v5647 = vmul.f32 %v5615, %v1251
  %v5648 = vmul.f32 %v5616, %v1252
  %v5649 = vpack.c.bf16 %v5618, %v5617
  %v5650 = vpack.c.bf16 %v5620, %v5619
  %v5651 = vpack.c.bf16 %v5622, %v5621
  %v5652 = vpack.c.bf16 %v5624, %v5623
  %v5653 = vpack.c.bf16 %v5626, %v5625
  %v5654 = vpack.c.bf16 %v5628, %v5627
  %v5655 = vpack.c.bf16 %v5630, %v5629
  %v5656 = vpack.c.bf16 %v5632, %v5631
  %v5657 = vpack.c.bf16 %v5634, %v5633
  %v5658 = vpack.c.bf16 %v5636, %v5635
  %v5659 = vpack.c.bf16 %v5638, %v5637
  %v5660 = vpack.c.bf16 %v5640, %v5639
  %v5661 = vpack.c.bf16 %v5642, %v5641
  %v5662 = vpack.c.bf16 %v5644, %v5643
  %v5663 = vpack.c.bf16 %v5646, %v5645
  %v5664 = vpack.c.bf16 %v5648, %v5647
  %v5665 = vld [vmem:[%s4 + $0xc] sm:$0xf]
  %v5667 = vsel %vm1349, %v5649, 0
  %v5670 = vsel %vm1349, %v5650, 0
  %v5673 = vsel %vm1349, %v5651, 0
  %v5676 = vsel %vm1349, %v5652, 0
  %v5679 = vsel %vm1349, %v5653, 0
  %v5682 = vsel %vm1349, %v5654, 0
  %v5685 = vsel %vm1349, %v5655, 0
  %v5688 = vsel %vm1349, %v5656, 0
  %v5691 = vsel %vm1349, %v5657, 0
  %v5694 = vsel %vm1349, %v5658, 0
  %v5697 = vsel %vm1349, %v5659, 0
  %v5700 = vsel %vm1349, %v5660, 0
  %v5703 = vsel %vm1349, %v5661, 0
  %v5706 = vsel %vm1349, %v5662, 0
  %v5709 = vsel %vm1349, %v5663, 0
  %v5712 = vsel %vm1349, %v5664, 0
  %v5715 = vsel %vm1567, %v5665, 0
  %5717 = vmatprep.subr.bf16.mxu0 0
  %5718 = vmatpush1.bf16.msra.mxu0 0
  %5719 = vmatprep.subr.bf16.mxu0 0
  %5720 = vmatpush1.bf16.msra.mxu0 0
  %5721 = vmatprep.subr.bf16.mxu0 0
  %5722 = vmatpush1.bf16.msra.mxu0 0
  %5723 = vmatprep.subr.bf16.mxu0 0
  %5724 = vmatpush1.bf16.msra.mxu0 0
  %5725 = vmatprep.subr.bf16.mxu0 0
  %5726 = vmatpush1.bf16.msra.mxu0 0
  %5727 = vmatprep.subr.bf16.mxu0 0
  %5728 = vmatpush1.bf16.msra.mxu0 0
  %5729 = vmatprep.subr.bf16.mxu0 0
  %5730 = vmatpush1.bf16.msra.mxu0 0
  %5731 = vmatprep.subr.bf16.mxu0 0
  %5732 = vmatpush1.bf16.msra.mxu0 %v5715
  %5733 = vmatprep.subr.bf16.mxu0 0
  %5734 = vmatpush2.bf16.msra.mxu0 0
  %5735 = vmatprep.subr.bf16.mxu0 0
  %5736 = vmatpush2.bf16.msra.mxu0 0
  %5737 = vmatprep.subr.bf16.mxu0 0
  %5738 = vmatpush2.bf16.msra.mxu0 0
  %5739 = vmatprep.subr.bf16.mxu0 0
  %5740 = vmatpush2.bf16.msra.mxu0 0
  %5741 = vmatprep.subr.bf16.mxu0 0
  %5742 = vmatpush2.bf16.msra.mxu0 0
  %5743 = vmatprep.subr.bf16.mxu0 0
  %5744 = vmatpush2.bf16.msra.mxu0 0
  %5745 = vmatprep.subr.bf16.mxu0 0
  %5746 = vmatpush2.bf16.msra.mxu0 0
  %5747 = vmatprep.subr.bf16.mxu0 0
  %5748 = vmatpush2.bf16.msra.mxu0 0
  %5749 = vmatprep.mubr.bf16.mxu0 0
  %5750 = vmatmul.mubr.bf16.gmra.mxu0 %v5667
  %v5751 = vpop.f32.mrf.mxu0
  %v5752 = vadd.f32 0.0, %v5751
  %v5753 = vpop.f32.mrf.mxu0
  %v5754 = vpop.f32.mrf.mxu0
  %v5755 = vadd.f32 0.0, %v5754
  %v5756 = vpop.f32.mrf.mxu0
  %5757 = vmatprep.mubr.bf16.mxu0 0
  %5758 = vmatmul.mubr.bf16.gmra.mxu0 %v5670
  %v5759 = vpop.f32.mrf.mxu0
  %v5760 = vadd.f32 0.0, %v5759
  %v5761 = vpop.f32.mrf.mxu0
  %v5762 = vpop.f32.mrf.mxu0
  %v5763 = vadd.f32 0.0, %v5762
  %v5764 = vpop.f32.mrf.mxu0
  %5765 = vmatprep.mubr.bf16.mxu0 0
  %5766 = vmatmul.mubr.bf16.gmra.mxu0 %v5673
  %v5767 = vpop.f32.mrf.mxu0
  %v5768 = vadd.f32 0.0, %v5767
  %v5769 = vpop.f32.mrf.mxu0
  %v5770 = vpop.f32.mrf.mxu0
  %v5771 = vadd.f32 0.0, %v5770
  %v5772 = vpop.f32.mrf.mxu0
  %5773 = vmatprep.mubr.bf16.mxu0 0
  %5774 = vmatmul.mubr.bf16.gmra.mxu0 %v5676
  %v5775 = vpop.f32.mrf.mxu0
  %v5776 = vadd.f32 0.0, %v5775
  %v5777 = vpop.f32.mrf.mxu0
  %v5778 = vpop.f32.mrf.mxu0
  %v5779 = vadd.f32 0.0, %v5778
  %v5780 = vpop.f32.mrf.mxu0
  %5781 = vmatprep.mubr.bf16.mxu0 0
  %5782 = vmatmul.mubr.bf16.gmra.mxu0 %v5679
  %v5783 = vpop.f32.mrf.mxu0
  %v5784 = vadd.f32 0.0, %v5783
  %v5785 = vpop.f32.mrf.mxu0
  %v5786 = vpop.f32.mrf.mxu0
  %v5787 = vadd.f32 0.0, %v5786
  %v5788 = vpop.f32.mrf.mxu0
  %5789 = vmatprep.mubr.bf16.mxu0 0
  %5790 = vmatmul.mubr.bf16.gmra.mxu0 %v5682
  %v5791 = vpop.f32.mrf.mxu0
  %v5792 = vadd.f32 0.0, %v5791
  %v5793 = vpop.f32.mrf.mxu0
  %v5794 = vpop.f32.mrf.mxu0
  %v5795 = vadd.f32 0.0, %v5794
  %v5796 = vpop.f32.mrf.mxu0
  %5797 = vmatprep.mubr.bf16.mxu0 0
  %5798 = vmatmul.mubr.bf16.gmra.mxu0 %v5685
  %v5799 = vpop.f32.mrf.mxu0
  %v5800 = vadd.f32 0.0, %v5799
  %v5801 = vpop.f32.mrf.mxu0
  %v5802 = vpop.f32.mrf.mxu0
  %v5803 = vadd.f32 0.0, %v5802
  %v5804 = vpop.f32.mrf.mxu0
  %5805 = vmatprep.mubr.bf16.mxu0 0
  %5806 = vmatmul.mubr.bf16.gmra.mxu0 %v5688
  %v5807 = vpop.f32.mrf.mxu0
  %v5808 = vadd.f32 0.0, %v5807
  %v5809 = vpop.f32.mrf.mxu0
  %v5810 = vpop.f32.mrf.mxu0
  %v5811 = vadd.f32 0.0, %v5810
  %v5812 = vpop.f32.mrf.mxu0
  %5813 = vmatprep.mubr.bf16.mxu0 0
  %5814 = vmatmul.mubr.bf16.gmra.mxu0 %v5691
  %v5815 = vpop.f32.mrf.mxu0
  %v5816 = vadd.f32 0.0, %v5815
  %v5817 = vpop.f32.mrf.mxu0
  %v5818 = vpop.f32.mrf.mxu0
  %v5819 = vadd.f32 0.0, %v5818
  %v5820 = vpop.f32.mrf.mxu0
  %5821 = vmatprep.mubr.bf16.mxu0 0
  %5822 = vmatmul.mubr.bf16.gmra.mxu0 %v5694
  %v5823 = vpop.f32.mrf.mxu0
  %v5824 = vadd.f32 0.0, %v5823
  %v5825 = vpop.f32.mrf.mxu0
  %v5826 = vpop.f32.mrf.mxu0
  %v5827 = vadd.f32 0.0, %v5826
  %v5828 = vpop.f32.mrf.mxu0
  %5829 = vmatprep.mubr.bf16.mxu0 0
  %5830 = vmatmul.mubr.bf16.gmra.mxu0 %v5697
  %v5831 = vpop.f32.mrf.mxu0
  %v5832 = vadd.f32 0.0, %v5831
  %v5833 = vpop.f32.mrf.mxu0
  %v5834 = vpop.f32.mrf.mxu0
  %v5835 = vadd.f32 0.0, %v5834
  %v5836 = vpop.f32.mrf.mxu0
  %5837 = vmatprep.mubr.bf16.mxu0 0
  %5838 = vmatmul.mubr.bf16.gmra.mxu0 %v5700
  %v5839 = vpop.f32.mrf.mxu0
  %v5840 = vadd.f32 0.0, %v5839
  %v5841 = vpop.f32.mrf.mxu0
  %v5842 = vpop.f32.mrf.mxu0
  %v5843 = vadd.f32 0.0, %v5842
  %v5844 = vpop.f32.mrf.mxu0
  %5845 = vmatprep.mubr.bf16.mxu0 0
  %5846 = vmatmul.mubr.bf16.gmra.mxu0 %v5703
  %v5847 = vpop.f32.mrf.mxu0
  %v5848 = vadd.f32 0.0, %v5847
  %v5849 = vpop.f32.mrf.mxu0
  %v5850 = vpop.f32.mrf.mxu0
  %v5851 = vadd.f32 0.0, %v5850
  %v5852 = vpop.f32.mrf.mxu0
  %5853 = vmatprep.mubr.bf16.mxu0 0
  %5854 = vmatmul.mubr.bf16.gmra.mxu0 %v5706
  %v5855 = vpop.f32.mrf.mxu0
  %v5856 = vadd.f32 0.0, %v5855
  %v5857 = vpop.f32.mrf.mxu0
  %v5858 = vpop.f32.mrf.mxu0
  %v5859 = vadd.f32 0.0, %v5858
  %v5860 = vpop.f32.mrf.mxu0
  %5861 = vmatprep.mubr.bf16.mxu0 0
  %5862 = vmatmul.mubr.bf16.gmra.mxu0 %v5709
  %v5863 = vpop.f32.mrf.mxu0
  %v5864 = vadd.f32 0.0, %v5863
  %v5865 = vpop.f32.mrf.mxu0
  %v5866 = vpop.f32.mrf.mxu0
  %v5867 = vadd.f32 0.0, %v5866
  %v5868 = vpop.f32.mrf.mxu0
  %5869 = vmatprep.mubr.bf16.mxu0 0
  %5870 = vmatmul.mubr.bf16.gmra.mxu0 %v5712
  %v5871 = vpop.f32.mrf.mxu0
  %v5872 = vadd.f32 0.0, %v5871
  %v5873 = vpop.f32.mrf.mxu0
  %v5874 = vpop.f32.mrf.mxu0
  %v5875 = vadd.f32 0.0, %v5874
  %v5876 = vpop.f32.mrf.mxu0
  %5877 = vdwg.mxu0
  %v5878 = vadd.f32 %v5553, %v5752
  %v5879 = vadd.f32 %v5554, %v5755
  %v5880 = vadd.f32 %v5555, %v5760
  %v5881 = vadd.f32 %v5556, %v5763
  %v5882 = vadd.f32 %v5557, %v5768
  %v5883 = vadd.f32 %v5558, %v5771
  %v5884 = vadd.f32 %v5559, %v5776
  %v5885 = vadd.f32 %v5560, %v5779
  %v5886 = vadd.f32 %v5561, %v5784
  %v5887 = vadd.f32 %v5562, %v5787
  %v5888 = vadd.f32 %v5563, %v5792
  %v5889 = vadd.f32 %v5564, %v5795
  %v5890 = vadd.f32 %v5565, %v5800
  %v5891 = vadd.f32 %v5566, %v5803
  %v5892 = vadd.f32 %v5567, %v5808
  %v5893 = vadd.f32 %v5568, %v5811
  %v5894 = vadd.f32 %v5569, %v5816
  %v5895 = vadd.f32 %v5570, %v5819
  %v5896 = vadd.f32 %v5571, %v5824
  %v5897 = vadd.f32 %v5572, %v5827
  %v5898 = vadd.f32 %v5573, %v5832
  %v5899 = vadd.f32 %v5574, %v5835
  %v5900 = vadd.f32 %v5575, %v5840
  %v5901 = vadd.f32 %v5576, %v5843
  %v5902 = vadd.f32 %v5577, %v5848
  %v5903 = vadd.f32 %v5578, %v5851
  %v5904 = vadd.f32 %v5579, %v5856
  %v5905 = vadd.f32 %v5580, %v5859
  %v5906 = vadd.f32 %v5581, %v5864
  %v5907 = vadd.f32 %v5582, %v5867
  %v5908 = vadd.f32 %v5583, %v5872
  %v5909 = vadd.f32 %v5584, %v5875
  %v5910 = vld [vmem:[#allocation2 + $0x11] sm:$0xff]
  %v5911 = vld [vmem:[#allocation2 + $0x19] sm:$0xff]
  %v5912 = vld [vmem:[#allocation2 + $0x21] sm:$0xff]
  %v5913 = vld [vmem:[#allocation2 + $0x29] sm:$0xff]
  %v5914 = vld [vmem:[#allocation2 + $0x31] sm:$0xff]
  %v5915 = vld [vmem:[#allocation2 + $0x39] sm:$0xff]
  %v5916 = vld [vmem:[#allocation2 + $0x41] sm:$0xff]
  %v5917 = vld [vmem:[#allocation2 + $0x49] sm:$0xff]
  %v5918 = vld [vmem:[#allocation2 + $0x51] sm:$0xff]
  %v5919 = vld [vmem:[#allocation2 + $0x59] sm:$0xff]
  %v5920 = vld [vmem:[#allocation2 + $0x61] sm:$0xff]
  %v5921 = vld [vmem:[#allocation2 + $0x69] sm:$0xff]
  %v5922 = vld [vmem:[#allocation2 + $0x71] sm:$0xff]
  %v5923 = vld [vmem:[#allocation2 + $0x79] sm:$0xff]
  %v5924 = vld [vmem:[#allocation2 + $0x81] sm:$0xff]
  %v5925 = vld [vmem:[#allocation2 + $0x89] sm:$0xff]
  %v5926 = vld [vmem:[#allocation2 + $0x91] sm:$0xff]
  %v5927 = vld [vmem:[#allocation2 + $0x99] sm:$0xff]
  %v5928 = vld [vmem:[#allocation2 + $0xa1] sm:$0xff]
  %v5929 = vld [vmem:[#allocation2 + $0xa9] sm:$0xff]
  %v5930 = vld [vmem:[#allocation2 + $0xb1] sm:$0xff]
  %v5931 = vld [vmem:[#allocation2 + $0xb9] sm:$0xff]
  %v5932 = vld [vmem:[#allocation2 + $0xc1] sm:$0xff]
  %v5933 = vld [vmem:[#allocation2 + $0xc9] sm:$0xff]
  %v5934 = vld [vmem:[#allocation2 + $0xd1] sm:$0xff]
  %v5935 = vld [vmem:[#allocation2 + $0xd9] sm:$0xff]
  %v5936 = vld [vmem:[#allocation2 + $0xe1] sm:$0xff]
  %v5937 = vld [vmem:[#allocation2 + $0xe9] sm:$0xff]
  %v5938 = vld [vmem:[#allocation2 + $0xf1] sm:$0xff]
  %v5939 = vld [vmem:[#allocation2 + $0xf9] sm:$0xff]
  %v5940 = vld [vmem:[#allocation2 + $0x101] sm:$0xff]
  %v5941 = vld [vmem:[#allocation2 + $0x109] sm:$0xff]
  %v5942 = vpack.c.bf16 %v5911, %v5910
  %v5943 = vpack.c.bf16 %v5913, %v5912
  %v5944 = vpack.c.bf16 %v5915, %v5914
  %v5945 = vpack.c.bf16 %v5917, %v5916
  %v5946 = vpack.c.bf16 %v5919, %v5918
  %v5947 = vpack.c.bf16 %v5921, %v5920
  %v5948 = vpack.c.bf16 %v5923, %v5922
  %v5949 = vpack.c.bf16 %v5925, %v5924
  %v5950 = vpack.c.bf16 %v5927, %v5926
  %v5951 = vpack.c.bf16 %v5929, %v5928
  %v5952 = vpack.c.bf16 %v5931, %v5930
  %v5953 = vpack.c.bf16 %v5933, %v5932
  %v5954 = vpack.c.bf16 %v5935, %v5934
  %v5955 = vpack.c.bf16 %v5937, %v5936
  %v5956 = vpack.c.bf16 %v5939, %v5938
  %v5957 = vpack.c.bf16 %v5941, %v5940
  %v5958 = vld [vmem:[%s4 + $0x10] sm:$0xf]
  %v5960 = vsel %vm1349, %v5942, 0
  %v5963 = vsel %vm1349, %v5943, 0
  %v5966 = vsel %vm1349, %v5944, 0
  %v5969 = vsel %vm1349, %v5945, 0
  %v5972 = vsel %vm1349, %v5946, 0
  %v5975 = vsel %vm1349, %v5947, 0
  %v5978 = vsel %vm1349, %v5948, 0
  %v5981 = vsel %vm1349, %v5949, 0
  %v5984 = vsel %vm1349, %v5950, 0
  %v5987 = vsel %vm1349, %v5951, 0
  %v5990 = vsel %vm1349, %v5952, 0
  %v5993 = vsel %vm1349, %v5953, 0
  %v5996 = vsel %vm1349, %v5954, 0
  %v5999 = vsel %vm1349, %v5955, 0
  %v6002 = vsel %vm1349, %v5956, 0
  %v6005 = vsel %vm1349, %v5957, 0
  %v6008 = vsel %vm1567, %v5958, 0
  %6010 = vmatprep.subr.bf16.mxu0 0
  %6011 = vmatpush1.bf16.msra.mxu0 0
  %6012 = vmatprep.subr.bf16.mxu0 0
  %6013 = vmatpush1.bf16.msra.mxu0 0
  %6014 = vmatprep.subr.bf16.mxu0 0
  %6015 = vmatpush1.bf16.msra.mxu0 0
  %6016 = vmatprep.subr.bf16.mxu0 0
  %6017 = vmatpush1.bf16.msra.mxu0 0
  %6018 = vmatprep.subr.bf16.mxu0 0
  %6019 = vmatpush1.bf16.msra.mxu0 0
  %6020 = vmatprep.subr.bf16.mxu0 0
  %6021 = vmatpush1.bf16.msra.mxu0 0
  %6022 = vmatprep.subr.bf16.mxu0 0
  %6023 = vmatpush1.bf16.msra.mxu0 0
  %6024 = vmatprep.subr.bf16.mxu0 0
  %6025 = vmatpush1.bf16.msra.mxu0 %v6008
  %6026 = vmatprep.subr.bf16.mxu0 0
  %6027 = vmatpush2.bf16.msra.mxu0 0
  %6028 = vmatprep.subr.bf16.mxu0 0
  %6029 = vmatpush2.bf16.msra.mxu0 0
  %6030 = vmatprep.subr.bf16.mxu0 0
  %6031 = vmatpush2.bf16.msra.mxu0 0
  %6032 = vmatprep.subr.bf16.mxu0 0
  %6033 = vmatpush2.bf16.msra.mxu0 0
  %6034 = vmatprep.subr.bf16.mxu0 0
  %6035 = vmatpush2.bf16.msra.mxu0 0
  %6036 = vmatprep.subr.bf16.mxu0 0
  %6037 = vmatpush2.bf16.msra.mxu0 0
  %6038 = vmatprep.subr.bf16.mxu0 0
  %6039 = vmatpush2.bf16.msra.mxu0 0
  %6040 = vmatprep.subr.bf16.mxu0 0
  %6041 = vmatpush2.bf16.msra.mxu0 0
  %6042 = vmatprep.mubr.bf16.mxu0 0
  %6043 = vmatmul.mubr.bf16.gmra.mxu0 %v5960
  %v6044 = vpop.f32.mrf.mxu0
  %v6045 = vadd.f32 0.0, %v6044
  %v6046 = vpop.f32.mrf.mxu0
  %v6047 = vpop.f32.mrf.mxu0
  %v6048 = vadd.f32 0.0, %v6047
  %v6049 = vpop.f32.mrf.mxu0
  %6050 = vmatprep.mubr.bf16.mxu0 0
  %6051 = vmatmul.mubr.bf16.gmra.mxu0 %v5963
  %v6052 = vpop.f32.mrf.mxu0
  %v6053 = vadd.f32 0.0, %v6052
  %v6054 = vpop.f32.mrf.mxu0
  %v6055 = vpop.f32.mrf.mxu0
  %v6056 = vadd.f32 0.0, %v6055
  %v6057 = vpop.f32.mrf.mxu0
  %6058 = vmatprep.mubr.bf16.mxu0 0
  %6059 = vmatmul.mubr.bf16.gmra.mxu0 %v5966
  %v6060 = vpop.f32.mrf.mxu0
  %v6061 = vadd.f32 0.0, %v6060
  %v6062 = vpop.f32.mrf.mxu0
  %v6063 = vpop.f32.mrf.mxu0
  %v6064 = vadd.f32 0.0, %v6063
  %v6065 = vpop.f32.mrf.mxu0
  %6066 = vmatprep.mubr.bf16.mxu0 0
  %6067 = vmatmul.mubr.bf16.gmra.mxu0 %v5969
  %v6068 = vpop.f32.mrf.mxu0
  %v6069 = vadd.f32 0.0, %v6068
  %v6070 = vpop.f32.mrf.mxu0
  %v6071 = vpop.f32.mrf.mxu0
  %v6072 = vadd.f32 0.0, %v6071
  %v6073 = vpop.f32.mrf.mxu0
  %6074 = vmatprep.mubr.bf16.mxu0 0
  %6075 = vmatmul.mubr.bf16.gmra.mxu0 %v5972
  %v6076 = vpop.f32.mrf.mxu0
  %v6077 = vadd.f32 0.0, %v6076
  %v6078 = vpop.f32.mrf.mxu0
  %v6079 = vpop.f32.mrf.mxu0
  %v6080 = vadd.f32 0.0, %v6079
  %v6081 = vpop.f32.mrf.mxu0
  %6082 = vmatprep.mubr.bf16.mxu0 0
  %6083 = vmatmul.mubr.bf16.gmra.mxu0 %v5975
  %v6084 = vpop.f32.mrf.mxu0
  %v6085 = vadd.f32 0.0, %v6084
  %v6086 = vpop.f32.mrf.mxu0
  %v6087 = vpop.f32.mrf.mxu0
  %v6088 = vadd.f32 0.0, %v6087
  %v6089 = vpop.f32.mrf.mxu0
  %6090 = vmatprep.mubr.bf16.mxu0 0
  %6091 = vmatmul.mubr.bf16.gmra.mxu0 %v5978
  %v6092 = vpop.f32.mrf.mxu0
  %v6093 = vadd.f32 0.0, %v6092
  %v6094 = vpop.f32.mrf.mxu0
  %v6095 = vpop.f32.mrf.mxu0
  %v6096 = vadd.f32 0.0, %v6095
  %v6097 = vpop.f32.mrf.mxu0
  %6098 = vmatprep.mubr.bf16.mxu0 0
  %6099 = vmatmul.mubr.bf16.gmra.mxu0 %v5981
  %v6100 = vpop.f32.mrf.mxu0
  %v6101 = vadd.f32 0.0, %v6100
  %v6102 = vpop.f32.mrf.mxu0
  %v6103 = vpop.f32.mrf.mxu0
  %v6104 = vadd.f32 0.0, %v6103
  %v6105 = vpop.f32.mrf.mxu0
  %6106 = vmatprep.mubr.bf16.mxu0 0
  %6107 = vmatmul.mubr.bf16.gmra.mxu0 %v5984
  %v6108 = vpop.f32.mrf.mxu0
  %v6109 = vadd.f32 0.0, %v6108
  %v6110 = vpop.f32.mrf.mxu0
  %v6111 = vpop.f32.mrf.mxu0
  %v6112 = vadd.f32 0.0, %v6111
  %v6113 = vpop.f32.mrf.mxu0
  %6114 = vmatprep.mubr.bf16.mxu0 0
  %6115 = vmatmul.mubr.bf16.gmra.mxu0 %v5987
  %v6116 = vpop.f32.mrf.mxu0
  %v6117 = vadd.f32 0.0, %v6116
  %v6118 = vpop.f32.mrf.mxu0
  %v6119 = vpop.f32.mrf.mxu0
  %v6120 = vadd.f32 0.0, %v6119
  %v6121 = vpop.f32.mrf.mxu0
  %6122 = vmatprep.mubr.bf16.mxu0 0
  %6123 = vmatmul.mubr.bf16.gmra.mxu0 %v5990
  %v6124 = vpop.f32.mrf.mxu0
  %v6125 = vadd.f32 0.0, %v6124
  %v6126 = vpop.f32.mrf.mxu0
  %v6127 = vpop.f32.mrf.mxu0
  %v6128 = vadd.f32 0.0, %v6127
  %v6129 = vpop.f32.mrf.mxu0
  %6130 = vmatprep.mubr.bf16.mxu0 0
  %6131 = vmatmul.mubr.bf16.gmra.mxu0 %v5993
  %v6132 = vpop.f32.mrf.mxu0
  %v6133 = vadd.f32 0.0, %v6132
  %v6134 = vpop.f32.mrf.mxu0
  %v6135 = vpop.f32.mrf.mxu0
  %v6136 = vadd.f32 0.0, %v6135
  %v6137 = vpop.f32.mrf.mxu0
  %6138 = vmatprep.mubr.bf16.mxu0 0
  %6139 = vmatmul.mubr.bf16.gmra.mxu0 %v5996
  %v6140 = vpop.f32.mrf.mxu0
  %v6141 = vadd.f32 0.0, %v6140
  %v6142 = vpop.f32.mrf.mxu0
  %v6143 = vpop.f32.mrf.mxu0
  %v6144 = vadd.f32 0.0, %v6143
  %v6145 = vpop.f32.mrf.mxu0
  %6146 = vmatprep.mubr.bf16.mxu0 0
  %6147 = vmatmul.mubr.bf16.gmra.mxu0 %v5999
  %v6148 = vpop.f32.mrf.mxu0
  %v6149 = vadd.f32 0.0, %v6148
  %v6150 = vpop.f32.mrf.mxu0
  %v6151 = vpop.f32.mrf.mxu0
  %v6152 = vadd.f32 0.0, %v6151
  %v6153 = vpop.f32.mrf.mxu0
  %6154 = vmatprep.mubr.bf16.mxu0 0
  %6155 = vmatmul.mubr.bf16.gmra.mxu0 %v6002
  %v6156 = vpop.f32.mrf.mxu0
  %v6157 = vadd.f32 0.0, %v6156
  %v6158 = vpop.f32.mrf.mxu0
  %v6159 = vpop.f32.mrf.mxu0
  %v6160 = vadd.f32 0.0, %v6159
  %v6161 = vpop.f32.mrf.mxu0
  %6162 = vmatprep.mubr.bf16.mxu0 0
  %6163 = vmatmul.mubr.bf16.gmra.mxu0 %v6005
  %v6164 = vpop.f32.mrf.mxu0
  %v6165 = vadd.f32 0.0, %v6164
  %v6166 = vpop.f32.mrf.mxu0
  %v6167 = vpop.f32.mrf.mxu0
  %v6168 = vadd.f32 0.0, %v6167
  %v6169 = vpop.f32.mrf.mxu0
  %6170 = vdwg.mxu0
  %v6171 = vadd.f32 %v5878, %v6045
  %v6172 = vadd.f32 %v5879, %v6048
  %v6173 = vadd.f32 %v5880, %v6053
  %v6174 = vadd.f32 %v5881, %v6056
  %v6175 = vadd.f32 %v5882, %v6061
  %v6176 = vadd.f32 %v5883, %v6064
  %v6177 = vadd.f32 %v5884, %v6069
  %v6178 = vadd.f32 %v5885, %v6072
  %v6179 = vadd.f32 %v5886, %v6077
  %v6180 = vadd.f32 %v5887, %v6080
  %v6181 = vadd.f32 %v5888, %v6085
  %v6182 = vadd.f32 %v5889, %v6088
  %v6183 = vadd.f32 %v5890, %v6093
  %v6184 = vadd.f32 %v5891, %v6096
  %v6185 = vadd.f32 %v5892, %v6101
  %v6186 = vadd.f32 %v5893, %v6104
  %v6187 = vadd.f32 %v5894, %v6109
  %v6188 = vadd.f32 %v5895, %v6112
  %v6189 = vadd.f32 %v5896, %v6117
  %v6190 = vadd.f32 %v5897, %v6120
  %v6191 = vadd.f32 %v5898, %v6125
  %v6192 = vadd.f32 %v5899, %v6128
  %v6193 = vadd.f32 %v5900, %v6133
  %v6194 = vadd.f32 %v5901, %v6136
  %v6195 = vadd.f32 %v5902, %v6141
  %v6196 = vadd.f32 %v5903, %v6144
  %v6197 = vadd.f32 %v5904, %v6149
  %v6198 = vadd.f32 %v5905, %v6152
  %v6199 = vadd.f32 %v5906, %v6157
  %v6200 = vadd.f32 %v5907, %v6160
  %v6201 = vadd.f32 %v5908, %v6165
  %v6202 = vadd.f32 %v5909, %v6168
  %v6203 = vld [vmem:[#allocation2 + $0x12] sm:$0xff]
  %v6204 = vld [vmem:[#allocation2 + $0x1a] sm:$0xff]
  %v6205 = vld [vmem:[#allocation2 + $0x22] sm:$0xff]
  %v6206 = vld [vmem:[#allocation2 + $0x2a] sm:$0xff]
  %v6207 = vld [vmem:[#allocation2 + $0x32] sm:$0xff]
  %v6208 = vld [vmem:[#allocation2 + $0x3a] sm:$0xff]
  %v6209 = vld [vmem:[#allocation2 + $0x42] sm:$0xff]
  %v6210 = vld [vmem:[#allocation2 + $0x4a] sm:$0xff]
  %v6211 = vld [vmem:[#allocation2 + $0x52] sm:$0xff]
  %v6212 = vld [vmem:[#allocation2 + $0x5a] sm:$0xff]
  %v6213 = vld [vmem:[#allocation2 + $0x62] sm:$0xff]
  %v6214 = vld [vmem:[#allocation2 + $0x6a] sm:$0xff]
  %v6215 = vld [vmem:[#allocation2 + $0x72] sm:$0xff]
  %v6216 = vld [vmem:[#allocation2 + $0x7a] sm:$0xff]
  %v6217 = vld [vmem:[#allocation2 + $0x82] sm:$0xff]
  %v6218 = vld [vmem:[#allocation2 + $0x8a] sm:$0xff]
  %v6219 = vld [vmem:[#allocation2 + $0x92] sm:$0xff]
  %v6220 = vld [vmem:[#allocation2 + $0x9a] sm:$0xff]
  %v6221 = vld [vmem:[#allocation2 + $0xa2] sm:$0xff]
  %v6222 = vld [vmem:[#allocation2 + $0xaa] sm:$0xff]
  %v6223 = vld [vmem:[#allocation2 + $0xb2] sm:$0xff]
  %v6224 = vld [vmem:[#allocation2 + $0xba] sm:$0xff]
  %v6225 = vld [vmem:[#allocation2 + $0xc2] sm:$0xff]
  %v6226 = vld [vmem:[#allocation2 + $0xca] sm:$0xff]
  %v6227 = vld [vmem:[#allocation2 + $0xd2] sm:$0xff]
  %v6228 = vld [vmem:[#allocation2 + $0xda] sm:$0xff]
  %v6229 = vld [vmem:[#allocation2 + $0xe2] sm:$0xff]
  %v6230 = vld [vmem:[#allocation2 + $0xea] sm:$0xff]
  %v6231 = vld [vmem:[#allocation2 + $0xf2] sm:$0xff]
  %v6232 = vld [vmem:[#allocation2 + $0xfa] sm:$0xff]
  %v6233 = vld [vmem:[#allocation2 + $0x102] sm:$0xff]
  %v6234 = vld [vmem:[#allocation2 + $0x10a] sm:$0xff]
  %v6235 = vmul.f32 %v6203, %v1317
  %v6236 = vmul.f32 %v6204, %v1318
  %v6237 = vmul.f32 %v6205, %v1319
  %v6238 = vmul.f32 %v6206, %v1320
  %v6239 = vmul.f32 %v6207, %v1321
  %v6240 = vmul.f32 %v6208, %v1322
  %v6241 = vmul.f32 %v6209, %v1323
  %v6242 = vmul.f32 %v6210, %v1324
  %v6243 = vmul.f32 %v6211, %v1325
  %v6244 = vmul.f32 %v6212, %v1326
  %v6245 = vmul.f32 %v6213, %v1327
  %v6246 = vmul.f32 %v6214, %v1328
  %v6247 = vmul.f32 %v6215, %v1329
  %v6248 = vmul.f32 %v6216, %v1330
  %v6249 = vmul.f32 %v6217, %v1331
  %v6250 = vmul.f32 %v6218, %v1332
  %v6251 = vmul.f32 %v6219, %v1333
  %v6252 = vmul.f32 %v6220, %v1334
  %v6253 = vmul.f32 %v6221, %v1335
  %v6254 = vmul.f32 %v6222, %v1336
  %v6255 = vmul.f32 %v6223, %v1337
  %v6256 = vmul.f32 %v6224, %v1338
  %v6257 = vmul.f32 %v6225, %v1339
  %v6258 = vmul.f32 %v6226, %v1340
  %v6259 = vmul.f32 %v6227, %v1341
  %v6260 = vmul.f32 %v6228, %v1342
  %v6261 = vmul.f32 %v6229, %v1343
  %v6262 = vmul.f32 %v6230, %v1344
  %v6263 = vmul.f32 %v6231, %v1345
  %v6264 = vmul.f32 %v6232, %v1346
  %v6265 = vmul.f32 %v6233, %v1347
  %v6266 = vmul.f32 %v6234, %v1348
  %v6267 = vpack.c.bf16 %v6236, %v6235
  %v6268 = vpack.c.bf16 %v6238, %v6237
  %v6269 = vpack.c.bf16 %v6240, %v6239
  %v6270 = vpack.c.bf16 %v6242, %v6241
  %v6271 = vpack.c.bf16 %v6244, %v6243
  %v6272 = vpack.c.bf16 %v6246, %v6245
  %v6273 = vpack.c.bf16 %v6248, %v6247
  %v6274 = vpack.c.bf16 %v6250, %v6249
  %v6275 = vpack.c.bf16 %v6252, %v6251
  %v6276 = vpack.c.bf16 %v6254, %v6253
  %v6277 = vpack.c.bf16 %v6256, %v6255
  %v6278 = vpack.c.bf16 %v6258, %v6257
  %v6279 = vpack.c.bf16 %v6260, %v6259
  %v6280 = vpack.c.bf16 %v6262, %v6261
  %v6281 = vpack.c.bf16 %v6264, %v6263
  %v6282 = vpack.c.bf16 %v6266, %v6265
  %v6283 = vld [vmem:[%s4 + $0x14] sm:$0xf]
  %v6285 = vsel %vm1349, %v6267, 0
  %v6288 = vsel %vm1349, %v6268, 0
  %v6291 = vsel %vm1349, %v6269, 0
  %v6294 = vsel %vm1349, %v6270, 0
  %v6297 = vsel %vm1349, %v6271, 0
  %v6300 = vsel %vm1349, %v6272, 0
  %v6303 = vsel %vm1349, %v6273, 0
  %v6306 = vsel %vm1349, %v6274, 0
  %v6309 = vsel %vm1349, %v6275, 0
  %v6312 = vsel %vm1349, %v6276, 0
  %v6315 = vsel %vm1349, %v6277, 0
  %v6318 = vsel %vm1349, %v6278, 0
  %v6321 = vsel %vm1349, %v6279, 0
  %v6324 = vsel %vm1349, %v6280, 0
  %v6327 = vsel %vm1349, %v6281, 0
  %v6330 = vsel %vm1349, %v6282, 0
  %v6333 = vsel %vm1567, %v6283, 0
  %6335 = vmatprep.subr.bf16.mxu0 0
  %6336 = vmatpush1.bf16.msra.mxu0 0
  %6337 = vmatprep.subr.bf16.mxu0 0
  %6338 = vmatpush1.bf16.msra.mxu0 0
  %6339 = vmatprep.subr.bf16.mxu0 0
  %6340 = vmatpush1.bf16.msra.mxu0 0
  %6341 = vmatprep.subr.bf16.mxu0 0
  %6342 = vmatpush1.bf16.msra.mxu0 0
  %6343 = vmatprep.subr.bf16.mxu0 0
  %6344 = vmatpush1.bf16.msra.mxu0 0
  %6345 = vmatprep.subr.bf16.mxu0 0
  %6346 = vmatpush1.bf16.msra.mxu0 0
  %6347 = vmatprep.subr.bf16.mxu0 0
  %6348 = vmatpush1.bf16.msra.mxu0 0
  %6349 = vmatprep.subr.bf16.mxu0 0
  %6350 = vmatpush1.bf16.msra.mxu0 %v6333
  %6351 = vmatprep.subr.bf16.mxu0 0
  %6352 = vmatpush2.bf16.msra.mxu0 0
  %6353 = vmatprep.subr.bf16.mxu0 0
  %6354 = vmatpush2.bf16.msra.mxu0 0
  %6355 = vmatprep.subr.bf16.mxu0 0
  %6356 = vmatpush2.bf16.msra.mxu0 0
  %6357 = vmatprep.subr.bf16.mxu0 0
  %6358 = vmatpush2.bf16.msra.mxu0 0
  %6359 = vmatprep.subr.bf16.mxu0 0
  %6360 = vmatpush2.bf16.msra.mxu0 0
  %6361 = vmatprep.subr.bf16.mxu0 0
  %6362 = vmatpush2.bf16.msra.mxu0 0
  %6363 = vmatprep.subr.bf16.mxu0 0
  %6364 = vmatpush2.bf16.msra.mxu0 0
  %6365 = vmatprep.subr.bf16.mxu0 0
  %6366 = vmatpush2.bf16.msra.mxu0 0
  %6367 = vmatprep.mubr.bf16.mxu0 0
  %6368 = vmatmul.mubr.bf16.gmra.mxu0 %v6285
  %v6369 = vpop.f32.mrf.mxu0
  %v6370 = vadd.f32 0.0, %v6369
  %v6371 = vpop.f32.mrf.mxu0
  %v6372 = vpop.f32.mrf.mxu0
  %v6373 = vadd.f32 0.0, %v6372
  %v6374 = vpop.f32.mrf.mxu0
  %6375 = vmatprep.mubr.bf16.mxu0 0
  %6376 = vmatmul.mubr.bf16.gmra.mxu0 %v6288
  %v6377 = vpop.f32.mrf.mxu0
  %v6378 = vadd.f32 0.0, %v6377
  %v6379 = vpop.f32.mrf.mxu0
  %v6380 = vpop.f32.mrf.mxu0
  %v6381 = vadd.f32 0.0, %v6380
  %v6382 = vpop.f32.mrf.mxu0
  %6383 = vmatprep.mubr.bf16.mxu0 0
  %6384 = vmatmul.mubr.bf16.gmra.mxu0 %v6291
  %v6385 = vpop.f32.mrf.mxu0
  %v6386 = vadd.f32 0.0, %v6385
  %v6387 = vpop.f32.mrf.mxu0
  %v6388 = vpop.f32.mrf.mxu0
  %v6389 = vadd.f32 0.0, %v6388
  %v6390 = vpop.f32.mrf.mxu0
  %6391 = vmatprep.mubr.bf16.mxu0 0
  %6392 = vmatmul.mubr.bf16.gmra.mxu0 %v6294
  %v6393 = vpop.f32.mrf.mxu0
  %v6394 = vadd.f32 0.0, %v6393
  %v6395 = vpop.f32.mrf.mxu0
  %v6396 = vpop.f32.mrf.mxu0
  %v6397 = vadd.f32 0.0, %v6396
  %v6398 = vpop.f32.mrf.mxu0
  %6399 = vmatprep.mubr.bf16.mxu0 0
  %6400 = vmatmul.mubr.bf16.gmra.mxu0 %v6297
  %v6401 = vpop.f32.mrf.mxu0
  %v6402 = vadd.f32 0.0, %v6401
  %v6403 = vpop.f32.mrf.mxu0
  %v6404 = vpop.f32.mrf.mxu0
  %v6405 = vadd.f32 0.0, %v6404
  %v6406 = vpop.f32.mrf.mxu0
  %6407 = vmatprep.mubr.bf16.mxu0 0
  %6408 = vmatmul.mubr.bf16.gmra.mxu0 %v6300
  %v6409 = vpop.f32.mrf.mxu0
  %v6410 = vadd.f32 0.0, %v6409
  %v6411 = vpop.f32.mrf.mxu0
  %v6412 = vpop.f32.mrf.mxu0
  %v6413 = vadd.f32 0.0, %v6412
  %v6414 = vpop.f32.mrf.mxu0
  %6415 = vmatprep.mubr.bf16.mxu0 0
  %6416 = vmatmul.mubr.bf16.gmra.mxu0 %v6303
  %v6417 = vpop.f32.mrf.mxu0
  %v6418 = vadd.f32 0.0, %v6417
  %v6419 = vpop.f32.mrf.mxu0
  %v6420 = vpop.f32.mrf.mxu0
  %v6421 = vadd.f32 0.0, %v6420
  %v6422 = vpop.f32.mrf.mxu0
  %6423 = vmatprep.mubr.bf16.mxu0 0
  %6424 = vmatmul.mubr.bf16.gmra.mxu0 %v6306
  %v6425 = vpop.f32.mrf.mxu0
  %v6426 = vadd.f32 0.0, %v6425
  %v6427 = vpop.f32.mrf.mxu0
  %v6428 = vpop.f32.mrf.mxu0
  %v6429 = vadd.f32 0.0, %v6428
  %v6430 = vpop.f32.mrf.mxu0
  %6431 = vmatprep.mubr.bf16.mxu0 0
  %6432 = vmatmul.mubr.bf16.gmra.mxu0 %v6309
  %v6433 = vpop.f32.mrf.mxu0
  %v6434 = vadd.f32 0.0, %v6433
  %v6435 = vpop.f32.mrf.mxu0
  %v6436 = vpop.f32.mrf.mxu0
  %v6437 = vadd.f32 0.0, %v6436
  %v6438 = vpop.f32.mrf.mxu0
  %6439 = vmatprep.mubr.bf16.mxu0 0
  %6440 = vmatmul.mubr.bf16.gmra.mxu0 %v6312
  %v6441 = vpop.f32.mrf.mxu0
  %v6442 = vadd.f32 0.0, %v6441
  %v6443 = vpop.f32.mrf.mxu0
  %v6444 = vpop.f32.mrf.mxu0
  %v6445 = vadd.f32 0.0, %v6444
  %v6446 = vpop.f32.mrf.mxu0
  %6447 = vmatprep.mubr.bf16.mxu0 0
  %6448 = vmatmul.mubr.bf16.gmra.mxu0 %v6315
  %v6449 = vpop.f32.mrf.mxu0
  %v6450 = vadd.f32 0.0, %v6449
  %v6451 = vpop.f32.mrf.mxu0
  %v6452 = vpop.f32.mrf.mxu0
  %v6453 = vadd.f32 0.0, %v6452
  %v6454 = vpop.f32.mrf.mxu0
  %6455 = vmatprep.mubr.bf16.mxu0 0
  %6456 = vmatmul.mubr.bf16.gmra.mxu0 %v6318
  %v6457 = vpop.f32.mrf.mxu0
  %v6458 = vadd.f32 0.0, %v6457
  %v6459 = vpop.f32.mrf.mxu0
  %v6460 = vpop.f32.mrf.mxu0
  %v6461 = vadd.f32 0.0, %v6460
  %v6462 = vpop.f32.mrf.mxu0
  %6463 = vmatprep.mubr.bf16.mxu0 0
  %6464 = vmatmul.mubr.bf16.gmra.mxu0 %v6321
  %v6465 = vpop.f32.mrf.mxu0
  %v6466 = vadd.f32 0.0, %v6465
  %v6467 = vpop.f32.mrf.mxu0
  %v6468 = vpop.f32.mrf.mxu0
  %v6469 = vadd.f32 0.0, %v6468
  %v6470 = vpop.f32.mrf.mxu0
  %6471 = vmatprep.mubr.bf16.mxu0 0
  %6472 = vmatmul.mubr.bf16.gmra.mxu0 %v6324
  %v6473 = vpop.f32.mrf.mxu0
  %v6474 = vadd.f32 0.0, %v6473
  %v6475 = vpop.f32.mrf.mxu0
  %v6476 = vpop.f32.mrf.mxu0
  %v6477 = vadd.f32 0.0, %v6476
  %v6478 = vpop.f32.mrf.mxu0
  %6479 = vmatprep.mubr.bf16.mxu0 0
  %6480 = vmatmul.mubr.bf16.gmra.mxu0 %v6327
  %v6481 = vpop.f32.mrf.mxu0
  %v6482 = vadd.f32 0.0, %v6481
  %v6483 = vpop.f32.mrf.mxu0
  %v6484 = vpop.f32.mrf.mxu0
  %v6485 = vadd.f32 0.0, %v6484
  %v6486 = vpop.f32.mrf.mxu0
  %6487 = vmatprep.mubr.bf16.mxu0 0
  %6488 = vmatmul.mubr.bf16.gmra.mxu0 %v6330
  %v6489 = vpop.f32.mrf.mxu0
  %v6490 = vadd.f32 0.0, %v6489
  %v6491 = vpop.f32.mrf.mxu0
  %v6492 = vpop.f32.mrf.mxu0
  %v6493 = vadd.f32 0.0, %v6492
  %v6494 = vpop.f32.mrf.mxu0
  %6495 = vdwg.mxu0
  %v6496 = vadd.f32 %v6171, %v6370
  %v6497 = vadd.f32 %v6172, %v6373
  %v6498 = vadd.f32 %v6173, %v6378
  %v6499 = vadd.f32 %v6174, %v6381
  %v6500 = vadd.f32 %v6175, %v6386
  %v6501 = vadd.f32 %v6176, %v6389
  %v6502 = vadd.f32 %v6177, %v6394
  %v6503 = vadd.f32 %v6178, %v6397
  %v6504 = vadd.f32 %v6179, %v6402
  %v6505 = vadd.f32 %v6180, %v6405
  %v6506 = vadd.f32 %v6181, %v6410
  %v6507 = vadd.f32 %v6182, %v6413
  %v6508 = vadd.f32 %v6183, %v6418
  %v6509 = vadd.f32 %v6184, %v6421
  %v6510 = vadd.f32 %v6185, %v6426
  %v6511 = vadd.f32 %v6186, %v6429
  %v6512 = vadd.f32 %v6187, %v6434
  %v6513 = vadd.f32 %v6188, %v6437
  %v6514 = vadd.f32 %v6189, %v6442
  %v6515 = vadd.f32 %v6190, %v6445
  %v6516 = vadd.f32 %v6191, %v6450
  %v6517 = vadd.f32 %v6192, %v6453
  %v6518 = vadd.f32 %v6193, %v6458
  %v6519 = vadd.f32 %v6194, %v6461
  %v6520 = vadd.f32 %v6195, %v6466
  %v6521 = vadd.f32 %v6196, %v6469
  %v6522 = vadd.f32 %v6197, %v6474
  %v6523 = vadd.f32 %v6198, %v6477
  %v6524 = vadd.f32 %v6199, %v6482
  %v6525 = vadd.f32 %v6200, %v6485
  %v6526 = vadd.f32 %v6201, %v6490
  %v6527 = vadd.f32 %v6202, %v6493
  %v6528 = vld [vmem:[#allocation2 + $0x20] sm:$0xff]
  %v6529 = vld [vmem:[#allocation2 + $0x28] sm:$0xff]
  %v6530 = vld [vmem:[#allocation2 + $0x30] sm:$0xff]
  %v6531 = vld [vmem:[#allocation2 + $0x38] sm:$0xff]
  %v6532 = vld [vmem:[#allocation2 + $0x40] sm:$0xff]
  %v6533 = vld [vmem:[#allocation2 + $0x48] sm:$0xff]
  %v6534 = vld [vmem:[#allocation2 + $0x50] sm:$0xff]
  %v6535 = vld [vmem:[#allocation2 + $0x58] sm:$0xff]
  %v6536 = vld [vmem:[#allocation2 + $0x60] sm:$0xff]
  %v6537 = vld [vmem:[#allocation2 + $0x68] sm:$0xff]
  %v6538 = vld [vmem:[#allocation2 + $0x70] sm:$0xff]
  %v6539 = vld [vmem:[#allocation2 + $0x78] sm:$0xff]
  %v6540 = vld [vmem:[#allocation2 + $0x80] sm:$0xff]
  %v6541 = vld [vmem:[#allocation2 + $0x88] sm:$0xff]
  %v6542 = vld [vmem:[#allocation2 + $0x90] sm:$0xff]
  %v6543 = vld [vmem:[#allocation2 + $0x98] sm:$0xff]
  %v6544 = vld [vmem:[#allocation2 + $0xa0] sm:$0xff]
  %v6545 = vld [vmem:[#allocation2 + $0xa8] sm:$0xff]
  %v6546 = vld [vmem:[#allocation2 + $0xb0] sm:$0xff]
  %v6547 = vld [vmem:[#allocation2 + $0xb8] sm:$0xff]
  %v6548 = vld [vmem:[#allocation2 + $0xc0] sm:$0xff]
  %v6549 = vld [vmem:[#allocation2 + $0xc8] sm:$0xff]
  %v6550 = vld [vmem:[#allocation2 + $0xd0] sm:$0xff]
  %v6551 = vld [vmem:[#allocation2 + $0xd8] sm:$0xff]
  %v6552 = vld [vmem:[#allocation2 + $0xe0] sm:$0xff]
  %v6553 = vld [vmem:[#allocation2 + $0xe8] sm:$0xff]
  %v6554 = vld [vmem:[#allocation2 + $0xf0] sm:$0xff]
  %v6555 = vld [vmem:[#allocation2 + $0xf8] sm:$0xff]
  %v6556 = vld [vmem:[#allocation2 + $0x100] sm:$0xff]
  %v6557 = vld [vmem:[#allocation2 + $0x108] sm:$0xff]
  %v6558 = vld [vmem:[#allocation2 + $0x110] sm:$0xff]
  %v6559 = vld [vmem:[#allocation2 + $0x118] sm:$0xff]
  %v6560 = vmul.f32 %v6528, %v1221
  %v6561 = vmul.f32 %v6529, %v1222
  %v6562 = vmul.f32 %v6530, %v1223
  %v6563 = vmul.f32 %v6531, %v1224
  %v6564 = vmul.f32 %v6532, %v1225
  %v6565 = vmul.f32 %v6533, %v1226
  %v6566 = vmul.f32 %v6534, %v1227
  %v6567 = vmul.f32 %v6535, %v1228
  %v6568 = vmul.f32 %v6536, %v1229
  %v6569 = vmul.f32 %v6537, %v1230
  %v6570 = vmul.f32 %v6538, %v1231
  %v6571 = vmul.f32 %v6539, %v1232
  %v6572 = vmul.f32 %v6540, %v1233
  %v6573 = vmul.f32 %v6541, %v1234
  %v6574 = vmul.f32 %v6542, %v1235
  %v6575 = vmul.f32 %v6543, %v1236
  %v6576 = vmul.f32 %v6544, %v1237
  %v6577 = vmul.f32 %v6545, %v1238
  %v6578 = vmul.f32 %v6546, %v1239
  %v6579 = vmul.f32 %v6547, %v1240
  %v6580 = vmul.f32 %v6548, %v1241
  %v6581 = vmul.f32 %v6549, %v1242
  %v6582 = vmul.f32 %v6550, %v1243
  %v6583 = vmul.f32 %v6551, %v1244
  %v6584 = vmul.f32 %v6552, %v1245
  %v6585 = vmul.f32 %v6553, %v1246
  %v6586 = vmul.f32 %v6554, %v1247
  %v6587 = vmul.f32 %v6555, %v1248
  %v6588 = vmul.f32 %v6556, %v1249
  %v6589 = vmul.f32 %v6557, %v1250
  %v6590 = vmul.f32 %v6558, %v1251
  %v6591 = vmul.f32 %v6559, %v1252
  %v6592 = vpack.c.bf16 %v6561, %v6560
  %v6593 = vpack.c.bf16 %v6563, %v6562
  %v6594 = vpack.c.bf16 %v6565, %v6564
  %v6595 = vpack.c.bf16 %v6567, %v6566
  %v6596 = vpack.c.bf16 %v6569, %v6568
  %v6597 = vpack.c.bf16 %v6571, %v6570
  %v6598 = vpack.c.bf16 %v6573, %v6572
  %v6599 = vpack.c.bf16 %v6575, %v6574
  %v6600 = vpack.c.bf16 %v6577, %v6576
  %v6601 = vpack.c.bf16 %v6579, %v6578
  %v6602 = vpack.c.bf16 %v6581, %v6580
  %v6603 = vpack.c.bf16 %v6583, %v6582
  %v6604 = vpack.c.bf16 %v6585, %v6584
  %v6605 = vpack.c.bf16 %v6587, %v6586
  %v6606 = vpack.c.bf16 %v6589, %v6588
  %v6607 = vpack.c.bf16 %v6591, %v6590
  %v6608 = vld [vmem:[%s4 + $0x18] sm:$0xf]
  %v6610 = vsel %vm1349, %v6592, 0
  %v6613 = vsel %vm1349, %v6593, 0
  %v6616 = vsel %vm1349, %v6594, 0
  %v6619 = vsel %vm1349, %v6595, 0
  %v6622 = vsel %vm1349, %v6596, 0
  %v6625 = vsel %vm1349, %v6597, 0
  %v6628 = vsel %vm1349, %v6598, 0
  %v6631 = vsel %vm1349, %v6599, 0
  %v6634 = vsel %vm1349, %v6600, 0
  %v6637 = vsel %vm1349, %v6601, 0
  %v6640 = vsel %vm1349, %v6602, 0
  %v6643 = vsel %vm1349, %v6603, 0
  %v6646 = vsel %vm1349, %v6604, 0
  %v6649 = vsel %vm1349, %v6605, 0
  %v6652 = vsel %vm1349, %v6606, 0
  %v6655 = vsel %vm1349, %v6607, 0
  %v6658 = vsel %vm1567, %v6608, 0
  %6660 = vmatprep.subr.bf16.mxu0 0
  %6661 = vmatpush1.bf16.msra.mxu0 0
  %6662 = vmatprep.subr.bf16.mxu0 0
  %6663 = vmatpush1.bf16.msra.mxu0 0
  %6664 = vmatprep.subr.bf16.mxu0 0
  %6665 = vmatpush1.bf16.msra.mxu0 0
  %6666 = vmatprep.subr.bf16.mxu0 0
  %6667 = vmatpush1.bf16.msra.mxu0 0
  %6668 = vmatprep.subr.bf16.mxu0 0
  %6669 = vmatpush1.bf16.msra.mxu0 0
  %6670 = vmatprep.subr.bf16.mxu0 0
  %6671 = vmatpush1.bf16.msra.mxu0 0
  %6672 = vmatprep.subr.bf16.mxu0 0
  %6673 = vmatpush1.bf16.msra.mxu0 0
  %6674 = vmatprep.subr.bf16.mxu0 0
  %6675 = vmatpush1.bf16.msra.mxu0 %v6658
  %6676 = vmatprep.subr.bf16.mxu0 0
  %6677 = vmatpush2.bf16.msra.mxu0 0
  %6678 = vmatprep.subr.bf16.mxu0 0
  %6679 = vmatpush2.bf16.msra.mxu0 0
  %6680 = vmatprep.subr.bf16.mxu0 0
  %6681 = vmatpush2.bf16.msra.mxu0 0
  %6682 = vmatprep.subr.bf16.mxu0 0
  %6683 = vmatpush2.bf16.msra.mxu0 0
  %6684 = vmatprep.subr.bf16.mxu0 0
  %6685 = vmatpush2.bf16.msra.mxu0 0
  %6686 = vmatprep.subr.bf16.mxu0 0
  %6687 = vmatpush2.bf16.msra.mxu0 0
  %6688 = vmatprep.subr.bf16.mxu0 0
  %6689 = vmatpush2.bf16.msra.mxu0 0
  %6690 = vmatprep.subr.bf16.mxu0 0
  %6691 = vmatpush2.bf16.msra.mxu0 0
  %6692 = vmatprep.mubr.bf16.mxu0 0
  %6693 = vmatmul.mubr.bf16.gmra.mxu0 %v6610
  %v6694 = vpop.f32.mrf.mxu0
  %v6695 = vadd.f32 0.0, %v6694
  %v6696 = vpop.f32.mrf.mxu0
  %v6697 = vpop.f32.mrf.mxu0
  %v6698 = vadd.f32 0.0, %v6697
  %v6699 = vpop.f32.mrf.mxu0
  %6700 = vmatprep.mubr.bf16.mxu0 0
  %6701 = vmatmul.mubr.bf16.gmra.mxu0 %v6613
  %v6702 = vpop.f32.mrf.mxu0
  %v6703 = vadd.f32 0.0, %v6702
  %v6704 = vpop.f32.mrf.mxu0
  %v6705 = vpop.f32.mrf.mxu0
  %v6706 = vadd.f32 0.0, %v6705
  %v6707 = vpop.f32.mrf.mxu0
  %6708 = vmatprep.mubr.bf16.mxu0 0
  %6709 = vmatmul.mubr.bf16.gmra.mxu0 %v6616
  %v6710 = vpop.f32.mrf.mxu0
  %v6711 = vadd.f32 0.0, %v6710
  %v6712 = vpop.f32.mrf.mxu0
  %v6713 = vpop.f32.mrf.mxu0
  %v6714 = vadd.f32 0.0, %v6713
  %v6715 = vpop.f32.mrf.mxu0
  %6716 = vmatprep.mubr.bf16.mxu0 0
  %6717 = vmatmul.mubr.bf16.gmra.mxu0 %v6619
  %v6718 = vpop.f32.mrf.mxu0
  %v6719 = vadd.f32 0.0, %v6718
  %v6720 = vpop.f32.mrf.mxu0
  %v6721 = vpop.f32.mrf.mxu0
  %v6722 = vadd.f32 0.0, %v6721
  %v6723 = vpop.f32.mrf.mxu0
  %6724 = vmatprep.mubr.bf16.mxu0 0
  %6725 = vmatmul.mubr.bf16.gmra.mxu0 %v6622
  %v6726 = vpop.f32.mrf.mxu0
  %v6727 = vadd.f32 0.0, %v6726
  %v6728 = vpop.f32.mrf.mxu0
  %v6729 = vpop.f32.mrf.mxu0
  %v6730 = vadd.f32 0.0, %v6729
  %v6731 = vpop.f32.mrf.mxu0
  %6732 = vmatprep.mubr.bf16.mxu0 0
  %6733 = vmatmul.mubr.bf16.gmra.mxu0 %v6625
  %v6734 = vpop.f32.mrf.mxu0
  %v6735 = vadd.f32 0.0, %v6734
  %v6736 = vpop.f32.mrf.mxu0
  %v6737 = vpop.f32.mrf.mxu0
  %v6738 = vadd.f32 0.0, %v6737
  %v6739 = vpop.f32.mrf.mxu0
  %6740 = vmatprep.mubr.bf16.mxu0 0
  %6741 = vmatmul.mubr.bf16.gmra.mxu0 %v6628
  %v6742 = vpop.f32.mrf.mxu0
  %v6743 = vadd.f32 0.0, %v6742
  %v6744 = vpop.f32.mrf.mxu0
  %v6745 = vpop.f32.mrf.mxu0
  %v6746 = vadd.f32 0.0, %v6745
  %v6747 = vpop.f32.mrf.mxu0
  %6748 = vmatprep.mubr.bf16.mxu0 0
  %6749 = vmatmul.mubr.bf16.gmra.mxu0 %v6631
  %v6750 = vpop.f32.mrf.mxu0
  %v6751 = vadd.f32 0.0, %v6750
  %v6752 = vpop.f32.mrf.mxu0
  %v6753 = vpop.f32.mrf.mxu0
  %v6754 = vadd.f32 0.0, %v6753
  %v6755 = vpop.f32.mrf.mxu0
  %6756 = vmatprep.mubr.bf16.mxu0 0
  %6757 = vmatmul.mubr.bf16.gmra.mxu0 %v6634
  %v6758 = vpop.f32.mrf.mxu0
  %v6759 = vadd.f32 0.0, %v6758
  %v6760 = vpop.f32.mrf.mxu0
  %v6761 = vpop.f32.mrf.mxu0
  %v6762 = vadd.f32 0.0, %v6761
  %v6763 = vpop.f32.mrf.mxu0
  %6764 = vmatprep.mubr.bf16.mxu0 0
  %6765 = vmatmul.mubr.bf16.gmra.mxu0 %v6637
  %v6766 = vpop.f32.mrf.mxu0
  %v6767 = vadd.f32 0.0, %v6766
  %v6768 = vpop.f32.mrf.mxu0
  %v6769 = vpop.f32.mrf.mxu0
  %v6770 = vadd.f32 0.0, %v6769
  %v6771 = vpop.f32.mrf.mxu0
  %6772 = vmatprep.mubr.bf16.mxu0 0
  %6773 = vmatmul.mubr.bf16.gmra.mxu0 %v6640
  %v6774 = vpop.f32.mrf.mxu0
  %v6775 = vadd.f32 0.0, %v6774
  %v6776 = vpop.f32.mrf.mxu0
  %v6777 = vpop.f32.mrf.mxu0
  %v6778 = vadd.f32 0.0, %v6777
  %v6779 = vpop.f32.mrf.mxu0
  %6780 = vmatprep.mubr.bf16.mxu0 0
  %6781 = vmatmul.mubr.bf16.gmra.mxu0 %v6643
  %v6782 = vpop.f32.mrf.mxu0
  %v6783 = vadd.f32 0.0, %v6782
  %v6784 = vpop.f32.mrf.mxu0
  %v6785 = vpop.f32.mrf.mxu0
  %v6786 = vadd.f32 0.0, %v6785
  %v6787 = vpop.f32.mrf.mxu0
  %6788 = vmatprep.mubr.bf16.mxu0 0
  %6789 = vmatmul.mubr.bf16.gmra.mxu0 %v6646
  %v6790 = vpop.f32.mrf.mxu0
  %v6791 = vadd.f32 0.0, %v6790
  %v6792 = vpop.f32.mrf.mxu0
  %v6793 = vpop.f32.mrf.mxu0
  %v6794 = vadd.f32 0.0, %v6793
  %v6795 = vpop.f32.mrf.mxu0
  %6796 = vmatprep.mubr.bf16.mxu0 0
  %6797 = vmatmul.mubr.bf16.gmra.mxu0 %v6649
  %v6798 = vpop.f32.mrf.mxu0
  %v6799 = vadd.f32 0.0, %v6798
  %v6800 = vpop.f32.mrf.mxu0
  %v6801 = vpop.f32.mrf.mxu0
  %v6802 = vadd.f32 0.0, %v6801
  %v6803 = vpop.f32.mrf.mxu0
  %6804 = vmatprep.mubr.bf16.mxu0 0
  %6805 = vmatmul.mubr.bf16.gmra.mxu0 %v6652
  %v6806 = vpop.f32.mrf.mxu0
  %v6807 = vadd.f32 0.0, %v6806
  %v6808 = vpop.f32.mrf.mxu0
  %v6809 = vpop.f32.mrf.mxu0
  %v6810 = vadd.f32 0.0, %v6809
  %v6811 = vpop.f32.mrf.mxu0
  %6812 = vmatprep.mubr.bf16.mxu0 0
  %6813 = vmatmul.mubr.bf16.gmra.mxu0 %v6655
  %v6814 = vpop.f32.mrf.mxu0
  %v6815 = vadd.f32 0.0, %v6814
  %v6816 = vpop.f32.mrf.mxu0
  %v6817 = vpop.f32.mrf.mxu0
  %v6818 = vadd.f32 0.0, %v6817
  %v6819 = vpop.f32.mrf.mxu0
  %6820 = vdwg.mxu0
  %v6821 = vadd.f32 %v6496, %v6695
  %v6822 = vadd.f32 %v6497, %v6698
  %v6823 = vadd.f32 %v6498, %v6703
  %v6824 = vadd.f32 %v6499, %v6706
  %v6825 = vadd.f32 %v6500, %v6711
  %v6826 = vadd.f32 %v6501, %v6714
  %v6827 = vadd.f32 %v6502, %v6719
  %v6828 = vadd.f32 %v6503, %v6722
  %v6829 = vadd.f32 %v6504, %v6727
  %v6830 = vadd.f32 %v6505, %v6730
  %v6831 = vadd.f32 %v6506, %v6735
  %v6832 = vadd.f32 %v6507, %v6738
  %v6833 = vadd.f32 %v6508, %v6743
  %v6834 = vadd.f32 %v6509, %v6746
  %v6835 = vadd.f32 %v6510, %v6751
  %v6836 = vadd.f32 %v6511, %v6754
  %v6837 = vadd.f32 %v6512, %v6759
  %v6838 = vadd.f32 %v6513, %v6762
  %v6839 = vadd.f32 %v6514, %v6767
  %v6840 = vadd.f32 %v6515, %v6770
  %v6841 = vadd.f32 %v6516, %v6775
  %v6842 = vadd.f32 %v6517, %v6778
  %v6843 = vadd.f32 %v6518, %v6783
  %v6844 = vadd.f32 %v6519, %v6786
  %v6845 = vadd.f32 %v6520, %v6791
  %v6846 = vadd.f32 %v6521, %v6794
  %v6847 = vadd.f32 %v6522, %v6799
  %v6848 = vadd.f32 %v6523, %v6802
  %v6849 = vadd.f32 %v6524, %v6807
  %v6850 = vadd.f32 %v6525, %v6810
  %v6851 = vadd.f32 %v6526, %v6815
  %v6852 = vadd.f32 %v6527, %v6818
  %v6853 = vld [vmem:[#allocation2 + $0x21] sm:$0xff]
  %v6854 = vld [vmem:[#allocation2 + $0x29] sm:$0xff]
  %v6855 = vld [vmem:[#allocation2 + $0x31] sm:$0xff]
  %v6856 = vld [vmem:[#allocation2 + $0x39] sm:$0xff]
  %v6857 = vld [vmem:[#allocation2 + $0x41] sm:$0xff]
  %v6858 = vld [vmem:[#allocation2 + $0x49] sm:$0xff]
  %v6859 = vld [vmem:[#allocation2 + $0x51] sm:$0xff]
  %v6860 = vld [vmem:[#allocation2 + $0x59] sm:$0xff]
  %v6861 = vld [vmem:[#allocation2 + $0x61] sm:$0xff]
  %v6862 = vld [vmem:[#allocation2 + $0x69] sm:$0xff]
  %v6863 = vld [vmem:[#allocation2 + $0x71] sm:$0xff]
  %v6864 = vld [vmem:[#allocation2 + $0x79] sm:$0xff]
  %v6865 = vld [vmem:[#allocation2 + $0x81] sm:$0xff]
  %v6866 = vld [vmem:[#allocation2 + $0x89] sm:$0xff]
  %v6867 = vld [vmem:[#allocation2 + $0x91] sm:$0xff]
  %v6868 = vld [vmem:[#allocation2 + $0x99] sm:$0xff]
  %v6869 = vld [vmem:[#allocation2 + $0xa1] sm:$0xff]
  %v6870 = vld [vmem:[#allocation2 + $0xa9] sm:$0xff]
  %v6871 = vld [vmem:[#allocation2 + $0xb1] sm:$0xff]
  %v6872 = vld [vmem:[#allocation2 + $0xb9] sm:$0xff]
  %v6873 = vld [vmem:[#allocation2 + $0xc1] sm:$0xff]
  %v6874 = vld [vmem:[#allocation2 + $0xc9] sm:$0xff]
  %v6875 = vld [vmem:[#allocation2 + $0xd1] sm:$0xff]
  %v6876 = vld [vmem:[#allocation2 + $0xd9] sm:$0xff]
  %v6877 = vld [vmem:[#allocation2 + $0xe1] sm:$0xff]
  %v6878 = vld [vmem:[#allocation2 + $0xe9] sm:$0xff]
  %v6879 = vld [vmem:[#allocation2 + $0xf1] sm:$0xff]
  %v6880 = vld [vmem:[#allocation2 + $0xf9] sm:$0xff]
  %v6881 = vld [vmem:[#allocation2 + $0x101] sm:$0xff]
  %v6882 = vld [vmem:[#allocation2 + $0x109] sm:$0xff]
  %v6883 = vld [vmem:[#allocation2 + $0x111] sm:$0xff]
  %v6884 = vld [vmem:[#allocation2 + $0x119] sm:$0xff]
  %v6885 = vpack.c.bf16 %v6854, %v6853
  %v6886 = vpack.c.bf16 %v6856, %v6855
  %v6887 = vpack.c.bf16 %v6858, %v6857
  %v6888 = vpack.c.bf16 %v6860, %v6859
  %v6889 = vpack.c.bf16 %v6862, %v6861
  %v6890 = vpack.c.bf16 %v6864, %v6863
  %v6891 = vpack.c.bf16 %v6866, %v6865
  %v6892 = vpack.c.bf16 %v6868, %v6867
  %v6893 = vpack.c.bf16 %v6870, %v6869
  %v6894 = vpack.c.bf16 %v6872, %v6871
  %v6895 = vpack.c.bf16 %v6874, %v6873
  %v6896 = vpack.c.bf16 %v6876, %v6875
  %v6897 = vpack.c.bf16 %v6878, %v6877
  %v6898 = vpack.c.bf16 %v6880, %v6879
  %v6899 = vpack.c.bf16 %v6882, %v6881
  %v6900 = vpack.c.bf16 %v6884, %v6883
  %v6901 = vld [vmem:[%s4 + $0x1c] sm:$0xf]
  %v6903 = vsel %vm1349, %v6885, 0
  %v6906 = vsel %vm1349, %v6886, 0
  %v6909 = vsel %vm1349, %v6887, 0
  %v6912 = vsel %vm1349, %v6888, 0
  %v6915 = vsel %vm1349, %v6889, 0
  %v6918 = vsel %vm1349, %v6890, 0
  %v6921 = vsel %vm1349, %v6891, 0
  %v6924 = vsel %vm1349, %v6892, 0
  %v6927 = vsel %vm1349, %v6893, 0
  %v6930 = vsel %vm1349, %v6894, 0
  %v6933 = vsel %vm1349, %v6895, 0
  %v6936 = vsel %vm1349, %v6896, 0
  %v6939 = vsel %vm1349, %v6897, 0
  %v6942 = vsel %vm1349, %v6898, 0
  %v6945 = vsel %vm1349, %v6899, 0
  %v6948 = vsel %vm1349, %v6900, 0
  %v6951 = vsel %vm1567, %v6901, 0
  %6953 = vmatprep.subr.bf16.mxu0 0
  %6954 = vmatpush1.bf16.msra.mxu0 0
  %6955 = vmatprep.subr.bf16.mxu0 0
  %6956 = vmatpush1.bf16.msra.mxu0 0
  %6957 = vmatprep.subr.bf16.mxu0 0
  %6958 = vmatpush1.bf16.msra.mxu0 0
  %6959 = vmatprep.subr.bf16.mxu0 0
  %6960 = vmatpush1.bf16.msra.mxu0 0
  %6961 = vmatprep.subr.bf16.mxu0 0
  %6962 = vmatpush1.bf16.msra.mxu0 0
  %6963 = vmatprep.subr.bf16.mxu0 0
  %6964 = vmatpush1.bf16.msra.mxu0 0
  %6965 = vmatprep.subr.bf16.mxu0 0
  %6966 = vmatpush1.bf16.msra.mxu0 0
  %6967 = vmatprep.subr.bf16.mxu0 0
  %6968 = vmatpush1.bf16.msra.mxu0 %v6951
  %6969 = vmatprep.subr.bf16.mxu0 0
  %6970 = vmatpush2.bf16.msra.mxu0 0
  %6971 = vmatprep.subr.bf16.mxu0 0
  %6972 = vmatpush2.bf16.msra.mxu0 0
  %6973 = vmatprep.subr.bf16.mxu0 0
  %6974 = vmatpush2.bf16.msra.mxu0 0
  %6975 = vmatprep.subr.bf16.mxu0 0
  %6976 = vmatpush2.bf16.msra.mxu0 0
  %6977 = vmatprep.subr.bf16.mxu0 0
  %6978 = vmatpush2.bf16.msra.mxu0 0
  %6979 = vmatprep.subr.bf16.mxu0 0
  %6980 = vmatpush2.bf16.msra.mxu0 0
  %6981 = vmatprep.subr.bf16.mxu0 0
  %6982 = vmatpush2.bf16.msra.mxu0 0
  %6983 = vmatprep.subr.bf16.mxu0 0
  %6984 = vmatpush2.bf16.msra.mxu0 0
  %6985 = vmatprep.mubr.bf16.mxu0 0
  %6986 = vmatmul.mubr.bf16.gmra.mxu0 %v6903
  %v6987 = vpop.f32.mrf.mxu0
  %v6988 = vadd.f32 0.0, %v6987
  %v6989 = vpop.f32.mrf.mxu0
  %v6990 = vpop.f32.mrf.mxu0
  %v6991 = vadd.f32 0.0, %v6990
  %v6992 = vpop.f32.mrf.mxu0
  %6993 = vmatprep.mubr.bf16.mxu0 0
  %6994 = vmatmul.mubr.bf16.gmra.mxu0 %v6906
  %v6995 = vpop.f32.mrf.mxu0
  %v6996 = vadd.f32 0.0, %v6995
  %v6997 = vpop.f32.mrf.mxu0
  %v6998 = vpop.f32.mrf.mxu0
  %v6999 = vadd.f32 0.0, %v6998
  %v7000 = vpop.f32.mrf.mxu0
  %7001 = vmatprep.mubr.bf16.mxu0 0
  %7002 = vmatmul.mubr.bf16.gmra.mxu0 %v6909
  %v7003 = vpop.f32.mrf.mxu0
  %v7004 = vadd.f32 0.0, %v7003
  %v7005 = vpop.f32.mrf.mxu0
  %v7006 = vpop.f32.mrf.mxu0
  %v7007 = vadd.f32 0.0, %v7006
  %v7008 = vpop.f32.mrf.mxu0
  %7009 = vmatprep.mubr.bf16.mxu0 0
  %7010 = vmatmul.mubr.bf16.gmra.mxu0 %v6912
  %v7011 = vpop.f32.mrf.mxu0
  %v7012 = vadd.f32 0.0, %v7011
  %v7013 = vpop.f32.mrf.mxu0
  %v7014 = vpop.f32.mrf.mxu0
  %v7015 = vadd.f32 0.0, %v7014
  %v7016 = vpop.f32.mrf.mxu0
  %7017 = vmatprep.mubr.bf16.mxu0 0
  %7018 = vmatmul.mubr.bf16.gmra.mxu0 %v6915
  %v7019 = vpop.f32.mrf.mxu0
  %v7020 = vadd.f32 0.0, %v7019
  %v7021 = vpop.f32.mrf.mxu0
  %v7022 = vpop.f32.mrf.mxu0
  %v7023 = vadd.f32 0.0, %v7022
  %v7024 = vpop.f32.mrf.mxu0
  %7025 = vmatprep.mubr.bf16.mxu0 0
  %7026 = vmatmul.mubr.bf16.gmra.mxu0 %v6918
  %v7027 = vpop.f32.mrf.mxu0
  %v7028 = vadd.f32 0.0, %v7027
  %v7029 = vpop.f32.mrf.mxu0
  %v7030 = vpop.f32.mrf.mxu0
  %v7031 = vadd.f32 0.0, %v7030
  %v7032 = vpop.f32.mrf.mxu0
  %7033 = vmatprep.mubr.bf16.mxu0 0
  %7034 = vmatmul.mubr.bf16.gmra.mxu0 %v6921
  %v7035 = vpop.f32.mrf.mxu0
  %v7036 = vadd.f32 0.0, %v7035
  %v7037 = vpop.f32.mrf.mxu0
  %v7038 = vpop.f32.mrf.mxu0
  %v7039 = vadd.f32 0.0, %v7038
  %v7040 = vpop.f32.mrf.mxu0
  %7041 = vmatprep.mubr.bf16.mxu0 0
  %7042 = vmatmul.mubr.bf16.gmra.mxu0 %v6924
  %v7043 = vpop.f32.mrf.mxu0
  %v7044 = vadd.f32 0.0, %v7043
  %v7045 = vpop.f32.mrf.mxu0
  %v7046 = vpop.f32.mrf.mxu0
  %v7047 = vadd.f32 0.0, %v7046
  %v7048 = vpop.f32.mrf.mxu0
  %7049 = vmatprep.mubr.bf16.mxu0 0
  %7050 = vmatmul.mubr.bf16.gmra.mxu0 %v6927
  %v7051 = vpop.f32.mrf.mxu0
  %v7052 = vadd.f32 0.0, %v7051
  %v7053 = vpop.f32.mrf.mxu0
  %v7054 = vpop.f32.mrf.mxu0
  %v7055 = vadd.f32 0.0, %v7054
  %v7056 = vpop.f32.mrf.mxu0
  %7057 = vmatprep.mubr.bf16.mxu0 0
  %7058 = vmatmul.mubr.bf16.gmra.mxu0 %v6930
  %v7059 = vpop.f32.mrf.mxu0
  %v7060 = vadd.f32 0.0, %v7059
  %v7061 = vpop.f32.mrf.mxu0
  %v7062 = vpop.f32.mrf.mxu0
  %v7063 = vadd.f32 0.0, %v7062
  %v7064 = vpop.f32.mrf.mxu0
  %7065 = vmatprep.mubr.bf16.mxu0 0
  %7066 = vmatmul.mubr.bf16.gmra.mxu0 %v6933
  %v7067 = vpop.f32.mrf.mxu0
  %v7068 = vadd.f32 0.0, %v7067
  %v7069 = vpop.f32.mrf.mxu0
  %v7070 = vpop.f32.mrf.mxu0
  %v7071 = vadd.f32 0.0, %v7070
  %v7072 = vpop.f32.mrf.mxu0
  %7073 = vmatprep.mubr.bf16.mxu0 0
  %7074 = vmatmul.mubr.bf16.gmra.mxu0 %v6936
  %v7075 = vpop.f32.mrf.mxu0
  %v7076 = vadd.f32 0.0, %v7075
  %v7077 = vpop.f32.mrf.mxu0
  %v7078 = vpop.f32.mrf.mxu0
  %v7079 = vadd.f32 0.0, %v7078
  %v7080 = vpop.f32.mrf.mxu0
  %7081 = vmatprep.mubr.bf16.mxu0 0
  %7082 = vmatmul.mubr.bf16.gmra.mxu0 %v6939
  %v7083 = vpop.f32.mrf.mxu0
  %v7084 = vadd.f32 0.0, %v7083
  %v7085 = vpop.f32.mrf.mxu0
  %v7086 = vpop.f32.mrf.mxu0
  %v7087 = vadd.f32 0.0, %v7086
  %v7088 = vpop.f32.mrf.mxu0
  %7089 = vmatprep.mubr.bf16.mxu0 0
  %7090 = vmatmul.mubr.bf16.gmra.mxu0 %v6942
  %v7091 = vpop.f32.mrf.mxu0
  %v7092 = vadd.f32 0.0, %v7091
  %v7093 = vpop.f32.mrf.mxu0
  %v7094 = vpop.f32.mrf.mxu0
  %v7095 = vadd.f32 0.0, %v7094
  %v7096 = vpop.f32.mrf.mxu0
  %7097 = vmatprep.mubr.bf16.mxu0 0
  %7098 = vmatmul.mubr.bf16.gmra.mxu0 %v6945
  %v7099 = vpop.f32.mrf.mxu0
  %v7100 = vadd.f32 0.0, %v7099
  %v7101 = vpop.f32.mrf.mxu0
  %v7102 = vpop.f32.mrf.mxu0
  %v7103 = vadd.f32 0.0, %v7102
  %v7104 = vpop.f32.mrf.mxu0
  %7105 = vmatprep.mubr.bf16.mxu0 0
  %7106 = vmatmul.mubr.bf16.gmra.mxu0 %v6948
  %v7107 = vpop.f32.mrf.mxu0
  %v7108 = vadd.f32 0.0, %v7107
  %v7109 = vpop.f32.mrf.mxu0
  %v7110 = vpop.f32.mrf.mxu0
  %v7111 = vadd.f32 0.0, %v7110
  %v7112 = vpop.f32.mrf.mxu0
  %7113 = vdwg.mxu0
  %v7114 = vadd.f32 %v6821, %v6988
  %v7115 = vadd.f32 %v6822, %v6991
  %v7116 = vadd.f32 %v6823, %v6996
  %v7117 = vadd.f32 %v6824, %v6999
  %v7118 = vadd.f32 %v6825, %v7004
  %v7119 = vadd.f32 %v6826, %v7007
  %v7120 = vadd.f32 %v6827, %v7012
  %v7121 = vadd.f32 %v6828, %v7015
  %v7122 = vadd.f32 %v6829, %v7020
  %v7123 = vadd.f32 %v6830, %v7023
  %v7124 = vadd.f32 %v6831, %v7028
  %v7125 = vadd.f32 %v6832, %v7031
  %v7126 = vadd.f32 %v6833, %v7036
  %v7127 = vadd.f32 %v6834, %v7039
  %v7128 = vadd.f32 %v6835, %v7044
  %v7129 = vadd.f32 %v6836, %v7047
  %v7130 = vadd.f32 %v6837, %v7052
  %v7131 = vadd.f32 %v6838, %v7055
  %v7132 = vadd.f32 %v6839, %v7060
  %v7133 = vadd.f32 %v6840, %v7063
  %v7134 = vadd.f32 %v6841, %v7068
  %v7135 = vadd.f32 %v6842, %v7071
  %v7136 = vadd.f32 %v6843, %v7076
  %v7137 = vadd.f32 %v6844, %v7079
  %v7138 = vadd.f32 %v6845, %v7084
  %v7139 = vadd.f32 %v6846, %v7087
  %v7140 = vadd.f32 %v6847, %v7092
  %v7141 = vadd.f32 %v6848, %v7095
  %v7142 = vadd.f32 %v6849, %v7100
  %v7143 = vadd.f32 %v6850, %v7103
  %v7144 = vadd.f32 %v6851, %v7108
  %v7145 = vadd.f32 %v6852, %v7111
  %v7146 = vld [vmem:[#allocation2 + $0x22] sm:$0xff]
  %v7147 = vld [vmem:[#allocation2 + $0x2a] sm:$0xff]
  %v7148 = vld [vmem:[#allocation2 + $0x32] sm:$0xff]
  %v7149 = vld [vmem:[#allocation2 + $0x3a] sm:$0xff]
  %v7150 = vld [vmem:[#allocation2 + $0x42] sm:$0xff]
  %v7151 = vld [vmem:[#allocation2 + $0x4a] sm:$0xff]
  %v7152 = vld [vmem:[#allocation2 + $0x52] sm:$0xff]
  %v7153 = vld [vmem:[#allocation2 + $0x5a] sm:$0xff]
  %v7154 = vld [vmem:[#allocation2 + $0x62] sm:$0xff]
  %v7155 = vld [vmem:[#allocation2 + $0x6a] sm:$0xff]
  %v7156 = vld [vmem:[#allocation2 + $0x72] sm:$0xff]
  %v7157 = vld [vmem:[#allocation2 + $0x7a] sm:$0xff]
  %v7158 = vld [vmem:[#allocation2 + $0x82] sm:$0xff]
  %v7159 = vld [vmem:[#allocation2 + $0x8a] sm:$0xff]
  %v7160 = vld [vmem:[#allocation2 + $0x92] sm:$0xff]
  %v7161 = vld [vmem:[#allocation2 + $0x9a] sm:$0xff]
  %v7162 = vld [vmem:[#allocation2 + $0xa2] sm:$0xff]
  %v7163 = vld [vmem:[#allocation2 + $0xaa] sm:$0xff]
  %v7164 = vld [vmem:[#allocation2 + $0xb2] sm:$0xff]
  %v7165 = vld [vmem:[#allocation2 + $0xba] sm:$0xff]
  %v7166 = vld [vmem:[#allocation2 + $0xc2] sm:$0xff]
  %v7167 = vld [vmem:[#allocation2 + $0xca] sm:$0xff]
  %v7168 = vld [vmem:[#allocation2 + $0xd2] sm:$0xff]
  %v7169 = vld [vmem:[#allocation2 + $0xda] sm:$0xff]
  %v7170 = vld [vmem:[#allocation2 + $0xe2] sm:$0xff]
  %v7171 = vld [vmem:[#allocation2 + $0xea] sm:$0xff]
  %v7172 = vld [vmem:[#allocation2 + $0xf2] sm:$0xff]
  %v7173 = vld [vmem:[#allocation2 + $0xfa] sm:$0xff]
  %v7174 = vld [vmem:[#allocation2 + $0x102] sm:$0xff]
  %v7175 = vld [vmem:[#allocation2 + $0x10a] sm:$0xff]
  %v7176 = vld [vmem:[#allocation2 + $0x112] sm:$0xff]
  %v7177 = vld [vmem:[#allocation2 + $0x11a] sm:$0xff]
  %v7178 = vmul.f32 %v7146, %v1317
  %v7179 = vmul.f32 %v7147, %v1318
  %v7180 = vmul.f32 %v7148, %v1319
  %v7181 = vmul.f32 %v7149, %v1320
  %v7182 = vmul.f32 %v7150, %v1321
  %v7183 = vmul.f32 %v7151, %v1322
  %v7184 = vmul.f32 %v7152, %v1323
  %v7185 = vmul.f32 %v7153, %v1324
  %v7186 = vmul.f32 %v7154, %v1325
  %v7187 = vmul.f32 %v7155, %v1326
  %v7188 = vmul.f32 %v7156, %v1327
  %v7189 = vmul.f32 %v7157, %v1328
  %v7190 = vmul.f32 %v7158, %v1329
  %v7191 = vmul.f32 %v7159, %v1330
  %v7192 = vmul.f32 %v7160, %v1331
  %v7193 = vmul.f32 %v7161, %v1332
  %v7194 = vmul.f32 %v7162, %v1333
  %v7195 = vmul.f32 %v7163, %v1334
  %v7196 = vmul.f32 %v7164, %v1335
  %v7197 = vmul.f32 %v7165, %v1336
  %v7198 = vmul.f32 %v7166, %v1337
  %v7199 = vmul.f32 %v7167, %v1338
  %v7200 = vmul.f32 %v7168, %v1339
  %v7201 = vmul.f32 %v7169, %v1340
  %v7202 = vmul.f32 %v7170, %v1341
  %v7203 = vmul.f32 %v7171, %v1342
  %v7204 = vmul.f32 %v7172, %v1343
  %v7205 = vmul.f32 %v7173, %v1344
  %v7206 = vmul.f32 %v7174, %v1345
  %v7207 = vmul.f32 %v7175, %v1346
  %v7208 = vmul.f32 %v7176, %v1347
  %v7209 = vmul.f32 %v7177, %v1348
  %v7210 = vpack.c.bf16 %v7179, %v7178
  %v7211 = vpack.c.bf16 %v7181, %v7180
  %v7212 = vpack.c.bf16 %v7183, %v7182
  %v7213 = vpack.c.bf16 %v7185, %v7184
  %v7214 = vpack.c.bf16 %v7187, %v7186
  %v7215 = vpack.c.bf16 %v7189, %v7188
  %v7216 = vpack.c.bf16 %v7191, %v7190
  %v7217 = vpack.c.bf16 %v7193, %v7192
  %v7218 = vpack.c.bf16 %v7195, %v7194
  %v7219 = vpack.c.bf16 %v7197, %v7196
  %v7220 = vpack.c.bf16 %v7199, %v7198
  %v7221 = vpack.c.bf16 %v7201, %v7200
  %v7222 = vpack.c.bf16 %v7203, %v7202
  %v7223 = vpack.c.bf16 %v7205, %v7204
  %v7224 = vpack.c.bf16 %v7207, %v7206
  %v7225 = vpack.c.bf16 %v7209, %v7208
  %v7226 = vld [vmem:[%s4 + $0x20] sm:$0xf]
  %v7228 = vsel %vm1349, %v7210, 0
  %v7231 = vsel %vm1349, %v7211, 0
  %v7234 = vsel %vm1349, %v7212, 0
  %v7237 = vsel %vm1349, %v7213, 0
  %v7240 = vsel %vm1349, %v7214, 0
  %v7243 = vsel %vm1349, %v7215, 0
  %v7246 = vsel %vm1349, %v7216, 0
  %v7249 = vsel %vm1349, %v7217, 0
  %v7252 = vsel %vm1349, %v7218, 0
  %v7255 = vsel %vm1349, %v7219, 0
  %v7258 = vsel %vm1349, %v7220, 0
  %v7261 = vsel %vm1349, %v7221, 0
  %v7264 = vsel %vm1349, %v7222, 0
  %v7267 = vsel %vm1349, %v7223, 0
  %v7270 = vsel %vm1349, %v7224, 0
  %v7273 = vsel %vm1349, %v7225, 0
  %v7276 = vsel %vm1567, %v7226, 0
  %7278 = vmatprep.subr.bf16.mxu0 0
  %7279 = vmatpush1.bf16.msra.mxu0 0
  %7280 = vmatprep.subr.bf16.mxu0 0
  %7281 = vmatpush1.bf16.msra.mxu0 0
  %7282 = vmatprep.subr.bf16.mxu0 0
  %7283 = vmatpush1.bf16.msra.mxu0 0
  %7284 = vmatprep.subr.bf16.mxu0 0
  %7285 = vmatpush1.bf16.msra.mxu0 0
  %7286 = vmatprep.subr.bf16.mxu0 0
  %7287 = vmatpush1.bf16.msra.mxu0 0
  %7288 = vmatprep.subr.bf16.mxu0 0
  %7289 = vmatpush1.bf16.msra.mxu0 0
  %7290 = vmatprep.subr.bf16.mxu0 0
  %7291 = vmatpush1.bf16.msra.mxu0 0
  %7292 = vmatprep.subr.bf16.mxu0 0
  %7293 = vmatpush1.bf16.msra.mxu0 %v7276
  %7294 = vmatprep.subr.bf16.mxu0 0
  %7295 = vmatpush2.bf16.msra.mxu0 0
  %7296 = vmatprep.subr.bf16.mxu0 0
  %7297 = vmatpush2.bf16.msra.mxu0 0
  %7298 = vmatprep.subr.bf16.mxu0 0
  %7299 = vmatpush2.bf16.msra.mxu0 0
  %7300 = vmatprep.subr.bf16.mxu0 0
  %7301 = vmatpush2.bf16.msra.mxu0 0
  %7302 = vmatprep.subr.bf16.mxu0 0
  %7303 = vmatpush2.bf16.msra.mxu0 0
  %7304 = vmatprep.subr.bf16.mxu0 0
  %7305 = vmatpush2.bf16.msra.mxu0 0
  %7306 = vmatprep.subr.bf16.mxu0 0
  %7307 = vmatpush2.bf16.msra.mxu0 0
  %7308 = vmatprep.subr.bf16.mxu0 0
  %7309 = vmatpush2.bf16.msra.mxu0 0
  %7310 = vmatprep.mubr.bf16.mxu0 0
  %7311 = vmatmul.mubr.bf16.gmra.mxu0 %v7228
  %v7312 = vpop.f32.mrf.mxu0
  %v7313 = vadd.f32 0.0, %v7312
  %v7314 = vpop.f32.mrf.mxu0
  %v7315 = vpop.f32.mrf.mxu0
  %v7316 = vadd.f32 0.0, %v7315
  %v7317 = vpop.f32.mrf.mxu0
  %7318 = vmatprep.mubr.bf16.mxu0 0
  %7319 = vmatmul.mubr.bf16.gmra.mxu0 %v7231
  %v7320 = vpop.f32.mrf.mxu0
  %v7321 = vadd.f32 0.0, %v7320
  %v7322 = vpop.f32.mrf.mxu0
  %v7323 = vpop.f32.mrf.mxu0
  %v7324 = vadd.f32 0.0, %v7323
  %v7325 = vpop.f32.mrf.mxu0
  %7326 = vmatprep.mubr.bf16.mxu0 0
  %7327 = vmatmul.mubr.bf16.gmra.mxu0 %v7234
  %v7328 = vpop.f32.mrf.mxu0
  %v7329 = vadd.f32 0.0, %v7328
  %v7330 = vpop.f32.mrf.mxu0
  %v7331 = vpop.f32.mrf.mxu0
  %v7332 = vadd.f32 0.0, %v7331
  %v7333 = vpop.f32.mrf.mxu0
  %7334 = vmatprep.mubr.bf16.mxu0 0
  %7335 = vmatmul.mubr.bf16.gmra.mxu0 %v7237
  %v7336 = vpop.f32.mrf.mxu0
  %v7337 = vadd.f32 0.0, %v7336
  %v7338 = vpop.f32.mrf.mxu0
  %v7339 = vpop.f32.mrf.mxu0
  %v7340 = vadd.f32 0.0, %v7339
  %v7341 = vpop.f32.mrf.mxu0
  %7342 = vmatprep.mubr.bf16.mxu0 0
  %7343 = vmatmul.mubr.bf16.gmra.mxu0 %v7240
  %v7344 = vpop.f32.mrf.mxu0
  %v7345 = vadd.f32 0.0, %v7344
  %v7346 = vpop.f32.mrf.mxu0
  %v7347 = vpop.f32.mrf.mxu0
  %v7348 = vadd.f32 0.0, %v7347
  %v7349 = vpop.f32.mrf.mxu0
  %7350 = vmatprep.mubr.bf16.mxu0 0
  %7351 = vmatmul.mubr.bf16.gmra.mxu0 %v7243
  %v7352 = vpop.f32.mrf.mxu0
  %v7353 = vadd.f32 0.0, %v7352
  %v7354 = vpop.f32.mrf.mxu0
  %v7355 = vpop.f32.mrf.mxu0
  %v7356 = vadd.f32 0.0, %v7355
  %v7357 = vpop.f32.mrf.mxu0
  %7358 = vmatprep.mubr.bf16.mxu0 0
  %7359 = vmatmul.mubr.bf16.gmra.mxu0 %v7246
  %v7360 = vpop.f32.mrf.mxu0
  %v7361 = vadd.f32 0.0, %v7360
  %v7362 = vpop.f32.mrf.mxu0
  %v7363 = vpop.f32.mrf.mxu0
  %v7364 = vadd.f32 0.0, %v7363
  %v7365 = vpop.f32.mrf.mxu0
  %7366 = vmatprep.mubr.bf16.mxu0 0
  %7367 = vmatmul.mubr.bf16.gmra.mxu0 %v7249
  %v7368 = vpop.f32.mrf.mxu0
  %v7369 = vadd.f32 0.0, %v7368
  %v7370 = vpop.f32.mrf.mxu0
  %v7371 = vpop.f32.mrf.mxu0
  %v7372 = vadd.f32 0.0, %v7371
  %v7373 = vpop.f32.mrf.mxu0
  %7374 = vmatprep.mubr.bf16.mxu0 0
  %7375 = vmatmul.mubr.bf16.gmra.mxu0 %v7252
  %v7376 = vpop.f32.mrf.mxu0
  %v7377 = vadd.f32 0.0, %v7376
  %v7378 = vpop.f32.mrf.mxu0
  %v7379 = vpop.f32.mrf.mxu0
  %v7380 = vadd.f32 0.0, %v7379
  %v7381 = vpop.f32.mrf.mxu0
  %7382 = vmatprep.mubr.bf16.mxu0 0
  %7383 = vmatmul.mubr.bf16.gmra.mxu0 %v7255
  %v7384 = vpop.f32.mrf.mxu0
  %v7385 = vadd.f32 0.0, %v7384
  %v7386 = vpop.f32.mrf.mxu0
  %v7387 = vpop.f32.mrf.mxu0
  %v7388 = vadd.f32 0.0, %v7387
  %v7389 = vpop.f32.mrf.mxu0
  %7390 = vmatprep.mubr.bf16.mxu0 0
  %7391 = vmatmul.mubr.bf16.gmra.mxu0 %v7258
  %v7392 = vpop.f32.mrf.mxu0
  %v7393 = vadd.f32 0.0, %v7392
  %v7394 = vpop.f32.mrf.mxu0
  %v7395 = vpop.f32.mrf.mxu0
  %v7396 = vadd.f32 0.0, %v7395
  %v7397 = vpop.f32.mrf.mxu0
  %7398 = vmatprep.mubr.bf16.mxu0 0
  %7399 = vmatmul.mubr.bf16.gmra.mxu0 %v7261
  %v7400 = vpop.f32.mrf.mxu0
  %v7401 = vadd.f32 0.0, %v7400
  %v7402 = vpop.f32.mrf.mxu0
  %v7403 = vpop.f32.mrf.mxu0
  %v7404 = vadd.f32 0.0, %v7403
  %v7405 = vpop.f32.mrf.mxu0
  %7406 = vmatprep.mubr.bf16.mxu0 0
  %7407 = vmatmul.mubr.bf16.gmra.mxu0 %v7264
  %v7408 = vpop.f32.mrf.mxu0
  %v7409 = vadd.f32 0.0, %v7408
  %v7410 = vpop.f32.mrf.mxu0
  %v7411 = vpop.f32.mrf.mxu0
  %v7412 = vadd.f32 0.0, %v7411
  %v7413 = vpop.f32.mrf.mxu0
  %7414 = vmatprep.mubr.bf16.mxu0 0
  %7415 = vmatmul.mubr.bf16.gmra.mxu0 %v7267
  %v7416 = vpop.f32.mrf.mxu0
  %v7417 = vadd.f32 0.0, %v7416
  %v7418 = vpop.f32.mrf.mxu0
  %v7419 = vpop.f32.mrf.mxu0
  %v7420 = vadd.f32 0.0, %v7419
  %v7421 = vpop.f32.mrf.mxu0
  %7422 = vmatprep.mubr.bf16.mxu0 0
  %7423 = vmatmul.mubr.bf16.gmra.mxu0 %v7270
  %v7424 = vpop.f32.mrf.mxu0
  %v7425 = vadd.f32 0.0, %v7424
  %v7426 = vpop.f32.mrf.mxu0
  %v7427 = vpop.f32.mrf.mxu0
  %v7428 = vadd.f32 0.0, %v7427
  %v7429 = vpop.f32.mrf.mxu0
  %7430 = vmatprep.mubr.bf16.mxu0 0
  %7431 = vmatmul.mubr.bf16.gmra.mxu0 %v7273
  %v7432 = vpop.f32.mrf.mxu0
  %v7433 = vadd.f32 0.0, %v7432
  %v7434 = vpop.f32.mrf.mxu0
  %v7435 = vpop.f32.mrf.mxu0
  %v7436 = vadd.f32 0.0, %v7435
  %v7437 = vpop.f32.mrf.mxu0
  %7438 = vdwg.mxu0
  %v7439 = vadd.f32 %v7114, %v7313
  %v7440 = vadd.f32 %v7115, %v7316
  %v7441 = vadd.f32 %v7116, %v7321
  %v7442 = vadd.f32 %v7117, %v7324
  %v7443 = vadd.f32 %v7118, %v7329
  %v7444 = vadd.f32 %v7119, %v7332
  %v7445 = vadd.f32 %v7120, %v7337
  %v7446 = vadd.f32 %v7121, %v7340
  %v7447 = vadd.f32 %v7122, %v7345
  %v7448 = vadd.f32 %v7123, %v7348
  %v7449 = vadd.f32 %v7124, %v7353
  %v7450 = vadd.f32 %v7125, %v7356
  %v7451 = vadd.f32 %v7126, %v7361
  %v7452 = vadd.f32 %v7127, %v7364
  %v7453 = vadd.f32 %v7128, %v7369
  %v7454 = vadd.f32 %v7129, %v7372
  %v7455 = vadd.f32 %v7130, %v7377
  %v7456 = vadd.f32 %v7131, %v7380
  %v7457 = vadd.f32 %v7132, %v7385
  %v7458 = vadd.f32 %v7133, %v7388
  %v7459 = vadd.f32 %v7134, %v7393
  %v7460 = vadd.f32 %v7135, %v7396
  %v7461 = vadd.f32 %v7136, %v7401
  %v7462 = vadd.f32 %v7137, %v7404
  %v7463 = vadd.f32 %v7138, %v7409
  %v7464 = vadd.f32 %v7139, %v7412
  %v7465 = vadd.f32 %v7140, %v7417
  %v7466 = vadd.f32 %v7141, %v7420
  %v7467 = vadd.f32 %v7142, %v7425
  %v7468 = vadd.f32 %v7143, %v7428
  %v7469 = vadd.f32 %v7144, %v7433
  %v7470 = vadd.f32 %v7145, %v7436
  %v7471 = vld [vmem:[%s5] sm:$0x1]
  %v7473 = vlaneseq
  %v7474 = vshrl.u32 %v7473, 7
  %v7475 = vsub.s32 0, %v7474
  %v7476 = vrot.slane %v7471, %v7475
  %v7478 = vmul.f32 %v7439, %v7476
  %v7479 = vmul.f32 %v7440, %v7476
  %v7480 = vmul.f32 %v7441, %v7476
  %v7481 = vmul.f32 %v7442, %v7476
  %v7482 = vmul.f32 %v7443, %v7476
  %v7483 = vmul.f32 %v7444, %v7476
  %v7484 = vmul.f32 %v7445, %v7476
  %v7485 = vmul.f32 %v7446, %v7476
  %v7486 = vmul.f32 %v7447, %v7476
  %v7487 = vmul.f32 %v7448, %v7476
  %v7488 = vmul.f32 %v7449, %v7476
  %v7489 = vmul.f32 %v7450, %v7476
  %v7490 = vmul.f32 %v7451, %v7476
  %v7491 = vmul.f32 %v7452, %v7476
  %v7492 = vmul.f32 %v7453, %v7476
  %v7493 = vmul.f32 %v7454, %v7476
  %v7494 = vmul.f32 %v7455, %v7476
  %v7495 = vmul.f32 %v7456, %v7476
  %v7496 = vmul.f32 %v7457, %v7476
  %v7497 = vmul.f32 %v7458, %v7476
  %v7498 = vmul.f32 %v7459, %v7476
  %v7499 = vmul.f32 %v7460, %v7476
  %v7500 = vmul.f32 %v7461, %v7476
  %v7501 = vmul.f32 %v7462, %v7476
  %v7502 = vmul.f32 %v7463, %v7476
  %v7503 = vmul.f32 %v7464, %v7476
  %v7504 = vmul.f32 %v7465, %v7476
  %v7505 = vmul.f32 %v7466, %v7476
  %v7506 = vmul.f32 %v7467, %v7476
  %v7507 = vmul.f32 %v7468, %v7476
  %v7508 = vmul.f32 %v7469, %v7476
  %v7509 = vmul.f32 %v7470, %v7476
  %v7510 = vld [vmem:[%s6] sm:$0x1]
  %v7512 = vlaneseq
  %v7513 = vshrl.u32 %v7512, 7
  %v7514 = vsub.s32 0, %v7513
  %v7515 = vrot.slane %v7510, %v7514
  %v7517 = vadd.f32 %v7478, %v7515
  %v7518 = vadd.f32 %v7479, %v7515
  %v7519 = vadd.f32 %v7480, %v7515
  %v7520 = vadd.f32 %v7481, %v7515
  %v7521 = vadd.f32 %v7482, %v7515
  %v7522 = vadd.f32 %v7483, %v7515
  %v7523 = vadd.f32 %v7484, %v7515
  %v7524 = vadd.f32 %v7485, %v7515
  %v7525 = vadd.f32 %v7486, %v7515
  %v7526 = vadd.f32 %v7487, %v7515
  %v7527 = vadd.f32 %v7488, %v7515
  %v7528 = vadd.f32 %v7489, %v7515
  %v7529 = vadd.f32 %v7490, %v7515
  %v7530 = vadd.f32 %v7491, %v7515
  %v7531 = vadd.f32 %v7492, %v7515
  %v7532 = vadd.f32 %v7493, %v7515
  %v7533 = vadd.f32 %v7494, %v7515
  %v7534 = vadd.f32 %v7495, %v7515
  %v7535 = vadd.f32 %v7496, %v7515
  %v7536 = vadd.f32 %v7497, %v7515
  %v7537 = vadd.f32 %v7498, %v7515
  %v7538 = vadd.f32 %v7499, %v7515
  %v7539 = vadd.f32 %v7500, %v7515
  %v7540 = vadd.f32 %v7501, %v7515
  %v7541 = vadd.f32 %v7502, %v7515
  %v7542 = vadd.f32 %v7503, %v7515
  %v7543 = vadd.f32 %v7504, %v7515
  %v7544 = vadd.f32 %v7505, %v7515
  %v7545 = vadd.f32 %v7506, %v7515
  %v7546 = vadd.f32 %v7507, %v7515
  %v7547 = vadd.f32 %v7508, %v7515
  %v7548 = vadd.f32 %v7509, %v7515
  %v7549 = vmax.f32 %v7517, 0.0
  %v7550 = vmax.f32 %v7518, 0.0
  %v7551 = vmax.f32 %v7519, 0.0
  %v7552 = vmax.f32 %v7520, 0.0
  %v7553 = vmax.f32 %v7521, 0.0
  %v7554 = vmax.f32 %v7522, 0.0
  %v7555 = vmax.f32 %v7523, 0.0
  %v7556 = vmax.f32 %v7524, 0.0
  %v7557 = vmax.f32 %v7525, 0.0
  %v7558 = vmax.f32 %v7526, 0.0
  %v7559 = vmax.f32 %v7527, 0.0
  %v7560 = vmax.f32 %v7528, 0.0
  %v7561 = vmax.f32 %v7529, 0.0
  %v7562 = vmax.f32 %v7530, 0.0
  %v7563 = vmax.f32 %v7531, 0.0
  %v7564 = vmax.f32 %v7532, 0.0
  %v7565 = vmax.f32 %v7533, 0.0
  %v7566 = vmax.f32 %v7534, 0.0
  %v7567 = vmax.f32 %v7535, 0.0
  %v7568 = vmax.f32 %v7536, 0.0
  %v7569 = vmax.f32 %v7537, 0.0
  %v7570 = vmax.f32 %v7538, 0.0
  %v7571 = vmax.f32 %v7539, 0.0
  %v7572 = vmax.f32 %v7540, 0.0
  %v7573 = vmax.f32 %v7541, 0.0
  %v7574 = vmax.f32 %v7542, 0.0
  %v7575 = vmax.f32 %v7543, 0.0
  %v7576 = vmax.f32 %v7544, 0.0
  %v7577 = vmax.f32 %v7545, 0.0
  %v7578 = vmax.f32 %v7546, 0.0
  %v7579 = vmax.f32 %v7547, 0.0
  %v7580 = vmax.f32 %v7548, 0.0
  %v7581 = vpack.c.bf16 %v7550, %v7549
  %v7582 = vpack.c.bf16 %v7552, %v7551
  %v7583 = vpack.c.bf16 %v7554, %v7553
  %v7584 = vpack.c.bf16 %v7556, %v7555
  %v7585 = vpack.c.bf16 %v7558, %v7557
  %v7586 = vpack.c.bf16 %v7560, %v7559
  %v7587 = vpack.c.bf16 %v7562, %v7561
  %v7588 = vpack.c.bf16 %v7564, %v7563
  %v7589 = vpack.c.bf16 %v7566, %v7565
  %v7590 = vpack.c.bf16 %v7568, %v7567
  %v7591 = vpack.c.bf16 %v7570, %v7569
  %v7592 = vpack.c.bf16 %v7572, %v7571
  %v7593 = vpack.c.bf16 %v7574, %v7573
  %v7594 = vpack.c.bf16 %v7576, %v7575
  %v7595 = vpack.c.bf16 %v7578, %v7577
  %v7596 = vpack.c.bf16 %v7580, %v7579
  %v7597 = vld [vmem:[%s7] sm:$0xf]
  %v7599 = vsel %vm1349, %v7581, 0
  %v7602 = vsel %vm1349, %v7582, 0
  %v7605 = vsel %vm1349, %v7583, 0
  %v7608 = vsel %vm1349, %v7584, 0
  %v7611 = vsel %vm1349, %v7585, 0
  %v7614 = vsel %vm1349, %v7586, 0
  %v7617 = vsel %vm1349, %v7587, 0
  %v7620 = vsel %vm1349, %v7588, 0
  %v7623 = vsel %vm1349, %v7589, 0
  %v7626 = vsel %vm1349, %v7590, 0
  %v7629 = vsel %vm1349, %v7591, 0
  %v7632 = vsel %vm1349, %v7592, 0
  %v7635 = vsel %vm1349, %v7593, 0
  %v7638 = vsel %vm1349, %v7594, 0
  %v7641 = vsel %vm1349, %v7595, 0
  %v7644 = vsel %vm1349, %v7596, 0
  %v7647 = vsel %vm1567, %v7597, 0
  %7649 = vmatprep.subr.bf16.mxu0 0
  %7650 = vmatpush1.bf16.msra.mxu0 0
  %7651 = vmatprep.subr.bf16.mxu0 0
  %7652 = vmatpush1.bf16.msra.mxu0 0
  %7653 = vmatprep.subr.bf16.mxu0 0
  %7654 = vmatpush1.bf16.msra.mxu0 0
  %7655 = vmatprep.subr.bf16.mxu0 0
  %7656 = vmatpush1.bf16.msra.mxu0 0
  %7657 = vmatprep.subr.bf16.mxu0 0
  %7658 = vmatpush1.bf16.msra.mxu0 0
  %7659 = vmatprep.subr.bf16.mxu0 0
  %7660 = vmatpush1.bf16.msra.mxu0 0
  %7661 = vmatprep.subr.bf16.mxu0 0
  %7662 = vmatpush1.bf16.msra.mxu0 0
  %7663 = vmatprep.subr.bf16.mxu0 0
  %7664 = vmatpush1.bf16.msra.mxu0 %v7647
  %7665 = vmatprep.subr.bf16.mxu0 0
  %7666 = vmatpush2.bf16.msra.mxu0 0
  %7667 = vmatprep.subr.bf16.mxu0 0
  %7668 = vmatpush2.bf16.msra.mxu0 0
  %7669 = vmatprep.subr.bf16.mxu0 0
  %7670 = vmatpush2.bf16.msra.mxu0 0
  %7671 = vmatprep.subr.bf16.mxu0 0
  %7672 = vmatpush2.bf16.msra.mxu0 0
  %7673 = vmatprep.subr.bf16.mxu0 0
  %7674 = vmatpush2.bf16.msra.mxu0 0
  %7675 = vmatprep.subr.bf16.mxu0 0
  %7676 = vmatpush2.bf16.msra.mxu0 0
  %7677 = vmatprep.subr.bf16.mxu0 0
  %7678 = vmatpush2.bf16.msra.mxu0 0
  %7679 = vmatprep.subr.bf16.mxu0 0
  %7680 = vmatpush2.bf16.msra.mxu0 0
  %7681 = vmatprep.mubr.bf16.mxu0 0
  %7682 = vmatmul.mubr.bf16.gmra.mxu0 %v7599
  %v7683 = vpop.f32.mrf.mxu0
  %v7684 = vadd.f32 0.0, %v7683
  %v7685 = vpop.f32.mrf.mxu0
  %v7686 = vpop.f32.mrf.mxu0
  %v7687 = vadd.f32 0.0, %v7686
  %v7688 = vpop.f32.mrf.mxu0
  %7689 = vmatprep.mubr.bf16.mxu0 0
  %7690 = vmatmul.mubr.bf16.gmra.mxu0 %v7602
  %v7691 = vpop.f32.mrf.mxu0
  %v7692 = vadd.f32 0.0, %v7691
  %v7693 = vpop.f32.mrf.mxu0
  %v7694 = vpop.f32.mrf.mxu0
  %v7695 = vadd.f32 0.0, %v7694
  %v7696 = vpop.f32.mrf.mxu0
  %7697 = vmatprep.mubr.bf16.mxu0 0
  %7698 = vmatmul.mubr.bf16.gmra.mxu0 %v7605
  %v7699 = vpop.f32.mrf.mxu0
  %v7700 = vadd.f32 0.0, %v7699
  %v7701 = vpop.f32.mrf.mxu0
  %v7702 = vpop.f32.mrf.mxu0
  %v7703 = vadd.f32 0.0, %v7702
  %v7704 = vpop.f32.mrf.mxu0
  %7705 = vmatprep.mubr.bf16.mxu0 0
  %7706 = vmatmul.mubr.bf16.gmra.mxu0 %v7608
  %v7707 = vpop.f32.mrf.mxu0
  %v7708 = vadd.f32 0.0, %v7707
  %v7709 = vpop.f32.mrf.mxu0
  %v7710 = vpop.f32.mrf.mxu0
  %v7711 = vadd.f32 0.0, %v7710
  %v7712 = vpop.f32.mrf.mxu0
  %7713 = vmatprep.mubr.bf16.mxu0 0
  %7714 = vmatmul.mubr.bf16.gmra.mxu0 %v7611
  %v7715 = vpop.f32.mrf.mxu0
  %v7716 = vadd.f32 0.0, %v7715
  %v7717 = vpop.f32.mrf.mxu0
  %v7718 = vpop.f32.mrf.mxu0
  %v7719 = vadd.f32 0.0, %v7718
  %v7720 = vpop.f32.mrf.mxu0
  %7721 = vmatprep.mubr.bf16.mxu0 0
  %7722 = vmatmul.mubr.bf16.gmra.mxu0 %v7614
  %v7723 = vpop.f32.mrf.mxu0
  %v7724 = vadd.f32 0.0, %v7723
  %v7725 = vpop.f32.mrf.mxu0
  %v7726 = vpop.f32.mrf.mxu0
  %v7727 = vadd.f32 0.0, %v7726
  %v7728 = vpop.f32.mrf.mxu0
  %7729 = vmatprep.mubr.bf16.mxu0 0
  %7730 = vmatmul.mubr.bf16.gmra.mxu0 %v7617
  %v7731 = vpop.f32.mrf.mxu0
  %v7732 = vadd.f32 0.0, %v7731
  %v7733 = vpop.f32.mrf.mxu0
  %v7734 = vpop.f32.mrf.mxu0
  %v7735 = vadd.f32 0.0, %v7734
  %v7736 = vpop.f32.mrf.mxu0
  %7737 = vmatprep.mubr.bf16.mxu0 0
  %7738 = vmatmul.mubr.bf16.gmra.mxu0 %v7620
  %v7739 = vpop.f32.mrf.mxu0
  %v7740 = vadd.f32 0.0, %v7739
  %v7741 = vpop.f32.mrf.mxu0
  %v7742 = vpop.f32.mrf.mxu0
  %v7743 = vadd.f32 0.0, %v7742
  %v7744 = vpop.f32.mrf.mxu0
  %7745 = vmatprep.mubr.bf16.mxu0 0
  %7746 = vmatmul.mubr.bf16.gmra.mxu0 %v7623
  %v7747 = vpop.f32.mrf.mxu0
  %v7748 = vadd.f32 0.0, %v7747
  %v7749 = vpop.f32.mrf.mxu0
  %v7750 = vpop.f32.mrf.mxu0
  %v7751 = vadd.f32 0.0, %v7750
  %v7752 = vpop.f32.mrf.mxu0
  %7753 = vmatprep.mubr.bf16.mxu0 0
  %7754 = vmatmul.mubr.bf16.gmra.mxu0 %v7626
  %v7755 = vpop.f32.mrf.mxu0
  %v7756 = vadd.f32 0.0, %v7755
  %v7757 = vpop.f32.mrf.mxu0
  %v7758 = vpop.f32.mrf.mxu0
  %v7759 = vadd.f32 0.0, %v7758
  %v7760 = vpop.f32.mrf.mxu0
  %7761 = vmatprep.mubr.bf16.mxu0 0
  %7762 = vmatmul.mubr.bf16.gmra.mxu0 %v7629
  %v7763 = vpop.f32.mrf.mxu0
  %v7764 = vadd.f32 0.0, %v7763
  %v7765 = vpop.f32.mrf.mxu0
  %v7766 = vpop.f32.mrf.mxu0
  %v7767 = vadd.f32 0.0, %v7766
  %v7768 = vpop.f32.mrf.mxu0
  %7769 = vmatprep.mubr.bf16.mxu0 0
  %7770 = vmatmul.mubr.bf16.gmra.mxu0 %v7632
  %v7771 = vpop.f32.mrf.mxu0
  %v7772 = vadd.f32 0.0, %v7771
  %v7773 = vpop.f32.mrf.mxu0
  %v7774 = vpop.f32.mrf.mxu0
  %v7775 = vadd.f32 0.0, %v7774
  %v7776 = vpop.f32.mrf.mxu0
  %7777 = vmatprep.mubr.bf16.mxu0 0
  %7778 = vmatmul.mubr.bf16.gmra.mxu0 %v7635
  %v7779 = vpop.f32.mrf.mxu0
  %v7780 = vadd.f32 0.0, %v7779
  %v7781 = vpop.f32.mrf.mxu0
  %v7782 = vpop.f32.mrf.mxu0
  %v7783 = vadd.f32 0.0, %v7782
  %v7784 = vpop.f32.mrf.mxu0
  %7785 = vmatprep.mubr.bf16.mxu0 0
  %7786 = vmatmul.mubr.bf16.gmra.mxu0 %v7638
  %v7787 = vpop.f32.mrf.mxu0
  %v7788 = vadd.f32 0.0, %v7787
  %v7789 = vpop.f32.mrf.mxu0
  %v7790 = vpop.f32.mrf.mxu0
  %v7791 = vadd.f32 0.0, %v7790
  %v7792 = vpop.f32.mrf.mxu0
  %7793 = vmatprep.mubr.bf16.mxu0 0
  %7794 = vmatmul.mubr.bf16.gmra.mxu0 %v7641
  %v7795 = vpop.f32.mrf.mxu0
  %v7796 = vadd.f32 0.0, %v7795
  %v7797 = vpop.f32.mrf.mxu0
  %v7798 = vpop.f32.mrf.mxu0
  %v7799 = vadd.f32 0.0, %v7798
  %v7800 = vpop.f32.mrf.mxu0
  %7801 = vmatprep.mubr.bf16.mxu0 0
  %7802 = vmatmul.mubr.bf16.gmra.mxu0 %v7644
  %v7803 = vpop.f32.mrf.mxu0
  %v7804 = vadd.f32 0.0, %v7803
  %v7805 = vpop.f32.mrf.mxu0
  %v7806 = vpop.f32.mrf.mxu0
  %v7807 = vadd.f32 0.0, %v7806
  %v7808 = vpop.f32.mrf.mxu0
  %7809 = vdwg.mxu0
  %v7810 = vld [vmem:[%s8] sm:$0x1]
  %v7812 = vlaneseq
  %v7813 = vshrl.u32 %v7812, 7
  %v7814 = vsub.s32 0, %v7813
  %v7815 = vrot.slane %v7810, %v7814
  %v7817 = vmul.f32 %v7684, %v7815
  %v7818 = vmul.f32 %v7687, %v7815
  %v7819 = vmul.f32 %v7692, %v7815
  %v7820 = vmul.f32 %v7695, %v7815
  %v7821 = vmul.f32 %v7700, %v7815
  %v7822 = vmul.f32 %v7703, %v7815
  %v7823 = vmul.f32 %v7708, %v7815
  %v7824 = vmul.f32 %v7711, %v7815
  %v7825 = vmul.f32 %v7716, %v7815
  %v7826 = vmul.f32 %v7719, %v7815
  %v7827 = vmul.f32 %v7724, %v7815
  %v7828 = vmul.f32 %v7727, %v7815
  %v7829 = vmul.f32 %v7732, %v7815
  %v7830 = vmul.f32 %v7735, %v7815
  %v7831 = vmul.f32 %v7740, %v7815
  %v7832 = vmul.f32 %v7743, %v7815
  %v7833 = vmul.f32 %v7748, %v7815
  %v7834 = vmul.f32 %v7751, %v7815
  %v7835 = vmul.f32 %v7756, %v7815
  %v7836 = vmul.f32 %v7759, %v7815
  %v7837 = vmul.f32 %v7764, %v7815
  %v7838 = vmul.f32 %v7767, %v7815
  %v7839 = vmul.f32 %v7772, %v7815
  %v7840 = vmul.f32 %v7775, %v7815
  %v7841 = vmul.f32 %v7780, %v7815
  %v7842 = vmul.f32 %v7783, %v7815
  %v7843 = vmul.f32 %v7788, %v7815
  %v7844 = vmul.f32 %v7791, %v7815
  %v7845 = vmul.f32 %v7796, %v7815
  %v7846 = vmul.f32 %v7799, %v7815
  %v7847 = vmul.f32 %v7804, %v7815
  %v7848 = vmul.f32 %v7807, %v7815
  %v7849 = vld [vmem:[%s9] sm:$0x1]
  %v7851 = vlaneseq
  %v7852 = vshrl.u32 %v7851, 7
  %v7853 = vsub.s32 0, %v7852
  %v7854 = vrot.slane %v7849, %v7853
  %v7856 = vadd.f32 %v7817, %v7854
  %v7857 = vadd.f32 %v7818, %v7854
  %v7858 = vadd.f32 %v7819, %v7854
  %v7859 = vadd.f32 %v7820, %v7854
  %v7860 = vadd.f32 %v7821, %v7854
  %v7861 = vadd.f32 %v7822, %v7854
  %v7862 = vadd.f32 %v7823, %v7854
  %v7863 = vadd.f32 %v7824, %v7854
  %v7864 = vadd.f32 %v7825, %v7854
  %v7865 = vadd.f32 %v7826, %v7854
  %v7866 = vadd.f32 %v7827, %v7854
  %v7867 = vadd.f32 %v7828, %v7854
  %v7868 = vadd.f32 %v7829, %v7854
  %v7869 = vadd.f32 %v7830, %v7854
  %v7870 = vadd.f32 %v7831, %v7854
  %v7871 = vadd.f32 %v7832, %v7854
  %v7872 = vadd.f32 %v7833, %v7854
  %v7873 = vadd.f32 %v7834, %v7854
  %v7874 = vadd.f32 %v7835, %v7854
  %v7875 = vadd.f32 %v7836, %v7854
  %v7876 = vadd.f32 %v7837, %v7854
  %v7877 = vadd.f32 %v7838, %v7854
  %v7878 = vadd.f32 %v7839, %v7854
  %v7879 = vadd.f32 %v7840, %v7854
  %v7880 = vadd.f32 %v7841, %v7854
  %v7881 = vadd.f32 %v7842, %v7854
  %v7882 = vadd.f32 %v7843, %v7854
  %v7883 = vadd.f32 %v7844, %v7854
  %v7884 = vadd.f32 %v7845, %v7854
  %v7885 = vadd.f32 %v7846, %v7854
  %v7886 = vadd.f32 %v7847, %v7854
  %v7887 = vadd.f32 %v7848, %v7854
  %v7888 = vadd.f32 %v7856, %v68
  %v7889 = vadd.f32 %v7857, %v69
  %v7890 = vadd.f32 %v7858, %v70
  %v7891 = vadd.f32 %v7859, %v71
  %v7892 = vadd.f32 %v7860, %v72
  %v7893 = vadd.f32 %v7861, %v73
  %v7894 = vadd.f32 %v7862, %v74
  %v7895 = vadd.f32 %v7863, %v75
  %v7896 = vadd.f32 %v7864, %v76
  %v7897 = vadd.f32 %v7865, %v77
  %v7898 = vadd.f32 %v7866, %v78
  %v7899 = vadd.f32 %v7867, %v79
  %v7900 = vadd.f32 %v7868, %v80
  %v7901 = vadd.f32 %v7869, %v81
  %v7902 = vadd.f32 %v7870, %v82
  %v7903 = vadd.f32 %v7871, %v83
  %v7904 = vadd.f32 %v7872, %v84
  %v7905 = vadd.f32 %v7873, %v85
  %v7906 = vadd.f32 %v7874, %v86
  %v7907 = vadd.f32 %v7875, %v87
  %v7908 = vadd.f32 %v7876, %v88
  %v7909 = vadd.f32 %v7877, %v89
  %v7910 = vadd.f32 %v7878, %v90
  %v7911 = vadd.f32 %v7879, %v91
  %v7912 = vadd.f32 %v7880, %v92
  %v7913 = vadd.f32 %v7881, %v93
  %v7914 = vadd.f32 %v7882, %v94
  %v7915 = vadd.f32 %v7883, %v95
  %v7916 = vadd.f32 %v7884, %v96
  %v7917 = vadd.f32 %v7885, %v97
  %v7918 = vadd.f32 %v7886, %v98
  %v7919 = vadd.f32 %v7887, %v99
  %v7920 = vmax.f32 %v7888, 0.0
  %v7921 = vmax.f32 %v7889, 0.0
  %v7922 = vmax.f32 %v7890, 0.0
  %v7923 = vmax.f32 %v7891, 0.0
  %v7924 = vmax.f32 %v7892, 0.0
  %v7925 = vmax.f32 %v7893, 0.0
  %v7926 = vmax.f32 %v7894, 0.0
  %v7927 = vmax.f32 %v7895, 0.0
  %v7928 = vmax.f32 %v7896, 0.0
  %v7929 = vmax.f32 %v7897, 0.0
  %v7930 = vmax.f32 %v7898, 0.0
  %v7931 = vmax.f32 %v7899, 0.0
  %v7932 = vmax.f32 %v7900, 0.0
  %v7933 = vmax.f32 %v7901, 0.0
  %v7934 = vmax.f32 %v7902, 0.0
  %v7935 = vmax.f32 %v7903, 0.0
  %v7936 = vmax.f32 %v7904, 0.0
  %v7937 = vmax.f32 %v7905, 0.0
  %v7938 = vmax.f32 %v7906, 0.0
  %v7939 = vmax.f32 %v7907, 0.0
  %v7940 = vmax.f32 %v7908, 0.0
  %v7941 = vmax.f32 %v7909, 0.0
  %v7942 = vmax.f32 %v7910, 0.0
  %v7943 = vmax.f32 %v7911, 0.0
  %v7944 = vmax.f32 %v7912, 0.0
  %v7945 = vmax.f32 %v7913, 0.0
  %v7946 = vmax.f32 %v7914, 0.0
  %v7947 = vmax.f32 %v7915, 0.0
  %v7948 = vmax.f32 %v7916, 0.0
  %v7949 = vmax.f32 %v7917, 0.0
  %v7950 = vmax.f32 %v7918, 0.0
  %v7951 = vmax.f32 %v7919, 0.0
  %7952 = vst.msk [vmem:[%s10 + $0x100] sm:$0xff] %vm148, %v7920
  %7953 = vst.msk [vmem:[%s10 + $0x108] sm:$0xff] %vm148, %v7921
  %7954 = vst.msk [vmem:[%s10 + $0x110] sm:$0xff] %vm148, %v7922
  %7955 = vst.msk [vmem:[%s10 + $0x118] sm:$0xff] %vm148, %v7923
  %7956 = vst.msk [vmem:[%s10 + $0x120] sm:$0xff] %vm148, %v7924
  %7957 = vst.msk [vmem:[%s10 + $0x128] sm:$0xff] %vm148, %v7925
  %7958 = vst.msk [vmem:[%s10 + $0x130] sm:$0xff] %vm148, %v7926
  %7959 = vst.msk [vmem:[%s10 + $0x138] sm:$0xff] %vm148, %v7927
  %7960 = vst.msk [vmem:[%s10 + $0x140] sm:$0xff] %vm148, %v7928
  %7961 = vst.msk [vmem:[%s10 + $0x148] sm:$0xff] %vm148, %v7929
  %7962 = vst.msk [vmem:[%s10 + $0x150] sm:$0xff] %vm148, %v7930
  %7963 = vst.msk [vmem:[%s10 + $0x158] sm:$0xff] %vm148, %v7931
  %7964 = vst.msk [vmem:[%s10 + $0x160] sm:$0xff] %vm148, %v7932
  %7965 = vst.msk [vmem:[%s10 + $0x168] sm:$0xff] %vm148, %v7933
  %7966 = vst.msk [vmem:[%s10 + $0x170] sm:$0xff] %vm148, %v7934
  %7967 = vst.msk [vmem:[%s10 + $0x178] sm:$0xff] %vm148, %v7935
  %7968 = vst.msk [vmem:[%s10 + $0x180] sm:$0xff] %vm148, %v7936
  %7969 = vst.msk [vmem:[%s10 + $0x188] sm:$0xff] %vm148, %v7937
  %7970 = vst.msk [vmem:[%s10 + $0x190] sm:$0xff] %vm148, %v7938
  %7971 = vst.msk [vmem:[%s10 + $0x198] sm:$0xff] %vm148, %v7939
  %7972 = vst.msk [vmem:[%s10 + $0x1a0] sm:$0xff] %vm148, %v7940
  %7973 = vst.msk [vmem:[%s10 + $0x1a8] sm:$0xff] %vm148, %v7941
  %7974 = vst.msk [vmem:[%s10 + $0x1b0] sm:$0xff] %vm148, %v7942
  %7975 = vst.msk [vmem:[%s10 + $0x1b8] sm:$0xff] %vm148, %v7943
  %7976 = vst.msk [vmem:[%s10 + $0x1c0] sm:$0xff] %vm148, %v7944
  %7977 = vst.msk [vmem:[%s10 + $0x1c8] sm:$0xff] %vm148, %v7945
  %7978 = vst.msk [vmem:[%s10 + $0x1d0] sm:$0xff] %vm148, %v7946
  %7979 = vst.msk [vmem:[%s10 + $0x1d8] sm:$0xff] %vm148, %v7947
  %7980 = vst.msk [vmem:[%s10 + $0x1e0] sm:$0xff] %vm148, %v7948
  %7981 = vst.msk [vmem:[%s10 + $0x1e8] sm:$0xff] %vm148, %v7949
  %7982 = vst.msk [vmem:[%s10 + $0x1f0] sm:$0xff] %vm148, %v7950
  %7983 = vst.msk [vmem:[%s10 + $0x1f8] sm:$0xff] %vm148, %v7951
  // Predicated region
  $region42: #{tpu_custom_call.1} parent=0 // pred_check
    _
  $region43: #{tpu_custom_call.1} parent=0 // pred_check_branch
    %7985 = sbr.rel (0) target = $region45
  $region44: #{tpu_custom_call.1} parent=0 // pred_region
    _
  $region45: #{tpu_custom_call.1} parent=0 // pred_fallthru
    _
  // Predicated region
  $region46: #{tpu_custom_call.1} parent=0 // pred_check
    _
  $region47: #{tpu_custom_call.1} parent=0 // pred_check_branch
    %7987 = sbr.rel (0) target = $region49
  $region48: #{tpu_custom_call.1} parent=0 // pred_region
    _
  $region49: #{tpu_custom_call.1} parent=0 // pred_fallthru
    _

</llo_original>
